<compile_context>
chip_gen: v7x
topology: tpu7x:2x2x1
jax: 0.10.0
libtpu: 0.0.40
codegen_flags: <defaults>
</compile_context>

<pallas_src>
import jax
import jax.numpy as jnp
from jax.experimental import pallas as pl
from jax.experimental.pallas import tpu as pltpu


# ----------------------------------------------------------------------------
# "hp" hyperparameters (small, deterministic, consistent with the module).
# baseline_type='CNN_BLSTM', attention_type='Self_Attention' (the only config
# whose shapes are internally consistent with self.dense's in_features).
# ----------------------------------------------------------------------------
class HP:
    num_classes = 32          # embedding vocab
    num_baseline_nodes = 16   # LSTM hidden size (per direction)
    lmfb_dim = 24             # acoustic feature dim (divisible by 3)
    frame_stacking = 0
    out_channels = 4
    num_emotion = 4
    batch_size = 2
    emb_dim = 300
    attn_hops = 8             # Self_Attention(8): structured self-attn, r = 8
    attn_da = 32              # internal attention hidden size


hp = HP


# ----------------------------------------------------------------------------
# Fused bidirectional LSTM layer: one launch per layer, in-kernel time loop.
# ----------------------------------------------------------------------------
def _bilstm_kernel(x_ref, wih_ref, whh_ref, b_ref, hf_ref, hb_ref, h_scr, c_scr):
    T, B, _ = x_ref.shape
    H = hf_ref.shape[-1]
    wih = wih_ref[...]            # (In, 8H): [fwd i,f,g,o | bwd i,f,g,o]
    whh = whh_ref[...]            # (H, 8H)
    bias = b_ref[...]             # (1, 8H)

    h_scr[...] = jnp.zeros_like(h_scr)   # rows 0:B fwd state, rows B:2B bwd state
    c_scr[...] = jnp.zeros_like(c_scr)

    @pl.loop(0, T)
    def _(t):
        tb = T - 1 - t
        # Stack fwd input x[t] and bwd input x[T-1-t] on the sublane axis so a
        # single 128-lane (8H) gate matmul serves both directions.
        xx = jnp.concatenate([x_ref[t], x_ref[tb]], axis=0)             # (2B, In)
        g = (jnp.dot(xx, wih, preferred_element_type=jnp.float32)
             + jnp.dot(h_scr[...], whh, preferred_element_type=jnp.float32)
             + bias)                                                    # (2B, 8H)
        # fwd gates: rows 0:B, cols 0:4H ; bwd gates: rows B:2B, cols 4H:8H.
        gsel = jnp.concatenate([g[:B, :4 * H], g[B:, 4 * H:]], axis=0)  # (2B, 4H)
        i = jax.nn.sigmoid(gsel[:, 0 * H:1 * H])
        f = jax.nn.sigmoid(gsel[:, 1 * H:2 * H])
        u = jnp.tanh(gsel[:, 2 * H:3 * H])
        o = jax.nn.sigmoid(gsel[:, 3 * H:4 * H])
        c_new = f * c_scr[...] + i * u
        h_new = o * jnp.tanh(c_new)
        h_scr[...] = h_new
        c_scr[...] = c_new
        hf_ref[t] = h_new[:B]
        hb_ref[tb] = h_new[B:]


def bilstm_layer(x_tbf, layer_p, hidden):
    """One fused-direction bidirectional LSTM layer. (T, B, In) -> (T, B, 2H)."""
    T, B, _ = x_tbf.shape
    hf, hb = pl.pallas_call(
        _bilstm_kernel,
        out_shape=(jax.ShapeDtypeStruct((T, B, hidden), jnp.float32),
                   jax.ShapeDtypeStruct((T, B, hidden), jnp.float32)),
        scratch_shapes=[pltpu.VMEM((2 * B, hidden), jnp.float32),
                        pltpu.VMEM((2 * B, hidden), jnp.float32)],
    )(x_tbf, layer_p["wih_t"], layer_p["whh_t"], layer_p["b"])
    return jnp.concatenate([hf, hb], axis=-1)


def bilstm_stack(x_tbf, layers, hidden):
    h = x_tbf
    for lp in layers:
        # TODO(synk): nn.LSTM inter-layer dropout is training-only; eval semantics here.
        h = bilstm_layer(h, lp, hidden)
    return h


# ----------------------------------------------------------------------------
# Fused conv1+ReLU+conv2+ReLU (3x3, stride 1, padding 1).  Pool is left to XLA.
# ----------------------------------------------------------------------------
def _cnn_kernel(x_ref, w1_ref, b1_ref, w2_ref, b2_ref, o_ref, pad1, pad2):
    B, H, W = x_ref.shape
    C = o_ref.shape[0]
    pad1[...] = jnp.zeros_like(pad1)
    pad2[...] = jnp.zeros_like(pad2)
    pad1[:, 1:H + 1, 1:W + 1] = x_ref[...]
    # conv1 (in_channels = 1) + ReLU -> zero-padded scratch for conv2
    for co in range(C):
        acc = jnp.zeros((B, H, W), jnp.float32)
        for kh in range(3):
            for kw in range(3):
                acc = acc + w1_ref[(co * 3 + kh) * 3 + kw] * pad1[:, kh:kh + H, kw:kw + W]
        pad2[co, :, 1:H + 1, 1:W + 1] = jnp.maximum(acc + b1_ref[co], 0.0)
    # conv2 + ReLU
    for co in range(C):
        acc = jnp.zeros((B, H, W), jnp.float32)
        for ci in range(C):
            for kh in range(3):
                for kw in range(3):
                    w = w2_ref[((co * C + ci) * 3 + kh) * 3 + kw]
                    acc = acc + w * pad2[ci, :, kh:kh + H, kw:kw + W]
        o_ref[co] = jnp.maximum(acc + b2_ref[co], 0.0)


def cnn_block(x_bhw, w1_flat, b1, w2_flat, b2, channels):
    """x: (B, H, W) (in_channels=1) -> (C, B, H, W) with both convs + ReLUs."""
    B, H, W = x_bhw.shape
    return pl.pallas_call(
        _cnn_kernel,
        out_shape=jax.ShapeDtypeStruct((channels, B, H, W), jnp.float32),
        in_specs=[
            pl.BlockSpec(memory_space=pltpu.MemorySpace.VMEM),
            pl.BlockSpec(memory_space=pltpu.MemorySpace.SMEM),
            pl.BlockSpec(memory_space=pltpu.MemorySpace.SMEM),
            pl.BlockSpec(memory_space=pltpu.MemorySpace.SMEM),
            pl.BlockSpec(memory_space=pltpu.MemorySpace.SMEM),
        ],
        out_specs=pl.BlockSpec(memory_space=pltpu.MemorySpace.VMEM),
        scratch_shapes=[
            pltpu.VMEM((B, H + 2, W + 2), jnp.float32),
            pltpu.VMEM((channels, B, H + 2, W + 2), jnp.float32),
        ],
    )(x_bhw, w1_flat, b1, w2_flat, b2)


# ----------------------------------------------------------------------------
# Structured self-attention (Lin et al. 2017), r hops, softmax over time.
# One launch per branch; batch handled by static unroll (B is tiny).
# ----------------------------------------------------------------------------
def _selfattn_kernel(h_ref, w1t_ref, w2t_ref, o_ref):
    B = h_ref.shape[0]
    w1 = w1t_ref[...]
    w2 = w2t_ref[...]
    for b in range(B):                                                  # static unroll
        h = h_ref[b]                                                    # (T, D)
        s = jnp.tanh(jnp.dot(h, w1, preferred_element_type=jnp.float32))   # (T, da)
        e = jnp.dot(s, w2, preferred_element_type=jnp.float32)             # (T, r)
        e = e - jnp.max(e, axis=0, keepdims=True)
        p = jnp.exp(e)
        a = p / jnp.sum(p, axis=0, keepdims=True)                       # softmax over T
        m = jnp.einsum("tr,td->rd", a, h, preferred_element_type=jnp.float32)  # (r, D)
        o_ref[b] = m


def self_attention(h_btd, w1t, w2t):
    """h: (B, T, D) -> (B, r*D)."""
    B, _, D = h_btd.shape
    r = w2t.shape[1]
    out = pl.pallas_call(
        _selfattn_kernel,
        out_shape=jax.ShapeDtypeStruct((B, r, D), jnp.float32),
    )(h_btd, w1t, w2t)
    return out.reshape(B, r * D)


# ----------------------------------------------------------------------------
# Fused fusion head: dense + ReLU + output projection in one kernel.
# The concat(acoustic, text) is folded into a split matmul over dense rows.
# ----------------------------------------------------------------------------
def _head_kernel(ac_ref, tx_ref, dwt_ref, db_ref, owt_ref, ob_ref, o_ref):
    k = ac_ref.shape[1]            # acoustic features occupy dense rows [0, k)
    h = (jnp.dot(ac_ref[...], dwt_ref[:k, :], preferred_element_type=jnp.float32)
         + jnp.dot(tx_ref[...], dwt_ref[k:, :], preferred_element_type=jnp.float32)
         + db_ref[...])
    h = jnp.maximum(h, 0.0)
    o_ref[...] = (jnp.dot(h, owt_ref[...], preferred_element_type=jnp.float32)
                  + ob_ref[...])


def fusion_head(acoustic, text, dwt, db, owt, ob):
    B = acoustic.shape[0]
    return pl.pallas_call(
        _head_kernel,
        out_shape=jax.ShapeDtypeStruct((B, owt.shape[1]), jnp.float32),
    )(acoustic, text, dwt, db, owt, ob)


# ----------------------------------------------------------------------------
# Parameters (deterministic, synthetic, pre-transposed / pre-flattened)
# ----------------------------------------------------------------------------
def init_params(key):
    keys = iter(jax.random.split(key, 64))

    def u(shape, scale=0.08):
        return jax.random.uniform(next(keys), shape, jnp.float32, -scale, scale)

    nb = hp.num_baseline_nodes
    p = {}
    p["emb"] = u((hp.num_classes, hp.emb_dim), 0.1)

    def bilstm_params(in_size, hidden):
        # Fused fwd/bwd weights: gate axis is [fwd i,f,g,o | bwd i,f,g,o] (8H lanes).
        # TODO(synk): PyTorch has separate b_ih/b_hh per direction; a real-weight
        # port must sum them into this single bias.
        return dict(wih_t=u((in_size, 8 * hidden)),
                    whh_t=u((hidden, 8 * hidden)),
                    b=u((1, 8 * hidden)))

    p["lstm1"] = [bilstm_params(hp.emb_dim, nb), bilstm_params(2 * nb, nb)]
    lstm2_in = hp.lmfb_dim // 3
    p["lstm2"] = [bilstm_params(lstm2_in, nb), bilstm_params(2 * nb, nb)]

    oc = hp.out_channels
    p["conv1_w"] = u((oc * 1 * 3 * 3,), 0.3)    # flat (co, ci, kh, kw) row-major
    p["conv1_b"] = u((oc,), 0.1)
    p["conv2_w"] = u((oc * oc * 3 * 3,), 0.2)
    p["conv2_b"] = u((oc,), 0.1)
    D = 2 * nb
    p["sa1_w1t"] = u((D, hp.attn_da))
    p["sa1_w2t"] = u((hp.attn_da, hp.attn_hops))
    p["sa2_w1t"] = u((D, hp.attn_da))
    p["sa2_w2t"] = u((hp.attn_da, hp.attn_hops))
    # fc_text / fc_acoustic exist in __init__ but are unused on the Self_Attention path.
    p["dense_wt"] = u((nb * 16 * 2, nb * 4 * 2), 0.05)   # pre-transposed (in, out)
    p["dense_b"] = u((1, nb * 4 * 2), 0.05)
    p["out_wt"] = u((nb * 4 * 2, hp.num_emotion), 0.05)
    p["out_b"] = u((1, hp.num_emotion), 0.05)
    return p


# ----------------------------------------------------------------------------
# Forward pass (matches Combined.forward for CNN_BLSTM + Self_Attention)
# ----------------------------------------------------------------------------
def combined_forward(p, x, lengths, ts, ts_lengths):
    # TODO(synk): pack_padded_sequence / pad_packed_sequence length masking is
    # omitted; all sequences are treated as full-length (eval-style semantics).
    del lengths, ts_lengths
    nb = hp.num_baseline_nodes

    # ---- text branch ----
    # TODO(synk): embedding gather stays in XLA (tiny); no Pallas gather used.
    ts_tbf = jnp.take(p["emb"], ts.T, axis=0)                     # (T_ts, B, 300)
    h_ts = bilstm_stack(ts_tbf, p["lstm1"], nb)                   # (T_ts, B, 2*nb)
    text = self_attention(jnp.transpose(h_ts, (1, 0, 2)),
                          p["sa1_w1t"], p["sa1_w2t"])             # (B, 8*2*nb)

    # ---- acoustic branch (CNN_BLSTM) ----
    conv = cnn_block(x, p["conv1_w"], p["conv1_b"],
                     p["conv2_w"], p["conv2_b"], hp.out_channels)  # (C, B, T, F)
    C, B, H, W = conv.shape
    Ho, Wo = H // 3, W // 3
    # MaxPool2d(kernel_size=3, stride=3) done in XLA (fuses with the reshapes).
    pooled = jnp.max(conv[:, :, :Ho * 3, :Wo * 3].reshape(C, B, Ho, 3, Wo, 3),
                     axis=(3, 5))                                  # (C, B, Ho, Wo)
    # PyTorch: cnnout.reshape(B, C*Ho, Wo) -> sequence index s = c*Ho + h.
    x2 = jnp.transpose(pooled, (0, 2, 1, 3)).reshape(C * Ho, B, Wo)  # (S, B, Wo)
    h_ac = bilstm_stack(x2, p["lstm2"], nb)                        # (S, B, 2*nb)
    acoustic = self_attention(jnp.transpose(h_ac, (1, 0, 2)),
                              p["sa2_w1t"], p["sa2_w2t"])          # (B, 8*2*nb)

    # ---- fusion head (dense + ReLU + output projection, fused) ----
    emotion = fusion_head(acoustic, text, p["dense_wt"], p["dense_b"],
                          p["out_wt"], p["out_b"])                 # (B, num_emotion)
    return emotion


if __name__ == "__main__":
    key = jax.random.PRNGKey(0)
    kp, kx, kts = jax.random.split(key, 3)
    params = init_params(kp)

    B, T_x, T_ts = hp.batch_size, 9, 8
    x = jax.random.normal(kx, (B, T_x, hp.lmfb_dim), jnp.float32)
    lengths = jnp.full((B,), T_x, jnp.int32)
    ts = jax.random.randint(kts, (B, T_ts), 0, hp.num_classes)
    ts_lengths = jnp.full((B,), T_ts, jnp.int32)

    emotion = jax.jit(combined_forward)(params, x, lengths, ts, ts_lengths)
    emotion = jax.block_until_ready(emotion)
    assert emotion.shape == (B, hp.num_emotion)
    assert bool(jnp.all(jnp.isfinite(emotion)))
    print("KERNEL_OK")
</pallas_src>

<mosaic_0001>
module attributes {stable_mosaic.version = 11 : i64} {
  func.func @_cnn_kernel(%arg0: memref<2x9x24xf32, #tpu.memory_space<vmem>>, %arg1: memref<36xf32, #tpu.memory_space<smem>>, %arg2: memref<4xf32, #tpu.memory_space<smem>>, %arg3: memref<144xf32, #tpu.memory_space<smem>>, %arg4: memref<4xf32, #tpu.memory_space<smem>>, %arg5: memref<4x2x9x24xf32, #tpu.memory_space<vmem>>, %arg6: memref<2x11x26xf32, #tpu.memory_space<vmem>>, %arg7: memref<4x2x11x26xf32, #tpu.memory_space<vmem>>) attributes {dimension_semantics = [], scalar_prefetch = 0 : i64, scratch_operands = 2 : i64, tpu.core_type = #tpu.core_type<tc>} {
    %cst = arith.constant 0.000000e+00 : f32
    %0 = vector.broadcast %cst : f32 to vector<2x11x26xf32>
    %c0 = arith.constant 0 : index
    %c0_0 = arith.constant 0 : index
    %c0_1 = arith.constant 0 : index
    %1 = vector.load %arg6[%c0, %c0_0, %c0_1] : memref<2x11x26xf32, #tpu.memory_space<vmem>>, vector<2x11x26xf32>
    tpu.vector_store %arg6[%c0, %c0_0, %c0_1], %0 {strides = array<i32>} : memref<2x11x26xf32, #tpu.memory_space<vmem>>, vector<2x11x26xf32>,
    %cst_2 = arith.constant 0.000000e+00 : f32
    %2 = vector.broadcast %cst_2 : f32 to vector<4x2x11x26xf32>
    %c0_3 = arith.constant 0 : index
    %c0_4 = arith.constant 0 : index
    %c0_5 = arith.constant 0 : index
    %c0_6 = arith.constant 0 : index
    %3 = vector.load %arg7[%c0_3, %c0_4, %c0_5, %c0_6] : memref<4x2x11x26xf32, #tpu.memory_space<vmem>>, vector<4x2x11x26xf32>
    tpu.vector_store %arg7[%c0_3, %c0_4, %c0_5, %c0_6], %2 {strides = array<i32>} : memref<4x2x11x26xf32, #tpu.memory_space<vmem>>, vector<4x2x11x26xf32>,
    %c0_7 = arith.constant 0 : index
    %c0_8 = arith.constant 0 : index
    %c0_9 = arith.constant 0 : index
    %4 = vector.load %arg0[%c0_7, %c0_8, %c0_9] : memref<2x9x24xf32, #tpu.memory_space<vmem>>, vector<2x9x24xf32>
    %c0_10 = arith.constant 0 : index
    %c1 = arith.constant 1 : index
    %c1_11 = arith.constant 1 : index
    %5 = vector.load %arg6[%c0_10, %c1, %c1_11] : memref<2x11x26xf32, #tpu.memory_space<vmem>>, vector<2x9x24xf32>
    tpu.vector_store %arg6[%c0_10, %c1, %c1_11], %4 {strides = array<i32>} : memref<2x11x26xf32, #tpu.memory_space<vmem>>, vector<2x9x24xf32>,
    %cst_12 = arith.constant 0.000000e+00 : f32
    %6 = vector.broadcast %cst_12 : f32 to vector<2x9x24xf32>
    %c0_13 = arith.constant 0 : index
    %7 = memref.load %arg1[%c0_13] : memref<36xf32, #tpu.memory_space<smem>>
    %c0_14 = arith.constant 0 : index
    %c0_15 = arith.constant 0 : index
    %c0_16 = arith.constant 0 : index
    %8 = vector.load %arg6[%c0_14, %c0_15, %c0_16] : memref<2x11x26xf32, #tpu.memory_space<vmem>>, vector<2x9x24xf32>
    %9 = vector.broadcast %7 : f32 to vector<2x9x24xf32>
    %10 = arith.mulf %9, %8 : vector<2x9x24xf32>
    %11 = arith.addf %6, %10 : vector<2x9x24xf32>
    %c1_17 = arith.constant 1 : index
    %12 = memref.load %arg1[%c1_17] : memref<36xf32, #tpu.memory_space<smem>>
    %c0_18 = arith.constant 0 : index
    %c0_19 = arith.constant 0 : index
    %c1_20 = arith.constant 1 : index
    %13 = vector.load %arg6[%c0_18, %c0_19, %c1_20] : memref<2x11x26xf32, #tpu.memory_space<vmem>>, vector<2x9x24xf32>
    %14 = vector.broadcast %12 : f32 to vector<2x9x24xf32>
    %15 = arith.mulf %14, %13 : vector<2x9x24xf32>
    %16 = arith.addf %11, %15 : vector<2x9x24xf32>
    %c2 = arith.constant 2 : index
    %17 = memref.load %arg1[%c2] : memref<36xf32, #tpu.memory_space<smem>>
    %c0_21 = arith.constant 0 : index
    %c0_22 = arith.constant 0 : index
    %c2_23 = arith.constant 2 : index
    %18 = vector.load %arg6[%c0_21, %c0_22, %c2_23] : memref<2x11x26xf32, #tpu.memory_space<vmem>>, vector<2x9x24xf32>
    %19 = vector.broadcast %17 : f32 to vector<2x9x24xf32>
    %20 = arith.mulf %19, %18 : vector<2x9x24xf32>
    %21 = arith.addf %16, %20 : vector<2x9x24xf32>
    %c3 = arith.constant 3 : index
    %22 = memref.load %arg1[%c3] : memref<36xf32, #tpu.memory_space<smem>>
    %c0_24 = arith.constant 0 : index
    %c1_25 = arith.constant 1 : index
    %c0_26 = arith.constant 0 : index
    %23 = vector.load %arg6[%c0_24, %c1_25, %c0_26] : memref<2x11x26xf32, #tpu.memory_space<vmem>>, vector<2x9x24xf32>
    %24 = vector.broadcast %22 : f32 to vector<2x9x24xf32>
    %25 = arith.mulf %24, %23 : vector<2x9x24xf32>
    %26 = arith.addf %21, %25 : vector<2x9x24xf32>
    %c4 = arith.constant 4 : index
    %27 = memref.load %arg1[%c4] : memref<36xf32, #tpu.memory_space<smem>>
    %c0_27 = arith.constant 0 : index
    %c1_28 = arith.constant 1 : index
    %c1_29 = arith.constant 1 : index
    %28 = vector.load %arg6[%c0_27, %c1_28, %c1_29] : memref<2x11x26xf32, #tpu.memory_space<vmem>>, vector<2x9x24xf32>
    %29 = vector.broadcast %27 : f32 to vector<2x9x24xf32>
    %30 = arith.mulf %29, %28 : vector<2x9x24xf32>
    %31 = arith.addf %26, %30 : vector<2x9x24xf32>
    %c5 = arith.constant 5 : index
    %32 = memref.load %arg1[%c5] : memref<36xf32, #tpu.memory_space<smem>>
    %c0_30 = arith.constant 0 : index
    %c1_31 = arith.constant 1 : index
    %c2_32 = arith.constant 2 : index
    %33 = vector.load %arg6[%c0_30, %c1_31, %c2_32] : memref<2x11x26xf32, #tpu.memory_space<vmem>>, vector<2x9x24xf32>
    %34 = vector.broadcast %32 : f32 to vector<2x9x24xf32>
    %35 = arith.mulf %34, %33 : vector<2x9x24xf32>
    %36 = arith.addf %31, %35 : vector<2x9x24xf32>
    %c6 = arith.constant 6 : index
    %37 = memref.load %arg1[%c6] : memref<36xf32, #tpu.memory_space<smem>>
    %c0_33 = arith.constant 0 : index
    %c2_34 = arith.constant 2 : index
    %c0_35 = arith.constant 0 : index
    %38 = vector.load %arg6[%c0_33, %c2_34, %c0_35] : memref<2x11x26xf32, #tpu.memory_space<vmem>>, vector<2x9x24xf32>
    %39 = vector.broadcast %37 : f32 to vector<2x9x24xf32>
    %40 = arith.mulf %39, %38 : vector<2x9x24xf32>
    %41 = arith.addf %36, %40 : vector<2x9x24xf32>
    %c7 = arith.constant 7 : index
    %42 = memref.load %arg1[%c7] : memref<36xf32, #tpu.memory_space<smem>>
    %c0_36 = arith.constant 0 : index
    %c2_37 = arith.constant 2 : index
    %c1_38 = arith.constant 1 : index
    %43 = vector.load %arg6[%c0_36, %c2_37, %c1_38] : memref<2x11x26xf32, #tpu.memory_space<vmem>>, vector<2x9x24xf32>
    %44 = vector.broadcast %42 : f32 to vector<2x9x24xf32>
    %45 = arith.mulf %44, %43 : vector<2x9x24xf32>
    %46 = arith.addf %41, %45 : vector<2x9x24xf32>
    %c8 = arith.constant 8 : index
    %47 = memref.load %arg1[%c8] : memref<36xf32, #tpu.memory_space<smem>>
    %c0_39 = arith.constant 0 : index
    %c2_40 = arith.constant 2 : index
    %c2_41 = arith.constant 2 : index
    %48 = vector.load %arg6[%c0_39, %c2_40, %c2_41] : memref<2x11x26xf32, #tpu.memory_space<vmem>>, vector<2x9x24xf32>
    %49 = vector.broadcast %47 : f32 to vector<2x9x24xf32>
    %50 = arith.mulf %49, %48 : vector<2x9x24xf32>
    %51 = arith.addf %46, %50 : vector<2x9x24xf32>
    %c0_42 = arith.constant 0 : index
    %52 = memref.load %arg2[%c0_42] : memref<4xf32, #tpu.memory_space<smem>>
    %53 = vector.broadcast %52 : f32 to vector<2x9x24xf32>
    %54 = arith.addf %51, %53 : vector<2x9x24xf32>
    %cst_43 = arith.constant 0.000000e+00 : f32
    %55 = vector.broadcast %cst_43 : f32 to vector<2x9x24xf32>
    %56 = arith.maximumf %54, %55 : vector<2x9x24xf32>
    %c0_44 = arith.constant 0 : index
    %c0_45 = arith.constant 0 : index
    %c1_46 = arith.constant 1 : index
    %c1_47 = arith.constant 1 : index
    %57 = vector.load %arg7[%c0_44, %c0_45, %c1_46, %c1_47] : memref<4x2x11x26xf32, #tpu.memory_space<vmem>>, vector<1x2x9x24xf32>
    %58 = vector.shape_cast %57 : vector<1x2x9x24xf32> to vector<2x9x24xf32>
    %59 = vector.shape_cast %56 : vector<2x9x24xf32> to vector<1x2x9x24xf32>
    tpu.vector_store %arg7[%c0_44, %c0_45, %c1_46, %c1_47], %59 {strides = array<i32>} : memref<4x2x11x26xf32, #tpu.memory_space<vmem>>, vector<1x2x9x24xf32>,
    %cst_48 = arith.constant 0.000000e+00 : f32
    %60 = vector.broadcast %cst_48 : f32 to vector<2x9x24xf32>
    %c9 = arith.constant 9 : index
    %61 = memref.load %arg1[%c9] : memref<36xf32, #tpu.memory_space<smem>>
    %c0_49 = arith.constant 0 : index
    %c0_50 = arith.constant 0 : index
    %c0_51 = arith.constant 0 : index
    %62 = vector.load %arg6[%c0_49, %c0_50, %c0_51] : memref<2x11x26xf32, #tpu.memory_space<vmem>>, vector<2x9x24xf32>
    %63 = vector.broadcast %61 : f32 to vector<2x9x24xf32>
    %64 = arith.mulf %63, %62 : vector<2x9x24xf32>
    %65 = arith.addf %60, %64 : vector<2x9x24xf32>
    %c10 = arith.constant 10 : index
    %66 = memref.load %arg1[%c10] : memref<36xf32, #tpu.memory_space<smem>>
    %c0_52 = arith.constant 0 : index
    %c0_53 = arith.constant 0 : index
    %c1_54 = arith.constant 1 : index
    %67 = vector.load %arg6[%c0_52, %c0_53, %c1_54] : memref<2x11x26xf32, #tpu.memory_space<vmem>>, vector<2x9x24xf32>
    %68 = vector.broadcast %66 : f32 to vector<2x9x24xf32>
    %69 = arith.mulf %68, %67 : vector<2x9x24xf32>
    %70 = arith.addf %65, %69 : vector<2x9x24xf32>
    %c11 = arith.constant 11 : index
    %71 = memref.load %arg1[%c11] : memref<36xf32, #tpu.memory_space<smem>>
    %c0_55 = arith.constant 0 : index
    %c0_56 = arith.constant 0 : index
    %c2_57 = arith.constant 2 : index
    %72 = vector.load %arg6[%c0_55, %c0_56, %c2_57] : memref<2x11x26xf32, #tpu.memory_space<vmem>>, vector<2x9x24xf32>
    %73 = vector.broadcast %71 : f32 to vector<2x9x24xf32>
    %74 = arith.mulf %73, %72 : vector<2x9x24xf32>
    %75 = arith.addf %70, %74 : vector<2x9x24xf32>
    %c12 = arith.constant 12 : index
    %76 = memref.load %arg1[%c12] : memref<36xf32, #tpu.memory_space<smem>>
    %c0_58 = arith.constant 0 : index
    %c1_59 = arith.constant 1 : index
    %c0_60 = arith.constant 0 : index
    %77 = vector.load %arg6[%c0_58, %c1_59, %c0_60] : memref<2x11x26xf32, #tpu.memory_space<vmem>>, vector<2x9x24xf32>
    %78 = vector.broadcast %76 : f32 to vector<2x9x24xf32>
    %79 = arith.mulf %78, %77 : vector<2x9x24xf32>
    %80 = arith.addf %75, %79 : vector<2x9x24xf32>
    %c13 = arith.constant 13 : index
    %81 = memref.load %arg1[%c13] : memref<36xf32, #tpu.memory_space<smem>>
    %c0_61 = arith.constant 0 : index
    %c1_62 = arith.constant 1 : index
    %c1_63 = arith.constant 1 : index
    %82 = vector.load %arg6[%c0_61, %c1_62, %c1_63] : memref<2x11x26xf32, #tpu.memory_space<vmem>>, vector<2x9x24xf32>
    %83 = vector.broadcast %81 : f32 to vector<2x9x24xf32>
    %84 = arith.mulf %83, %82 : vector<2x9x24xf32>
    %85 = arith.addf %80, %84 : vector<2x9x24xf32>
    %c14 = arith.constant 14 : index
    %86 = memref.load %arg1[%c14] : memref<36xf32, #tpu.memory_space<smem>>
    %c0_64 = arith.constant 0 : index
    %c1_65 = arith.constant 1 : index
    %c2_66 = arith.constant 2 : index
    %87 = vector.load %arg6[%c0_64, %c1_65, %c2_66] : memref<2x11x26xf32, #tpu.memory_space<vmem>>, vector<2x9x24xf32>
    %88 = vector.broadcast %86 : f32 to vector<2x9x24xf32>
    %89 = arith.mulf %88, %87 : vector<2x9x24xf32>
    %90 = arith.addf %85, %89 : vector<2x9x24xf32>
    %c15 = arith.constant 15 : index
    %91 = memref.load %arg1[%c15] : memref<36xf32, #tpu.memory_space<smem>>
    %c0_67 = arith.constant 0 : index
    %c2_68 = arith.constant 2 : index
    %c0_69 = arith.constant 0 : index
    %92 = vector.load %arg6[%c0_67, %c2_68, %c0_69] : memref<2x11x26xf32, #tpu.memory_space<vmem>>, vector<2x9x24xf32>
    %93 = vector.broadcast %91 : f32 to vector<2x9x24xf32>
    %94 = arith.mulf %93, %92 : vector<2x9x24xf32>
    %95 = arith.addf %90, %94 : vector<2x9x24xf32>
    %c16 = arith.constant 16 : index
    %96 = memref.load %arg1[%c16] : memref<36xf32, #tpu.memory_space<smem>>
    %c0_70 = arith.constant 0 : index
    %c2_71 = arith.constant 2 : index
    %c1_72 = arith.constant 1 : index
    %97 = vector.load %arg6[%c0_70, %c2_71, %c1_72] : memref<2x11x26xf32, #tpu.memory_space<vmem>>, vector<2x9x24xf32>
    %98 = vector.broadcast %96 : f32 to vector<2x9x24xf32>
    %99 = arith.mulf %98, %97 : vector<2x9x24xf32>
    %100 = arith.addf %95, %99 : vector<2x9x24xf32>
    %c17 = arith.constant 17 : index
    %101 = memref.load %arg1[%c17] : memref<36xf32, #tpu.memory_space<smem>>
    %c0_73 = arith.constant 0 : index
    %c2_74 = arith.constant 2 : index
    %c2_75 = arith.constant 2 : index
    %102 = vector.load %arg6[%c0_73, %c2_74, %c2_75] : memref<2x11x26xf32, #tpu.memory_space<vmem>>, vector<2x9x24xf32>
    %103 = vector.broadcast %101 : f32 to vector<2x9x24xf32>
    %104 = arith.mulf %103, %102 : vector<2x9x24xf32>
    %105 = arith.addf %100, %104 : vector<2x9x24xf32>
    %c1_76 = arith.constant 1 : index
    %106 = memref.load %arg2[%c1_76] : memref<4xf32, #tpu.memory_space<smem>>
    %107 = vector.broadcast %106 : f32 to vector<2x9x24xf32>
    %108 = arith.addf %105, %107 : vector<2x9x24xf32>
    %cst_77 = arith.constant 0.000000e+00 : f32
    %109 = vector.broadcast %cst_77 : f32 to vector<2x9x24xf32>
    %110 = arith.maximumf %108, %109 : vector<2x9x24xf32>
    %c1_78 = arith.constant 1 : index
    %c0_79 = arith.constant 0 : index
    %c1_80 = arith.constant 1 : index
    %c1_81 = arith.constant 1 : index
    %111 = vector.load %arg7[%c1_78, %c0_79, %c1_80, %c1_81] : memref<4x2x11x26xf32, #tpu.memory_space<vmem>>, vector<1x2x9x24xf32>
    %112 = vector.shape_cast %111 : vector<1x2x9x24xf32> to vector<2x9x24xf32>
    %113 = vector.shape_cast %110 : vector<2x9x24xf32> to vector<1x2x9x24xf32>
    tpu.vector_store %arg7[%c1_78, %c0_79, %c1_80, %c1_81], %113 {strides = array<i32>} : memref<4x2x11x26xf32, #tpu.memory_space<vmem>>, vector<1x2x9x24xf32>,
    %cst_82 = arith.constant 0.000000e+00 : f32
    %114 = vector.broadcast %cst_82 : f32 to vector<2x9x24xf32>
    %c18 = arith.constant 18 : index
    %115 = memref.load %arg1[%c18] : memref<36xf32, #tpu.memory_space<smem>>
    %c0_83 = arith.constant 0 : index
    %c0_84 = arith.constant 0 : index
    %c0_85 = arith.constant 0 : index
    %116 = vector.load %arg6[%c0_83, %c0_84, %c0_85] : memref<2x11x26xf32, #tpu.memory_space<vmem>>, vector<2x9x24xf32>
    %117 = vector.broadcast %115 : f32 to vector<2x9x24xf32>
    %118 = arith.mulf %117, %116 : vector<2x9x24xf32>
    %119 = arith.addf %114, %118 : vector<2x9x24xf32>
    %c19 = arith.constant 19 : index
    %120 = memref.load %arg1[%c19] : memref<36xf32, #tpu.memory_space<smem>>
    %c0_86 = arith.constant 0 : index
    %c0_87 = arith.constant 0 : index
    %c1_88 = arith.constant 1 : index
    %121 = vector.load %arg6[%c0_86, %c0_87, %c1_88] : memref<2x11x26xf32, #tpu.memory_space<vmem>>, vector<2x9x24xf32>
    %122 = vector.broadcast %120 : f32 to vector<2x9x24xf32>
    %123 = arith.mulf %122, %121 : vector<2x9x24xf32>
    %124 = arith.addf %119, %123 : vector<2x9x24xf32>
    %c20 = arith.constant 20 : index
    %125 = memref.load %arg1[%c20] : memref<36xf32, #tpu.memory_space<smem>>
    %c0_89 = arith.constant 0 : index
    %c0_90 = arith.constant 0 : index
    %c2_91 = arith.constant 2 : index
    %126 = vector.load %arg6[%c0_89, %c0_90, %c2_91] : memref<2x11x26xf32, #tpu.memory_space<vmem>>, vector<2x9x24xf32>
    %127 = vector.broadcast %125 : f32 to vector<2x9x24xf32>
    %128 = arith.mulf %127, %126 : vector<2x9x24xf32>
    %129 = arith.addf %124, %128 : vector<2x9x24xf32>
    %c21 = arith.constant 21 : index
    %130 = memref.load %arg1[%c21] : memref<36xf32, #tpu.memory_space<smem>>
    %c0_92 = arith.constant 0 : index
    %c1_93 = arith.constant 1 : index
    %c0_94 = arith.constant 0 : index
    %131 = vector.load %arg6[%c0_92, %c1_93, %c0_94] : memref<2x11x26xf32, #tpu.memory_space<vmem>>, vector<2x9x24xf32>
    %132 = vector.broadcast %130 : f32 to vector<2x9x24xf32>
    %133 = arith.mulf %132, %131 : vector<2x9x24xf32>
    %134 = arith.addf %129, %133 : vector<2x9x24xf32>
    %c22 = arith.constant 22 : index
    %135 = memref.load %arg1[%c22] : memref<36xf32, #tpu.memory_space<smem>>
    %c0_95 = arith.constant 0 : index
    %c1_96 = arith.constant 1 : index
    %c1_97 = arith.constant 1 : index
    %136 = vector.load %arg6[%c0_95, %c1_96, %c1_97] : memref<2x11x26xf32, #tpu.memory_space<vmem>>, vector<2x9x24xf32>
    %137 = vector.broadcast %135 : f32 to vector<2x9x24xf32>
    %138 = arith.mulf %137, %136 : vector<2x9x24xf32>
    %139 = arith.addf %134, %138 : vector<2x9x24xf32>
    %c23 = arith.constant 23 : index
    %140 = memref.load %arg1[%c23] : memref<36xf32, #tpu.memory_space<smem>>
    %c0_98 = arith.constant 0 : index
    %c1_99 = arith.constant 1 : index
    %c2_100 = arith.constant 2 : index
    %141 = vector.load %arg6[%c0_98, %c1_99, %c2_100] : memref<2x11x26xf32, #tpu.memory_space<vmem>>, vector<2x9x24xf32>
    %142 = vector.broadcast %140 : f32 to vector<2x9x24xf32>
    %143 = arith.mulf %142, %141 : vector<2x9x24xf32>
    %144 = arith.addf %139, %143 : vector<2x9x24xf32>
    %c24 = arith.constant 24 : index
    %145 = memref.load %arg1[%c24] : memref<36xf32, #tpu.memory_space<smem>>
    %c0_101 = arith.constant 0 : index
    %c2_102 = arith.constant 2 : index
    %c0_103 = arith.constant 0 : index
    %146 = vector.load %arg6[%c0_101, %c2_102, %c0_103] : memref<2x11x26xf32, #tpu.memory_space<vmem>>, vector<2x9x24xf32>
    %147 = vector.broadcast %145 : f32 to vector<2x9x24xf32>
    %148 = arith.mulf %147, %146 : vector<2x9x24xf32>
    %149 = arith.addf %144, %148 : vector<2x9x24xf32>
    %c25 = arith.constant 25 : index
    %150 = memref.load %arg1[%c25] : memref<36xf32, #tpu.memory_space<smem>>
    %c0_104 = arith.constant 0 : index
    %c2_105 = arith.constant 2 : index
    %c1_106 = arith.constant 1 : index
    %151 = vector.load %arg6[%c0_104, %c2_105, %c1_106] : memref<2x11x26xf32, #tpu.memory_space<vmem>>, vector<2x9x24xf32>
    %152 = vector.broadcast %150 : f32 to vector<2x9x24xf32>
    %153 = arith.mulf %152, %151 : vector<2x9x24xf32>
    %154 = arith.addf %149, %153 : vector<2x9x24xf32>
    %c26 = arith.constant 26 : index
    %155 = memref.load %arg1[%c26] : memref<36xf32, #tpu.memory_space<smem>>
    %c0_107 = arith.constant 0 : index
    %c2_108 = arith.constant 2 : index
    %c2_109 = arith.constant 2 : index
    %156 = vector.load %arg6[%c0_107, %c2_108, %c2_109] : memref<2x11x26xf32, #tpu.memory_space<vmem>>, vector<2x9x24xf32>
    %157 = vector.broadcast %155 : f32 to vector<2x9x24xf32>
    %158 = arith.mulf %157, %156 : vector<2x9x24xf32>
    %159 = arith.addf %154, %158 : vector<2x9x24xf32>
    %c2_110 = arith.constant 2 : index
    %160 = memref.load %arg2[%c2_110] : memref<4xf32, #tpu.memory_space<smem>>
    %161 = vector.broadcast %160 : f32 to vector<2x9x24xf32>
    %162 = arith.addf %159, %161 : vector<2x9x24xf32>
    %cst_111 = arith.constant 0.000000e+00 : f32
    %163 = vector.broadcast %cst_111 : f32 to vector<2x9x24xf32>
    %164 = arith.maximumf %162, %163 : vector<2x9x24xf32>
    %c2_112 = arith.constant 2 : index
    %c0_113 = arith.constant 0 : index
    %c1_114 = arith.constant 1 : index
    %c1_115 = arith.constant 1 : index
    %165 = vector.load %arg7[%c2_112, %c0_113, %c1_114, %c1_115] : memref<4x2x11x26xf32, #tpu.memory_space<vmem>>, vector<1x2x9x24xf32>
    %166 = vector.shape_cast %165 : vector<1x2x9x24xf32> to vector<2x9x24xf32>
    %167 = vector.shape_cast %164 : vector<2x9x24xf32> to vector<1x2x9x24xf32>
    tpu.vector_store %arg7[%c2_112, %c0_113, %c1_114, %c1_115], %167 {strides = array<i32>} : memref<4x2x11x26xf32, #tpu.memory_space<vmem>>, vector<1x2x9x24xf32>,
    %cst_116 = arith.constant 0.000000e+00 : f32
    %168 = vector.broadcast %cst_116 : f32 to vector<2x9x24xf32>
    %c27 = arith.constant 27 : index
    %169 = memref.load %arg1[%c27] : memref<36xf32, #tpu.memory_space<smem>>
    %c0_117 = arith.constant 0 : index
    %c0_118 = arith.constant 0 : index
    %c0_119 = arith.constant 0 : index
    %170 = vector.load %arg6[%c0_117, %c0_118, %c0_119] : memref<2x11x26xf32, #tpu.memory_space<vmem>>, vector<2x9x24xf32>
    %171 = vector.broadcast %169 : f32 to vector<2x9x24xf32>
    %172 = arith.mulf %171, %170 : vector<2x9x24xf32>
    %173 = arith.addf %168, %172 : vector<2x9x24xf32>
    %c28 = arith.constant 28 : index
    %174 = memref.load %arg1[%c28] : memref<36xf32, #tpu.memory_space<smem>>
    %c0_120 = arith.constant 0 : index
    %c0_121 = arith.constant 0 : index
    %c1_122 = arith.constant 1 : index
    %175 = vector.load %arg6[%c0_120, %c0_121, %c1_122] : memref<2x11x26xf32, #tpu.memory_space<vmem>>, vector<2x9x24xf32>
    %176 = vector.broadcast %174 : f32 to vector<2x9x24xf32>
    %177 = arith.mulf %176, %175 : vector<2x9x24xf32>
    %178 = arith.addf %173, %177 : vector<2x9x24xf32>
    %c29 = arith.constant 29 : index
    %179 = memref.load %arg1[%c29] : memref<36xf32, #tpu.memory_space<smem>>
    %c0_123 = arith.constant 0 : index
    %c0_124 = arith.constant 0 : index
    %c2_125 = arith.constant 2 : index
    %180 = vector.load %arg6[%c0_123, %c0_124, %c2_125] : memref<2x11x26xf32, #tpu.memory_space<vmem>>, vector<2x9x24xf32>
    %181 = vector.broadcast %179 : f32 to vector<2x9x24xf32>
    %182 = arith.mulf %181, %180 : vector<2x9x24xf32>
    %183 = arith.addf %178, %182 : vector<2x9x24xf32>
    %c30 = arith.constant 30 : index
    %184 = memref.load %arg1[%c30] : memref<36xf32, #tpu.memory_space<smem>>
    %c0_126 = arith.constant 0 : index
    %c1_127 = arith.constant 1 : index
    %c0_128 = arith.constant 0 : index
    %185 = vector.load %arg6[%c0_126, %c1_127, %c0_128] : memref<2x11x26xf32, #tpu.memory_space<vmem>>, vector<2x9x24xf32>
    %186 = vector.broadcast %184 : f32 to vector<2x9x24xf32>
    %187 = arith.mulf %186, %185 : vector<2x9x24xf32>
    %188 = arith.addf %183, %187 : vector<2x9x24xf32>
    %c31 = arith.constant 31 : index
    %189 = memref.load %arg1[%c31] : memref<36xf32, #tpu.memory_space<smem>>
    %c0_129 = arith.constant 0 : index
    %c1_130 = arith.constant 1 : index
    %c1_131 = arith.constant 1 : index
    %190 = vector.load %arg6[%c0_129, %c1_130, %c1_131] : memref<2x11x26xf32, #tpu.memory_space<vmem>>, vector<2x9x24xf32>
    %191 = vector.broadcast %189 : f32 to vector<2x9x24xf32>
    %192 = arith.mulf %191, %190 : vector<2x9x24xf32>
    %193 = arith.addf %188, %192 : vector<2x9x24xf32>
    %c32 = arith.constant 32 : index
    %194 = memref.load %arg1[%c32] : memref<36xf32, #tpu.memory_space<smem>>
    %c0_132 = arith.constant 0 : index
    %c1_133 = arith.constant 1 : index
    %c2_134 = arith.constant 2 : index
    %195 = vector.load %arg6[%c0_132, %c1_133, %c2_134] : memref<2x11x26xf32, #tpu.memory_space<vmem>>, vector<2x9x24xf32>
    %196 = vector.broadcast %194 : f32 to vector<2x9x24xf32>
    %197 = arith.mulf %196, %195 : vector<2x9x24xf32>
    %198 = arith.addf %193, %197 : vector<2x9x24xf32>
    %c33 = arith.constant 33 : index
    %199 = memref.load %arg1[%c33] : memref<36xf32, #tpu.memory_space<smem>>
    %c0_135 = arith.constant 0 : index
    %c2_136 = arith.constant 2 : index
    %c0_137 = arith.constant 0 : index
    %200 = vector.load %arg6[%c0_135, %c2_136, %c0_137] : memref<2x11x26xf32, #tpu.memory_space<vmem>>, vector<2x9x24xf32>
    %201 = vector.broadcast %199 : f32 to vector<2x9x24xf32>
    %202 = arith.mulf %201, %200 : vector<2x9x24xf32>
    %203 = arith.addf %198, %202 : vector<2x9x24xf32>
    %c34 = arith.constant 34 : index
    %204 = memref.load %arg1[%c34] : memref<36xf32, #tpu.memory_space<smem>>
    %c0_138 = arith.constant 0 : index
    %c2_139 = arith.constant 2 : index
    %c1_140 = arith.constant 1 : index
    %205 = vector.load %arg6[%c0_138, %c2_139, %c1_140] : memref<2x11x26xf32, #tpu.memory_space<vmem>>, vector<2x9x24xf32>
    %206 = vector.broadcast %204 : f32 to vector<2x9x24xf32>
    %207 = arith.mulf %206, %205 : vector<2x9x24xf32>
    %208 = arith.addf %203, %207 : vector<2x9x24xf32>
    %c35 = arith.constant 35 : index
    %209 = memref.load %arg1[%c35] : memref<36xf32, #tpu.memory_space<smem>>
    %c0_141 = arith.constant 0 : index
    %c2_142 = arith.constant 2 : index
    %c2_143 = arith.constant 2 : index
    %210 = vector.load %arg6[%c0_141, %c2_142, %c2_143] : memref<2x11x26xf32, #tpu.memory_space<vmem>>, vector<2x9x24xf32>
    %211 = vector.broadcast %209 : f32 to vector<2x9x24xf32>
    %212 = arith.mulf %211, %210 : vector<2x9x24xf32>
    %213 = arith.addf %208, %212 : vector<2x9x24xf32>
    %c3_144 = arith.constant 3 : index
    %214 = memref.load %arg2[%c3_144] : memref<4xf32, #tpu.memory_space<smem>>
    %215 = vector.broadcast %214 : f32 to vector<2x9x24xf32>
    %216 = arith.addf %213, %215 : vector<2x9x24xf32>
    %cst_145 = arith.constant 0.000000e+00 : f32
    %217 = vector.broadcast %cst_145 : f32 to vector<2x9x24xf32>
    %218 = arith.maximumf %216, %217 : vector<2x9x24xf32>
    %c3_146 = arith.constant 3 : index
    %c0_147 = arith.constant 0 : index
    %c1_148 = arith.constant 1 : index
    %c1_149 = arith.constant 1 : index
    %219 = vector.load %arg7[%c3_146, %c0_147, %c1_148, %c1_149] : memref<4x2x11x26xf32, #tpu.memory_space<vmem>>, vector<1x2x9x24xf32>
    %220 = vector.shape_cast %219 : vector<1x2x9x24xf32> to vector<2x9x24xf32>
    %221 = vector.shape_cast %218 : vector<2x9x24xf32> to vector<1x2x9x24xf32>
    tpu.vector_store %arg7[%c3_146, %c0_147, %c1_148, %c1_149], %221 {strides = array<i32>} : memref<4x2x11x26xf32, #tpu.memory_space<vmem>>, vector<1x2x9x24xf32>,
    %cst_150 = arith.constant 0.000000e+00 : f32
    %222 = vector.broadcast %cst_150 : f32 to vector<2x9x24xf32>
    %c0_151 = arith.constant 0 : index
    %223 = memref.load %arg3[%c0_151] : memref<144xf32, #tpu.memory_space<smem>>
    %c0_152 = arith.constant 0 : index
    %c0_153 = arith.constant 0 : index
    %c0_154 = arith.constant 0 : index
    %c0_155 = arith.constant 0 : index
    %224 = vector.load %arg7[%c0_152, %c0_153, %c0_154, %c0_155] : memref<4x2x11x26xf32, #tpu.memory_space<vmem>>, vector<1x2x9x24xf32>
    %225 = vector.shape_cast %224 : vector<1x2x9x24xf32> to vector<2x9x24xf32>
    %226 = vector.broadcast %223 : f32 to vector<2x9x24xf32>
    %227 = arith.mulf %226, %225 : vector<2x9x24xf32>
    %228 = arith.addf %222, %227 : vector<2x9x24xf32>
    %c1_156 = arith.constant 1 : index
    %229 = memref.load %arg3[%c1_156] : memref<144xf32, #tpu.memory_space<smem>>
    %c0_157 = arith.constant 0 : index
    %c0_158 = arith.constant 0 : index
    %c0_159 = arith.constant 0 : index
    %c1_160 = arith.constant 1 : index
    %230 = vector.load %arg7[%c0_157, %c0_158, %c0_159, %c1_160] : memref<4x2x11x26xf32, #tpu.memory_space<vmem>>, vector<1x2x9x24xf32>
    %231 = vector.shape_cast %230 : vector<1x2x9x24xf32> to vector<2x9x24xf32>
    %232 = vector.broadcast %229 : f32 to vector<2x9x24xf32>
    %233 = arith.mulf %232, %231 : vector<2x9x24xf32>
    %234 = arith.addf %228, %233 : vector<2x9x24xf32>
    %c2_161 = arith.constant 2 : index
    %235 = memref.load %arg3[%c2_161] : memref<144xf32, #tpu.memory_space<smem>>
    %c0_162 = arith.constant 0 : index
    %c0_163 = arith.constant 0 : index
    %c0_164 = arith.constant 0 : index
    %c2_165 = arith.constant 2 : index
    %236 = vector.load %arg7[%c0_162, %c0_163, %c0_164, %c2_165] : memref<4x2x11x26xf32, #tpu.memory_space<vmem>>, vector<1x2x9x24xf32>
    %237 = vector.shape_cast %236 : vector<1x2x9x24xf32> to vector<2x9x24xf32>
    %238 = vector.broadcast %235 : f32 to vector<2x9x24xf32>
    %239 = arith.mulf %238, %237 : vector<2x9x24xf32>
    %240 = arith.addf %234, %239 : vector<2x9x24xf32>
    %c3_166 = arith.constant 3 : index
    %241 = memref.load %arg3[%c3_166] : memref<144xf32, #tpu.memory_space<smem>>
    %c0_167 = arith.constant 0 : index
    %c0_168 = arith.constant 0 : index
    %c1_169 = arith.constant 1 : index
    %c0_170 = arith.constant 0 : index
    %242 = vector.load %arg7[%c0_167, %c0_168, %c1_169, %c0_170] : memref<4x2x11x26xf32, #tpu.memory_space<vmem>>, vector<1x2x9x24xf32>
    %243 = vector.shape_cast %242 : vector<1x2x9x24xf32> to vector<2x9x24xf32>
    %244 = vector.broadcast %241 : f32 to vector<2x9x24xf32>
    %245 = arith.mulf %244, %243 : vector<2x9x24xf32>
    %246 = arith.addf %240, %245 : vector<2x9x24xf32>
    %c4_171 = arith.constant 4 : index
    %247 = memref.load %arg3[%c4_171] : memref<144xf32, #tpu.memory_space<smem>>
    %c0_172 = arith.constant 0 : index
    %c0_173 = arith.constant 0 : index
    %c1_174 = arith.constant 1 : index
    %c1_175 = arith.constant 1 : index
    %248 = vector.load %arg7[%c0_172, %c0_173, %c1_174, %c1_175] : memref<4x2x11x26xf32, #tpu.memory_space<vmem>>, vector<1x2x9x24xf32>
    %249 = vector.shape_cast %248 : vector<1x2x9x24xf32> to vector<2x9x24xf32>
    %250 = vector.broadcast %247 : f32 to vector<2x9x24xf32>
    %251 = arith.mulf %250, %249 : vector<2x9x24xf32>
    %252 = arith.addf %246, %251 : vector<2x9x24xf32>
    %c5_176 = arith.constant 5 : index
    %253 = memref.load %arg3[%c5_176] : memref<144xf32, #tpu.memory_space<smem>>
    %c0_177 = arith.constant 0 : index
    %c0_178 = arith.constant 0 : index
    %c1_179 = arith.constant 1 : index
    %c2_180 = arith.constant 2 : index
    %254 = vector.load %arg7[%c0_177, %c0_178, %c1_179, %c2_180] : memref<4x2x11x26xf32, #tpu.memory_space<vmem>>, vector<1x2x9x24xf32>
    %255 = vector.shape_cast %254 : vector<1x2x9x24xf32> to vector<2x9x24xf32>
    %256 = vector.broadcast %253 : f32 to vector<2x9x24xf32>
    %257 = arith.mulf %256, %255 : vector<2x9x24xf32>
    %258 = arith.addf %252, %257 : vector<2x9x24xf32>
    %c6_181 = arith.constant 6 : index
    %259 = memref.load %arg3[%c6_181] : memref<144xf32, #tpu.memory_space<smem>>
    %c0_182 = arith.constant 0 : index
    %c0_183 = arith.constant 0 : index
    %c2_184 = arith.constant 2 : index
    %c0_185 = arith.constant 0 : index
    %260 = vector.load %arg7[%c0_182, %c0_183, %c2_184, %c0_185] : memref<4x2x11x26xf32, #tpu.memory_space<vmem>>, vector<1x2x9x24xf32>
    %261 = vector.shape_cast %260 : vector<1x2x9x24xf32> to vector<2x9x24xf32>
    %262 = vector.broadcast %259 : f32 to vector<2x9x24xf32>
    %263 = arith.mulf %262, %261 : vector<2x9x24xf32>
    %264 = arith.addf %258, %263 : vector<2x9x24xf32>
    %c7_186 = arith.constant 7 : index
    %265 = memref.load %arg3[%c7_186] : memref<144xf32, #tpu.memory_space<smem>>
    %c0_187 = arith.constant 0 : index
    %c0_188 = arith.constant 0 : index
    %c2_189 = arith.constant 2 : index
    %c1_190 = arith.constant 1 : index
    %266 = vector.load %arg7[%c0_187, %c0_188, %c2_189, %c1_190] : memref<4x2x11x26xf32, #tpu.memory_space<vmem>>, vector<1x2x9x24xf32>
    %267 = vector.shape_cast %266 : vector<1x2x9x24xf32> to vector<2x9x24xf32>
    %268 = vector.broadcast %265 : f32 to vector<2x9x24xf32>
    %269 = arith.mulf %268, %267 : vector<2x9x24xf32>
    %270 = arith.addf %264, %269 : vector<2x9x24xf32>
    %c8_191 = arith.constant 8 : index
    %271 = memref.load %arg3[%c8_191] : memref<144xf32, #tpu.memory_space<smem>>
    %c0_192 = arith.constant 0 : index
    %c0_193 = arith.constant 0 : index
    %c2_194 = arith.constant 2 : index
    %c2_195 = arith.constant 2 : index
    %272 = vector.load %arg7[%c0_192, %c0_193, %c2_194, %c2_195] : memref<4x2x11x26xf32, #tpu.memory_space<vmem>>, vector<1x2x9x24xf32>
    %273 = vector.shape_cast %272 : vector<1x2x9x24xf32> to vector<2x9x24xf32>
    %274 = vector.broadcast %271 : f32 to vector<2x9x24xf32>
    %275 = arith.mulf %274, %273 : vector<2x9x24xf32>
    %276 = arith.addf %270, %275 : vector<2x9x24xf32>
    %c9_196 = arith.constant 9 : index
    %277 = memref.load %arg3[%c9_196] : memref<144xf32, #tpu.memory_space<smem>>
    %c1_197 = arith.constant 1 : index
    %c0_198 = arith.constant 0 : index
    %c0_199 = arith.constant 0 : index
    %c0_200 = arith.constant 0 : index
    %278 = vector.load %arg7[%c1_197, %c0_198, %c0_199, %c0_200] : memref<4x2x11x26xf32, #tpu.memory_space<vmem>>, vector<1x2x9x24xf32>
    %279 = vector.shape_cast %278 : vector<1x2x9x24xf32> to vector<2x9x24xf32>
    %280 = vector.broadcast %277 : f32 to vector<2x9x24xf32>
    %281 = arith.mulf %280, %279 : vector<2x9x24xf32>
    %282 = arith.addf %276, %281 : vector<2x9x24xf32>
    %c10_201 = arith.constant 10 : index
    %283 = memref.load %arg3[%c10_201] : memref<144xf32, #tpu.memory_space<smem>>
    %c1_202 = arith.constant 1 : index
    %c0_203 = arith.constant 0 : index
    %c0_204 = arith.constant 0 : index
    %c1_205 = arith.constant 1 : index
    %284 = vector.load %arg7[%c1_202, %c0_203, %c0_204, %c1_205] : memref<4x2x11x26xf32, #tpu.memory_space<vmem>>, vector<1x2x9x24xf32>
    %285 = vector.shape_cast %284 : vector<1x2x9x24xf32> to vector<2x9x24xf32>
    %286 = vector.broadcast %283 : f32 to vector<2x9x24xf32>
    %287 = arith.mulf %286, %285 : vector<2x9x24xf32>
    %288 = arith.addf %282, %287 : vector<2x9x24xf32>
    %c11_206 = arith.constant 11 : index
    %289 = memref.load %arg3[%c11_206] : memref<144xf32, #tpu.memory_space<smem>>
    %c1_207 = arith.constant 1 : index
    %c0_208 = arith.constant 0 : index
    %c0_209 = arith.constant 0 : index
    %c2_210 = arith.constant 2 : index
    %290 = vector.load %arg7[%c1_207, %c0_208, %c0_209, %c2_210] : memref<4x2x11x26xf32, #tpu.memory_space<vmem>>, vector<1x2x9x24xf32>
    %291 = vector.shape_cast %290 : vector<1x2x9x24xf32> to vector<2x9x24xf32>
    %292 = vector.broadcast %289 : f32 to vector<2x9x24xf32>
    %293 = arith.mulf %292, %291 : vector<2x9x24xf32>
    %294 = arith.addf %288, %293 : vector<2x9x24xf32>
    %c12_211 = arith.constant 12 : index
    %295 = memref.load %arg3[%c12_211] : memref<144xf32, #tpu.memory_space<smem>>
    %c1_212 = arith.constant 1 : index
    %c0_213 = arith.constant 0 : index
    %c1_214 = arith.constant 1 : index
    %c0_215 = arith.constant 0 : index
    %296 = vector.load %arg7[%c1_212, %c0_213, %c1_214, %c0_215] : memref<4x2x11x26xf32, #tpu.memory_space<vmem>>, vector<1x2x9x24xf32>
    %297 = vector.shape_cast %296 : vector<1x2x9x24xf32> to vector<2x9x24xf32>
    %298 = vector.broadcast %295 : f32 to vector<2x9x24xf32>
    %299 = arith.mulf %298, %297 : vector<2x9x24xf32>
    %300 = arith.addf %294, %299 : vector<2x9x24xf32>
    %c13_216 = arith.constant 13 : index
    %301 = memref.load %arg3[%c13_216] : memref<144xf32, #tpu.memory_space<smem>>
    %c1_217 = arith.constant 1 : index
    %c0_218 = arith.constant 0 : index
    %c1_219 = arith.constant 1 : index
    %c1_220 = arith.constant 1 : index
    %302 = vector.load %arg7[%c1_217, %c0_218, %c1_219, %c1_220] : memref<4x2x11x26xf32, #tpu.memory_space<vmem>>, vector<1x2x9x24xf32>
    %303 = vector.shape_cast %302 : vector<1x2x9x24xf32> to vector<2x9x24xf32>
    %304 = vector.broadcast %301 : f32 to vector<2x9x24xf32>
    %305 = arith.mulf %304, %303 : vector<2x9x24xf32>
    %306 = arith.addf %300, %305 : vector<2x9x24xf32>
    %c14_221 = arith.constant 14 : index
    %307 = memref.load %arg3[%c14_221] : memref<144xf32, #tpu.memory_space<smem>>
    %c1_222 = arith.constant 1 : index
    %c0_223 = arith.constant 0 : index
    %c1_224 = arith.constant 1 : index
    %c2_225 = arith.constant 2 : index
    %308 = vector.load %arg7[%c1_222, %c0_223, %c1_224, %c2_225] : memref<4x2x11x26xf32, #tpu.memory_space<vmem>>, vector<1x2x9x24xf32>
    %309 = vector.shape_cast %308 : vector<1x2x9x24xf32> to vector<2x9x24xf32>
    %310 = vector.broadcast %307 : f32 to vector<2x9x24xf32>
    %311 = arith.mulf %310, %309 : vector<2x9x24xf32>
    %312 = arith.addf %306, %311 : vector<2x9x24xf32>
    %c15_226 = arith.constant 15 : index
    %313 = memref.load %arg3[%c15_226] : memref<144xf32, #tpu.memory_space<smem>>
    %c1_227 = arith.constant 1 : index
    %c0_228 = arith.constant 0 : index
    %c2_229 = arith.constant 2 : index
    %c0_230 = arith.constant 0 : index
    %314 = vector.load %arg7[%c1_227, %c0_228, %c2_229, %c0_230] : memref<4x2x11x26xf32, #tpu.memory_space<vmem>>, vector<1x2x9x24xf32>
    %315 = vector.shape_cast %314 : vector<1x2x9x24xf32> to vector<2x9x24xf32>
    %316 = vector.broadcast %313 : f32 to vector<2x9x24xf32>
    %317 = arith.mulf %316, %315 : vector<2x9x24xf32>
    %318 = arith.addf %312, %317 : vector<2x9x24xf32>
    %c16_231 = arith.constant 16 : index
    %319 = memref.load %arg3[%c16_231] : memref<144xf32, #tpu.memory_space<smem>>
    %c1_232 = arith.constant 1 : index
    %c0_233 = arith.constant 0 : index
    %c2_234 = arith.constant 2 : index
    %c1_235 = arith.constant 1 : index
    %320 = vector.load %arg7[%c1_232, %c0_233, %c2_234, %c1_235] : memref<4x2x11x26xf32, #tpu.memory_space<vmem>>, vector<1x2x9x24xf32>
    %321 = vector.shape_cast %320 : vector<1x2x9x24xf32> to vector<2x9x24xf32>
    %322 = vector.broadcast %319 : f32 to vector<2x9x24xf32>
    %323 = arith.mulf %322, %321 : vector<2x9x24xf32>
    %324 = arith.addf %318, %323 : vector<2x9x24xf32>
    %c17_236 = arith.constant 17 : index
    %325 = memref.load %arg3[%c17_236] : memref<144xf32, #tpu.memory_space<smem>>
    %c1_237 = arith.constant 1 : index
    %c0_238 = arith.constant 0 : index
    %c2_239 = arith.constant 2 : index
    %c2_240 = arith.constant 2 : index
    %326 = vector.load %arg7[%c1_237, %c0_238, %c2_239, %c2_240] : memref<4x2x11x26xf32, #tpu.memory_space<vmem>>, vector<1x2x9x24xf32>
    %327 = vector.shape_cast %326 : vector<1x2x9x24xf32> to vector<2x9x24xf32>
    %328 = vector.broadcast %325 : f32 to vector<2x9x24xf32>
    %329 = arith.mulf %328, %327 : vector<2x9x24xf32>
    %330 = arith.addf %324, %329 : vector<2x9x24xf32>
    %c18_241 = arith.constant 18 : index
    %331 = memref.load %arg3[%c18_241] : memref<144xf32, #tpu.memory_space<smem>>
    %c2_242 = arith.constant 2 : index
    %c0_243 = arith.constant 0 : index
    %c0_244 = arith.constant 0 : index
    %c0_245 = arith.constant 0 : index
    %332 = vector.load %arg7[%c2_242, %c0_243, %c0_244, %c0_245] : memref<4x2x11x26xf32, #tpu.memory_space<vmem>>, vector<1x2x9x24xf32>
    %333 = vector.shape_cast %332 : vector<1x2x9x24xf32> to vector<2x9x24xf32>
    %334 = vector.broadcast %331 : f32 to vector<2x9x24xf32>
    %335 = arith.mulf %334, %333 : vector<2x9x24xf32>
    %336 = arith.addf %330, %335 : vector<2x9x24xf32>
    %c19_246 = arith.constant 19 : index
    %337 = memref.load %arg3[%c19_246] : memref<144xf32, #tpu.memory_space<smem>>
    %c2_247 = arith.constant 2 : index
    %c0_248 = arith.constant 0 : index
    %c0_249 = arith.constant 0 : index
    %c1_250 = arith.constant 1 : index
    %338 = vector.load %arg7[%c2_247, %c0_248, %c0_249, %c1_250] : memref<4x2x11x26xf32, #tpu.memory_space<vmem>>, vector<1x2x9x24xf32>
    %339 = vector.shape_cast %338 : vector<1x2x9x24xf32> to vector<2x9x24xf32>
    %340 = vector.broadcast %337 : f32 to vector<2x9x24xf32>
    %341 = arith.mulf %340, %339 : vector<2x9x24xf32>
    %342 = arith.addf %336, %341 : vector<2x9x24xf32>
    %c20_251 = arith.constant 20 : index
    %343 = memref.load %arg3[%c20_251] : memref<144xf32, #tpu.memory_space<smem>>
    %c2_252 = arith.constant 2 : index
    %c0_253 = arith.constant 0 : index
    %c0_254 = arith.constant 0 : index
    %c2_255 = arith.constant 2 : index
    %344 = vector.load %arg7[%c2_252, %c0_253, %c0_254, %c2_255] : memref<4x2x11x26xf32, #tpu.memory_space<vmem>>, vector<1x2x9x24xf32>
    %345 = vector.shape_cast %344 : vector<1x2x9x24xf32> to vector<2x9x24xf32>
    %346 = vector.broadcast %343 : f32 to vector<2x9x24xf32>
    %347 = arith.mulf %346, %345 : vector<2x9x24xf32>
    %348 = arith.addf %342, %347 : vector<2x9x24xf32>
    %c21_256 = arith.constant 21 : index
    %349 = memref.load %arg3[%c21_256] : memref<144xf32, #tpu.memory_space<smem>>
    %c2_257 = arith.constant 2 : index
    %c0_258 = arith.constant 0 : index
    %c1_259 = arith.constant 1 : index
    %c0_260 = arith.constant 0 : index
    %350 = vector.load %arg7[%c2_257, %c0_258, %c1_259, %c0_260] : memref<4x2x11x26xf32, #tpu.memory_space<vmem>>, vector<1x2x9x24xf32>
    %351 = vector.shape_cast %350 : vector<1x2x9x24xf32> to vector<2x9x24xf32>
    %352 = vector.broadcast %349 : f32 to vector<2x9x24xf32>
    %353 = arith.mulf %352, %351 : vector<2x9x24xf32>
    %354 = arith.addf %348, %353 : vector<2x9x24xf32>
    %c22_261 = arith.constant 22 : index
    %355 = memref.load %arg3[%c22_261] : memref<144xf32, #tpu.memory_space<smem>>
    %c2_262 = arith.constant 2 : index
    %c0_263 = arith.constant 0 : index
    %c1_264 = arith.constant 1 : index
    %c1_265 = arith.constant 1 : index
    %356 = vector.load %arg7[%c2_262, %c0_263, %c1_264, %c1_265] : memref<4x2x11x26xf32, #tpu.memory_space<vmem>>, vector<1x2x9x24xf32>
    %357 = vector.shape_cast %356 : vector<1x2x9x24xf32> to vector<2x9x24xf32>
    %358 = vector.broadcast %355 : f32 to vector<2x9x24xf32>
    %359 = arith.mulf %358, %357 : vector<2x9x24xf32>
    %360 = arith.addf %354, %359 : vector<2x9x24xf32>
    %c23_266 = arith.constant 23 : index
    %361 = memref.load %arg3[%c23_266] : memref<144xf32, #tpu.memory_space<smem>>
    %c2_267 = arith.constant 2 : index
    %c0_268 = arith.constant 0 : index
    %c1_269 = arith.constant 1 : index
    %c2_270 = arith.constant 2 : index
    %362 = vector.load %arg7[%c2_267, %c0_268, %c1_269, %c2_270] : memref<4x2x11x26xf32, #tpu.memory_space<vmem>>, vector<1x2x9x24xf32>
    %363 = vector.shape_cast %362 : vector<1x2x9x24xf32> to vector<2x9x24xf32>
    %364 = vector.broadcast %361 : f32 to vector<2x9x24xf32>
    %365 = arith.mulf %364, %363 : vector<2x9x24xf32>
    %366 = arith.addf %360, %365 : vector<2x9x24xf32>
    %c24_271 = arith.constant 24 : index
    %367 = memref.load %arg3[%c24_271] : memref<144xf32, #tpu.memory_space<smem>>
    %c2_272 = arith.constant 2 : index
    %c0_273 = arith.constant 0 : index
    %c2_274 = arith.constant 2 : index
    %c0_275 = arith.constant 0 : index
    %368 = vector.load %arg7[%c2_272, %c0_273, %c2_274, %c0_275] : memref<4x2x11x26xf32, #tpu.memory_space<vmem>>, vector<1x2x9x24xf32>
    %369 = vector.shape_cast %368 : vector<1x2x9x24xf32> to vector<2x9x24xf32>
    %370 = vector.broadcast %367 : f32 to vector<2x9x24xf32>
    %371 = arith.mulf %370, %369 : vector<2x9x24xf32>
    %372 = arith.addf %366, %371 : vector<2x9x24xf32>
    %c25_276 = arith.constant 25 : index
    %373 = memref.load %arg3[%c25_276] : memref<144xf32, #tpu.memory_space<smem>>
    %c2_277 = arith.constant 2 : index
    %c0_278 = arith.constant 0 : index
    %c2_279 = arith.constant 2 : index
    %c1_280 = arith.constant 1 : index
    %374 = vector.load %arg7[%c2_277, %c0_278, %c2_279, %c1_280] : memref<4x2x11x26xf32, #tpu.memory_space<vmem>>, vector<1x2x9x24xf32>
    %375 = vector.shape_cast %374 : vector<1x2x9x24xf32> to vector<2x9x24xf32>
    %376 = vector.broadcast %373 : f32 to vector<2x9x24xf32>
    %377 = arith.mulf %376, %375 : vector<2x9x24xf32>
    %378 = arith.addf %372, %377 : vector<2x9x24xf32>
    %c26_281 = arith.constant 26 : index
    %379 = memref.load %arg3[%c26_281] : memref<144xf32, #tpu.memory_space<smem>>
    %c2_282 = arith.constant 2 : index
    %c0_283 = arith.constant 0 : index
    %c2_284 = arith.constant 2 : index
    %c2_285 = arith.constant 2 : index
    %380 = vector.load %arg7[%c2_282, %c0_283, %c2_284, %c2_285] : memref<4x2x11x26xf32, #tpu.memory_space<vmem>>, vector<1x2x9x24xf32>
    %381 = vector.shape_cast %380 : vector<1x2x9x24xf32> to vector<2x9x24xf32>
    %382 = vector.broadcast %379 : f32 to vector<2x9x24xf32>
    %383 = arith.mulf %382, %381 : vector<2x9x24xf32>
    %384 = arith.addf %378, %383 : vector<2x9x24xf32>
    %c27_286 = arith.constant 27 : index
    %385 = memref.load %arg3[%c27_286] : memref<144xf32, #tpu.memory_space<smem>>
    %c3_287 = arith.constant 3 : index
    %c0_288 = arith.constant 0 : index
    %c0_289 = arith.constant 0 : index
    %c0_290 = arith.constant 0 : index
    %386 = vector.load %arg7[%c3_287, %c0_288, %c0_289, %c0_290] : memref<4x2x11x26xf32, #tpu.memory_space<vmem>>, vector<1x2x9x24xf32>
    %387 = vector.shape_cast %386 : vector<1x2x9x24xf32> to vector<2x9x24xf32>
    %388 = vector.broadcast %385 : f32 to vector<2x9x24xf32>
    %389 = arith.mulf %388, %387 : vector<2x9x24xf32>
    %390 = arith.addf %384, %389 : vector<2x9x24xf32>
    %c28_291 = arith.constant 28 : index
    %391 = memref.load %arg3[%c28_291] : memref<144xf32, #tpu.memory_space<smem>>
    %c3_292 = arith.constant 3 : index
    %c0_293 = arith.constant 0 : index
    %c0_294 = arith.constant 0 : index
    %c1_295 = arith.constant 1 : index
    %392 = vector.load %arg7[%c3_292, %c0_293, %c0_294, %c1_295] : memref<4x2x11x26xf32, #tpu.memory_space<vmem>>, vector<1x2x9x24xf32>
    %393 = vector.shape_cast %392 : vector<1x2x9x24xf32> to vector<2x9x24xf32>
    %394 = vector.broadcast %391 : f32 to vector<2x9x24xf32>
    %395 = arith.mulf %394, %393 : vector<2x9x24xf32>
    %396 = arith.addf %390, %395 : vector<2x9x24xf32>
    %c29_296 = arith.constant 29 : index
    %397 = memref.load %arg3[%c29_296] : memref<144xf32, #tpu.memory_space<smem>>
    %c3_297 = arith.constant 3 : index
    %c0_298 = arith.constant 0 : index
    %c0_299 = arith.constant 0 : index
    %c2_300 = arith.constant 2 : index
    %398 = vector.load %arg7[%c3_297, %c0_298, %c0_299, %c2_300] : memref<4x2x11x26xf32, #tpu.memory_space<vmem>>, vector<1x2x9x24xf32>
    %399 = vector.shape_cast %398 : vector<1x2x9x24xf32> to vector<2x9x24xf32>
    %400 = vector.broadcast %397 : f32 to vector<2x9x24xf32>
    %401 = arith.mulf %400, %399 : vector<2x9x24xf32>
    %402 = arith.addf %396, %401 : vector<2x9x24xf32>
    %c30_301 = arith.constant 30 : index
    %403 = memref.load %arg3[%c30_301] : memref<144xf32, #tpu.memory_space<smem>>
    %c3_302 = arith.constant 3 : index
    %c0_303 = arith.constant 0 : index
    %c1_304 = arith.constant 1 : index
    %c0_305 = arith.constant 0 : index
    %404 = vector.load %arg7[%c3_302, %c0_303, %c1_304, %c0_305] : memref<4x2x11x26xf32, #tpu.memory_space<vmem>>, vector<1x2x9x24xf32>
    %405 = vector.shape_cast %404 : vector<1x2x9x24xf32> to vector<2x9x24xf32>
    %406 = vector.broadcast %403 : f32 to vector<2x9x24xf32>
    %407 = arith.mulf %406, %405 : vector<2x9x24xf32>
    %408 = arith.addf %402, %407 : vector<2x9x24xf32>
    %c31_306 = arith.constant 31 : index
    %409 = memref.load %arg3[%c31_306] : memref<144xf32, #tpu.memory_space<smem>>
    %c3_307 = arith.constant 3 : index
    %c0_308 = arith.constant 0 : index
    %c1_309 = arith.constant 1 : index
    %c1_310 = arith.constant 1 : index
    %410 = vector.load %arg7[%c3_307, %c0_308, %c1_309, %c1_310] : memref<4x2x11x26xf32, #tpu.memory_space<vmem>>, vector<1x2x9x24xf32>
    %411 = vector.shape_cast %410 : vector<1x2x9x24xf32> to vector<2x9x24xf32>
    %412 = vector.broadcast %409 : f32 to vector<2x9x24xf32>
    %413 = arith.mulf %412, %411 : vector<2x9x24xf32>
    %414 = arith.addf %408, %413 : vector<2x9x24xf32>
    %c32_311 = arith.constant 32 : index
    %415 = memref.load %arg3[%c32_311] : memref<144xf32, #tpu.memory_space<smem>>
    %c3_312 = arith.constant 3 : index
    %c0_313 = arith.constant 0 : index
    %c1_314 = arith.constant 1 : index
    %c2_315 = arith.constant 2 : index
    %416 = vector.load %arg7[%c3_312, %c0_313, %c1_314, %c2_315] : memref<4x2x11x26xf32, #tpu.memory_space<vmem>>, vector<1x2x9x24xf32>
    %417 = vector.shape_cast %416 : vector<1x2x9x24xf32> to vector<2x9x24xf32>
    %418 = vector.broadcast %415 : f32 to vector<2x9x24xf32>
    %419 = arith.mulf %418, %417 : vector<2x9x24xf32>
    %420 = arith.addf %414, %419 : vector<2x9x24xf32>
    %c33_316 = arith.constant 33 : index
    %421 = memref.load %arg3[%c33_316] : memref<144xf32, #tpu.memory_space<smem>>
    %c3_317 = arith.constant 3 : index
    %c0_318 = arith.constant 0 : index
    %c2_319 = arith.constant 2 : index
    %c0_320 = arith.constant 0 : index
    %422 = vector.load %arg7[%c3_317, %c0_318, %c2_319, %c0_320] : memref<4x2x11x26xf32, #tpu.memory_space<vmem>>, vector<1x2x9x24xf32>
    %423 = vector.shape_cast %422 : vector<1x2x9x24xf32> to vector<2x9x24xf32>
    %424 = vector.broadcast %421 : f32 to vector<2x9x24xf32>
    %425 = arith.mulf %424, %423 : vector<2x9x24xf32>
    %426 = arith.addf %420, %425 : vector<2x9x24xf32>
    %c34_321 = arith.constant 34 : index
    %427 = memref.load %arg3[%c34_321] : memref<144xf32, #tpu.memory_space<smem>>
    %c3_322 = arith.constant 3 : index
    %c0_323 = arith.constant 0 : index
    %c2_324 = arith.constant 2 : index
    %c1_325 = arith.constant 1 : index
    %428 = vector.load %arg7[%c3_322, %c0_323, %c2_324, %c1_325] : memref<4x2x11x26xf32, #tpu.memory_space<vmem>>, vector<1x2x9x24xf32>
    %429 = vector.shape_cast %428 : vector<1x2x9x24xf32> to vector<2x9x24xf32>
    %430 = vector.broadcast %427 : f32 to vector<2x9x24xf32>
    %431 = arith.mulf %430, %429 : vector<2x9x24xf32>
    %432 = arith.addf %426, %431 : vector<2x9x24xf32>
    %c35_326 = arith.constant 35 : index
    %433 = memref.load %arg3[%c35_326] : memref<144xf32, #tpu.memory_space<smem>>
    %c3_327 = arith.constant 3 : index
    %c0_328 = arith.constant 0 : index
    %c2_329 = arith.constant 2 : index
    %c2_330 = arith.constant 2 : index
    %434 = vector.load %arg7[%c3_327, %c0_328, %c2_329, %c2_330] : memref<4x2x11x26xf32, #tpu.memory_space<vmem>>, vector<1x2x9x24xf32>
    %435 = vector.shape_cast %434 : vector<1x2x9x24xf32> to vector<2x9x24xf32>
    %436 = vector.broadcast %433 : f32 to vector<2x9x24xf32>
    %437 = arith.mulf %436, %435 : vector<2x9x24xf32>
    %438 = arith.addf %432, %437 : vector<2x9x24xf32>
    %c0_331 = arith.constant 0 : index
    %439 = memref.load %arg4[%c0_331] : memref<4xf32, #tpu.memory_space<smem>>
    %440 = vector.broadcast %439 : f32 to vector<2x9x24xf32>
    %441 = arith.addf %438, %440 : vector<2x9x24xf32>
    %cst_332 = arith.constant 0.000000e+00 : f32
    %442 = vector.broadcast %cst_332 : f32 to vector<2x9x24xf32>
    %443 = arith.maximumf %441, %442 : vector<2x9x24xf32>
    %c0_333 = arith.constant 0 : index
    %c0_334 = arith.constant 0 : index
    %c0_335 = arith.constant 0 : index
    %c0_336 = arith.constant 0 : index
    %444 = vector.load %arg5[%c0_333, %c0_334, %c0_335, %c0_336] : memref<4x2x9x24xf32, #tpu.memory_space<vmem>>, vector<1x2x9x24xf32>
    %445 = vector.shape_cast %444 : vector<1x2x9x24xf32> to vector<2x9x24xf32>
    %446 = vector.shape_cast %443 : vector<2x9x24xf32> to vector<1x2x9x24xf32>
    tpu.vector_store %arg5[%c0_333, %c0_334, %c0_335, %c0_336], %446 {strides = array<i32>} : memref<4x2x9x24xf32, #tpu.memory_space<vmem>>, vector<1x2x9x24xf32>,
    %cst_337 = arith.constant 0.000000e+00 : f32
    %447 = vector.broadcast %cst_337 : f32 to vector<2x9x24xf32>
    %c36 = arith.constant 36 : index
    %448 = memref.load %arg3[%c36] : memref<144xf32, #tpu.memory_space<smem>>
    %c0_338 = arith.constant 0 : index
    %c0_339 = arith.constant 0 : index
    %c0_340 = arith.constant 0 : index
    %c0_341 = arith.constant 0 : index
    %449 = vector.load %arg7[%c0_338, %c0_339, %c0_340, %c0_341] : memref<4x2x11x26xf32, #tpu.memory_space<vmem>>, vector<1x2x9x24xf32>
    %450 = vector.shape_cast %449 : vector<1x2x9x24xf32> to vector<2x9x24xf32>
    %451 = vector.broadcast %448 : f32 to vector<2x9x24xf32>
    %452 = arith.mulf %451, %450 : vector<2x9x24xf32>
    %453 = arith.addf %447, %452 : vector<2x9x24xf32>
    %c37 = arith.constant 37 : index
    %454 = memref.load %arg3[%c37] : memref<144xf32, #tpu.memory_space<smem>>
    %c0_342 = arith.constant 0 : index
    %c0_343 = arith.constant 0 : index
    %c0_344 = arith.constant 0 : index
    %c1_345 = arith.constant 1 : index
    %455 = vector.load %arg7[%c0_342, %c0_343, %c0_344, %c1_345] : memref<4x2x11x26xf32, #tpu.memory_space<vmem>>, vector<1x2x9x24xf32>
    %456 = vector.shape_cast %455 : vector<1x2x9x24xf32> to vector<2x9x24xf32>
    %457 = vector.broadcast %454 : f32 to vector<2x9x24xf32>
    %458 = arith.mulf %457, %456 : vector<2x9x24xf32>
    %459 = arith.addf %453, %458 : vector<2x9x24xf32>
    %c38 = arith.constant 38 : index
    %460 = memref.load %arg3[%c38] : memref<144xf32, #tpu.memory_space<smem>>
    %c0_346 = arith.constant 0 : index
    %c0_347 = arith.constant 0 : index
    %c0_348 = arith.constant 0 : index
    %c2_349 = arith.constant 2 : index
    %461 = vector.load %arg7[%c0_346, %c0_347, %c0_348, %c2_349] : memref<4x2x11x26xf32, #tpu.memory_space<vmem>>, vector<1x2x9x24xf32>
    %462 = vector.shape_cast %461 : vector<1x2x9x24xf32> to vector<2x9x24xf32>
    %463 = vector.broadcast %460 : f32 to vector<2x9x24xf32>
    %464 = arith.mulf %463, %462 : vector<2x9x24xf32>
    %465 = arith.addf %459, %464 : vector<2x9x24xf32>
    %c39 = arith.constant 39 : index
    %466 = memref.load %arg3[%c39] : memref<144xf32, #tpu.memory_space<smem>>
    %c0_350 = arith.constant 0 : index
    %c0_351 = arith.constant 0 : index
    %c1_352 = arith.constant 1 : index
    %c0_353 = arith.constant 0 : index
    %467 = vector.load %arg7[%c0_350, %c0_351, %c1_352, %c0_353] : memref<4x2x11x26xf32, #tpu.memory_space<vmem>>, vector<1x2x9x24xf32>
    %468 = vector.shape_cast %467 : vector<1x2x9x24xf32> to vector<2x9x24xf32>
    %469 = vector.broadcast %466 : f32 to vector<2x9x24xf32>
    %470 = arith.mulf %469, %468 : vector<2x9x24xf32>
    %471 = arith.addf %465, %470 : vector<2x9x24xf32>
    %c40 = arith.constant 40 : index
    %472 = memref.load %arg3[%c40] : memref<144xf32, #tpu.memory_space<smem>>
    %c0_354 = arith.constant 0 : index
    %c0_355 = arith.constant 0 : index
    %c1_356 = arith.constant 1 : index
    %c1_357 = arith.constant 1 : index
    %473 = vector.load %arg7[%c0_354, %c0_355, %c1_356, %c1_357] : memref<4x2x11x26xf32, #tpu.memory_space<vmem>>, vector<1x2x9x24xf32>
    %474 = vector.shape_cast %473 : vector<1x2x9x24xf32> to vector<2x9x24xf32>
    %475 = vector.broadcast %472 : f32 to vector<2x9x24xf32>
    %476 = arith.mulf %475, %474 : vector<2x9x24xf32>
    %477 = arith.addf %471, %476 : vector<2x9x24xf32>
    %c41 = arith.constant 41 : index
    %478 = memref.load %arg3[%c41] : memref<144xf32, #tpu.memory_space<smem>>
    %c0_358 = arith.constant 0 : index
    %c0_359 = arith.constant 0 : index
    %c1_360 = arith.constant 1 : index
    %c2_361 = arith.constant 2 : index
    %479 = vector.load %arg7[%c0_358, %c0_359, %c1_360, %c2_361] : memref<4x2x11x26xf32, #tpu.memory_space<vmem>>, vector<1x2x9x24xf32>
    %480 = vector.shape_cast %479 : vector<1x2x9x24xf32> to vector<2x9x24xf32>
    %481 = vector.broadcast %478 : f32 to vector<2x9x24xf32>
    %482 = arith.mulf %481, %480 : vector<2x9x24xf32>
    %483 = arith.addf %477, %482 : vector<2x9x24xf32>
    %c42 = arith.constant 42 : index
    %484 = memref.load %arg3[%c42] : memref<144xf32, #tpu.memory_space<smem>>
    %c0_362 = arith.constant 0 : index
    %c0_363 = arith.constant 0 : index
    %c2_364 = arith.constant 2 : index
    %c0_365 = arith.constant 0 : index
    %485 = vector.load %arg7[%c0_362, %c0_363, %c2_364, %c0_365] : memref<4x2x11x26xf32, #tpu.memory_space<vmem>>, vector<1x2x9x24xf32>
    %486 = vector.shape_cast %485 : vector<1x2x9x24xf32> to vector<2x9x24xf32>
    %487 = vector.broadcast %484 : f32 to vector<2x9x24xf32>
    %488 = arith.mulf %487, %486 : vector<2x9x24xf32>
    %489 = arith.addf %483, %488 : vector<2x9x24xf32>
    %c43 = arith.constant 43 : index
    %490 = memref.load %arg3[%c43] : memref<144xf32, #tpu.memory_space<smem>>
    %c0_366 = arith.constant 0 : index
    %c0_367 = arith.constant 0 : index
    %c2_368 = arith.constant 2 : index
    %c1_369 = arith.constant 1 : index
    %491 = vector.load %arg7[%c0_366, %c0_367, %c2_368, %c1_369] : memref<4x2x11x26xf32, #tpu.memory_space<vmem>>, vector<1x2x9x24xf32>
    %492 = vector.shape_cast %491 : vector<1x2x9x24xf32> to vector<2x9x24xf32>
    %493 = vector.broadcast %490 : f32 to vector<2x9x24xf32>
    %494 = arith.mulf %493, %492 : vector<2x9x24xf32>
    %495 = arith.addf %489, %494 : vector<2x9x24xf32>
    %c44 = arith.constant 44 : index
    %496 = memref.load %arg3[%c44] : memref<144xf32, #tpu.memory_space<smem>>
    %c0_370 = arith.constant 0 : index
    %c0_371 = arith.constant 0 : index
    %c2_372 = arith.constant 2 : index
    %c2_373 = arith.constant 2 : index
    %497 = vector.load %arg7[%c0_370, %c0_371, %c2_372, %c2_373] : memref<4x2x11x26xf32, #tpu.memory_space<vmem>>, vector<1x2x9x24xf32>
    %498 = vector.shape_cast %497 : vector<1x2x9x24xf32> to vector<2x9x24xf32>
    %499 = vector.broadcast %496 : f32 to vector<2x9x24xf32>
    %500 = arith.mulf %499, %498 : vector<2x9x24xf32>
    %501 = arith.addf %495, %500 : vector<2x9x24xf32>
    %c45 = arith.constant 45 : index
    %502 = memref.load %arg3[%c45] : memref<144xf32, #tpu.memory_space<smem>>
    %c1_374 = arith.constant 1 : index
    %c0_375 = arith.constant 0 : index
    %c0_376 = arith.constant 0 : index
    %c0_377 = arith.constant 0 : index
    %503 = vector.load %arg7[%c1_374, %c0_375, %c0_376, %c0_377] : memref<4x2x11x26xf32, #tpu.memory_space<vmem>>, vector<1x2x9x24xf32>
    %504 = vector.shape_cast %503 : vector<1x2x9x24xf32> to vector<2x9x24xf32>
    %505 = vector.broadcast %502 : f32 to vector<2x9x24xf32>
    %506 = arith.mulf %505, %504 : vector<2x9x24xf32>
    %507 = arith.addf %501, %506 : vector<2x9x24xf32>
    %c46 = arith.constant 46 : index
    %508 = memref.load %arg3[%c46] : memref<144xf32, #tpu.memory_space<smem>>
    %c1_378 = arith.constant 1 : index
    %c0_379 = arith.constant 0 : index
    %c0_380 = arith.constant 0 : index
    %c1_381 = arith.constant 1 : index
    %509 = vector.load %arg7[%c1_378, %c0_379, %c0_380, %c1_381] : memref<4x2x11x26xf32, #tpu.memory_space<vmem>>, vector<1x2x9x24xf32>
    %510 = vector.shape_cast %509 : vector<1x2x9x24xf32> to vector<2x9x24xf32>
    %511 = vector.broadcast %508 : f32 to vector<2x9x24xf32>
    %512 = arith.mulf %511, %510 : vector<2x9x24xf32>
    %513 = arith.addf %507, %512 : vector<2x9x24xf32>
    %c47 = arith.constant 47 : index
    %514 = memref.load %arg3[%c47] : memref<144xf32, #tpu.memory_space<smem>>
    %c1_382 = arith.constant 1 : index
    %c0_383 = arith.constant 0 : index
    %c0_384 = arith.constant 0 : index
    %c2_385 = arith.constant 2 : index
    %515 = vector.load %arg7[%c1_382, %c0_383, %c0_384, %c2_385] : memref<4x2x11x26xf32, #tpu.memory_space<vmem>>, vector<1x2x9x24xf32>
    %516 = vector.shape_cast %515 : vector<1x2x9x24xf32> to vector<2x9x24xf32>
    %517 = vector.broadcast %514 : f32 to vector<2x9x24xf32>
    %518 = arith.mulf %517, %516 : vector<2x9x24xf32>
    %519 = arith.addf %513, %518 : vector<2x9x24xf32>
    %c48 = arith.constant 48 : index
    %520 = memref.load %arg3[%c48] : memref<144xf32, #tpu.memory_space<smem>>
    %c1_386 = arith.constant 1 : index
    %c0_387 = arith.constant 0 : index
    %c1_388 = arith.constant 1 : index
    %c0_389 = arith.constant 0 : index
    %521 = vector.load %arg7[%c1_386, %c0_387, %c1_388, %c0_389] : memref<4x2x11x26xf32, #tpu.memory_space<vmem>>, vector<1x2x9x24xf32>
    %522 = vector.shape_cast %521 : vector<1x2x9x24xf32> to vector<2x9x24xf32>
    %523 = vector.broadcast %520 : f32 to vector<2x9x24xf32>
    %524 = arith.mulf %523, %522 : vector<2x9x24xf32>
    %525 = arith.addf %519, %524 : vector<2x9x24xf32>
    %c49 = arith.constant 49 : index
    %526 = memref.load %arg3[%c49] : memref<144xf32, #tpu.memory_space<smem>>
    %c1_390 = arith.constant 1 : index
    %c0_391 = arith.constant 0 : index
    %c1_392 = arith.constant 1 : index
    %c1_393 = arith.constant 1 : index
    %527 = vector.load %arg7[%c1_390, %c0_391, %c1_392, %c1_393] : memref<4x2x11x26xf32, #tpu.memory_space<vmem>>, vector<1x2x9x24xf32>
    %528 = vector.shape_cast %527 : vector<1x2x9x24xf32> to vector<2x9x24xf32>
    %529 = vector.broadcast %526 : f32 to vector<2x9x24xf32>
    %530 = arith.mulf %529, %528 : vector<2x9x24xf32>
    %531 = arith.addf %525, %530 : vector<2x9x24xf32>
    %c50 = arith.constant 50 : index
    %532 = memref.load %arg3[%c50] : memref<144xf32, #tpu.memory_space<smem>>
    %c1_394 = arith.constant 1 : index
    %c0_395 = arith.constant 0 : index
    %c1_396 = arith.constant 1 : index
    %c2_397 = arith.constant 2 : index
    %533 = vector.load %arg7[%c1_394, %c0_395, %c1_396, %c2_397] : memref<4x2x11x26xf32, #tpu.memory_space<vmem>>, vector<1x2x9x24xf32>
    %534 = vector.shape_cast %533 : vector<1x2x9x24xf32> to vector<2x9x24xf32>
    %535 = vector.broadcast %532 : f32 to vector<2x9x24xf32>
    %536 = arith.mulf %535, %534 : vector<2x9x24xf32>
    %537 = arith.addf %531, %536 : vector<2x9x24xf32>
    %c51 = arith.constant 51 : index
    %538 = memref.load %arg3[%c51] : memref<144xf32, #tpu.memory_space<smem>>
    %c1_398 = arith.constant 1 : index
    %c0_399 = arith.constant 0 : index
    %c2_400 = arith.constant 2 : index
    %c0_401 = arith.constant 0 : index
    %539 = vector.load %arg7[%c1_398, %c0_399, %c2_400, %c0_401] : memref<4x2x11x26xf32, #tpu.memory_space<vmem>>, vector<1x2x9x24xf32>
    %540 = vector.shape_cast %539 : vector<1x2x9x24xf32> to vector<2x9x24xf32>
    %541 = vector.broadcast %538 : f32 to vector<2x9x24xf32>
    %542 = arith.mulf %541, %540 : vector<2x9x24xf32>
    %543 = arith.addf %537, %542 : vector<2x9x24xf32>
    %c52 = arith.constant 52 : index
    %544 = memref.load %arg3[%c52] : memref<144xf32, #tpu.memory_space<smem>>
    %c1_402 = arith.constant 1 : index
    %c0_403 = arith.constant 0 : index
    %c2_404 = arith.constant 2 : index
    %c1_405 = arith.constant 1 : index
    %545 = vector.load %arg7[%c1_402, %c0_403, %c2_404, %c1_405] : memref<4x2x11x26xf32, #tpu.memory_space<vmem>>, vector<1x2x9x24xf32>
    %546 = vector.shape_cast %545 : vector<1x2x9x24xf32> to vector<2x9x24xf32>
    %547 = vector.broadcast %544 : f32 to vector<2x9x24xf32>
    %548 = arith.mulf %547, %546 : vector<2x9x24xf32>
    %549 = arith.addf %543, %548 : vector<2x9x24xf32>
    %c53 = arith.constant 53 : index
    %550 = memref.load %arg3[%c53] : memref<144xf32, #tpu.memory_space<smem>>
    %c1_406 = arith.constant 1 : index
    %c0_407 = arith.constant 0 : index
    %c2_408 = arith.constant 2 : index
    %c2_409 = arith.constant 2 : index
    %551 = vector.load %arg7[%c1_406, %c0_407, %c2_408, %c2_409] : memref<4x2x11x26xf32, #tpu.memory_space<vmem>>, vector<1x2x9x24xf32>
    %552 = vector.shape_cast %551 : vector<1x2x9x24xf32> to vector<2x9x24xf32>
    %553 = vector.broadcast %550 : f32 to vector<2x9x24xf32>
    %554 = arith.mulf %553, %552 : vector<2x9x24xf32>
    %555 = arith.addf %549, %554 : vector<2x9x24xf32>
    %c54 = arith.constant 54 : index
    %556 = memref.load %arg3[%c54] : memref<144xf32, #tpu.memory_space<smem>>
    %c2_410 = arith.constant 2 : index
    %c0_411 = arith.constant 0 : index
    %c0_412 = arith.constant 0 : index
    %c0_413 = arith.constant 0 : index
    %557 = vector.load %arg7[%c2_410, %c0_411, %c0_412, %c0_413] : memref<4x2x11x26xf32, #tpu.memory_space<vmem>>, vector<1x2x9x24xf32>
    %558 = vector.shape_cast %557 : vector<1x2x9x24xf32> to vector<2x9x24xf32>
    %559 = vector.broadcast %556 : f32 to vector<2x9x24xf32>
    %560 = arith.mulf %559, %558 : vector<2x9x24xf32>
    %561 = arith.addf %555, %560 : vector<2x9x24xf32>
    %c55 = arith.constant 55 : index
    %562 = memref.load %arg3[%c55] : memref<144xf32, #tpu.memory_space<smem>>
    %c2_414 = arith.constant 2 : index
    %c0_415 = arith.constant 0 : index
    %c0_416 = arith.constant 0 : index
    %c1_417 = arith.constant 1 : index
    %563 = vector.load %arg7[%c2_414, %c0_415, %c0_416, %c1_417] : memref<4x2x11x26xf32, #tpu.memory_space<vmem>>, vector<1x2x9x24xf32>
    %564 = vector.shape_cast %563 : vector<1x2x9x24xf32> to vector<2x9x24xf32>
    %565 = vector.broadcast %562 : f32 to vector<2x9x24xf32>
    %566 = arith.mulf %565, %564 : vector<2x9x24xf32>
    %567 = arith.addf %561, %566 : vector<2x9x24xf32>
    %c56 = arith.constant 56 : index
    %568 = memref.load %arg3[%c56] : memref<144xf32, #tpu.memory_space<smem>>
    %c2_418 = arith.constant 2 : index
    %c0_419 = arith.constant 0 : index
    %c0_420 = arith.constant 0 : index
    %c2_421 = arith.constant 2 : index
    %569 = vector.load %arg7[%c2_418, %c0_419, %c0_420, %c2_421] : memref<4x2x11x26xf32, #tpu.memory_space<vmem>>, vector<1x2x9x24xf32>
    %570 = vector.shape_cast %569 : vector<1x2x9x24xf32> to vector<2x9x24xf32>
    %571 = vector.broadcast %568 : f32 to vector<2x9x24xf32>
    %572 = arith.mulf %571, %570 : vector<2x9x24xf32>
    %573 = arith.addf %567, %572 : vector<2x9x24xf32>
    %c57 = arith.constant 57 : index
    %574 = memref.load %arg3[%c57] : memref<144xf32, #tpu.memory_space<smem>>
    %c2_422 = arith.constant 2 : index
    %c0_423 = arith.constant 0 : index
    %c1_424 = arith.constant 1 : index
    %c0_425 = arith.constant 0 : index
    %575 = vector.load %arg7[%c2_422, %c0_423, %c1_424, %c0_425] : memref<4x2x11x26xf32, #tpu.memory_space<vmem>>, vector<1x2x9x24xf32>
    %576 = vector.shape_cast %575 : vector<1x2x9x24xf32> to vector<2x9x24xf32>
    %577 = vector.broadcast %574 : f32 to vector<2x9x24xf32>
    %578 = arith.mulf %577, %576 : vector<2x9x24xf32>
    %579 = arith.addf %573, %578 : vector<2x9x24xf32>
    %c58 = arith.constant 58 : index
    %580 = memref.load %arg3[%c58] : memref<144xf32, #tpu.memory_space<smem>>
    %c2_426 = arith.constant 2 : index
    %c0_427 = arith.constant 0 : index
    %c1_428 = arith.constant 1 : index
    %c1_429 = arith.constant 1 : index
    %581 = vector.load %arg7[%c2_426, %c0_427, %c1_428, %c1_429] : memref<4x2x11x26xf32, #tpu.memory_space<vmem>>, vector<1x2x9x24xf32>
    %582 = vector.shape_cast %581 : vector<1x2x9x24xf32> to vector<2x9x24xf32>
    %583 = vector.broadcast %580 : f32 to vector<2x9x24xf32>
    %584 = arith.mulf %583, %582 : vector<2x9x24xf32>
    %585 = arith.addf %579, %584 : vector<2x9x24xf32>
    %c59 = arith.constant 59 : index
    %586 = memref.load %arg3[%c59] : memref<144xf32, #tpu.memory_space<smem>>
    %c2_430 = arith.constant 2 : index
    %c0_431 = arith.constant 0 : index
    %c1_432 = arith.constant 1 : index
    %c2_433 = arith.constant 2 : index
    %587 = vector.load %arg7[%c2_430, %c0_431, %c1_432, %c2_433] : memref<4x2x11x26xf32, #tpu.memory_space<vmem>>, vector<1x2x9x24xf32>
    %588 = vector.shape_cast %587 : vector<1x2x9x24xf32> to vector<2x9x24xf32>
    %589 = vector.broadcast %586 : f32 to vector<2x9x24xf32>
    %590 = arith.mulf %589, %588 : vector<2x9x24xf32>
    %591 = arith.addf %585, %590 : vector<2x9x24xf32>
    %c60 = arith.constant 60 : index
    %592 = memref.load %arg3[%c60] : memref<144xf32, #tpu.memory_space<smem>>
    %c2_434 = arith.constant 2 : index
    %c0_435 = arith.constant 0 : index
    %c2_436 = arith.constant 2 : index
    %c0_437 = arith.constant 0 : index
    %593 = vector.load %arg7[%c2_434, %c0_435, %c2_436, %c0_437] : memref<4x2x11x26xf32, #tpu.memory_space<vmem>>, vector<1x2x9x24xf32>
    %594 = vector.shape_cast %593 : vector<1x2x9x24xf32> to vector<2x9x24xf32>
    %595 = vector.broadcast %592 : f32 to vector<2x9x24xf32>
    %596 = arith.mulf %595, %594 : vector<2x9x24xf32>
    %597 = arith.addf %591, %596 : vector<2x9x24xf32>
    %c61 = arith.constant 61 : index
    %598 = memref.load %arg3[%c61] : memref<144xf32, #tpu.memory_space<smem>>
    %c2_438 = arith.constant 2 : index
    %c0_439 = arith.constant 0 : index
    %c2_440 = arith.constant 2 : index
    %c1_441 = arith.constant 1 : index
    %599 = vector.load %arg7[%c2_438, %c0_439, %c2_440, %c1_441] : memref<4x2x11x26xf32, #tpu.memory_space<vmem>>, vector<1x2x9x24xf32>
    %600 = vector.shape_cast %599 : vector<1x2x9x24xf32> to vector<2x9x24xf32>
    %601 = vector.broadcast %598 : f32 to vector<2x9x24xf32>
    %602 = arith.mulf %601, %600 : vector<2x9x24xf32>
    %603 = arith.addf %597, %602 : vector<2x9x24xf32>
    %c62 = arith.constant 62 : index
    %604 = memref.load %arg3[%c62] : memref<144xf32, #tpu.memory_space<smem>>
    %c2_442 = arith.constant 2 : index
    %c0_443 = arith.constant 0 : index
    %c2_444 = arith.constant 2 : index
    %c2_445 = arith.constant 2 : index
    %605 = vector.load %arg7[%c2_442, %c0_443, %c2_444, %c2_445] : memref<4x2x11x26xf32, #tpu.memory_space<vmem>>, vector<1x2x9x24xf32>
    %606 = vector.shape_cast %605 : vector<1x2x9x24xf32> to vector<2x9x24xf32>
    %607 = vector.broadcast %604 : f32 to vector<2x9x24xf32>
    %608 = arith.mulf %607, %606 : vector<2x9x24xf32>
    %609 = arith.addf %603, %608 : vector<2x9x24xf32>
    %c63 = arith.constant 63 : index
    %610 = memref.load %arg3[%c63] : memref<144xf32, #tpu.memory_space<smem>>
    %c3_446 = arith.constant 3 : index
    %c0_447 = arith.constant 0 : index
    %c0_448 = arith.constant 0 : index
    %c0_449 = arith.constant 0 : index
    %611 = vector.load %arg7[%c3_446, %c0_447, %c0_448, %c0_449] : memref<4x2x11x26xf32, #tpu.memory_space<vmem>>, vector<1x2x9x24xf32>
    %612 = vector.shape_cast %611 : vector<1x2x9x24xf32> to vector<2x9x24xf32>
    %613 = vector.broadcast %610 : f32 to vector<2x9x24xf32>
    %614 = arith.mulf %613, %612 : vector<2x9x24xf32>
    %615 = arith.addf %609, %614 : vector<2x9x24xf32>
    %c64 = arith.constant 64 : index
    %616 = memref.load %arg3[%c64] : memref<144xf32, #tpu.memory_space<smem>>
    %c3_450 = arith.constant 3 : index
    %c0_451 = arith.constant 0 : index
    %c0_452 = arith.constant 0 : index
    %c1_453 = arith.constant 1 : index
    %617 = vector.load %arg7[%c3_450, %c0_451, %c0_452, %c1_453] : memref<4x2x11x26xf32, #tpu.memory_space<vmem>>, vector<1x2x9x24xf32>
    %618 = vector.shape_cast %617 : vector<1x2x9x24xf32> to vector<2x9x24xf32>
    %619 = vector.broadcast %616 : f32 to vector<2x9x24xf32>
    %620 = arith.mulf %619, %618 : vector<2x9x24xf32>
    %621 = arith.addf %615, %620 : vector<2x9x24xf32>
    %c65 = arith.constant 65 : index
    %622 = memref.load %arg3[%c65] : memref<144xf32, #tpu.memory_space<smem>>
    %c3_454 = arith.constant 3 : index
    %c0_455 = arith.constant 0 : index
    %c0_456 = arith.constant 0 : index
    %c2_457 = arith.constant 2 : index
    %623 = vector.load %arg7[%c3_454, %c0_455, %c0_456, %c2_457] : memref<4x2x11x26xf32, #tpu.memory_space<vmem>>, vector<1x2x9x24xf32>
    %624 = vector.shape_cast %623 : vector<1x2x9x24xf32> to vector<2x9x24xf32>
    %625 = vector.broadcast %622 : f32 to vector<2x9x24xf32>
    %626 = arith.mulf %625, %624 : vector<2x9x24xf32>
    %627 = arith.addf %621, %626 : vector<2x9x24xf32>
    %c66 = arith.constant 66 : index
    %628 = memref.load %arg3[%c66] : memref<144xf32, #tpu.memory_space<smem>>
    %c3_458 = arith.constant 3 : index
    %c0_459 = arith.constant 0 : index
    %c1_460 = arith.constant 1 : index
    %c0_461 = arith.constant 0 : index
    %629 = vector.load %arg7[%c3_458, %c0_459, %c1_460, %c0_461] : memref<4x2x11x26xf32, #tpu.memory_space<vmem>>, vector<1x2x9x24xf32>
    %630 = vector.shape_cast %629 : vector<1x2x9x24xf32> to vector<2x9x24xf32>
    %631 = vector.broadcast %628 : f32 to vector<2x9x24xf32>
    %632 = arith.mulf %631, %630 : vector<2x9x24xf32>
    %633 = arith.addf %627, %632 : vector<2x9x24xf32>
    %c67 = arith.constant 67 : index
    %634 = memref.load %arg3[%c67] : memref<144xf32, #tpu.memory_space<smem>>
    %c3_462 = arith.constant 3 : index
    %c0_463 = arith.constant 0 : index
    %c1_464 = arith.constant 1 : index
    %c1_465 = arith.constant 1 : index
    %635 = vector.load %arg7[%c3_462, %c0_463, %c1_464, %c1_465] : memref<4x2x11x26xf32, #tpu.memory_space<vmem>>, vector<1x2x9x24xf32>
    %636 = vector.shape_cast %635 : vector<1x2x9x24xf32> to vector<2x9x24xf32>
    %637 = vector.broadcast %634 : f32 to vector<2x9x24xf32>
    %638 = arith.mulf %637, %636 : vector<2x9x24xf32>
    %639 = arith.addf %633, %638 : vector<2x9x24xf32>
    %c68 = arith.constant 68 : index
    %640 = memref.load %arg3[%c68] : memref<144xf32, #tpu.memory_space<smem>>
    %c3_466 = arith.constant 3 : index
    %c0_467 = arith.constant 0 : index
    %c1_468 = arith.constant 1 : index
    %c2_469 = arith.constant 2 : index
    %641 = vector.load %arg7[%c3_466, %c0_467, %c1_468, %c2_469] : memref<4x2x11x26xf32, #tpu.memory_space<vmem>>, vector<1x2x9x24xf32>
    %642 = vector.shape_cast %641 : vector<1x2x9x24xf32> to vector<2x9x24xf32>
    %643 = vector.broadcast %640 : f32 to vector<2x9x24xf32>
    %644 = arith.mulf %643, %642 : vector<2x9x24xf32>
    %645 = arith.addf %639, %644 : vector<2x9x24xf32>
    %c69 = arith.constant 69 : index
    %646 = memref.load %arg3[%c69] : memref<144xf32, #tpu.memory_space<smem>>
    %c3_470 = arith.constant 3 : index
    %c0_471 = arith.constant 0 : index
    %c2_472 = arith.constant 2 : index
    %c0_473 = arith.constant 0 : index
    %647 = vector.load %arg7[%c3_470, %c0_471, %c2_472, %c0_473] : memref<4x2x11x26xf32, #tpu.memory_space<vmem>>, vector<1x2x9x24xf32>
    %648 = vector.shape_cast %647 : vector<1x2x9x24xf32> to vector<2x9x24xf32>
    %649 = vector.broadcast %646 : f32 to vector<2x9x24xf32>
    %650 = arith.mulf %649, %648 : vector<2x9x24xf32>
    %651 = arith.addf %645, %650 : vector<2x9x24xf32>
    %c70 = arith.constant 70 : index
    %652 = memref.load %arg3[%c70] : memref<144xf32, #tpu.memory_space<smem>>
    %c3_474 = arith.constant 3 : index
    %c0_475 = arith.constant 0 : index
    %c2_476 = arith.constant 2 : index
    %c1_477 = arith.constant 1 : index
    %653 = vector.load %arg7[%c3_474, %c0_475, %c2_476, %c1_477] : memref<4x2x11x26xf32, #tpu.memory_space<vmem>>, vector<1x2x9x24xf32>
    %654 = vector.shape_cast %653 : vector<1x2x9x24xf32> to vector<2x9x24xf32>
    %655 = vector.broadcast %652 : f32 to vector<2x9x24xf32>
    %656 = arith.mulf %655, %654 : vector<2x9x24xf32>
    %657 = arith.addf %651, %656 : vector<2x9x24xf32>
    %c71 = arith.constant 71 : index
    %658 = memref.load %arg3[%c71] : memref<144xf32, #tpu.memory_space<smem>>
    %c3_478 = arith.constant 3 : index
    %c0_479 = arith.constant 0 : index
    %c2_480 = arith.constant 2 : index
    %c2_481 = arith.constant 2 : index
    %659 = vector.load %arg7[%c3_478, %c0_479, %c2_480, %c2_481] : memref<4x2x11x26xf32, #tpu.memory_space<vmem>>, vector<1x2x9x24xf32>
    %660 = vector.shape_cast %659 : vector<1x2x9x24xf32> to vector<2x9x24xf32>
    %661 = vector.broadcast %658 : f32 to vector<2x9x24xf32>
    %662 = arith.mulf %661, %660 : vector<2x9x24xf32>
    %663 = arith.addf %657, %662 : vector<2x9x24xf32>
    %c1_482 = arith.constant 1 : index
    %664 = memref.load %arg4[%c1_482] : memref<4xf32, #tpu.memory_space<smem>>
    %665 = vector.broadcast %664 : f32 to vector<2x9x24xf32>
    %666 = arith.addf %663, %665 : vector<2x9x24xf32>
    %cst_483 = arith.constant 0.000000e+00 : f32
    %667 = vector.broadcast %cst_483 : f32 to vector<2x9x24xf32>
    %668 = arith.maximumf %666, %667 : vector<2x9x24xf32>
    %c1_484 = arith.constant 1 : index
    %c0_485 = arith.constant 0 : index
    %c0_486 = arith.constant 0 : index
    %c0_487 = arith.constant 0 : index
    %669 = vector.load %arg5[%c1_484, %c0_485, %c0_486, %c0_487] : memref<4x2x9x24xf32, #tpu.memory_space<vmem>>, vector<1x2x9x24xf32>
    %670 = vector.shape_cast %669 : vector<1x2x9x24xf32> to vector<2x9x24xf32>
    %671 = vector.shape_cast %668 : vector<2x9x24xf32> to vector<1x2x9x24xf32>
    tpu.vector_store %arg5[%c1_484, %c0_485, %c0_486, %c0_487], %671 {strides = array<i32>} : memref<4x2x9x24xf32, #tpu.memory_space<vmem>>, vector<1x2x9x24xf32>,
    %cst_488 = arith.constant 0.000000e+00 : f32
    %672 = vector.broadcast %cst_488 : f32 to vector<2x9x24xf32>
    %c72 = arith.constant 72 : index
    %673 = memref.load %arg3[%c72] : memref<144xf32, #tpu.memory_space<smem>>
    %c0_489 = arith.constant 0 : index
    %c0_490 = arith.constant 0 : index
    %c0_491 = arith.constant 0 : index
    %c0_492 = arith.constant 0 : index
    %674 = vector.load %arg7[%c0_489, %c0_490, %c0_491, %c0_492] : memref<4x2x11x26xf32, #tpu.memory_space<vmem>>, vector<1x2x9x24xf32>
    %675 = vector.shape_cast %674 : vector<1x2x9x24xf32> to vector<2x9x24xf32>
    %676 = vector.broadcast %673 : f32 to vector<2x9x24xf32>
    %677 = arith.mulf %676, %675 : vector<2x9x24xf32>
    %678 = arith.addf %672, %677 : vector<2x9x24xf32>
    %c73 = arith.constant 73 : index
    %679 = memref.load %arg3[%c73] : memref<144xf32, #tpu.memory_space<smem>>
    %c0_493 = arith.constant 0 : index
    %c0_494 = arith.constant 0 : index
    %c0_495 = arith.constant 0 : index
    %c1_496 = arith.constant 1 : index
    %680 = vector.load %arg7[%c0_493, %c0_494, %c0_495, %c1_496] : memref<4x2x11x26xf32, #tpu.memory_space<vmem>>, vector<1x2x9x24xf32>
    %681 = vector.shape_cast %680 : vector<1x2x9x24xf32> to vector<2x9x24xf32>
    %682 = vector.broadcast %679 : f32 to vector<2x9x24xf32>
    %683 = arith.mulf %682, %681 : vector<2x9x24xf32>
    %684 = arith.addf %678, %683 : vector<2x9x24xf32>
    %c74 = arith.constant 74 : index
    %685 = memref.load %arg3[%c74] : memref<144xf32, #tpu.memory_space<smem>>
    %c0_497 = arith.constant 0 : index
    %c0_498 = arith.constant 0 : index
    %c0_499 = arith.constant 0 : index
    %c2_500 = arith.constant 2 : index
    %686 = vector.load %arg7[%c0_497, %c0_498, %c0_499, %c2_500] : memref<4x2x11x26xf32, #tpu.memory_space<vmem>>, vector<1x2x9x24xf32>
    %687 = vector.shape_cast %686 : vector<1x2x9x24xf32> to vector<2x9x24xf32>
    %688 = vector.broadcast %685 : f32 to vector<2x9x24xf32>
    %689 = arith.mulf %688, %687 : vector<2x9x24xf32>
    %690 = arith.addf %684, %689 : vector<2x9x24xf32>
    %c75 = arith.constant 75 : index
    %691 = memref.load %arg3[%c75] : memref<144xf32, #tpu.memory_space<smem>>
    %c0_501 = arith.constant 0 : index
    %c0_502 = arith.constant 0 : index
    %c1_503 = arith.constant 1 : index
    %c0_504 = arith.constant 0 : index
    %692 = vector.load %arg7[%c0_501, %c0_502, %c1_503, %c0_504] : memref<4x2x11x26xf32, #tpu.memory_space<vmem>>, vector<1x2x9x24xf32>
    %693 = vector.shape_cast %692 : vector<1x2x9x24xf32> to vector<2x9x24xf32>
    %694 = vector.broadcast %691 : f32 to vector<2x9x24xf32>
    %695 = arith.mulf %694, %693 : vector<2x9x24xf32>
    %696 = arith.addf %690, %695 : vector<2x9x24xf32>
    %c76 = arith.constant 76 : index
    %697 = memref.load %arg3[%c76] : memref<144xf32, #tpu.memory_space<smem>>
    %c0_505 = arith.constant 0 : index
    %c0_506 = arith.constant 0 : index
    %c1_507 = arith.constant 1 : index
    %c1_508 = arith.constant 1 : index
    %698 = vector.load %arg7[%c0_505, %c0_506, %c1_507, %c1_508] : memref<4x2x11x26xf32, #tpu.memory_space<vmem>>, vector<1x2x9x24xf32>
    %699 = vector.shape_cast %698 : vector<1x2x9x24xf32> to vector<2x9x24xf32>
    %700 = vector.broadcast %697 : f32 to vector<2x9x24xf32>
    %701 = arith.mulf %700, %699 : vector<2x9x24xf32>
    %702 = arith.addf %696, %701 : vector<2x9x24xf32>
    %c77 = arith.constant 77 : index
    %703 = memref.load %arg3[%c77] : memref<144xf32, #tpu.memory_space<smem>>
    %c0_509 = arith.constant 0 : index
    %c0_510 = arith.constant 0 : index
    %c1_511 = arith.constant 1 : index
    %c2_512 = arith.constant 2 : index
    %704 = vector.load %arg7[%c0_509, %c0_510, %c1_511, %c2_512] : memref<4x2x11x26xf32, #tpu.memory_space<vmem>>, vector<1x2x9x24xf32>
    %705 = vector.shape_cast %704 : vector<1x2x9x24xf32> to vector<2x9x24xf32>
    %706 = vector.broadcast %703 : f32 to vector<2x9x24xf32>
    %707 = arith.mulf %706, %705 : vector<2x9x24xf32>
    %708 = arith.addf %702, %707 : vector<2x9x24xf32>
    %c78 = arith.constant 78 : index
    %709 = memref.load %arg3[%c78] : memref<144xf32, #tpu.memory_space<smem>>
    %c0_513 = arith.constant 0 : index
    %c0_514 = arith.constant 0 : index
    %c2_515 = arith.constant 2 : index
    %c0_516 = arith.constant 0 : index
    %710 = vector.load %arg7[%c0_513, %c0_514, %c2_515, %c0_516] : memref<4x2x11x26xf32, #tpu.memory_space<vmem>>, vector<1x2x9x24xf32>
    %711 = vector.shape_cast %710 : vector<1x2x9x24xf32> to vector<2x9x24xf32>
    %712 = vector.broadcast %709 : f32 to vector<2x9x24xf32>
    %713 = arith.mulf %712, %711 : vector<2x9x24xf32>
    %714 = arith.addf %708, %713 : vector<2x9x24xf32>
    %c79 = arith.constant 79 : index
    %715 = memref.load %arg3[%c79] : memref<144xf32, #tpu.memory_space<smem>>
    %c0_517 = arith.constant 0 : index
    %c0_518 = arith.constant 0 : index
    %c2_519 = arith.constant 2 : index
    %c1_520 = arith.constant 1 : index
    %716 = vector.load %arg7[%c0_517, %c0_518, %c2_519, %c1_520] : memref<4x2x11x26xf32, #tpu.memory_space<vmem>>, vector<1x2x9x24xf32>
    %717 = vector.shape_cast %716 : vector<1x2x9x24xf32> to vector<2x9x24xf32>
    %718 = vector.broadcast %715 : f32 to vector<2x9x24xf32>
    %719 = arith.mulf %718, %717 : vector<2x9x24xf32>
    %720 = arith.addf %714, %719 : vector<2x9x24xf32>
    %c80 = arith.constant 80 : index
    %721 = memref.load %arg3[%c80] : memref<144xf32, #tpu.memory_space<smem>>
    %c0_521 = arith.constant 0 : index
    %c0_522 = arith.constant 0 : index
    %c2_523 = arith.constant 2 : index
    %c2_524 = arith.constant 2 : index
    %722 = vector.load %arg7[%c0_521, %c0_522, %c2_523, %c2_524] : memref<4x2x11x26xf32, #tpu.memory_space<vmem>>, vector<1x2x9x24xf32>
    %723 = vector.shape_cast %722 : vector<1x2x9x24xf32> to vector<2x9x24xf32>
    %724 = vector.broadcast %721 : f32 to vector<2x9x24xf32>
    %725 = arith.mulf %724, %723 : vector<2x9x24xf32>
    %726 = arith.addf %720, %725 : vector<2x9x24xf32>
    %c81 = arith.constant 81 : index
    %727 = memref.load %arg3[%c81] : memref<144xf32, #tpu.memory_space<smem>>
    %c1_525 = arith.constant 1 : index
    %c0_526 = arith.constant 0 : index
    %c0_527 = arith.constant 0 : index
    %c0_528 = arith.constant 0 : index
    %728 = vector.load %arg7[%c1_525, %c0_526, %c0_527, %c0_528] : memref<4x2x11x26xf32, #tpu.memory_space<vmem>>, vector<1x2x9x24xf32>
    %729 = vector.shape_cast %728 : vector<1x2x9x24xf32> to vector<2x9x24xf32>
    %730 = vector.broadcast %727 : f32 to vector<2x9x24xf32>
    %731 = arith.mulf %730, %729 : vector<2x9x24xf32>
    %732 = arith.addf %726, %731 : vector<2x9x24xf32>
    %c82 = arith.constant 82 : index
    %733 = memref.load %arg3[%c82] : memref<144xf32, #tpu.memory_space<smem>>
    %c1_529 = arith.constant 1 : index
    %c0_530 = arith.constant 0 : index
    %c0_531 = arith.constant 0 : index
    %c1_532 = arith.constant 1 : index
    %734 = vector.load %arg7[%c1_529, %c0_530, %c0_531, %c1_532] : memref<4x2x11x26xf32, #tpu.memory_space<vmem>>, vector<1x2x9x24xf32>
    %735 = vector.shape_cast %734 : vector<1x2x9x24xf32> to vector<2x9x24xf32>
    %736 = vector.broadcast %733 : f32 to vector<2x9x24xf32>
    %737 = arith.mulf %736, %735 : vector<2x9x24xf32>
    %738 = arith.addf %732, %737 : vector<2x9x24xf32>
    %c83 = arith.constant 83 : index
    %739 = memref.load %arg3[%c83] : memref<144xf32, #tpu.memory_space<smem>>
    %c1_533 = arith.constant 1 : index
    %c0_534 = arith.constant 0 : index
    %c0_535 = arith.constant 0 : index
    %c2_536 = arith.constant 2 : index
    %740 = vector.load %arg7[%c1_533, %c0_534, %c0_535, %c2_536] : memref<4x2x11x26xf32, #tpu.memory_space<vmem>>, vector<1x2x9x24xf32>
    %741 = vector.shape_cast %740 : vector<1x2x9x24xf32> to vector<2x9x24xf32>
    %742 = vector.broadcast %739 : f32 to vector<2x9x24xf32>
    %743 = arith.mulf %742, %741 : vector<2x9x24xf32>
    %744 = arith.addf %738, %743 : vector<2x9x24xf32>
    %c84 = arith.constant 84 : index
    %745 = memref.load %arg3[%c84] : memref<144xf32, #tpu.memory_space<smem>>
    %c1_537 = arith.constant 1 : index
    %c0_538 = arith.constant 0 : index
    %c1_539 = arith.constant 1 : index
    %c0_540 = arith.constant 0 : index
    %746 = vector.load %arg7[%c1_537, %c0_538, %c1_539, %c0_540] : memref<4x2x11x26xf32, #tpu.memory_space<vmem>>, vector<1x2x9x24xf32>
    %747 = vector.shape_cast %746 : vector<1x2x9x24xf32> to vector<2x9x24xf32>
    %748 = vector.broadcast %745 : f32 to vector<2x9x24xf32>
    %749 = arith.mulf %748, %747 : vector<2x9x24xf32>
    %750 = arith.addf %744, %749 : vector<2x9x24xf32>
    %c85 = arith.constant 85 : index
    %751 = memref.load %arg3[%c85] : memref<144xf32, #tpu.memory_space<smem>>
    %c1_541 = arith.constant 1 : index
    %c0_542 = arith.constant 0 : index
    %c1_543 = arith.constant 1 : index
    %c1_544 = arith.constant 1 : index
    %752 = vector.load %arg7[%c1_541, %c0_542, %c1_543, %c1_544] : memref<4x2x11x26xf32, #tpu.memory_space<vmem>>, vector<1x2x9x24xf32>
    %753 = vector.shape_cast %752 : vector<1x2x9x24xf32> to vector<2x9x24xf32>
    %754 = vector.broadcast %751 : f32 to vector<2x9x24xf32>
    %755 = arith.mulf %754, %753 : vector<2x9x24xf32>
    %756 = arith.addf %750, %755 : vector<2x9x24xf32>
    %c86 = arith.constant 86 : index
    %757 = memref.load %arg3[%c86] : memref<144xf32, #tpu.memory_space<smem>>
    %c1_545 = arith.constant 1 : index
    %c0_546 = arith.constant 0 : index
    %c1_547 = arith.constant 1 : index
    %c2_548 = arith.constant 2 : index
    %758 = vector.load %arg7[%c1_545, %c0_546, %c1_547, %c2_548] : memref<4x2x11x26xf32, #tpu.memory_space<vmem>>, vector<1x2x9x24xf32>
    %759 = vector.shape_cast %758 : vector<1x2x9x24xf32> to vector<2x9x24xf32>
    %760 = vector.broadcast %757 : f32 to vector<2x9x24xf32>
    %761 = arith.mulf %760, %759 : vector<2x9x24xf32>
    %762 = arith.addf %756, %761 : vector<2x9x24xf32>
    %c87 = arith.constant 87 : index
    %763 = memref.load %arg3[%c87] : memref<144xf32, #tpu.memory_space<smem>>
    %c1_549 = arith.constant 1 : index
    %c0_550 = arith.constant 0 : index
    %c2_551 = arith.constant 2 : index
    %c0_552 = arith.constant 0 : index
    %764 = vector.load %arg7[%c1_549, %c0_550, %c2_551, %c0_552] : memref<4x2x11x26xf32, #tpu.memory_space<vmem>>, vector<1x2x9x24xf32>
    %765 = vector.shape_cast %764 : vector<1x2x9x24xf32> to vector<2x9x24xf32>
    %766 = vector.broadcast %763 : f32 to vector<2x9x24xf32>
    %767 = arith.mulf %766, %765 : vector<2x9x24xf32>
    %768 = arith.addf %762, %767 : vector<2x9x24xf32>
    %c88 = arith.constant 88 : index
    %769 = memref.load %arg3[%c88] : memref<144xf32, #tpu.memory_space<smem>>
    %c1_553 = arith.constant 1 : index
    %c0_554 = arith.constant 0 : index
    %c2_555 = arith.constant 2 : index
    %c1_556 = arith.constant 1 : index
    %770 = vector.load %arg7[%c1_553, %c0_554, %c2_555, %c1_556] : memref<4x2x11x26xf32, #tpu.memory_space<vmem>>, vector<1x2x9x24xf32>
    %771 = vector.shape_cast %770 : vector<1x2x9x24xf32> to vector<2x9x24xf32>
    %772 = vector.broadcast %769 : f32 to vector<2x9x24xf32>
    %773 = arith.mulf %772, %771 : vector<2x9x24xf32>
    %774 = arith.addf %768, %773 : vector<2x9x24xf32>
    %c89 = arith.constant 89 : index
    %775 = memref.load %arg3[%c89] : memref<144xf32, #tpu.memory_space<smem>>
    %c1_557 = arith.constant 1 : index
    %c0_558 = arith.constant 0 : index
    %c2_559 = arith.constant 2 : index
    %c2_560 = arith.constant 2 : index
    %776 = vector.load %arg7[%c1_557, %c0_558, %c2_559, %c2_560] : memref<4x2x11x26xf32, #tpu.memory_space<vmem>>, vector<1x2x9x24xf32>
    %777 = vector.shape_cast %776 : vector<1x2x9x24xf32> to vector<2x9x24xf32>
    %778 = vector.broadcast %775 : f32 to vector<2x9x24xf32>
    %779 = arith.mulf %778, %777 : vector<2x9x24xf32>
    %780 = arith.addf %774, %779 : vector<2x9x24xf32>
    %c90 = arith.constant 90 : index
    %781 = memref.load %arg3[%c90] : memref<144xf32, #tpu.memory_space<smem>>
    %c2_561 = arith.constant 2 : index
    %c0_562 = arith.constant 0 : index
    %c0_563 = arith.constant 0 : index
    %c0_564 = arith.constant 0 : index
    %782 = vector.load %arg7[%c2_561, %c0_562, %c0_563, %c0_564] : memref<4x2x11x26xf32, #tpu.memory_space<vmem>>, vector<1x2x9x24xf32>
    %783 = vector.shape_cast %782 : vector<1x2x9x24xf32> to vector<2x9x24xf32>
    %784 = vector.broadcast %781 : f32 to vector<2x9x24xf32>
    %785 = arith.mulf %784, %783 : vector<2x9x24xf32>
    %786 = arith.addf %780, %785 : vector<2x9x24xf32>
    %c91 = arith.constant 91 : index
    %787 = memref.load %arg3[%c91] : memref<144xf32, #tpu.memory_space<smem>>
    %c2_565 = arith.constant 2 : index
    %c0_566 = arith.constant 0 : index
    %c0_567 = arith.constant 0 : index
    %c1_568 = arith.constant 1 : index
    %788 = vector.load %arg7[%c2_565, %c0_566, %c0_567, %c1_568] : memref<4x2x11x26xf32, #tpu.memory_space<vmem>>, vector<1x2x9x24xf32>
    %789 = vector.shape_cast %788 : vector<1x2x9x24xf32> to vector<2x9x24xf32>
    %790 = vector.broadcast %787 : f32 to vector<2x9x24xf32>
    %791 = arith.mulf %790, %789 : vector<2x9x24xf32>
    %792 = arith.addf %786, %791 : vector<2x9x24xf32>
    %c92 = arith.constant 92 : index
    %793 = memref.load %arg3[%c92] : memref<144xf32, #tpu.memory_space<smem>>
    %c2_569 = arith.constant 2 : index
    %c0_570 = arith.constant 0 : index
    %c0_571 = arith.constant 0 : index
    %c2_572 = arith.constant 2 : index
    %794 = vector.load %arg7[%c2_569, %c0_570, %c0_571, %c2_572] : memref<4x2x11x26xf32, #tpu.memory_space<vmem>>, vector<1x2x9x24xf32>
    %795 = vector.shape_cast %794 : vector<1x2x9x24xf32> to vector<2x9x24xf32>
    %796 = vector.broadcast %793 : f32 to vector<2x9x24xf32>
    %797 = arith.mulf %796, %795 : vector<2x9x24xf32>
    %798 = arith.addf %792, %797 : vector<2x9x24xf32>
    %c93 = arith.constant 93 : index
    %799 = memref.load %arg3[%c93] : memref<144xf32, #tpu.memory_space<smem>>
    %c2_573 = arith.constant 2 : index
    %c0_574 = arith.constant 0 : index
    %c1_575 = arith.constant 1 : index
    %c0_576 = arith.constant 0 : index
    %800 = vector.load %arg7[%c2_573, %c0_574, %c1_575, %c0_576] : memref<4x2x11x26xf32, #tpu.memory_space<vmem>>, vector<1x2x9x24xf32>
    %801 = vector.shape_cast %800 : vector<1x2x9x24xf32> to vector<2x9x24xf32>
    %802 = vector.broadcast %799 : f32 to vector<2x9x24xf32>
    %803 = arith.mulf %802, %801 : vector<2x9x24xf32>
    %804 = arith.addf %798, %803 : vector<2x9x24xf32>
    %c94 = arith.constant 94 : index
    %805 = memref.load %arg3[%c94] : memref<144xf32, #tpu.memory_space<smem>>
    %c2_577 = arith.constant 2 : index
    %c0_578 = arith.constant 0 : index
    %c1_579 = arith.constant 1 : index
    %c1_580 = arith.constant 1 : index
    %806 = vector.load %arg7[%c2_577, %c0_578, %c1_579, %c1_580] : memref<4x2x11x26xf32, #tpu.memory_space<vmem>>, vector<1x2x9x24xf32>
    %807 = vector.shape_cast %806 : vector<1x2x9x24xf32> to vector<2x9x24xf32>
    %808 = vector.broadcast %805 : f32 to vector<2x9x24xf32>
    %809 = arith.mulf %808, %807 : vector<2x9x24xf32>
    %810 = arith.addf %804, %809 : vector<2x9x24xf32>
    %c95 = arith.constant 95 : index
    %811 = memref.load %arg3[%c95] : memref<144xf32, #tpu.memory_space<smem>>
    %c2_581 = arith.constant 2 : index
    %c0_582 = arith.constant 0 : index
    %c1_583 = arith.constant 1 : index
    %c2_584 = arith.constant 2 : index
    %812 = vector.load %arg7[%c2_581, %c0_582, %c1_583, %c2_584] : memref<4x2x11x26xf32, #tpu.memory_space<vmem>>, vector<1x2x9x24xf32>
    %813 = vector.shape_cast %812 : vector<1x2x9x24xf32> to vector<2x9x24xf32>
    %814 = vector.broadcast %811 : f32 to vector<2x9x24xf32>
    %815 = arith.mulf %814, %813 : vector<2x9x24xf32>
    %816 = arith.addf %810, %815 : vector<2x9x24xf32>
    %c96 = arith.constant 96 : index
    %817 = memref.load %arg3[%c96] : memref<144xf32, #tpu.memory_space<smem>>
    %c2_585 = arith.constant 2 : index
    %c0_586 = arith.constant 0 : index
    %c2_587 = arith.constant 2 : index
    %c0_588 = arith.constant 0 : index
    %818 = vector.load %arg7[%c2_585, %c0_586, %c2_587, %c0_588] : memref<4x2x11x26xf32, #tpu.memory_space<vmem>>, vector<1x2x9x24xf32>
    %819 = vector.shape_cast %818 : vector<1x2x9x24xf32> to vector<2x9x24xf32>
    %820 = vector.broadcast %817 : f32 to vector<2x9x24xf32>
    %821 = arith.mulf %820, %819 : vector<2x9x24xf32>
    %822 = arith.addf %816, %821 : vector<2x9x24xf32>
    %c97 = arith.constant 97 : index
    %823 = memref.load %arg3[%c97] : memref<144xf32, #tpu.memory_space<smem>>
    %c2_589 = arith.constant 2 : index
    %c0_590 = arith.constant 0 : index
    %c2_591 = arith.constant 2 : index
    %c1_592 = arith.constant 1 : index
    %824 = vector.load %arg7[%c2_589, %c0_590, %c2_591, %c1_592] : memref<4x2x11x26xf32, #tpu.memory_space<vmem>>, vector<1x2x9x24xf32>
    %825 = vector.shape_cast %824 : vector<1x2x9x24xf32> to vector<2x9x24xf32>
    %826 = vector.broadcast %823 : f32 to vector<2x9x24xf32>
    %827 = arith.mulf %826, %825 : vector<2x9x24xf32>
    %828 = arith.addf %822, %827 : vector<2x9x24xf32>
    %c98 = arith.constant 98 : index
    %829 = memref.load %arg3[%c98] : memref<144xf32, #tpu.memory_space<smem>>
    %c2_593 = arith.constant 2 : index
    %c0_594 = arith.constant 0 : index
    %c2_595 = arith.constant 2 : index
    %c2_596 = arith.constant 2 : index
    %830 = vector.load %arg7[%c2_593, %c0_594, %c2_595, %c2_596] : memref<4x2x11x26xf32, #tpu.memory_space<vmem>>, vector<1x2x9x24xf32>
    %831 = vector.shape_cast %830 : vector<1x2x9x24xf32> to vector<2x9x24xf32>
    %832 = vector.broadcast %829 : f32 to vector<2x9x24xf32>
    %833 = arith.mulf %832, %831 : vector<2x9x24xf32>
    %834 = arith.addf %828, %833 : vector<2x9x24xf32>
    %c99 = arith.constant 99 : index
    %835 = memref.load %arg3[%c99] : memref<144xf32, #tpu.memory_space<smem>>
    %c3_597 = arith.constant 3 : index
    %c0_598 = arith.constant 0 : index
    %c0_599 = arith.constant 0 : index
    %c0_600 = arith.constant 0 : index
    %836 = vector.load %arg7[%c3_597, %c0_598, %c0_599, %c0_600] : memref<4x2x11x26xf32, #tpu.memory_space<vmem>>, vector<1x2x9x24xf32>
    %837 = vector.shape_cast %836 : vector<1x2x9x24xf32> to vector<2x9x24xf32>
    %838 = vector.broadcast %835 : f32 to vector<2x9x24xf32>
    %839 = arith.mulf %838, %837 : vector<2x9x24xf32>
    %840 = arith.addf %834, %839 : vector<2x9x24xf32>
    %c100 = arith.constant 100 : index
    %841 = memref.load %arg3[%c100] : memref<144xf32, #tpu.memory_space<smem>>
    %c3_601 = arith.constant 3 : index
    %c0_602 = arith.constant 0 : index
    %c0_603 = arith.constant 0 : index
    %c1_604 = arith.constant 1 : index
    %842 = vector.load %arg7[%c3_601, %c0_602, %c0_603, %c1_604] : memref<4x2x11x26xf32, #tpu.memory_space<vmem>>, vector<1x2x9x24xf32>
    %843 = vector.shape_cast %842 : vector<1x2x9x24xf32> to vector<2x9x24xf32>
    %844 = vector.broadcast %841 : f32 to vector<2x9x24xf32>
    %845 = arith.mulf %844, %843 : vector<2x9x24xf32>
    %846 = arith.addf %840, %845 : vector<2x9x24xf32>
    %c101 = arith.constant 101 : index
    %847 = memref.load %arg3[%c101] : memref<144xf32, #tpu.memory_space<smem>>
    %c3_605 = arith.constant 3 : index
    %c0_606 = arith.constant 0 : index
    %c0_607 = arith.constant 0 : index
    %c2_608 = arith.constant 2 : index
    %848 = vector.load %arg7[%c3_605, %c0_606, %c0_607, %c2_608] : memref<4x2x11x26xf32, #tpu.memory_space<vmem>>, vector<1x2x9x24xf32>
    %849 = vector.shape_cast %848 : vector<1x2x9x24xf32> to vector<2x9x24xf32>
    %850 = vector.broadcast %847 : f32 to vector<2x9x24xf32>
    %851 = arith.mulf %850, %849 : vector<2x9x24xf32>
    %852 = arith.addf %846, %851 : vector<2x9x24xf32>
    %c102 = arith.constant 102 : index
    %853 = memref.load %arg3[%c102] : memref<144xf32, #tpu.memory_space<smem>>
    %c3_609 = arith.constant 3 : index
    %c0_610 = arith.constant 0 : index
    %c1_611 = arith.constant 1 : index
    %c0_612 = arith.constant 0 : index
    %854 = vector.load %arg7[%c3_609, %c0_610, %c1_611, %c0_612] : memref<4x2x11x26xf32, #tpu.memory_space<vmem>>, vector<1x2x9x24xf32>
    %855 = vector.shape_cast %854 : vector<1x2x9x24xf32> to vector<2x9x24xf32>
    %856 = vector.broadcast %853 : f32 to vector<2x9x24xf32>
    %857 = arith.mulf %856, %855 : vector<2x9x24xf32>
    %858 = arith.addf %852, %857 : vector<2x9x24xf32>
    %c103 = arith.constant 103 : index
    %859 = memref.load %arg3[%c103] : memref<144xf32, #tpu.memory_space<smem>>
    %c3_613 = arith.constant 3 : index
    %c0_614 = arith.constant 0 : index
    %c1_615 = arith.constant 1 : index
    %c1_616 = arith.constant 1 : index
    %860 = vector.load %arg7[%c3_613, %c0_614, %c1_615, %c1_616] : memref<4x2x11x26xf32, #tpu.memory_space<vmem>>, vector<1x2x9x24xf32>
    %861 = vector.shape_cast %860 : vector<1x2x9x24xf32> to vector<2x9x24xf32>
    %862 = vector.broadcast %859 : f32 to vector<2x9x24xf32>
    %863 = arith.mulf %862, %861 : vector<2x9x24xf32>
    %864 = arith.addf %858, %863 : vector<2x9x24xf32>
    %c104 = arith.constant 104 : index
    %865 = memref.load %arg3[%c104] : memref<144xf32, #tpu.memory_space<smem>>
    %c3_617 = arith.constant 3 : index
    %c0_618 = arith.constant 0 : index
    %c1_619 = arith.constant 1 : index
    %c2_620 = arith.constant 2 : index
    %866 = vector.load %arg7[%c3_617, %c0_618, %c1_619, %c2_620] : memref<4x2x11x26xf32, #tpu.memory_space<vmem>>, vector<1x2x9x24xf32>
    %867 = vector.shape_cast %866 : vector<1x2x9x24xf32> to vector<2x9x24xf32>
    %868 = vector.broadcast %865 : f32 to vector<2x9x24xf32>
    %869 = arith.mulf %868, %867 : vector<2x9x24xf32>
    %870 = arith.addf %864, %869 : vector<2x9x24xf32>
    %c105 = arith.constant 105 : index
    %871 = memref.load %arg3[%c105] : memref<144xf32, #tpu.memory_space<smem>>
    %c3_621 = arith.constant 3 : index
    %c0_622 = arith.constant 0 : index
    %c2_623 = arith.constant 2 : index
    %c0_624 = arith.constant 0 : index
    %872 = vector.load %arg7[%c3_621, %c0_622, %c2_623, %c0_624] : memref<4x2x11x26xf32, #tpu.memory_space<vmem>>, vector<1x2x9x24xf32>
    %873 = vector.shape_cast %872 : vector<1x2x9x24xf32> to vector<2x9x24xf32>
    %874 = vector.broadcast %871 : f32 to vector<2x9x24xf32>
    %875 = arith.mulf %874, %873 : vector<2x9x24xf32>
    %876 = arith.addf %870, %875 : vector<2x9x24xf32>
    %c106 = arith.constant 106 : index
    %877 = memref.load %arg3[%c106] : memref<144xf32, #tpu.memory_space<smem>>
    %c3_625 = arith.constant 3 : index
    %c0_626 = arith.constant 0 : index
    %c2_627 = arith.constant 2 : index
    %c1_628 = arith.constant 1 : index
    %878 = vector.load %arg7[%c3_625, %c0_626, %c2_627, %c1_628] : memref<4x2x11x26xf32, #tpu.memory_space<vmem>>, vector<1x2x9x24xf32>
    %879 = vector.shape_cast %878 : vector<1x2x9x24xf32> to vector<2x9x24xf32>
    %880 = vector.broadcast %877 : f32 to vector<2x9x24xf32>
    %881 = arith.mulf %880, %879 : vector<2x9x24xf32>
    %882 = arith.addf %876, %881 : vector<2x9x24xf32>
    %c107 = arith.constant 107 : index
    %883 = memref.load %arg3[%c107] : memref<144xf32, #tpu.memory_space<smem>>
    %c3_629 = arith.constant 3 : index
    %c0_630 = arith.constant 0 : index
    %c2_631 = arith.constant 2 : index
    %c2_632 = arith.constant 2 : index
    %884 = vector.load %arg7[%c3_629, %c0_630, %c2_631, %c2_632] : memref<4x2x11x26xf32, #tpu.memory_space<vmem>>, vector<1x2x9x24xf32>
    %885 = vector.shape_cast %884 : vector<1x2x9x24xf32> to vector<2x9x24xf32>
    %886 = vector.broadcast %883 : f32 to vector<2x9x24xf32>
    %887 = arith.mulf %886, %885 : vector<2x9x24xf32>
    %888 = arith.addf %882, %887 : vector<2x9x24xf32>
    %c2_633 = arith.constant 2 : index
    %889 = memref.load %arg4[%c2_633] : memref<4xf32, #tpu.memory_space<smem>>
    %890 = vector.broadcast %889 : f32 to vector<2x9x24xf32>
    %891 = arith.addf %888, %890 : vector<2x9x24xf32>
    %cst_634 = arith.constant 0.000000e+00 : f32
    %892 = vector.broadcast %cst_634 : f32 to vector<2x9x24xf32>
    %893 = arith.maximumf %891, %892 : vector<2x9x24xf32>
    %c2_635 = arith.constant 2 : index
    %c0_636 = arith.constant 0 : index
    %c0_637 = arith.constant 0 : index
    %c0_638 = arith.constant 0 : index
    %894 = vector.load %arg5[%c2_635, %c0_636, %c0_637, %c0_638] : memref<4x2x9x24xf32, #tpu.memory_space<vmem>>, vector<1x2x9x24xf32>
    %895 = vector.shape_cast %894 : vector<1x2x9x24xf32> to vector<2x9x24xf32>
    %896 = vector.shape_cast %893 : vector<2x9x24xf32> to vector<1x2x9x24xf32>
    tpu.vector_store %arg5[%c2_635, %c0_636, %c0_637, %c0_638], %896 {strides = array<i32>} : memref<4x2x9x24xf32, #tpu.memory_space<vmem>>, vector<1x2x9x24xf32>,
    %cst_639 = arith.constant 0.000000e+00 : f32
    %897 = vector.broadcast %cst_639 : f32 to vector<2x9x24xf32>
    %c108 = arith.constant 108 : index
    %898 = memref.load %arg3[%c108] : memref<144xf32, #tpu.memory_space<smem>>
    %c0_640 = arith.constant 0 : index
    %c0_641 = arith.constant 0 : index
    %c0_642 = arith.constant 0 : index
    %c0_643 = arith.constant 0 : index
    %899 = vector.load %arg7[%c0_640, %c0_641, %c0_642, %c0_643] : memref<4x2x11x26xf32, #tpu.memory_space<vmem>>, vector<1x2x9x24xf32>
    %900 = vector.shape_cast %899 : vector<1x2x9x24xf32> to vector<2x9x24xf32>
    %901 = vector.broadcast %898 : f32 to vector<2x9x24xf32>
    %902 = arith.mulf %901, %900 : vector<2x9x24xf32>
    %903 = arith.addf %897, %902 : vector<2x9x24xf32>
    %c109 = arith.constant 109 : index
    %904 = memref.load %arg3[%c109] : memref<144xf32, #tpu.memory_space<smem>>
    %c0_644 = arith.constant 0 : index
    %c0_645 = arith.constant 0 : index
    %c0_646 = arith.constant 0 : index
    %c1_647 = arith.constant 1 : index
    %905 = vector.load %arg7[%c0_644, %c0_645, %c0_646, %c1_647] : memref<4x2x11x26xf32, #tpu.memory_space<vmem>>, vector<1x2x9x24xf32>
    %906 = vector.shape_cast %905 : vector<1x2x9x24xf32> to vector<2x9x24xf32>
    %907 = vector.broadcast %904 : f32 to vector<2x9x24xf32>
    %908 = arith.mulf %907, %906 : vector<2x9x24xf32>
    %909 = arith.addf %903, %908 : vector<2x9x24xf32>
    %c110 = arith.constant 110 : index
    %910 = memref.load %arg3[%c110] : memref<144xf32, #tpu.memory_space<smem>>
    %c0_648 = arith.constant 0 : index
    %c0_649 = arith.constant 0 : index
    %c0_650 = arith.constant 0 : index
    %c2_651 = arith.constant 2 : index
    %911 = vector.load %arg7[%c0_648, %c0_649, %c0_650, %c2_651] : memref<4x2x11x26xf32, #tpu.memory_space<vmem>>, vector<1x2x9x24xf32>
    %912 = vector.shape_cast %911 : vector<1x2x9x24xf32> to vector<2x9x24xf32>
    %913 = vector.broadcast %910 : f32 to vector<2x9x24xf32>
    %914 = arith.mulf %913, %912 : vector<2x9x24xf32>
    %915 = arith.addf %909, %914 : vector<2x9x24xf32>
    %c111 = arith.constant 111 : index
    %916 = memref.load %arg3[%c111] : memref<144xf32, #tpu.memory_space<smem>>
    %c0_652 = arith.constant 0 : index
    %c0_653 = arith.constant 0 : index
    %c1_654 = arith.constant 1 : index
    %c0_655 = arith.constant 0 : index
    %917 = vector.load %arg7[%c0_652, %c0_653, %c1_654, %c0_655] : memref<4x2x11x26xf32, #tpu.memory_space<vmem>>, vector<1x2x9x24xf32>
    %918 = vector.shape_cast %917 : vector<1x2x9x24xf32> to vector<2x9x24xf32>
    %919 = vector.broadcast %916 : f32 to vector<2x9x24xf32>
    %920 = arith.mulf %919, %918 : vector<2x9x24xf32>
    %921 = arith.addf %915, %920 : vector<2x9x24xf32>
    %c112 = arith.constant 112 : index
    %922 = memref.load %arg3[%c112] : memref<144xf32, #tpu.memory_space<smem>>
    %c0_656 = arith.constant 0 : index
    %c0_657 = arith.constant 0 : index
    %c1_658 = arith.constant 1 : index
    %c1_659 = arith.constant 1 : index
    %923 = vector.load %arg7[%c0_656, %c0_657, %c1_658, %c1_659] : memref<4x2x11x26xf32, #tpu.memory_space<vmem>>, vector<1x2x9x24xf32>
    %924 = vector.shape_cast %923 : vector<1x2x9x24xf32> to vector<2x9x24xf32>
    %925 = vector.broadcast %922 : f32 to vector<2x9x24xf32>
    %926 = arith.mulf %925, %924 : vector<2x9x24xf32>
    %927 = arith.addf %921, %926 : vector<2x9x24xf32>
    %c113 = arith.constant 113 : index
    %928 = memref.load %arg3[%c113] : memref<144xf32, #tpu.memory_space<smem>>
    %c0_660 = arith.constant 0 : index
    %c0_661 = arith.constant 0 : index
    %c1_662 = arith.constant 1 : index
    %c2_663 = arith.constant 2 : index
    %929 = vector.load %arg7[%c0_660, %c0_661, %c1_662, %c2_663] : memref<4x2x11x26xf32, #tpu.memory_space<vmem>>, vector<1x2x9x24xf32>
    %930 = vector.shape_cast %929 : vector<1x2x9x24xf32> to vector<2x9x24xf32>
    %931 = vector.broadcast %928 : f32 to vector<2x9x24xf32>
    %932 = arith.mulf %931, %930 : vector<2x9x24xf32>
    %933 = arith.addf %927, %932 : vector<2x9x24xf32>
    %c114 = arith.constant 114 : index
    %934 = memref.load %arg3[%c114] : memref<144xf32, #tpu.memory_space<smem>>
    %c0_664 = arith.constant 0 : index
    %c0_665 = arith.constant 0 : index
    %c2_666 = arith.constant 2 : index
    %c0_667 = arith.constant 0 : index
    %935 = vector.load %arg7[%c0_664, %c0_665, %c2_666, %c0_667] : memref<4x2x11x26xf32, #tpu.memory_space<vmem>>, vector<1x2x9x24xf32>
    %936 = vector.shape_cast %935 : vector<1x2x9x24xf32> to vector<2x9x24xf32>
    %937 = vector.broadcast %934 : f32 to vector<2x9x24xf32>
    %938 = arith.mulf %937, %936 : vector<2x9x24xf32>
    %939 = arith.addf %933, %938 : vector<2x9x24xf32>
    %c115 = arith.constant 115 : index
    %940 = memref.load %arg3[%c115] : memref<144xf32, #tpu.memory_space<smem>>
    %c0_668 = arith.constant 0 : index
    %c0_669 = arith.constant 0 : index
    %c2_670 = arith.constant 2 : index
    %c1_671 = arith.constant 1 : index
    %941 = vector.load %arg7[%c0_668, %c0_669, %c2_670, %c1_671] : memref<4x2x11x26xf32, #tpu.memory_space<vmem>>, vector<1x2x9x24xf32>
    %942 = vector.shape_cast %941 : vector<1x2x9x24xf32> to vector<2x9x24xf32>
    %943 = vector.broadcast %940 : f32 to vector<2x9x24xf32>
    %944 = arith.mulf %943, %942 : vector<2x9x24xf32>
    %945 = arith.addf %939, %944 : vector<2x9x24xf32>
    %c116 = arith.constant 116 : index
    %946 = memref.load %arg3[%c116] : memref<144xf32, #tpu.memory_space<smem>>
    %c0_672 = arith.constant 0 : index
    %c0_673 = arith.constant 0 : index
    %c2_674 = arith.constant 2 : index
    %c2_675 = arith.constant 2 : index
    %947 = vector.load %arg7[%c0_672, %c0_673, %c2_674, %c2_675] : memref<4x2x11x26xf32, #tpu.memory_space<vmem>>, vector<1x2x9x24xf32>
    %948 = vector.shape_cast %947 : vector<1x2x9x24xf32> to vector<2x9x24xf32>
    %949 = vector.broadcast %946 : f32 to vector<2x9x24xf32>
    %950 = arith.mulf %949, %948 : vector<2x9x24xf32>
    %951 = arith.addf %945, %950 : vector<2x9x24xf32>
    %c117 = arith.constant 117 : index
    %952 = memref.load %arg3[%c117] : memref<144xf32, #tpu.memory_space<smem>>
    %c1_676 = arith.constant 1 : index
    %c0_677 = arith.constant 0 : index
    %c0_678 = arith.constant 0 : index
    %c0_679 = arith.constant 0 : index
    %953 = vector.load %arg7[%c1_676, %c0_677, %c0_678, %c0_679] : memref<4x2x11x26xf32, #tpu.memory_space<vmem>>, vector<1x2x9x24xf32>
    %954 = vector.shape_cast %953 : vector<1x2x9x24xf32> to vector<2x9x24xf32>
    %955 = vector.broadcast %952 : f32 to vector<2x9x24xf32>
    %956 = arith.mulf %955, %954 : vector<2x9x24xf32>
    %957 = arith.addf %951, %956 : vector<2x9x24xf32>
    %c118 = arith.constant 118 : index
    %958 = memref.load %arg3[%c118] : memref<144xf32, #tpu.memory_space<smem>>
    %c1_680 = arith.constant 1 : index
    %c0_681 = arith.constant 0 : index
    %c0_682 = arith.constant 0 : index
    %c1_683 = arith.constant 1 : index
    %959 = vector.load %arg7[%c1_680, %c0_681, %c0_682, %c1_683] : memref<4x2x11x26xf32, #tpu.memory_space<vmem>>, vector<1x2x9x24xf32>
    %960 = vector.shape_cast %959 : vector<1x2x9x24xf32> to vector<2x9x24xf32>
    %961 = vector.broadcast %958 : f32 to vector<2x9x24xf32>
    %962 = arith.mulf %961, %960 : vector<2x9x24xf32>
    %963 = arith.addf %957, %962 : vector<2x9x24xf32>
    %c119 = arith.constant 119 : index
    %964 = memref.load %arg3[%c119] : memref<144xf32, #tpu.memory_space<smem>>
    %c1_684 = arith.constant 1 : index
    %c0_685 = arith.constant 0 : index
    %c0_686 = arith.constant 0 : index
    %c2_687 = arith.constant 2 : index
    %965 = vector.load %arg7[%c1_684, %c0_685, %c0_686, %c2_687] : memref<4x2x11x26xf32, #tpu.memory_space<vmem>>, vector<1x2x9x24xf32>
    %966 = vector.shape_cast %965 : vector<1x2x9x24xf32> to vector<2x9x24xf32>
    %967 = vector.broadcast %964 : f32 to vector<2x9x24xf32>
    %968 = arith.mulf %967, %966 : vector<2x9x24xf32>
    %969 = arith.addf %963, %968 : vector<2x9x24xf32>
    %c120 = arith.constant 120 : index
    %970 = memref.load %arg3[%c120] : memref<144xf32, #tpu.memory_space<smem>>
    %c1_688 = arith.constant 1 : index
    %c0_689 = arith.constant 0 : index
    %c1_690 = arith.constant 1 : index
    %c0_691 = arith.constant 0 : index
    %971 = vector.load %arg7[%c1_688, %c0_689, %c1_690, %c0_691] : memref<4x2x11x26xf32, #tpu.memory_space<vmem>>, vector<1x2x9x24xf32>
    %972 = vector.shape_cast %971 : vector<1x2x9x24xf32> to vector<2x9x24xf32>
    %973 = vector.broadcast %970 : f32 to vector<2x9x24xf32>
    %974 = arith.mulf %973, %972 : vector<2x9x24xf32>
    %975 = arith.addf %969, %974 : vector<2x9x24xf32>
    %c121 = arith.constant 121 : index
    %976 = memref.load %arg3[%c121] : memref<144xf32, #tpu.memory_space<smem>>
    %c1_692 = arith.constant 1 : index
    %c0_693 = arith.constant 0 : index
    %c1_694 = arith.constant 1 : index
    %c1_695 = arith.constant 1 : index
    %977 = vector.load %arg7[%c1_692, %c0_693, %c1_694, %c1_695] : memref<4x2x11x26xf32, #tpu.memory_space<vmem>>, vector<1x2x9x24xf32>
    %978 = vector.shape_cast %977 : vector<1x2x9x24xf32> to vector<2x9x24xf32>
    %979 = vector.broadcast %976 : f32 to vector<2x9x24xf32>
    %980 = arith.mulf %979, %978 : vector<2x9x24xf32>
    %981 = arith.addf %975, %980 : vector<2x9x24xf32>
    %c122 = arith.constant 122 : index
    %982 = memref.load %arg3[%c122] : memref<144xf32, #tpu.memory_space<smem>>
    %c1_696 = arith.constant 1 : index
    %c0_697 = arith.constant 0 : index
    %c1_698 = arith.constant 1 : index
    %c2_699 = arith.constant 2 : index
    %983 = vector.load %arg7[%c1_696, %c0_697, %c1_698, %c2_699] : memref<4x2x11x26xf32, #tpu.memory_space<vmem>>, vector<1x2x9x24xf32>
    %984 = vector.shape_cast %983 : vector<1x2x9x24xf32> to vector<2x9x24xf32>
    %985 = vector.broadcast %982 : f32 to vector<2x9x24xf32>
    %986 = arith.mulf %985, %984 : vector<2x9x24xf32>
    %987 = arith.addf %981, %986 : vector<2x9x24xf32>
    %c123 = arith.constant 123 : index
    %988 = memref.load %arg3[%c123] : memref<144xf32, #tpu.memory_space<smem>>
    %c1_700 = arith.constant 1 : index
    %c0_701 = arith.constant 0 : index
    %c2_702 = arith.constant 2 : index
    %c0_703 = arith.constant 0 : index
    %989 = vector.load %arg7[%c1_700, %c0_701, %c2_702, %c0_703] : memref<4x2x11x26xf32, #tpu.memory_space<vmem>>, vector<1x2x9x24xf32>
    %990 = vector.shape_cast %989 : vector<1x2x9x24xf32> to vector<2x9x24xf32>
    %991 = vector.broadcast %988 : f32 to vector<2x9x24xf32>
    %992 = arith.mulf %991, %990 : vector<2x9x24xf32>
    %993 = arith.addf %987, %992 : vector<2x9x24xf32>
    %c124 = arith.constant 124 : index
    %994 = memref.load %arg3[%c124] : memref<144xf32, #tpu.memory_space<smem>>
    %c1_704 = arith.constant 1 : index
    %c0_705 = arith.constant 0 : index
    %c2_706 = arith.constant 2 : index
    %c1_707 = arith.constant 1 : index
    %995 = vector.load %arg7[%c1_704, %c0_705, %c2_706, %c1_707] : memref<4x2x11x26xf32, #tpu.memory_space<vmem>>, vector<1x2x9x24xf32>
    %996 = vector.shape_cast %995 : vector<1x2x9x24xf32> to vector<2x9x24xf32>
    %997 = vector.broadcast %994 : f32 to vector<2x9x24xf32>
    %998 = arith.mulf %997, %996 : vector<2x9x24xf32>
    %999 = arith.addf %993, %998 : vector<2x9x24xf32>
    %c125 = arith.constant 125 : index
    %1000 = memref.load %arg3[%c125] : memref<144xf32, #tpu.memory_space<smem>>
    %c1_708 = arith.constant 1 : index
    %c0_709 = arith.constant 0 : index
    %c2_710 = arith.constant 2 : index
    %c2_711 = arith.constant 2 : index
    %1001 = vector.load %arg7[%c1_708, %c0_709, %c2_710, %c2_711] : memref<4x2x11x26xf32, #tpu.memory_space<vmem>>, vector<1x2x9x24xf32>
    %1002 = vector.shape_cast %1001 : vector<1x2x9x24xf32> to vector<2x9x24xf32>
    %1003 = vector.broadcast %1000 : f32 to vector<2x9x24xf32>
    %1004 = arith.mulf %1003, %1002 : vector<2x9x24xf32>
    %1005 = arith.addf %999, %1004 : vector<2x9x24xf32>
    %c126 = arith.constant 126 : index
    %1006 = memref.load %arg3[%c126] : memref<144xf32, #tpu.memory_space<smem>>
    %c2_712 = arith.constant 2 : index
    %c0_713 = arith.constant 0 : index
    %c0_714 = arith.constant 0 : index
    %c0_715 = arith.constant 0 : index
    %1007 = vector.load %arg7[%c2_712, %c0_713, %c0_714, %c0_715] : memref<4x2x11x26xf32, #tpu.memory_space<vmem>>, vector<1x2x9x24xf32>
    %1008 = vector.shape_cast %1007 : vector<1x2x9x24xf32> to vector<2x9x24xf32>
    %1009 = vector.broadcast %1006 : f32 to vector<2x9x24xf32>
    %1010 = arith.mulf %1009, %1008 : vector<2x9x24xf32>
    %1011 = arith.addf %1005, %1010 : vector<2x9x24xf32>
    %c127 = arith.constant 127 : index
    %1012 = memref.load %arg3[%c127] : memref<144xf32, #tpu.memory_space<smem>>
    %c2_716 = arith.constant 2 : index
    %c0_717 = arith.constant 0 : index
    %c0_718 = arith.constant 0 : index
    %c1_719 = arith.constant 1 : index
    %1013 = vector.load %arg7[%c2_716, %c0_717, %c0_718, %c1_719] : memref<4x2x11x26xf32, #tpu.memory_space<vmem>>, vector<1x2x9x24xf32>
    %1014 = vector.shape_cast %1013 : vector<1x2x9x24xf32> to vector<2x9x24xf32>
    %1015 = vector.broadcast %1012 : f32 to vector<2x9x24xf32>
    %1016 = arith.mulf %1015, %1014 : vector<2x9x24xf32>
    %1017 = arith.addf %1011, %1016 : vector<2x9x24xf32>
    %c128 = arith.constant 128 : index
    %1018 = memref.load %arg3[%c128] : memref<144xf32, #tpu.memory_space<smem>>
    %c2_720 = arith.constant 2 : index
    %c0_721 = arith.constant 0 : index
    %c0_722 = arith.constant 0 : index
    %c2_723 = arith.constant 2 : index
    %1019 = vector.load %arg7[%c2_720, %c0_721, %c0_722, %c2_723] : memref<4x2x11x26xf32, #tpu.memory_space<vmem>>, vector<1x2x9x24xf32>
    %1020 = vector.shape_cast %1019 : vector<1x2x9x24xf32> to vector<2x9x24xf32>
    %1021 = vector.broadcast %1018 : f32 to vector<2x9x24xf32>
    %1022 = arith.mulf %1021, %1020 : vector<2x9x24xf32>
    %1023 = arith.addf %1017, %1022 : vector<2x9x24xf32>
    %c129 = arith.constant 129 : index
    %1024 = memref.load %arg3[%c129] : memref<144xf32, #tpu.memory_space<smem>>
    %c2_724 = arith.constant 2 : index
    %c0_725 = arith.constant 0 : index
    %c1_726 = arith.constant 1 : index
    %c0_727 = arith.constant 0 : index
    %1025 = vector.load %arg7[%c2_724, %c0_725, %c1_726, %c0_727] : memref<4x2x11x26xf32, #tpu.memory_space<vmem>>, vector<1x2x9x24xf32>
    %1026 = vector.shape_cast %1025 : vector<1x2x9x24xf32> to vector<2x9x24xf32>
    %1027 = vector.broadcast %1024 : f32 to vector<2x9x24xf32>
    %1028 = arith.mulf %1027, %1026 : vector<2x9x24xf32>
    %1029 = arith.addf %1023, %1028 : vector<2x9x24xf32>
    %c130 = arith.constant 130 : index
    %1030 = memref.load %arg3[%c130] : memref<144xf32, #tpu.memory_space<smem>>
    %c2_728 = arith.constant 2 : index
    %c0_729 = arith.constant 0 : index
    %c1_730 = arith.constant 1 : index
    %c1_731 = arith.constant 1 : index
    %1031 = vector.load %arg7[%c2_728, %c0_729, %c1_730, %c1_731] : memref<4x2x11x26xf32, #tpu.memory_space<vmem>>, vector<1x2x9x24xf32>
    %1032 = vector.shape_cast %1031 : vector<1x2x9x24xf32> to vector<2x9x24xf32>
    %1033 = vector.broadcast %1030 : f32 to vector<2x9x24xf32>
    %1034 = arith.mulf %1033, %1032 : vector<2x9x24xf32>
    %1035 = arith.addf %1029, %1034 : vector<2x9x24xf32>
    %c131 = arith.constant 131 : index
    %1036 = memref.load %arg3[%c131] : memref<144xf32, #tpu.memory_space<smem>>
    %c2_732 = arith.constant 2 : index
    %c0_733 = arith.constant 0 : index
    %c1_734 = arith.constant 1 : index
    %c2_735 = arith.constant 2 : index
    %1037 = vector.load %arg7[%c2_732, %c0_733, %c1_734, %c2_735] : memref<4x2x11x26xf32, #tpu.memory_space<vmem>>, vector<1x2x9x24xf32>
    %1038 = vector.shape_cast %1037 : vector<1x2x9x24xf32> to vector<2x9x24xf32>
    %1039 = vector.broadcast %1036 : f32 to vector<2x9x24xf32>
    %1040 = arith.mulf %1039, %1038 : vector<2x9x24xf32>
    %1041 = arith.addf %1035, %1040 : vector<2x9x24xf32>
    %c132 = arith.constant 132 : index
    %1042 = memref.load %arg3[%c132] : memref<144xf32, #tpu.memory_space<smem>>
    %c2_736 = arith.constant 2 : index
    %c0_737 = arith.constant 0 : index
    %c2_738 = arith.constant 2 : index
    %c0_739 = arith.constant 0 : index
    %1043 = vector.load %arg7[%c2_736, %c0_737, %c2_738, %c0_739] : memref<4x2x11x26xf32, #tpu.memory_space<vmem>>, vector<1x2x9x24xf32>
    %1044 = vector.shape_cast %1043 : vector<1x2x9x24xf32> to vector<2x9x24xf32>
    %1045 = vector.broadcast %1042 : f32 to vector<2x9x24xf32>
    %1046 = arith.mulf %1045, %1044 : vector<2x9x24xf32>
    %1047 = arith.addf %1041, %1046 : vector<2x9x24xf32>
    %c133 = arith.constant 133 : index
    %1048 = memref.load %arg3[%c133] : memref<144xf32, #tpu.memory_space<smem>>
    %c2_740 = arith.constant 2 : index
    %c0_741 = arith.constant 0 : index
    %c2_742 = arith.constant 2 : index
    %c1_743 = arith.constant 1 : index
    %1049 = vector.load %arg7[%c2_740, %c0_741, %c2_742, %c1_743] : memref<4x2x11x26xf32, #tpu.memory_space<vmem>>, vector<1x2x9x24xf32>
    %1050 = vector.shape_cast %1049 : vector<1x2x9x24xf32> to vector<2x9x24xf32>
    %1051 = vector.broadcast %1048 : f32 to vector<2x9x24xf32>
    %1052 = arith.mulf %1051, %1050 : vector<2x9x24xf32>
    %1053 = arith.addf %1047, %1052 : vector<2x9x24xf32>
    %c134 = arith.constant 134 : index
    %1054 = memref.load %arg3[%c134] : memref<144xf32, #tpu.memory_space<smem>>
    %c2_744 = arith.constant 2 : index
    %c0_745 = arith.constant 0 : index
    %c2_746 = arith.constant 2 : index
    %c2_747 = arith.constant 2 : index
    %1055 = vector.load %arg7[%c2_744, %c0_745, %c2_746, %c2_747] : memref<4x2x11x26xf32, #tpu.memory_space<vmem>>, vector<1x2x9x24xf32>
    %1056 = vector.shape_cast %1055 : vector<1x2x9x24xf32> to vector<2x9x24xf32>
    %1057 = vector.broadcast %1054 : f32 to vector<2x9x24xf32>
    %1058 = arith.mulf %1057, %1056 : vector<2x9x24xf32>
    %1059 = arith.addf %1053, %1058 : vector<2x9x24xf32>
    %c135 = arith.constant 135 : index
    %1060 = memref.load %arg3[%c135] : memref<144xf32, #tpu.memory_space<smem>>
    %c3_748 = arith.constant 3 : index
    %c0_749 = arith.constant 0 : index
    %c0_750 = arith.constant 0 : index
    %c0_751 = arith.constant 0 : index
    %1061 = vector.load %arg7[%c3_748, %c0_749, %c0_750, %c0_751] : memref<4x2x11x26xf32, #tpu.memory_space<vmem>>, vector<1x2x9x24xf32>
    %1062 = vector.shape_cast %1061 : vector<1x2x9x24xf32> to vector<2x9x24xf32>
    %1063 = vector.broadcast %1060 : f32 to vector<2x9x24xf32>
    %1064 = arith.mulf %1063, %1062 : vector<2x9x24xf32>
    %1065 = arith.addf %1059, %1064 : vector<2x9x24xf32>
    %c136 = arith.constant 136 : index
    %1066 = memref.load %arg3[%c136] : memref<144xf32, #tpu.memory_space<smem>>
    %c3_752 = arith.constant 3 : index
    %c0_753 = arith.constant 0 : index
    %c0_754 = arith.constant 0 : index
    %c1_755 = arith.constant 1 : index
    %1067 = vector.load %arg7[%c3_752, %c0_753, %c0_754, %c1_755] : memref<4x2x11x26xf32, #tpu.memory_space<vmem>>, vector<1x2x9x24xf32>
    %1068 = vector.shape_cast %1067 : vector<1x2x9x24xf32> to vector<2x9x24xf32>
    %1069 = vector.broadcast %1066 : f32 to vector<2x9x24xf32>
    %1070 = arith.mulf %1069, %1068 : vector<2x9x24xf32>
    %1071 = arith.addf %1065, %1070 : vector<2x9x24xf32>
    %c137 = arith.constant 137 : index
    %1072 = memref.load %arg3[%c137] : memref<144xf32, #tpu.memory_space<smem>>
    %c3_756 = arith.constant 3 : index
    %c0_757 = arith.constant 0 : index
    %c0_758 = arith.constant 0 : index
    %c2_759 = arith.constant 2 : index
    %1073 = vector.load %arg7[%c3_756, %c0_757, %c0_758, %c2_759] : memref<4x2x11x26xf32, #tpu.memory_space<vmem>>, vector<1x2x9x24xf32>
    %1074 = vector.shape_cast %1073 : vector<1x2x9x24xf32> to vector<2x9x24xf32>
    %1075 = vector.broadcast %1072 : f32 to vector<2x9x24xf32>
    %1076 = arith.mulf %1075, %1074 : vector<2x9x24xf32>
    %1077 = arith.addf %1071, %1076 : vector<2x9x24xf32>
    %c138 = arith.constant 138 : index
    %1078 = memref.load %arg3[%c138] : memref<144xf32, #tpu.memory_space<smem>>
    %c3_760 = arith.constant 3 : index
    %c0_761 = arith.constant 0 : index
    %c1_762 = arith.constant 1 : index
    %c0_763 = arith.constant 0 : index
    %1079 = vector.load %arg7[%c3_760, %c0_761, %c1_762, %c0_763] : memref<4x2x11x26xf32, #tpu.memory_space<vmem>>, vector<1x2x9x24xf32>
    %1080 = vector.shape_cast %1079 : vector<1x2x9x24xf32> to vector<2x9x24xf32>
    %1081 = vector.broadcast %1078 : f32 to vector<2x9x24xf32>
    %1082 = arith.mulf %1081, %1080 : vector<2x9x24xf32>
    %1083 = arith.addf %1077, %1082 : vector<2x9x24xf32>
    %c139 = arith.constant 139 : index
    %1084 = memref.load %arg3[%c139] : memref<144xf32, #tpu.memory_space<smem>>
    %c3_764 = arith.constant 3 : index
    %c0_765 = arith.constant 0 : index
    %c1_766 = arith.constant 1 : index
    %c1_767 = arith.constant 1 : index
    %1085 = vector.load %arg7[%c3_764, %c0_765, %c1_766, %c1_767] : memref<4x2x11x26xf32, #tpu.memory_space<vmem>>, vector<1x2x9x24xf32>
    %1086 = vector.shape_cast %1085 : vector<1x2x9x24xf32> to vector<2x9x24xf32>
    %1087 = vector.broadcast %1084 : f32 to vector<2x9x24xf32>
    %1088 = arith.mulf %1087, %1086 : vector<2x9x24xf32>
    %1089 = arith.addf %1083, %1088 : vector<2x9x24xf32>
    %c140 = arith.constant 140 : index
    %1090 = memref.load %arg3[%c140] : memref<144xf32, #tpu.memory_space<smem>>
    %c3_768 = arith.constant 3 : index
    %c0_769 = arith.constant 0 : index
    %c1_770 = arith.constant 1 : index
    %c2_771 = arith.constant 2 : index
    %1091 = vector.load %arg7[%c3_768, %c0_769, %c1_770, %c2_771] : memref<4x2x11x26xf32, #tpu.memory_space<vmem>>, vector<1x2x9x24xf32>
    %1092 = vector.shape_cast %1091 : vector<1x2x9x24xf32> to vector<2x9x24xf32>
    %1093 = vector.broadcast %1090 : f32 to vector<2x9x24xf32>
    %1094 = arith.mulf %1093, %1092 : vector<2x9x24xf32>
    %1095 = arith.addf %1089, %1094 : vector<2x9x24xf32>
    %c141 = arith.constant 141 : index
    %1096 = memref.load %arg3[%c141] : memref<144xf32, #tpu.memory_space<smem>>
    %c3_772 = arith.constant 3 : index
    %c0_773 = arith.constant 0 : index
    %c2_774 = arith.constant 2 : index
    %c0_775 = arith.constant 0 : index
    %1097 = vector.load %arg7[%c3_772, %c0_773, %c2_774, %c0_775] : memref<4x2x11x26xf32, #tpu.memory_space<vmem>>, vector<1x2x9x24xf32>
    %1098 = vector.shape_cast %1097 : vector<1x2x9x24xf32> to vector<2x9x24xf32>
    %1099 = vector.broadcast %1096 : f32 to vector<2x9x24xf32>
    %1100 = arith.mulf %1099, %1098 : vector<2x9x24xf32>
    %1101 = arith.addf %1095, %1100 : vector<2x9x24xf32>
    %c142 = arith.constant 142 : index
    %1102 = memref.load %arg3[%c142] : memref<144xf32, #tpu.memory_space<smem>>
    %c3_776 = arith.constant 3 : index
    %c0_777 = arith.constant 0 : index
    %c2_778 = arith.constant 2 : index
    %c1_779 = arith.constant 1 : index
    %1103 = vector.load %arg7[%c3_776, %c0_777, %c2_778, %c1_779] : memref<4x2x11x26xf32, #tpu.memory_space<vmem>>, vector<1x2x9x24xf32>
    %1104 = vector.shape_cast %1103 : vector<1x2x9x24xf32> to vector<2x9x24xf32>
    %1105 = vector.broadcast %1102 : f32 to vector<2x9x24xf32>
    %1106 = arith.mulf %1105, %1104 : vector<2x9x24xf32>
    %1107 = arith.addf %1101, %1106 : vector<2x9x24xf32>
    %c143 = arith.constant 143 : index
    %1108 = memref.load %arg3[%c143] : memref<144xf32, #tpu.memory_space<smem>>
    %c3_780 = arith.constant 3 : index
    %c0_781 = arith.constant 0 : index
    %c2_782 = arith.constant 2 : index
    %c2_783 = arith.constant 2 : index
    %1109 = vector.load %arg7[%c3_780, %c0_781, %c2_782, %c2_783] : memref<4x2x11x26xf32, #tpu.memory_space<vmem>>, vector<1x2x9x24xf32>
    %1110 = vector.shape_cast %1109 : vector<1x2x9x24xf32> to vector<2x9x24xf32>
    %1111 = vector.broadcast %1108 : f32 to vector<2x9x24xf32>
    %1112 = arith.mulf %1111, %1110 : vector<2x9x24xf32>
    %1113 = arith.addf %1107, %1112 : vector<2x9x24xf32>
    %c3_784 = arith.constant 3 : index
    %1114 = memref.load %arg4[%c3_784] : memref<4xf32, #tpu.memory_space<smem>>
    %1115 = vector.broadcast %1114 : f32 to vector<2x9x24xf32>
    %1116 = arith.addf %1113, %1115 : vector<2x9x24xf32>
    %cst_785 = arith.constant 0.000000e+00 : f32
    %1117 = vector.broadcast %cst_785 : f32 to vector<2x9x24xf32>
    %1118 = arith.maximumf %1116, %1117 : vector<2x9x24xf32>
    %c3_786 = arith.constant 3 : index
    %c0_787 = arith.constant 0 : index
    %c0_788 = arith.constant 0 : index
    %c0_789 = arith.constant 0 : index
    %1119 = vector.load %arg5[%c3_786, %c0_787, %c0_788, %c0_789] : memref<4x2x9x24xf32, #tpu.memory_space<vmem>>, vector<1x2x9x24xf32>
    %1120 = vector.shape_cast %1119 : vector<1x2x9x24xf32> to vector<2x9x24xf32>
    %1121 = vector.shape_cast %1118 : vector<2x9x24xf32> to vector<1x2x9x24xf32>
    tpu.vector_store %arg5[%c3_786, %c0_787, %c0_788, %c0_789], %1121 {strides = array<i32>} : memref<4x2x9x24xf32, #tpu.memory_space<vmem>>, vector<1x2x9x24xf32>,
    return
  }
}

module attributes {stable_mosaic.version = 11 : i64} {
  func.func @_bilstm_kernel(%arg0: memref<12x2x8xf32, #tpu.memory_space<vmem>>, %arg1: memref<8x128xf32, #tpu.memory_space<vmem>>, %arg2: memref<16x128xf32, #tpu.memory_space<vmem>>, %arg3: memref<1x128xf32, #tpu.memory_space<vmem>>, %arg4: memref<12x2x16xf32, #tpu.memory_space<vmem>>, %arg5: memref<12x2x16xf32, #tpu.memory_space<vmem>>, %arg6: memref<4x16xf32, #tpu.memory_space<vmem>>, %arg7: memref<4x16xf32, #tpu.memory_space<vmem>>) attributes {dimension_semantics = [], scalar_prefetch = 0 : i64, scratch_operands = 2 : i64, tpu.core_type = #tpu.core_type<tc>} {
    %c0 = arith.constant 0 : index
    %c0_0 = arith.constant 0 : index
    %0 = vector.load %arg1[%c0, %c0_0] : memref<8x128xf32, #tpu.memory_space<vmem>>, vector<8x128xf32>
    %c0_1 = arith.constant 0 : index
    %c0_2 = arith.constant 0 : index
    %1 = vector.load %arg2[%c0_1, %c0_2] : memref<16x128xf32, #tpu.memory_space<vmem>>, vector<16x128xf32>
    %c0_3 = arith.constant 0 : index
    %c0_4 = arith.constant 0 : index
    %2 = vector.load %arg3[%c0_3, %c0_4] : memref<1x128xf32, #tpu.memory_space<vmem>>, vector<1x128xf32>
    %cst = arith.constant 0.000000e+00 : f32
    %3 = vector.broadcast %cst : f32 to vector<4x16xf32>
    %c0_5 = arith.constant 0 : index
    %c0_6 = arith.constant 0 : index
    %4 = vector.load %arg6[%c0_5, %c0_6] : memref<4x16xf32, #tpu.memory_space<vmem>>, vector<4x16xf32>
    tpu.vector_store %arg6[%c0_5, %c0_6], %3 {strides = array<i32>} : memref<4x16xf32, #tpu.memory_space<vmem>>, vector<4x16xf32>,
    %cst_7 = arith.constant 0.000000e+00 : f32
    %5 = vector.broadcast %cst_7 : f32 to vector<4x16xf32>
    %c0_8 = arith.constant 0 : index
    %c0_9 = arith.constant 0 : index
    %6 = vector.load %arg7[%c0_8, %c0_9] : memref<4x16xf32, #tpu.memory_space<vmem>>, vector<4x16xf32>
    tpu.vector_store %arg7[%c0_8, %c0_9], %5 {strides = array<i32>} : memref<4x16xf32, #tpu.memory_space<vmem>>, vector<4x16xf32>,
    %c0_i32 = arith.constant 0 : i32
    %c12_i32 = arith.constant 12 : i32
    %7 = arith.addi %c0_i32, %c12_i32 : i32
    %c1_i32 = arith.constant 1 : i32
    scf.for %arg8 = %c0_i32 to %7 step %c1_i32  : i32 {
      %c1_i32_11 = arith.constant 1 : i32
      %8 = arith.muli %arg8, %c1_i32_11 : i32
      %c0_i32_12 = arith.constant 0 : i32
      %9 = arith.addi %c0_i32_12, %8 : i32
      %c11_i32 = arith.constant 11 : i32
      %10 = arith.subi %c11_i32, %9 : i32
      %11 = arith.index_cast %9 : i32 to index
      %c0_13 = arith.constant 0 : index
      %c0_14 = arith.constant 0 : index
      %12 = vector.load %arg0[%11, %c0_13, %c0_14] : memref<12x2x8xf32, #tpu.memory_space<vmem>>, vector<1x2x8xf32>
      %13 = vector.shape_cast %12 : vector<1x2x8xf32> to vector<2x8xf32>
      %14 = arith.index_cast %10 : i32 to index
      %c0_15 = arith.constant 0 : index
      %c0_16 = arith.constant 0 : index
      %15 = vector.load %arg0[%14, %c0_15, %c0_16] : memref<12x2x8xf32, #tpu.memory_space<vmem>>, vector<1x2x8xf32>
      %16 = vector.shape_cast %15 : vector<1x2x8xf32> to vector<2x8xf32>
      %17 = tpu.concatenate %13, %16 in 0 : vector<2x8xf32>, vector<2x8xf32> -> vector<4x8xf32>
      %cst_17 = arith.constant dense<0.000000e+00> : vector<4x128xf32>
      %18 = tpu.matmul %17, %0, %cst_17 {dimension_numbers = #tpu.dot_dimension_numbers<[1], [0], [0], [1], [0, 0, 1, 1], [], []>} : vector<4x8xf32>, vector<8x128xf32>, vector<4x128xf32> -> vector<4x128xf32>
      %c0_18 = arith.constant 0 : index
      %c0_19 = arith.constant 0 : index
      %19 = vector.load %arg6[%c0_18, %c0_19] : memref<4x16xf32, #tpu.memory_space<vmem>>, vector<4x16xf32>
      %cst_20 = arith.constant dense<0.000000e+00> : vector<4x128xf32>
      %20 = tpu.matmul %19, %1, %cst_20 {dimension_numbers = #tpu.dot_dimension_numbers<[1], [0], [0], [1], [0, 0, 1, 1], [], []>} : vector<4x16xf32>, vector<16x128xf32>, vector<4x128xf32> -> vector<4x128xf32>
      %21 = arith.addf %18, %20 : vector<4x128xf32>
      %22 = vector.broadcast %2 : vector<1x128xf32> to vector<4x128xf32>
      %23 = arith.addf %21, %22 : vector<4x128xf32>
      %24 = vector.extract_strided_slice %23 {offsets = [0, 0], sizes = [2, 64], strides = [1, 1]} : vector<4x128xf32> to vector<2x64xf32>
      %25 = vector.extract_strided_slice %23 {offsets = [2, 64], sizes = [2, 64], strides = [1, 1]} : vector<4x128xf32> to vector<2x64xf32>
      %26 = tpu.concatenate %24, %25 in 0 : vector<2x64xf32>, vector<2x64xf32> -> vector<4x64xf32>
      %27 = vector.extract_strided_slice %26 {offsets = [0, 0], sizes = [4, 16], strides = [1, 1]} : vector<4x64xf32> to vector<4x16xf32>
      %28 = arith.negf %27 : vector<4x16xf32>
      %29 = math.exp %28 : vector<4x16xf32>
      %cst_21 = arith.constant 1.000000e+00 : f32
      %30 = vector.broadcast %cst_21 : f32 to vector<4x16xf32>
      %31 = arith.addf %30, %29 : vector<4x16xf32>
      %32 = arith.divf %30, %31 : vector<4x16xf32>
      %33 = vector.extract_strided_slice %26 {offsets = [0, 16], sizes = [4, 16], strides = [1, 1]} : vector<4x64xf32> to vector<4x16xf32>
      %34 = arith.negf %33 : vector<4x16xf32>
      %35 = math.exp %34 : vector<4x16xf32>
      %cst_22 = arith.constant 1.000000e+00 : f32
      %36 = vector.broadcast %cst_22 : f32 to vector<4x16xf32>
      %37 = arith.addf %36, %35 : vector<4x16xf32>
      %38 = arith.divf %36, %37 : vector<4x16xf32>
      %39 = vector.extract_strided_slice %26 {offsets = [0, 32], sizes = [4, 16], strides = [1, 1]} : vector<4x64xf32> to vector<4x16xf32>
      %40 = math.tanh %39 : vector<4x16xf32>
      %41 = vector.extract_strided_slice %26 {offsets = [0, 48], sizes = [4, 16], strides = [1, 1]} : vector<4x64xf32> to vector<4x16xf32>
      %42 = arith.negf %41 : vector<4x16xf32>
      %43 = math.exp %42 : vector<4x16xf32>
      %cst_23 = arith.constant 1.000000e+00 : f32
      %44 = vector.broadcast %cst_23 : f32 to vector<4x16xf32>
      %45 = arith.addf %44, %43 : vector<4x16xf32>
      %46 = arith.divf %44, %45 : vector<4x16xf32>
      %c0_24 = arith.constant 0 : index
      %c0_25 = arith.constant 0 : index
      %47 = vector.load %arg7[%c0_24, %c0_25] : memref<4x16xf32, #tpu.memory_space<vmem>>, vector<4x16xf32>
      %48 = arith.mulf %38, %47 : vector<4x16xf32>
      %49 = arith.mulf %32, %40 : vector<4x16xf32>
      %50 = arith.addf %48, %49 : vector<4x16xf32>
      %51 = math.tanh %50 : vector<4x16xf32>
      %52 = arith.mulf %46, %51 : vector<4x16xf32>
      %c0_26 = arith.constant 0 : index
      %c0_27 = arith.constant 0 : index
      %53 = vector.load %arg6[%c0_26, %c0_27] : memref<4x16xf32, #tpu.memory_space<vmem>>, vector<4x16xf32>
      tpu.vector_store %arg6[%c0_26, %c0_27], %52 {strides = array<i32>} : memref<4x16xf32, #tpu.memory_space<vmem>>, vector<4x16xf32>,
      %c0_28 = arith.constant 0 : index
      %c0_29 = arith.constant 0 : index
      %54 = vector.load %arg7[%c0_28, %c0_29] : memref<4x16xf32, #tpu.memory_space<vmem>>, vector<4x16xf32>
      tpu.vector_store %arg7[%c0_28, %c0_29], %50 {strides = array<i32>} : memref<4x16xf32, #tpu.memory_space<vmem>>, vector<4x16xf32>,
      %55 = vector.extract_strided_slice %52 {offsets = [0, 0], sizes = [2, 16], strides = [1, 1]} : vector<4x16xf32> to vector<2x16xf32>
      %56 = arith.index_cast %9 : i32 to index
      %c0_30 = arith.constant 0 : index
      %c0_31 = arith.constant 0 : index
      %57 = vector.load %arg4[%56, %c0_30, %c0_31] : memref<12x2x16xf32, #tpu.memory_space<vmem>>, vector<1x2x16xf32>
      %58 = vector.shape_cast %57 : vector<1x2x16xf32> to vector<2x16xf32>
      %59 = vector.shape_cast %55 : vector<2x16xf32> to vector<1x2x16xf32>
      tpu.vector_store %arg4[%56, %c0_30, %c0_31], %59 {strides = array<i32>} : memref<12x2x16xf32, #tpu.memory_space<vmem>>, vector<1x2x16xf32>,
      %60 = vector.extract_strided_slice %52 {offsets = [2, 0], sizes = [2, 16], strides = [1, 1]} : vector<4x16xf32> to vector<2x16xf32>
      %61 = arith.index_cast %10 : i32 to index
      %c0_32 = arith.constant 0 : index
      %c0_33 = arith.constant 0 : index
      %62 = vector.load %arg5[%61, %c0_32, %c0_33] : memref<12x2x16xf32, #tpu.memory_space<vmem>>, vector<1x2x16xf32>
      %63 = vector.shape_cast %62 : vector<1x2x16xf32> to vector<2x16xf32>
      %64 = vector.shape_cast %60 : vector<2x16xf32> to vector<1x2x16xf32>
      tpu.vector_store %arg5[%61, %c0_32, %c0_33], %64 {strides = array<i32>} : memref<12x2x16xf32, #tpu.memory_space<vmem>>, vector<1x2x16xf32>,
    }
    %c12_i32_10 = arith.constant 12 : i32
    return
  }
}

module attributes {stable_mosaic.version = 11 : i64} {
  func.func @_bilstm_kernel(%arg0: memref<12x2x32xf32, #tpu.memory_space<vmem>>, %arg1: memref<32x128xf32, #tpu.memory_space<vmem>>, %arg2: memref<16x128xf32, #tpu.memory_space<vmem>>, %arg3: memref<1x128xf32, #tpu.memory_space<vmem>>, %arg4: memref<12x2x16xf32, #tpu.memory_space<vmem>>, %arg5: memref<12x2x16xf32, #tpu.memory_space<vmem>>, %arg6: memref<4x16xf32, #tpu.memory_space<vmem>>, %arg7: memref<4x16xf32, #tpu.memory_space<vmem>>) attributes {dimension_semantics = [], scalar_prefetch = 0 : i64, scratch_operands = 2 : i64, tpu.core_type = #tpu.core_type<tc>} {
    %c0 = arith.constant 0 : index
    %c0_0 = arith.constant 0 : index
    %0 = vector.load %arg1[%c0, %c0_0] : memref<32x128xf32, #tpu.memory_space<vmem>>, vector<32x128xf32>
    %c0_1 = arith.constant 0 : index
    %c0_2 = arith.constant 0 : index
    %1 = vector.load %arg2[%c0_1, %c0_2] : memref<16x128xf32, #tpu.memory_space<vmem>>, vector<16x128xf32>
    %c0_3 = arith.constant 0 : index
    %c0_4 = arith.constant 0 : index
    %2 = vector.load %arg3[%c0_3, %c0_4] : memref<1x128xf32, #tpu.memory_space<vmem>>, vector<1x128xf32>
    %cst = arith.constant 0.000000e+00 : f32
    %3 = vector.broadcast %cst : f32 to vector<4x16xf32>
    %c0_5 = arith.constant 0 : index
    %c0_6 = arith.constant 0 : index
    %4 = vector.load %arg6[%c0_5, %c0_6] : memref<4x16xf32, #tpu.memory_space<vmem>>, vector<4x16xf32>
    tpu.vector_store %arg6[%c0_5, %c0_6], %3 {strides = array<i32>} : memref<4x16xf32, #tpu.memory_space<vmem>>, vector<4x16xf32>,
    %cst_7 = arith.constant 0.000000e+00 : f32
    %5 = vector.broadcast %cst_7 : f32 to vector<4x16xf32>
    %c0_8 = arith.constant 0 : index
    %c0_9 = arith.constant 0 : index
    %6 = vector.load %arg7[%c0_8, %c0_9] : memref<4x16xf32, #tpu.memory_space<vmem>>, vector<4x16xf32>
    tpu.vector_store %arg7[%c0_8, %c0_9], %5 {strides = array<i32>} : memref<4x16xf32, #tpu.memory_space<vmem>>, vector<4x16xf32>,
    %c0_i32 = arith.constant 0 : i32
    %c12_i32 = arith.constant 12 : i32
    %7 = arith.addi %c0_i32, %c12_i32 : i32
    %c1_i32 = arith.constant 1 : i32
    scf.for %arg8 = %c0_i32 to %7 step %c1_i32  : i32 {
      %c1_i32_11 = arith.constant 1 : i32
      %8 = arith.muli %arg8, %c1_i32_11 : i32
      %c0_i32_12 = arith.constant 0 : i32
      %9 = arith.addi %c0_i32_12, %8 : i32
      %c11_i32 = arith.constant 11 : i32
      %10 = arith.subi %c11_i32, %9 : i32
      %11 = arith.index_cast %9 : i32 to index
      %c0_13 = arith.constant 0 : index
      %c0_14 = arith.constant 0 : index
      %12 = vector.load %arg0[%11, %c0_13, %c0_14] : memref<12x2x32xf32, #tpu.memory_space<vmem>>, vector<1x2x32xf32>
      %13 = vector.shape_cast %12 : vector<1x2x32xf32> to vector<2x32xf32>
      %14 = arith.index_cast %10 : i32 to index
      %c0_15 = arith.constant 0 : index
      %c0_16 = arith.constant 0 : index
      %15 = vector.load %arg0[%14, %c0_15, %c0_16] : memref<12x2x32xf32, #tpu.memory_space<vmem>>, vector<1x2x32xf32>
      %16 = vector.shape_cast %15 : vector<1x2x32xf32> to vector<2x32xf32>
      %17 = tpu.concatenate %13, %16 in 0 : vector<2x32xf32>, vector<2x32xf32> -> vector<4x32xf32>
      %cst_17 = arith.constant dense<0.000000e+00> : vector<4x128xf32>
      %18 = tpu.matmul %17, %0, %cst_17 {dimension_numbers = #tpu.dot_dimension_numbers<[1], [0], [0], [1], [0, 0, 1, 1], [], []>} : vector<4x32xf32>, vector<32x128xf32>, vector<4x128xf32> -> vector<4x128xf32>
      %c0_18 = arith.constant 0 : index
      %c0_19 = arith.constant 0 : index
      %19 = vector.load %arg6[%c0_18, %c0_19] : memref<4x16xf32, #tpu.memory_space<vmem>>, vector<4x16xf32>
      %cst_20 = arith.constant dense<0.000000e+00> : vector<4x128xf32>
      %20 = tpu.matmul %19, %1, %cst_20 {dimension_numbers = #tpu.dot_dimension_numbers<[1], [0], [0], [1], [0, 0, 1, 1], [], []>} : vector<4x16xf32>, vector<16x128xf32>, vector<4x128xf32> -> vector<4x128xf32>
      %21 = arith.addf %18, %20 : vector<4x128xf32>
      %22 = vector.broadcast %2 : vector<1x128xf32> to vector<4x128xf32>
      %23 = arith.addf %21, %22 : vector<4x128xf32>
      %24 = vector.extract_strided_slice %23 {offsets = [0, 0], sizes = [2, 64], strides = [1, 1]} : vector<4x128xf32> to vector<2x64xf32>
      %25 = vector.extract_strided_slice %23 {offsets = [2, 64], sizes = [2, 64], strides = [1, 1]} : vector<4x128xf32> to vector<2x64xf32>
      %26 = tpu.concatenate %24, %25 in 0 : vector<2x64xf32>, vector<2x64xf32> -> vector<4x64xf32>
      %27 = vector.extract_strided_slice %26 {offsets = [0, 0], sizes = [4, 16], strides = [1, 1]} : vector<4x64xf32> to vector<4x16xf32>
      %28 = arith.negf %27 : vector<4x16xf32>
      %29 = math.exp %28 : vector<4x16xf32>
      %cst_21 = arith.constant 1.000000e+00 : f32
      %30 = vector.broadcast %cst_21 : f32 to vector<4x16xf32>
      %31 = arith.addf %30, %29 : vector<4x16xf32>
      %32 = arith.divf %30, %31 : vector<4x16xf32>
      %33 = vector.extract_strided_slice %26 {offsets = [0, 16], sizes = [4, 16], strides = [1, 1]} : vector<4x64xf32> to vector<4x16xf32>
      %34 = arith.negf %33 : vector<4x16xf32>
      %35 = math.exp %34 : vector<4x16xf32>
      %cst_22 = arith.constant 1.000000e+00 : f32
      %36 = vector.broadcast %cst_22 : f32 to vector<4x16xf32>
      %37 = arith.addf %36, %35 : vector<4x16xf32>
      %38 = arith.divf %36, %37 : vector<4x16xf32>
      %39 = vector.extract_strided_slice %26 {offsets = [0, 32], sizes = [4, 16], strides = [1, 1]} : vector<4x64xf32> to vector<4x16xf32>
      %40 = math.tanh %39 : vector<4x16xf32>
      %41 = vector.extract_strided_slice %26 {offsets = [0, 48], sizes = [4, 16], strides = [1, 1]} : vector<4x64xf32> to vector<4x16xf32>
      %42 = arith.negf %41 : vector<4x16xf32>
      %43 = math.exp %42 : vector<4x16xf32>
      %cst_23 = arith.constant 1.000000e+00 : f32
      %44 = vector.broadcast %cst_23 : f32 to vector<4x16xf32>
      %45 = arith.addf %44, %43 : vector<4x16xf32>
      %46 = arith.divf %44, %45 : vector<4x16xf32>
      %c0_24 = arith.constant 0 : index
      %c0_25 = arith.constant 0 : index
      %47 = vector.load %arg7[%c0_24, %c0_25] : memref<4x16xf32, #tpu.memory_space<vmem>>, vector<4x16xf32>
      %48 = arith.mulf %38, %47 : vector<4x16xf32>
      %49 = arith.mulf %32, %40 : vector<4x16xf32>
      %50 = arith.addf %48, %49 : vector<4x16xf32>
      %51 = math.tanh %50 : vector<4x16xf32>
      %52 = arith.mulf %46, %51 : vector<4x16xf32>
      %c0_26 = arith.constant 0 : index
      %c0_27 = arith.constant 0 : index
      %53 = vector.load %arg6[%c0_26, %c0_27] : memref<4x16xf32, #tpu.memory_space<vmem>>, vector<4x16xf32>
      tpu.vector_store %arg6[%c0_26, %c0_27], %52 {strides = array<i32>} : memref<4x16xf32, #tpu.memory_space<vmem>>, vector<4x16xf32>,
      %c0_28 = arith.constant 0 : index
      %c0_29 = arith.constant 0 : index
      %54 = vector.load %arg7[%c0_28, %c0_29] : memref<4x16xf32, #tpu.memory_space<vmem>>, vector<4x16xf32>
      tpu.vector_store %arg7[%c0_28, %c0_29], %50 {strides = array<i32>} : memref<4x16xf32, #tpu.memory_space<vmem>>, vector<4x16xf32>,
      %55 = vector.extract_strided_slice %52 {offsets = [0, 0], sizes = [2, 16], strides = [1, 1]} : vector<4x16xf32> to vector<2x16xf32>
      %56 = arith.index_cast %9 : i32 to index
      %c0_30 = arith.constant 0 : index
      %c0_31 = arith.constant 0 : index
      %57 = vector.load %arg4[%56, %c0_30, %c0_31] : memref<12x2x16xf32, #tpu.memory_space<vmem>>, vector<1x2x16xf32>
      %58 = vector.shape_cast %57 : vector<1x2x16xf32> to vector<2x16xf32>
      %59 = vector.shape_cast %55 : vector<2x16xf32> to vector<1x2x16xf32>
      tpu.vector_store %arg4[%56, %c0_30, %c0_31], %59 {strides = array<i32>} : memref<12x2x16xf32, #tpu.memory_space<vmem>>, vector<1x2x16xf32>,
      %60 = vector.extract_strided_slice %52 {offsets = [2, 0], sizes = [2, 16], strides = [1, 1]} : vector<4x16xf32> to vector<2x16xf32>
      %61 = arith.index_cast %10 : i32 to index
      %c0_32 = arith.constant 0 : index
      %c0_33 = arith.constant 0 : index
      %62 = vector.load %arg5[%61, %c0_32, %c0_33] : memref<12x2x16xf32, #tpu.memory_space<vmem>>, vector<1x2x16xf32>
      %63 = vector.shape_cast %62 : vector<1x2x16xf32> to vector<2x16xf32>
      %64 = vector.shape_cast %60 : vector<2x16xf32> to vector<1x2x16xf32>
      tpu.vector_store %arg5[%61, %c0_32, %c0_33], %64 {strides = array<i32>} : memref<12x2x16xf32, #tpu.memory_space<vmem>>, vector<1x2x16xf32>,
    }
    %c12_i32_10 = arith.constant 12 : i32
    return
  }
}

module attributes {stable_mosaic.version = 11 : i64} {
  func.func @_selfattn_kernel(%arg0: memref<2x12x32xf32, #tpu.memory_space<vmem>>, %arg1: memref<32x32xf32, #tpu.memory_space<vmem>>, %arg2: memref<32x8xf32, #tpu.memory_space<vmem>>, %arg3: memref<2x8x32xf32, #tpu.memory_space<vmem>>) attributes {dimension_semantics = [], scalar_prefetch = 0 : i64, scratch_operands = 0 : i64, tpu.core_type = #tpu.core_type<tc>} {
    %c0 = arith.constant 0 : index
    %c0_0 = arith.constant 0 : index
    %0 = vector.load %arg1[%c0, %c0_0] : memref<32x32xf32, #tpu.memory_space<vmem>>, vector<32x32xf32>
    %c0_1 = arith.constant 0 : index
    %c0_2 = arith.constant 0 : index
    %1 = vector.load %arg2[%c0_1, %c0_2] : memref<32x8xf32, #tpu.memory_space<vmem>>, vector<32x8xf32>
    %c0_3 = arith.constant 0 : index
    %c0_4 = arith.constant 0 : index
    %c0_5 = arith.constant 0 : index
    %2 = vector.load %arg0[%c0_3, %c0_4, %c0_5] : memref<2x12x32xf32, #tpu.memory_space<vmem>>, vector<1x12x32xf32>
    %3 = vector.shape_cast %2 : vector<1x12x32xf32> to vector<12x32xf32>
    %cst = arith.constant dense<0.000000e+00> : vector<12x32xf32>
    %4 = tpu.matmul %3, %0, %cst {dimension_numbers = #tpu.dot_dimension_numbers<[1], [0], [0], [1], [0, 0, 1, 1], [], []>} : vector<12x32xf32>, vector<32x32xf32>, vector<12x32xf32> -> vector<12x32xf32>
    %5 = math.tanh %4 : vector<12x32xf32>
    %cst_6 = arith.constant dense<0.000000e+00> : vector<12x8xf32>
    %6 = tpu.matmul %5, %1, %cst_6 {dimension_numbers = #tpu.dot_dimension_numbers<[1], [0], [0], [1], [0, 0, 1, 1], [], []>} : vector<12x32xf32>, vector<32x8xf32>, vector<12x8xf32> -> vector<12x8xf32>
    %cst_7 = arith.constant dense<0xFF800000> : vector<8xf32>
    %7 = vector.multi_reduction <maximumf>, %6, %cst_7 [0] : vector<12x8xf32> to vector<8xf32>
    %8 = vector.shape_cast %7 : vector<8xf32> to vector<1x8xf32>
    %9 = vector.broadcast %8 : vector<1x8xf32> to vector<12x8xf32>
    %10 = arith.subf %6, %9 : vector<12x8xf32>
    %11 = math.exp %10 : vector<12x8xf32>
    %cst_8 = arith.constant dense<0.000000e+00> : vector<8xf32>
    %12 = vector.multi_reduction <add>, %11, %cst_8 [0] : vector<12x8xf32> to vector<8xf32>
    %13 = vector.shape_cast %12 : vector<8xf32> to vector<1x8xf32>
    %14 = vector.broadcast %13 : vector<1x8xf32> to vector<12x8xf32>
    %15 = arith.divf %11, %14 : vector<12x8xf32>
    "tpu.trace_start"() <{level = 10 : i32, message = "tr,td->rd"}> : () -> ()
    %cst_9 = arith.constant dense<0.000000e+00> : vector<8x32xf32>
    %16 = tpu.matmul %15, %3, %cst_9 {dimension_numbers = #tpu.dot_dimension_numbers<[0], [0], [1], [1], [0, 1, 1, 1], [], []>} : vector<12x8xf32>, vector<12x32xf32>, vector<8x32xf32> -> vector<8x32xf32>
    "tpu.trace_stop"() : () -> ()
    %c0_10 = arith.constant 0 : index
    %c0_11 = arith.constant 0 : index
    %c0_12 = arith.constant 0 : index
    %17 = vector.load %arg3[%c0_10, %c0_11, %c0_12] : memref<2x8x32xf32, #tpu.memory_space<vmem>>, vector<1x8x32xf32>
    %18 = vector.shape_cast %17 : vector<1x8x32xf32> to vector<8x32xf32>
    %19 = vector.shape_cast %16 : vector<8x32xf32> to vector<1x8x32xf32>
    tpu.vector_store %arg3[%c0_10, %c0_11, %c0_12], %19 {strides = array<i32>} : memref<2x8x32xf32, #tpu.memory_space<vmem>>, vector<1x8x32xf32>,
    %c1 = arith.constant 1 : index
    %c0_13 = arith.constant 0 : index
    %c0_14 = arith.constant 0 : index
    %20 = vector.load %arg0[%c1, %c0_13, %c0_14] : memref<2x12x32xf32, #tpu.memory_space<vmem>>, vector<1x12x32xf32>
    %21 = vector.shape_cast %20 : vector<1x12x32xf32> to vector<12x32xf32>
    %cst_15 = arith.constant dense<0.000000e+00> : vector<12x32xf32>
    %22 = tpu.matmul %21, %0, %cst_15 {dimension_numbers = #tpu.dot_dimension_numbers<[1], [0], [0], [1], [0, 0, 1, 1], [], []>} : vector<12x32xf32>, vector<32x32xf32>, vector<12x32xf32> -> vector<12x32xf32>
    %23 = math.tanh %22 : vector<12x32xf32>
    %cst_16 = arith.constant dense<0.000000e+00> : vector<12x8xf32>
    %24 = tpu.matmul %23, %1, %cst_16 {dimension_numbers = #tpu.dot_dimension_numbers<[1], [0], [0], [1], [0, 0, 1, 1], [], []>} : vector<12x32xf32>, vector<32x8xf32>, vector<12x8xf32> -> vector<12x8xf32>
    %cst_17 = arith.constant dense<0xFF800000> : vector<8xf32>
    %25 = vector.multi_reduction <maximumf>, %24, %cst_17 [0] : vector<12x8xf32> to vector<8xf32>
    %26 = vector.shape_cast %25 : vector<8xf32> to vector<1x8xf32>
    %27 = vector.broadcast %26 : vector<1x8xf32> to vector<12x8xf32>
    %28 = arith.subf %24, %27 : vector<12x8xf32>
    %29 = math.exp %28 : vector<12x8xf32>
    %cst_18 = arith.constant dense<0.000000e+00> : vector<8xf32>
    %30 = vector.multi_reduction <add>, %29, %cst_18 [0] : vector<12x8xf32> to vector<8xf32>
    %31 = vector.shape_cast %30 : vector<8xf32> to vector<1x8xf32>
    %32 = vector.broadcast %31 : vector<1x8xf32> to vector<12x8xf32>
    %33 = arith.divf %29, %32 : vector<12x8xf32>
    "tpu.trace_start"() <{level = 10 : i32, message = "tr,td->rd"}> : () -> ()
    %cst_19 = arith.constant dense<0.000000e+00> : vector<8x32xf32>
    %34 = tpu.matmul %33, %21, %cst_19 {dimension_numbers = #tpu.dot_dimension_numbers<[0], [0], [1], [1], [0, 1, 1, 1], [], []>} : vector<12x8xf32>, vector<12x32xf32>, vector<8x32xf32> -> vector<8x32xf32>
    "tpu.trace_stop"() : () -> ()
    %c1_20 = arith.constant 1 : index
    %c0_21 = arith.constant 0 : index
    %c0_22 = arith.constant 0 : index
    %35 = vector.load %arg3[%c1_20, %c0_21, %c0_22] : memref<2x8x32xf32, #tpu.memory_space<vmem>>, vector<1x8x32xf32>
    %36 = vector.shape_cast %35 : vector<1x8x32xf32> to vector<8x32xf32>
    %37 = vector.shape_cast %34 : vector<8x32xf32> to vector<1x8x32xf32>
    tpu.vector_store %arg3[%c1_20, %c0_21, %c0_22], %37 {strides = array<i32>} : memref<2x8x32xf32, #tpu.memory_space<vmem>>, vector<1x8x32xf32>,
    return
  }
}

module attributes {stable_mosaic.version = 11 : i64} {
  func.func @_bilstm_kernel(%arg0: memref<8x2x300xf32, #tpu.memory_space<vmem>>, %arg1: memref<300x128xf32, #tpu.memory_space<vmem>>, %arg2: memref<16x128xf32, #tpu.memory_space<vmem>>, %arg3: memref<1x128xf32, #tpu.memory_space<vmem>>, %arg4: memref<8x2x16xf32, #tpu.memory_space<vmem>>, %arg5: memref<8x2x16xf32, #tpu.memory_space<vmem>>, %arg6: memref<4x16xf32, #tpu.memory_space<vmem>>, %arg7: memref<4x16xf32, #tpu.memory_space<vmem>>) attributes {dimension_semantics = [], scalar_prefetch = 0 : i64, scratch_operands = 2 : i64, tpu.core_type = #tpu.core_type<tc>} {
    %c0 = arith.constant 0 : index
    %c0_0 = arith.constant 0 : index
    %0 = vector.load %arg1[%c0, %c0_0] : memref<300x128xf32, #tpu.memory_space<vmem>>, vector<300x128xf32>
    %c0_1 = arith.constant 0 : index
    %c0_2 = arith.constant 0 : index
    %1 = vector.load %arg2[%c0_1, %c0_2] : memref<16x128xf32, #tpu.memory_space<vmem>>, vector<16x128xf32>
    %c0_3 = arith.constant 0 : index
    %c0_4 = arith.constant 0 : index
    %2 = vector.load %arg3[%c0_3, %c0_4] : memref<1x128xf32, #tpu.memory_space<vmem>>, vector<1x128xf32>
    %cst = arith.constant 0.000000e+00 : f32
    %3 = vector.broadcast %cst : f32 to vector<4x16xf32>
    %c0_5 = arith.constant 0 : index
    %c0_6 = arith.constant 0 : index
    %4 = vector.load %arg6[%c0_5, %c0_6] : memref<4x16xf32, #tpu.memory_space<vmem>>, vector<4x16xf32>
    tpu.vector_store %arg6[%c0_5, %c0_6], %3 {strides = array<i32>} : memref<4x16xf32, #tpu.memory_space<vmem>>, vector<4x16xf32>,
    %cst_7 = arith.constant 0.000000e+00 : f32
    %5 = vector.broadcast %cst_7 : f32 to vector<4x16xf32>
    %c0_8 = arith.constant 0 : index
    %c0_9 = arith.constant 0 : index
    %6 = vector.load %arg7[%c0_8, %c0_9] : memref<4x16xf32, #tpu.memory_space<vmem>>, vector<4x16xf32>
    tpu.vector_store %arg7[%c0_8, %c0_9], %5 {strides = array<i32>} : memref<4x16xf32, #tpu.memory_space<vmem>>, vector<4x16xf32>,
    %c0_i32 = arith.constant 0 : i32
    %c8_i32 = arith.constant 8 : i32
    %7 = arith.addi %c0_i32, %c8_i32 : i32
    %c1_i32 = arith.constant 1 : i32
    scf.for %arg8 = %c0_i32 to %7 step %c1_i32  : i32 {
      %c1_i32_11 = arith.constant 1 : i32
      %8 = arith.muli %arg8, %c1_i32_11 : i32
      %c0_i32_12 = arith.constant 0 : i32
      %9 = arith.addi %c0_i32_12, %8 : i32
      %c7_i32 = arith.constant 7 : i32
      %10 = arith.subi %c7_i32, %9 : i32
      %11 = arith.index_cast %9 : i32 to index
      %c0_13 = arith.constant 0 : index
      %c0_14 = arith.constant 0 : index
      %12 = vector.load %arg0[%11, %c0_13, %c0_14] : memref<8x2x300xf32, #tpu.memory_space<vmem>>, vector<1x2x300xf32>
      %13 = vector.shape_cast %12 : vector<1x2x300xf32> to vector<2x300xf32>
      %14 = arith.index_cast %10 : i32 to index
      %c0_15 = arith.constant 0 : index
      %c0_16 = arith.constant 0 : index
      %15 = vector.load %arg0[%14, %c0_15, %c0_16] : memref<8x2x300xf32, #tpu.memory_space<vmem>>, vector<1x2x300xf32>
      %16 = vector.shape_cast %15 : vector<1x2x300xf32> to vector<2x300xf32>
      %17 = tpu.concatenate %13, %16 in 0 : vector<2x300xf32>, vector<2x300xf32> -> vector<4x300xf32>
      %cst_17 = arith.constant dense<0.000000e+00> : vector<4x128xf32>
      %18 = tpu.matmul %17, %0, %cst_17 {dimension_numbers = #tpu.dot_dimension_numbers<[1], [0], [0], [1], [0, 0, 1, 1], [], []>} : vector<4x300xf32>, vector<300x128xf32>, vector<4x128xf32> -> vector<4x128xf32>
      %c0_18 = arith.constant 0 : index
      %c0_19 = arith.constant 0 : index
      %19 = vector.load %arg6[%c0_18, %c0_19] : memref<4x16xf32, #tpu.memory_space<vmem>>, vector<4x16xf32>
      %cst_20 = arith.constant dense<0.000000e+00> : vector<4x128xf32>
      %20 = tpu.matmul %19, %1, %cst_20 {dimension_numbers = #tpu.dot_dimension_numbers<[1], [0], [0], [1], [0, 0, 1, 1], [], []>} : vector<4x16xf32>, vector<16x128xf32>, vector<4x128xf32> -> vector<4x128xf32>
      %21 = arith.addf %18, %20 : vector<4x128xf32>
      %22 = vector.broadcast %2 : vector<1x128xf32> to vector<4x128xf32>
      %23 = arith.addf %21, %22 : vector<4x128xf32>
      %24 = vector.extract_strided_slice %23 {offsets = [0, 0], sizes = [2, 64], strides = [1, 1]} : vector<4x128xf32> to vector<2x64xf32>
      %25 = vector.extract_strided_slice %23 {offsets = [2, 64], sizes = [2, 64], strides = [1, 1]} : vector<4x128xf32> to vector<2x64xf32>
      %26 = tpu.concatenate %24, %25 in 0 : vector<2x64xf32>, vector<2x64xf32> -> vector<4x64xf32>
      %27 = vector.extract_strided_slice %26 {offsets = [0, 0], sizes = [4, 16], strides = [1, 1]} : vector<4x64xf32> to vector<4x16xf32>
      %28 = arith.negf %27 : vector<4x16xf32>
      %29 = math.exp %28 : vector<4x16xf32>
      %cst_21 = arith.constant 1.000000e+00 : f32
      %30 = vector.broadcast %cst_21 : f32 to vector<4x16xf32>
      %31 = arith.addf %30, %29 : vector<4x16xf32>
      %32 = arith.divf %30, %31 : vector<4x16xf32>
      %33 = vector.extract_strided_slice %26 {offsets = [0, 16], sizes = [4, 16], strides = [1, 1]} : vector<4x64xf32> to vector<4x16xf32>
      %34 = arith.negf %33 : vector<4x16xf32>
      %35 = math.exp %34 : vector<4x16xf32>
      %cst_22 = arith.constant 1.000000e+00 : f32
      %36 = vector.broadcast %cst_22 : f32 to vector<4x16xf32>
      %37 = arith.addf %36, %35 : vector<4x16xf32>
      %38 = arith.divf %36, %37 : vector<4x16xf32>
      %39 = vector.extract_strided_slice %26 {offsets = [0, 32], sizes = [4, 16], strides = [1, 1]} : vector<4x64xf32> to vector<4x16xf32>
      %40 = math.tanh %39 : vector<4x16xf32>
      %41 = vector.extract_strided_slice %26 {offsets = [0, 48], sizes = [4, 16], strides = [1, 1]} : vector<4x64xf32> to vector<4x16xf32>
      %42 = arith.negf %41 : vector<4x16xf32>
      %43 = math.exp %42 : vector<4x16xf32>
      %cst_23 = arith.constant 1.000000e+00 : f32
      %44 = vector.broadcast %cst_23 : f32 to vector<4x16xf32>
      %45 = arith.addf %44, %43 : vector<4x16xf32>
      %46 = arith.divf %44, %45 : vector<4x16xf32>
      %c0_24 = arith.constant 0 : index
      %c0_25 = arith.constant 0 : index
      %47 = vector.load %arg7[%c0_24, %c0_25] : memref<4x16xf32, #tpu.memory_space<vmem>>, vector<4x16xf32>
      %48 = arith.mulf %38, %47 : vector<4x16xf32>
      %49 = arith.mulf %32, %40 : vector<4x16xf32>
      %50 = arith.addf %48, %49 : vector<4x16xf32>
      %51 = math.tanh %50 : vector<4x16xf32>
      %52 = arith.mulf %46, %51 : vector<4x16xf32>
      %c0_26 = arith.constant 0 : index
      %c0_27 = arith.constant 0 : index
      %53 = vector.load %arg6[%c0_26, %c0_27] : memref<4x16xf32, #tpu.memory_space<vmem>>, vector<4x16xf32>
      tpu.vector_store %arg6[%c0_26, %c0_27], %52 {strides = array<i32>} : memref<4x16xf32, #tpu.memory_space<vmem>>, vector<4x16xf32>,
      %c0_28 = arith.constant 0 : index
      %c0_29 = arith.constant 0 : index
      %54 = vector.load %arg7[%c0_28, %c0_29] : memref<4x16xf32, #tpu.memory_space<vmem>>, vector<4x16xf32>
      tpu.vector_store %arg7[%c0_28, %c0_29], %50 {strides = array<i32>} : memref<4x16xf32, #tpu.memory_space<vmem>>, vector<4x16xf32>,
      %55 = vector.extract_strided_slice %52 {offsets = [0, 0], sizes = [2, 16], strides = [1, 1]} : vector<4x16xf32> to vector<2x16xf32>
      %56 = arith.index_cast %9 : i32 to index
      %c0_30 = arith.constant 0 : index
      %c0_31 = arith.constant 0 : index
      %57 = vector.load %arg4[%56, %c0_30, %c0_31] : memref<8x2x16xf32, #tpu.memory_space<vmem>>, vector<1x2x16xf32>
      %58 = vector.shape_cast %57 : vector<1x2x16xf32> to vector<2x16xf32>
      %59 = vector.shape_cast %55 : vector<2x16xf32> to vector<1x2x16xf32>
      tpu.vector_store %arg4[%56, %c0_30, %c0_31], %59 {strides = array<i32>} : memref<8x2x16xf32, #tpu.memory_space<vmem>>, vector<1x2x16xf32>,
      %60 = vector.extract_strided_slice %52 {offsets = [2, 0], sizes = [2, 16], strides = [1, 1]} : vector<4x16xf32> to vector<2x16xf32>
      %61 = arith.index_cast %10 : i32 to index
      %c0_32 = arith.constant 0 : index
      %c0_33 = arith.constant 0 : index
      %62 = vector.load %arg5[%61, %c0_32, %c0_33] : memref<8x2x16xf32, #tpu.memory_space<vmem>>, vector<1x2x16xf32>
      %63 = vector.shape_cast %62 : vector<1x2x16xf32> to vector<2x16xf32>
      %64 = vector.shape_cast %60 : vector<2x16xf32> to vector<1x2x16xf32>
      tpu.vector_store %arg5[%61, %c0_32, %c0_33], %64 {strides = array<i32>} : memref<8x2x16xf32, #tpu.memory_space<vmem>>, vector<1x2x16xf32>,
    }
    %c8_i32_10 = arith.constant 8 : i32
    return
  }
}

module attributes {stable_mosaic.version = 11 : i64} {
  func.func @_selfattn_kernel(%arg0: memref<2x8x32xf32, #tpu.memory_space<vmem>>, %arg1: memref<32x32xf32, #tpu.memory_space<vmem>>, %arg2: memref<32x8xf32, #tpu.memory_space<vmem>>, %arg3: memref<2x8x32xf32, #tpu.memory_space<vmem>>) attributes {dimension_semantics = [], scalar_prefetch = 0 : i64, scratch_operands = 0 : i64, tpu.core_type = #tpu.core_type<tc>} {
    %c0 = arith.constant 0 : index
    %c0_0 = arith.constant 0 : index
    %0 = vector.load %arg1[%c0, %c0_0] : memref<32x32xf32, #tpu.memory_space<vmem>>, vector<32x32xf32>
    %c0_1 = arith.constant 0 : index
    %c0_2 = arith.constant 0 : index
    %1 = vector.load %arg2[%c0_1, %c0_2] : memref<32x8xf32, #tpu.memory_space<vmem>>, vector<32x8xf32>
    %c0_3 = arith.constant 0 : index
    %c0_4 = arith.constant 0 : index
    %c0_5 = arith.constant 0 : index
    %2 = vector.load %arg0[%c0_3, %c0_4, %c0_5] : memref<2x8x32xf32, #tpu.memory_space<vmem>>, vector<1x8x32xf32>
    %3 = vector.shape_cast %2 : vector<1x8x32xf32> to vector<8x32xf32>
    %cst = arith.constant dense<0.000000e+00> : vector<8x32xf32>
    %4 = tpu.matmul %3, %0, %cst {dimension_numbers = #tpu.dot_dimension_numbers<[1], [0], [0], [1], [0, 0, 1, 1], [], []>} : vector<8x32xf32>, vector<32x32xf32>, vector<8x32xf32> -> vector<8x32xf32>
    %5 = math.tanh %4 : vector<8x32xf32>
    %cst_6 = arith.constant dense<0.000000e+00> : vector<8x8xf32>
    %6 = tpu.matmul %5, %1, %cst_6 {dimension_numbers = #tpu.dot_dimension_numbers<[1], [0], [0], [1], [0, 0, 1, 1], [], []>} : vector<8x32xf32>, vector<32x8xf32>, vector<8x8xf32> -> vector<8x8xf32>
    %cst_7 = arith.constant dense<0xFF800000> : vector<8xf32>
    %7 = vector.multi_reduction <maximumf>, %6, %cst_7 [0] : vector<8x8xf32> to vector<8xf32>
    %8 = vector.shape_cast %7 : vector<8xf32> to vector<1x8xf32>
    %9 = vector.broadcast %8 : vector<1x8xf32> to vector<8x8xf32>
    %10 = arith.subf %6, %9 : vector<8x8xf32>
    %11 = math.exp %10 : vector<8x8xf32>
    %cst_8 = arith.constant dense<0.000000e+00> : vector<8xf32>
    %12 = vector.multi_reduction <add>, %11, %cst_8 [0] : vector<8x8xf32> to vector<8xf32>
    %13 = vector.shape_cast %12 : vector<8xf32> to vector<1x8xf32>
    %14 = vector.broadcast %13 : vector<1x8xf32> to vector<8x8xf32>
    %15 = arith.divf %11, %14 : vector<8x8xf32>
    "tpu.trace_start"() <{level = 10 : i32, message = "tr,td->rd"}> : () -> ()
    %cst_9 = arith.constant dense<0.000000e+00> : vector<8x32xf32>
    %16 = tpu.matmul %15, %3, %cst_9 {dimension_numbers = #tpu.dot_dimension_numbers<[0], [0], [1], [1], [0, 1, 1, 1], [], []>} : vector<8x8xf32>, vector<8x32xf32>, vector<8x32xf32> -> vector<8x32xf32>
    "tpu.trace_stop"() : () -> ()
    %c0_10 = arith.constant 0 : index
    %c0_11 = arith.constant 0 : index
    %c0_12 = arith.constant 0 : index
    %17 = vector.load %arg3[%c0_10, %c0_11, %c0_12] : memref<2x8x32xf32, #tpu.memory_space<vmem>>, vector<1x8x32xf32>
    %18 = vector.shape_cast %17 : vector<1x8x32xf32> to vector<8x32xf32>
    %19 = vector.shape_cast %16 : vector<8x32xf32> to vector<1x8x32xf32>
    tpu.vector_store %arg3[%c0_10, %c0_11, %c0_12], %19 {strides = array<i32>} : memref<2x8x32xf32, #tpu.memory_space<vmem>>, vector<1x8x32xf32>,
    %c1 = arith.constant 1 : index
    %c0_13 = arith.constant 0 : index
    %c0_14 = arith.constant 0 : index
    %20 = vector.load %arg0[%c1, %c0_13, %c0_14] : memref<2x8x32xf32, #tpu.memory_space<vmem>>, vector<1x8x32xf32>
    %21 = vector.shape_cast %20 : vector<1x8x32xf32> to vector<8x32xf32>
    %cst_15 = arith.constant dense<0.000000e+00> : vector<8x32xf32>
    %22 = tpu.matmul %21, %0, %cst_15 {dimension_numbers = #tpu.dot_dimension_numbers<[1], [0], [0], [1], [0, 0, 1, 1], [], []>} : vector<8x32xf32>, vector<32x32xf32>, vector<8x32xf32> -> vector<8x32xf32>
    %23 = math.tanh %22 : vector<8x32xf32>
    %cst_16 = arith.constant dense<0.000000e+00> : vector<8x8xf32>
    %24 = tpu.matmul %23, %1, %cst_16 {dimension_numbers = #tpu.dot_dimension_numbers<[1], [0], [0], [1], [0, 0, 1, 1], [], []>} : vector<8x32xf32>, vector<32x8xf32>, vector<8x8xf32> -> vector<8x8xf32>
    %cst_17 = arith.constant dense<0xFF800000> : vector<8xf32>
    %25 = vector.multi_reduction <maximumf>, %24, %cst_17 [0] : vector<8x8xf32> to vector<8xf32>
    %26 = vector.shape_cast %25 : vector<8xf32> to vector<1x8xf32>
    %27 = vector.broadcast %26 : vector<1x8xf32> to vector<8x8xf32>
    %28 = arith.subf %24, %27 : vector<8x8xf32>
    %29 = math.exp %28 : vector<8x8xf32>
    %cst_18 = arith.constant dense<0.000000e+00> : vector<8xf32>
    %30 = vector.multi_reduction <add>, %29, %cst_18 [0] : vector<8x8xf32> to vector<8xf32>
    %31 = vector.shape_cast %30 : vector<8xf32> to vector<1x8xf32>
    %32 = vector.broadcast %31 : vector<1x8xf32> to vector<8x8xf32>
    %33 = arith.divf %29, %32 : vector<8x8xf32>
    "tpu.trace_start"() <{level = 10 : i32, message = "tr,td->rd"}> : () -> ()
    %cst_19 = arith.constant dense<0.000000e+00> : vector<8x32xf32>
    %34 = tpu.matmul %33, %21, %cst_19 {dimension_numbers = #tpu.dot_dimension_numbers<[0], [0], [1], [1], [0, 1, 1, 1], [], []>} : vector<8x8xf32>, vector<8x32xf32>, vector<8x32xf32> -> vector<8x32xf32>
    "tpu.trace_stop"() : () -> ()
    %c1_20 = arith.constant 1 : index
    %c0_21 = arith.constant 0 : index
    %c0_22 = arith.constant 0 : index
    %35 = vector.load %arg3[%c1_20, %c0_21, %c0_22] : memref<2x8x32xf32, #tpu.memory_space<vmem>>, vector<1x8x32xf32>
    %36 = vector.shape_cast %35 : vector<1x8x32xf32> to vector<8x32xf32>
    %37 = vector.shape_cast %34 : vector<8x32xf32> to vector<1x8x32xf32>
    tpu.vector_store %arg3[%c1_20, %c0_21, %c0_22], %37 {strides = array<i32>} : memref<2x8x32xf32, #tpu.memory_space<vmem>>, vector<1x8x32xf32>,
    return
  }
}

module attributes {stable_mosaic.version = 11 : i64} {
  func.func @_bilstm_kernel(%arg0: memref<8x2x32xf32, #tpu.memory_space<vmem>>, %arg1: memref<32x128xf32, #tpu.memory_space<vmem>>, %arg2: memref<16x128xf32, #tpu.memory_space<vmem>>, %arg3: memref<1x128xf32, #tpu.memory_space<vmem>>, %arg4: memref<8x2x16xf32, #tpu.memory_space<vmem>>, %arg5: memref<8x2x16xf32, #tpu.memory_space<vmem>>, %arg6: memref<4x16xf32, #tpu.memory_space<vmem>>, %arg7: memref<4x16xf32, #tpu.memory_space<vmem>>) attributes {dimension_semantics = [], scalar_prefetch = 0 : i64, scratch_operands = 2 : i64, tpu.core_type = #tpu.core_type<tc>} {
    %c0 = arith.constant 0 : index
    %c0_0 = arith.constant 0 : index
    %0 = vector.load %arg1[%c0, %c0_0] : memref<32x128xf32, #tpu.memory_space<vmem>>, vector<32x128xf32>
    %c0_1 = arith.constant 0 : index
    %c0_2 = arith.constant 0 : index
    %1 = vector.load %arg2[%c0_1, %c0_2] : memref<16x128xf32, #tpu.memory_space<vmem>>, vector<16x128xf32>
    %c0_3 = arith.constant 0 : index
    %c0_4 = arith.constant 0 : index
    %2 = vector.load %arg3[%c0_3, %c0_4] : memref<1x128xf32, #tpu.memory_space<vmem>>, vector<1x128xf32>
    %cst = arith.constant 0.000000e+00 : f32
    %3 = vector.broadcast %cst : f32 to vector<4x16xf32>
    %c0_5 = arith.constant 0 : index
    %c0_6 = arith.constant 0 : index
    %4 = vector.load %arg6[%c0_5, %c0_6] : memref<4x16xf32, #tpu.memory_space<vmem>>, vector<4x16xf32>
    tpu.vector_store %arg6[%c0_5, %c0_6], %3 {strides = array<i32>} : memref<4x16xf32, #tpu.memory_space<vmem>>, vector<4x16xf32>,
    %cst_7 = arith.constant 0.000000e+00 : f32
    %5 = vector.broadcast %cst_7 : f32 to vector<4x16xf32>
    %c0_8 = arith.constant 0 : index
    %c0_9 = arith.constant 0 : index
    %6 = vector.load %arg7[%c0_8, %c0_9] : memref<4x16xf32, #tpu.memory_space<vmem>>, vector<4x16xf32>
    tpu.vector_store %arg7[%c0_8, %c0_9], %5 {strides = array<i32>} : memref<4x16xf32, #tpu.memory_space<vmem>>, vector<4x16xf32>,
    %c0_i32 = arith.constant 0 : i32
    %c8_i32 = arith.constant 8 : i32
    %7 = arith.addi %c0_i32, %c8_i32 : i32
    %c1_i32 = arith.constant 1 : i32
    scf.for %arg8 = %c0_i32 to %7 step %c1_i32  : i32 {
      %c1_i32_11 = arith.constant 1 : i32
      %8 = arith.muli %arg8, %c1_i32_11 : i32
      %c0_i32_12 = arith.constant 0 : i32
      %9 = arith.addi %c0_i32_12, %8 : i32
      %c7_i32 = arith.constant 7 : i32
      %10 = arith.subi %c7_i32, %9 : i32
      %11 = arith.index_cast %9 : i32 to index
      %c0_13 = arith.constant 0 : index
      %c0_14 = arith.constant 0 : index
      %12 = vector.load %arg0[%11, %c0_13, %c0_14] : memref<8x2x32xf32, #tpu.memory_space<vmem>>, vector<1x2x32xf32>
      %13 = vector.shape_cast %12 : vector<1x2x32xf32> to vector<2x32xf32>
      %14 = arith.index_cast %10 : i32 to index
      %c0_15 = arith.constant 0 : index
      %c0_16 = arith.constant 0 : index
      %15 = vector.load %arg0[%14, %c0_15, %c0_16] : memref<8x2x32xf32, #tpu.memory_space<vmem>>, vector<1x2x32xf32>
      %16 = vector.shape_cast %15 : vector<1x2x32xf32> to vector<2x32xf32>
      %17 = tpu.concatenate %13, %16 in 0 : vector<2x32xf32>, vector<2x32xf32> -> vector<4x32xf32>
      %cst_17 = arith.constant dense<0.000000e+00> : vector<4x128xf32>
      %18 = tpu.matmul %17, %0, %cst_17 {dimension_numbers = #tpu.dot_dimension_numbers<[1], [0], [0], [1], [0, 0, 1, 1], [], []>} : vector<4x32xf32>, vector<32x128xf32>, vector<4x128xf32> -> vector<4x128xf32>
      %c0_18 = arith.constant 0 : index
      %c0_19 = arith.constant 0 : index
      %19 = vector.load %arg6[%c0_18, %c0_19] : memref<4x16xf32, #tpu.memory_space<vmem>>, vector<4x16xf32>
      %cst_20 = arith.constant dense<0.000000e+00> : vector<4x128xf32>
      %20 = tpu.matmul %19, %1, %cst_20 {dimension_numbers = #tpu.dot_dimension_numbers<[1], [0], [0], [1], [0, 0, 1, 1], [], []>} : vector<4x16xf32>, vector<16x128xf32>, vector<4x128xf32> -> vector<4x128xf32>
      %21 = arith.addf %18, %20 : vector<4x128xf32>
      %22 = vector.broadcast %2 : vector<1x128xf32> to vector<4x128xf32>
      %23 = arith.addf %21, %22 : vector<4x128xf32>
      %24 = vector.extract_strided_slice %23 {offsets = [0, 0], sizes = [2, 64], strides = [1, 1]} : vector<4x128xf32> to vector<2x64xf32>
      %25 = vector.extract_strided_slice %23 {offsets = [2, 64], sizes = [2, 64], strides = [1, 1]} : vector<4x128xf32> to vector<2x64xf32>
      %26 = tpu.concatenate %24, %25 in 0 : vector<2x64xf32>, vector<2x64xf32> -> vector<4x64xf32>
      %27 = vector.extract_strided_slice %26 {offsets = [0, 0], sizes = [4, 16], strides = [1, 1]} : vector<4x64xf32> to vector<4x16xf32>
      %28 = arith.negf %27 : vector<4x16xf32>
      %29 = math.exp %28 : vector<4x16xf32>
      %cst_21 = arith.constant 1.000000e+00 : f32
      %30 = vector.broadcast %cst_21 : f32 to vector<4x16xf32>
      %31 = arith.addf %30, %29 : vector<4x16xf32>
      %32 = arith.divf %30, %31 : vector<4x16xf32>
      %33 = vector.extract_strided_slice %26 {offsets = [0, 16], sizes = [4, 16], strides = [1, 1]} : vector<4x64xf32> to vector<4x16xf32>
      %34 = arith.negf %33 : vector<4x16xf32>
      %35 = math.exp %34 : vector<4x16xf32>
      %cst_22 = arith.constant 1.000000e+00 : f32
      %36 = vector.broadcast %cst_22 : f32 to vector<4x16xf32>
      %37 = arith.addf %36, %35 : vector<4x16xf32>
      %38 = arith.divf %36, %37 : vector<4x16xf32>
      %39 = vector.extract_strided_slice %26 {offsets = [0, 32], sizes = [4, 16], strides = [1, 1]} : vector<4x64xf32> to vector<4x16xf32>
      %40 = math.tanh %39 : vector<4x16xf32>
      %41 = vector.extract_strided_slice %26 {offsets = [0, 48], sizes = [4, 16], strides = [1, 1]} : vector<4x64xf32> to vector<4x16xf32>
      %42 = arith.negf %41 : vector<4x16xf32>
      %43 = math.exp %42 : vector<4x16xf32>
      %cst_23 = arith.constant 1.000000e+00 : f32
      %44 = vector.broadcast %cst_23 : f32 to vector<4x16xf32>
      %45 = arith.addf %44, %43 : vector<4x16xf32>
      %46 = arith.divf %44, %45 : vector<4x16xf32>
      %c0_24 = arith.constant 0 : index
      %c0_25 = arith.constant 0 : index
      %47 = vector.load %arg7[%c0_24, %c0_25] : memref<4x16xf32, #tpu.memory_space<vmem>>, vector<4x16xf32>
      %48 = arith.mulf %38, %47 : vector<4x16xf32>
      %49 = arith.mulf %32, %40 : vector<4x16xf32>
      %50 = arith.addf %48, %49 : vector<4x16xf32>
      %51 = math.tanh %50 : vector<4x16xf32>
      %52 = arith.mulf %46, %51 : vector<4x16xf32>
      %c0_26 = arith.constant 0 : index
      %c0_27 = arith.constant 0 : index
      %53 = vector.load %arg6[%c0_26, %c0_27] : memref<4x16xf32, #tpu.memory_space<vmem>>, vector<4x16xf32>
      tpu.vector_store %arg6[%c0_26, %c0_27], %52 {strides = array<i32>} : memref<4x16xf32, #tpu.memory_space<vmem>>, vector<4x16xf32>,
      %c0_28 = arith.constant 0 : index
      %c0_29 = arith.constant 0 : index
      %54 = vector.load %arg7[%c0_28, %c0_29] : memref<4x16xf32, #tpu.memory_space<vmem>>, vector<4x16xf32>
      tpu.vector_store %arg7[%c0_28, %c0_29], %50 {strides = array<i32>} : memref<4x16xf32, #tpu.memory_space<vmem>>, vector<4x16xf32>,
      %55 = vector.extract_strided_slice %52 {offsets = [0, 0], sizes = [2, 16], strides = [1, 1]} : vector<4x16xf32> to vector<2x16xf32>
      %56 = arith.index_cast %9 : i32 to index
      %c0_30 = arith.constant 0 : index
      %c0_31 = arith.constant 0 : index
      %57 = vector.load %arg4[%56, %c0_30, %c0_31] : memref<8x2x16xf32, #tpu.memory_space<vmem>>, vector<1x2x16xf32>
      %58 = vector.shape_cast %57 : vector<1x2x16xf32> to vector<2x16xf32>
      %59 = vector.shape_cast %55 : vector<2x16xf32> to vector<1x2x16xf32>
      tpu.vector_store %arg4[%56, %c0_30, %c0_31], %59 {strides = array<i32>} : memref<8x2x16xf32, #tpu.memory_space<vmem>>, vector<1x2x16xf32>,
      %60 = vector.extract_strided_slice %52 {offsets = [2, 0], sizes = [2, 16], strides = [1, 1]} : vector<4x16xf32> to vector<2x16xf32>
      %61 = arith.index_cast %10 : i32 to index
      %c0_32 = arith.constant 0 : index
      %c0_33 = arith.constant 0 : index
      %62 = vector.load %arg5[%61, %c0_32, %c0_33] : memref<8x2x16xf32, #tpu.memory_space<vmem>>, vector<1x2x16xf32>
      %63 = vector.shape_cast %62 : vector<1x2x16xf32> to vector<2x16xf32>
      %64 = vector.shape_cast %60 : vector<2x16xf32> to vector<1x2x16xf32>
      tpu.vector_store %arg5[%61, %c0_32, %c0_33], %64 {strides = array<i32>} : memref<8x2x16xf32, #tpu.memory_space<vmem>>, vector<1x2x16xf32>,
    }
    %c8_i32_10 = arith.constant 8 : i32
    return
  }
}

module attributes {stable_mosaic.version = 11 : i64} {
  func.func @_head_kernel(%arg0: memref<2x256xf32, #tpu.memory_space<vmem>>, %arg1: memref<2x256xf32, #tpu.memory_space<vmem>>, %arg2: memref<512x128xf32, #tpu.memory_space<vmem>>, %arg3: memref<1x128xf32, #tpu.memory_space<vmem>>, %arg4: memref<128x4xf32, #tpu.memory_space<vmem>>, %arg5: memref<1x4xf32, #tpu.memory_space<vmem>>, %arg6: memref<2x4xf32, #tpu.memory_space<vmem>>) attributes {dimension_semantics = [], scalar_prefetch = 0 : i64, scratch_operands = 0 : i64, tpu.core_type = #tpu.core_type<tc>} {
    %c0 = arith.constant 0 : index
    %c0_0 = arith.constant 0 : index
    %0 = vector.load %arg0[%c0, %c0_0] : memref<2x256xf32, #tpu.memory_space<vmem>>, vector<2x256xf32>
    %c0_1 = arith.constant 0 : index
    %c0_2 = arith.constant 0 : index
    %1 = vector.load %arg2[%c0_1, %c0_2] : memref<512x128xf32, #tpu.memory_space<vmem>>, vector<256x128xf32>
    %cst = arith.constant dense<0.000000e+00> : vector<2x128xf32>
    %2 = tpu.matmul %0, %1, %cst {dimension_numbers = #tpu.dot_dimension_numbers<[1], [0], [0], [1], [0, 0, 1, 1], [], []>} : vector<2x256xf32>, vector<256x128xf32>, vector<2x128xf32> -> vector<2x128xf32>
    %c0_3 = arith.constant 0 : index
    %c0_4 = arith.constant 0 : index
    %3 = vector.load %arg1[%c0_3, %c0_4] : memref<2x256xf32, #tpu.memory_space<vmem>>, vector<2x256xf32>
    %c256 = arith.constant 256 : index
    %c0_5 = arith.constant 0 : index
    %4 = vector.load %arg2[%c256, %c0_5] : memref<512x128xf32, #tpu.memory_space<vmem>>, vector<256x128xf32>
    %cst_6 = arith.constant dense<0.000000e+00> : vector<2x128xf32>
    %5 = tpu.matmul %3, %4, %cst_6 {dimension_numbers = #tpu.dot_dimension_numbers<[1], [0], [0], [1], [0, 0, 1, 1], [], []>} : vector<2x256xf32>, vector<256x128xf32>, vector<2x128xf32> -> vector<2x128xf32>
    %6 = arith.addf %2, %5 : vector<2x128xf32>
    %c0_7 = arith.constant 0 : index
    %c0_8 = arith.constant 0 : index
    %7 = vector.load %arg3[%c0_7, %c0_8] : memref<1x128xf32, #tpu.memory_space<vmem>>, vector<1x128xf32>
    %8 = vector.broadcast %7 : vector<1x128xf32> to vector<2x128xf32>
    %9 = arith.addf %6, %8 : vector<2x128xf32>
    %cst_9 = arith.constant 0.000000e+00 : f32
    %10 = vector.broadcast %cst_9 : f32 to vector<2x128xf32>
    %11 = arith.maximumf %9, %10 : vector<2x128xf32>
    %c0_10 = arith.constant 0 : index
    %c0_11 = arith.constant 0 : index
    %12 = vector.load %arg4[%c0_10, %c0_11] : memref<128x4xf32, #tpu.memory_space<vmem>>, vector<128x4xf32>
    %cst_12 = arith.constant dense<0.000000e+00> : vector<2x4xf32>
    %13 = tpu.matmul %11, %12, %cst_12 {dimension_numbers = #tpu.dot_dimension_numbers<[1], [0], [0], [1], [0, 0, 1, 1], [], []>} : vector<2x128xf32>, vector<128x4xf32>, vector<2x4xf32> -> vector<2x4xf32>
    %c0_13 = arith.constant 0 : index
    %c0_14 = arith.constant 0 : index
    %14 = vector.load %arg5[%c0_13, %c0_14] : memref<1x4xf32, #tpu.memory_space<vmem>>, vector<1x4xf32>
    %15 = vector.broadcast %14 : vector<1x4xf32> to vector<2x4xf32>
    %16 = arith.addf %13, %15 : vector<2x4xf32>
    %c0_15 = arith.constant 0 : index
    %c0_16 = arith.constant 0 : index
    %17 = vector.load %arg6[%c0_15, %c0_16] : memref<2x4xf32, #tpu.memory_space<vmem>>, vector<2x4xf32>
    tpu.vector_store %arg6[%c0_15, %c0_16], %16 {strides = array<i32>} : memref<2x4xf32, #tpu.memory_space<vmem>>, vector<2x4xf32>,
    return
  }
}

</mosaic_0001>

<llo_original>
// kernel: combined_forward.13
$region0: #{combined_forward.13}
  #allocation0 [shape = 'u32[]', space=smem, size = 0x4, offset = 0x4, fixed_abs, tag = 'smem constant byte address 0x4 - core index']
  #allocation1 [shape = 'u32[144,128]{1,0:T(1,128)}', space=vmem, size = 0x12000, scoped, tag = 'internal scratch']
  #allocation2 [shape = 'f32[4,16]{1,0:T(4,128)}', space=vmem, size = 0x800, scoped, tag = 'scratch operand']
  #allocation3 [shape = 'f32[4,16]{1,0:T(4,128)}', space=vmem, size = 0x800, scoped, tag = 'scratch operand']
  %s0 = inlined_call_operand.vmem [shape: f32[12,2,32], index: 0, kind: input, shape index: {}]
  %s1 = inlined_call_operand.vmem [shape: f32[32,128], index: 1, kind: input, shape index: {}]
  %s2 = inlined_call_operand.vmem [shape: f32[16,128], index: 2, kind: input, shape index: {}]
  %s3 = inlined_call_operand.vmem [shape: f32[1,128], index: 3, kind: input, shape index: {}]
  %s4 = inlined_call_operand.vmem [shape: f32[12,2,16], index: 4, kind: output, shape index: {0}]
  %s5 = inlined_call_operand.vmem [shape: f32[12,2,16], index: 5, kind: output, shape index: {1}]
  %6 = xla_tuple %s4, %s5
  %s7 = sld [smem:[#allocation0]]
  $region41: #{combined_forward.13} parent=0
    _
  %s9 = ssub.s32 1, %s7
  %s10 = scalar_select 0, %s9, %s7
  // Predicated region
  $region2: #{combined_forward.13} parent=0 // pred_check
    _
  $region3: #{combined_forward.13} parent=0 // pred_check_branch
    %12 = sbr.rel (0) target = $region5
  $region4: #{combined_forward.13} parent=0 // pred_region
    _
  $region5: #{combined_forward.13} parent=0 // pred_fallthru
    _
  // Predicated region
  $region6: #{combined_forward.13} parent=0 // pred_check
    _
  $region7: #{combined_forward.13} parent=0 // pred_check_branch
    %14 = sbr.rel (0) target = $region9
  $region8: #{combined_forward.13} parent=0 // pred_region
    _
  $region9: #{combined_forward.13} parent=0 // pred_fallthru
    _
  // Predicated region
  $region10: #{combined_forward.13} parent=0 // pred_check
    _
  $region11: #{combined_forward.13} parent=0 // pred_check_branch
    %16 = sbr.rel (0) target = $region13
  $region12: #{combined_forward.13} parent=0 // pred_region
    _
  $region13: #{combined_forward.13} parent=0 // pred_fallthru
    _
  // Predicated region
  $region14: #{combined_forward.13} parent=0 // pred_check
    _
  $region15: #{combined_forward.13} parent=0 // pred_check_branch
    %18 = sbr.rel (0) target = $region17
  $region16: #{combined_forward.13} parent=0 // pred_region
    _
  $region17: #{combined_forward.13} parent=0 // pred_fallthru
    _
  %v19 = vld [vmem:[%s1] sm:$0xff]
  %v20 = vld [vmem:[%s1 + $0x8] sm:$0xff]
  %v21 = vld [vmem:[%s1 + $0x10] sm:$0xff]
  %v22 = vld [vmem:[%s1 + $0x18] sm:$0xff]
  %v23 = vld [vmem:[%s2] sm:$0xff]
  %v24 = vld [vmem:[%s2 + $0x8] sm:$0xff]
  %v25 = vld [vmem:[%s3] sm:$0x1]
  %vm26 = vcmask 125952
  %27 = vst.msk [vmem:[#allocation2] sm:$0xf] %vm26, 0.0
  %28 = vst.msk [vmem:[#allocation3] sm:$0xf] %vm26, 0.0
  loop: start=0, step=1, limit=12
  $region18: #{combined_forward.13} parent=0 // loop_pre_header
    _
  $region19: #{combined_forward.13} parent=0 // loop_header
    %s30 = sphi 0, %s34
    %p31 = scmp.ge.s32.totalorder %s30, 12
  $region20: #{combined_forward.13} parent=0 // loop_header_branch
    %33 = sbr.rel (%p31) target = $region24
  $region21: #{combined_forward.13} parent=0 // loop_body
    %s35 = ssub.s32 11, %s30
    %s36 = smul.u32 %s30, 2
    %s37 = scalar_lea.vmem %s0, %s36
    %v38 = vld [vmem:[%s37] sm:$0x3]
    %s39 = smul.u32 %s35, 2
    %s40 = scalar_lea.vmem %s0, %s39
    %v41 = vld [vmem:[%s40] sm:$0x3]
    %v43 = vrot.slane %v41, 6
    %vm45 = vcmask 1041408
    %v46 = vsel %vm45, %v38, %v43
    %v47 = vld [vmem:[#allocation2] sm:$0xf]
    %vm48 = vcmask 130048
    %v50 = vsel %vm48, %v47, 0
    %52 = vmatprep.subr.mxu0 0.0
    %53 = vmatpush1.msra.mxu0 %v23
    %54 = vmatprep.subr.mxu0 0.0
    %55 = vmatpush1.msra.mxu0 %v24
    %56 = vmatprep.subr.mxu0 0.0
    %57 = vmatpush1.msra.mxu0 0.0
    %58 = vmatprep.subr.mxu0 0.0
    %59 = vmatpush1.msra.mxu0 0.0
    %60 = vmatprep.subr.mxu0 0.0
    %61 = vmatpush1.msra.mxu0 0.0
    %62 = vmatprep.subr.mxu0 0.0
    %63 = vmatpush1.msra.mxu0 0.0
    %64 = vmatprep.subr.mxu0 0.0
    %65 = vmatpush1.msra.mxu0 0.0
    %66 = vmatprep.subr.mxu0 0.0
    %67 = vmatpush1.msra.mxu0 0.0
    %68 = vmatprep.subr.mxu0 0.0
    %69 = vmatpush1.msra.mxu0 0.0
    %70 = vmatprep.subr.mxu0 0.0
    %71 = vmatpush1.msra.mxu0 0.0
    %72 = vmatprep.subr.mxu0 0.0
    %73 = vmatpush1.msra.mxu0 0.0
    %74 = vmatprep.subr.mxu0 0.0
    %75 = vmatpush1.msra.mxu0 0.0
    %76 = vmatprep.subr.mxu0 0.0
    %77 = vmatpush1.msra.mxu0 0.0
    %78 = vmatprep.subr.mxu0 0.0
    %79 = vmatpush1.msra.mxu0 0.0
    %80 = vmatprep.subr.mxu0 0.0
    %81 = vmatpush1.msra.mxu0 0.0
    %82 = vmatprep.subr.mxu0 0.0
    %83 = vmatpush1.msra.mxu0 0.0
    %84 = vmatprep.subr.mxu0 0.0
    %85 = vmatpush1.msra.mxu0 0.0
    %86 = vmatprep.subr.mxu0 0.0
    %87 = vmatpush1.msra.mxu0 0.0
    %88 = vmatprep.subr.mxu0 0.0
    %89 = vmatpush1.msra.mxu0 0.0
    %90 = vmatprep.subr.mxu0 0.0
    %91 = vmatpush1.msra.mxu0 0.0
    %92 = vmatprep.subr.mxu0 0.0
    %93 = vmatpush1.msra.mxu0 0.0
    %94 = vmatprep.subr.mxu0 0.0
    %95 = vmatpush1.msra.mxu0 0.0
    %96 = vmatprep.subr.mxu0 0.0
    %97 = vmatpush1.msra.mxu0 0.0
    %98 = vmatprep.subr.mxu0 0.0
    %99 = vmatpush1.msra.mxu0 0.0
    %100 = vmatprep.subr.mxu0 0.0
    %101 = vmatpush1.msra.mxu0 0.0
    %102 = vmatprep.subr.mxu0 0.0
    %103 = vmatpush1.msra.mxu0 0.0
    %104 = vmatprep.subr.mxu0 0.0
    %105 = vmatpush1.msra.mxu0 0.0
    %106 = vmatprep.subr.mxu0 0.0
    %107 = vmatpush1.msra.mxu0 0.0
    %108 = vmatprep.subr.mxu0 0.0
    %109 = vmatpush1.msra.mxu0 0.0
    %110 = vmatprep.subr.mxu0 0.0
    %111 = vmatpush1.msra.mxu0 0.0
    %112 = vmatprep.subr.mxu0 0.0
    %113 = vmatpush1.msra.mxu0 0.0
    %114 = vmatprep.subr.mxu0 0.0
    %115 = vmatpush1.msra.mxu0 0.0
    %116 = vmatprep.mubr.f32.mxu0 0.0
    %117 = vmatmul.mubr.f32.gmra.mrb[0].mxu0 %v50
    %v118 = vpop.f32.mrb[0].mxu0
    %v119 = vadd.f32 0.0, %v118
    %v120 = vpop.f32.mrb[0].mxu0
    %121 = vdwg.mxu0
    %vm122 = vcmask 261120
    %v124 = vsel %vm122, %v46, 0
    %126 = vmatprep.subr.mxu0 0.0
    %127 = vmatpush1.msra.mxu0 %v19
    %128 = vmatprep.subr.mxu0 0.0
    %129 = vmatpush1.msra.mxu0 %v20
    %130 = vmatprep.subr.mxu0 0.0
    %131 = vmatpush1.msra.mxu0 %v21
    %132 = vmatprep.subr.mxu0 0.0
    %133 = vmatpush1.msra.mxu0 %v22
    %134 = vmatprep.subr.mxu0 0.0
    %135 = vmatpush1.msra.mxu0 0.0
    %136 = vmatprep.subr.mxu0 0.0
    %137 = vmatpush1.msra.mxu0 0.0
    %138 = vmatprep.subr.mxu0 0.0
    %139 = vmatpush1.msra.mxu0 0.0
    %140 = vmatprep.subr.mxu0 0.0
    %141 = vmatpush1.msra.mxu0 0.0
    %142 = vmatprep.subr.mxu0 0.0
    %143 = vmatpush1.msra.mxu0 0.0
    %144 = vmatprep.subr.mxu0 0.0
    %145 = vmatpush1.msra.mxu0 0.0
    %146 = vmatprep.subr.mxu0 0.0
    %147 = vmatpush1.msra.mxu0 0.0
    %148 = vmatprep.subr.mxu0 0.0
    %149 = vmatpush1.msra.mxu0 0.0
    %150 = vmatprep.subr.mxu0 0.0
    %151 = vmatpush1.msra.mxu0 0.0
    %152 = vmatprep.subr.mxu0 0.0
    %153 = vmatpush1.msra.mxu0 0.0
    %154 = vmatprep.subr.mxu0 0.0
    %155 = vmatpush1.msra.mxu0 0.0
    %156 = vmatprep.subr.mxu0 0.0
    %157 = vmatpush1.msra.mxu0 0.0
    %158 = vmatprep.subr.mxu0 0.0
    %159 = vmatpush1.msra.mxu0 0.0
    %160 = vmatprep.subr.mxu0 0.0
    %161 = vmatpush1.msra.mxu0 0.0
    %162 = vmatprep.subr.mxu0 0.0
    %163 = vmatpush1.msra.mxu0 0.0
    %164 = vmatprep.subr.mxu0 0.0
    %165 = vmatpush1.msra.mxu0 0.0
    %166 = vmatprep.subr.mxu0 0.0
    %167 = vmatpush1.msra.mxu0 0.0
    %168 = vmatprep.subr.mxu0 0.0
    %169 = vmatpush1.msra.mxu0 0.0
    %170 = vmatprep.subr.mxu0 0.0
    %171 = vmatpush1.msra.mxu0 0.0
    %172 = vmatprep.subr.mxu0 0.0
    %173 = vmatpush1.msra.mxu0 0.0
    %174 = vmatprep.subr.mxu0 0.0
    %175 = vmatpush1.msra.mxu0 0.0
    %176 = vmatprep.subr.mxu0 0.0
    %177 = vmatpush1.msra.mxu0 0.0
    %178 = vmatprep.subr.mxu0 0.0
    %179 = vmatpush1.msra.mxu0 0.0
    %180 = vmatprep.subr.mxu0 0.0
    %181 = vmatpush1.msra.mxu0 0.0
    %182 = vmatprep.subr.mxu0 0.0
    %183 = vmatpush1.msra.mxu0 0.0
    %184 = vmatprep.subr.mxu0 0.0
    %185 = vmatpush1.msra.mxu0 0.0
    %186 = vmatprep.subr.mxu0 0.0
    %187 = vmatpush1.msra.mxu0 0.0
    %188 = vmatprep.subr.mxu0 0.0
    %189 = vmatpush1.msra.mxu0 0.0
    %190 = vmatprep.mubr.f32.mxu0 0.0
    %191 = vmatmul.mubr.f32.gmra.mrb[0].mxu0 %v124
    %v192 = vpop.f32.mrb[0].mxu0
    %v193 = vadd.f32 %v119, %v192
    %v194 = vpop.f32.mrb[0].mxu0
    %195 = vdwg.mxu0
    %v197 = vlaneseq
    %v198 = vshrl.u32 %v197, 7
    %v199 = vsub.s32 0, %v198
    %v200 = vrot.slane %v25, %v199
    %v202 = vadd.f32 %v193, %v200
    %204 = vrot.lane.b32.xlu0 %v202, 64
    %v205 = vpop.permute.xlu0 %204
    %v207 = vsel %vm45, %v202, %v205
    %v208 = vxor.u32 %v207, 2147483648
    %v209 = vmul.f32 %v208, 1.442695
    %v210 = vpow.pop %v209
    %v211 = vadd.f32 %v210, 1.0
    %v212 = vrcp.pop %v211
    %v213 = vmul.f32 1.0, %v212
    %v214 = vtanh.pop %v207
    %v215 = vld [vmem:[#allocation3] sm:$0xf]
    %217 = vrot.lane.b32.xlu0 %v215, 16
    %v218 = vpop.permute.xlu0 %217
    %v220 = vmul.f32 %v213, %v218
    %222 = vrot.lane.b32.xlu0 %v214, 96
    %v223 = vpop.permute.xlu0 %222
    %v225 = vmul.f32 %v213, %v223
    %227 = vrot.lane.b32.xlu0 %v225, 16
    %v228 = vpop.permute.xlu0 %227
    %v230 = vadd.f32 %v220, %v228
    %v231 = vtanh.pop %v230
    %233 = vrot.lane.b32.xlu0 %v231, 32
    %v234 = vpop.permute.xlu0 %233
    %v236 = vmul.f32 %v213, %v234
    %238 = vrot.lane.b32.xlu0 %v236, 80
    %v239 = vpop.permute.xlu0 %238
    %241 = vst.msk [vmem:[#allocation2] sm:$0xf] %vm26, %v239
    %243 = vrot.lane.b32.xlu0 %v230, 112
    %v244 = vpop.permute.xlu0 %243
    %246 = vst.msk [vmem:[#allocation3] sm:$0xf] %vm26, %v244
    %s247 = scalar_lea.vmem %s4, %s36
    %vm248 = vcmask 123904
    %249 = vst.msk [vmem:[%s247] sm:$0x3] %vm248, %v239
    %s250 = scalar_lea.vmem %s5, %s39
    %vm251 = vcmask 125954
    %252 = vst.msk [vmem:[%s250 - $0x2] sm:$0xc] %vm251, %v239
  $region22: #{combined_forward.13} parent=0 // loop_footer
    %s34 = sadd.s32 1, %s30
  $region23: #{combined_forward.13} parent=0 // loop_footer_branch
    %29 = sbr.rel target = $region19
  $region24: #{combined_forward.13} parent=0 // loop_exit
    _
  // Predicated region
  $region25: #{combined_forward.13} parent=0 // pred_check
    _
  $region26: #{combined_forward.13} parent=0 // pred_check_branch
    %254 = sbr.rel (0) target = $region28
  $region27: #{combined_forward.13} parent=0 // pred_region
    _
  $region28: #{combined_forward.13} parent=0 // pred_fallthru
    _
  // Predicated region
  $region29: #{combined_forward.13} parent=0 // pred_check
    _
  $region30: #{combined_forward.13} parent=0 // pred_check_branch
    %256 = sbr.rel (0) target = $region32
  $region31: #{combined_forward.13} parent=0 // pred_region
    _
  $region32: #{combined_forward.13} parent=0 // pred_fallthru
    _
  // Predicated region
  $region33: #{combined_forward.13} parent=0 // pred_check
    _
  $region34: #{combined_forward.13} parent=0 // pred_check_branch
    %258 = sbr.rel (0) target = $region36
  $region35: #{combined_forward.13} parent=0 // pred_region
    _
  $region36: #{combined_forward.13} parent=0 // pred_fallthru
    _
  // Predicated region
  $region37: #{combined_forward.13} parent=0 // pred_check
    _
  $region38: #{combined_forward.13} parent=0 // pred_check_branch
    %260 = sbr.rel (0) target = $region40
  $region39: #{combined_forward.13} parent=0 // pred_region
    _
  $region40: #{combined_forward.13} parent=0 // pred_fallthru
    _

// kernel: combined_forward.12
$region0: #{combined_forward.12}
  #allocation0 [shape = 'u32[]', space=smem, size = 0x4, offset = 0x4, fixed_abs, tag = 'smem constant byte address 0x4 - core index']
  #allocation1 [shape = 'u32[144,128]{1,0:T(1,128)}', space=vmem, size = 0x12000, scoped, tag = 'internal scratch']
  #allocation2 [shape = 'f32[4,16]{1,0:T(4,128)}', space=vmem, size = 0x800, scoped, tag = 'scratch operand']
  #allocation3 [shape = 'f32[4,16]{1,0:T(4,128)}', space=vmem, size = 0x800, scoped, tag = 'scratch operand']
  %s0 = inlined_call_operand.vmem [shape: f32[12,2,8], index: 0, kind: input, shape index: {}]
  %s1 = inlined_call_operand.vmem [shape: f32[8,128], index: 1, kind: input, shape index: {}]
  %s2 = inlined_call_operand.vmem [shape: f32[16,128], index: 2, kind: input, shape index: {}]
  %s3 = inlined_call_operand.vmem [shape: f32[1,128], index: 3, kind: input, shape index: {}]
  %s4 = inlined_call_operand.vmem [shape: f32[12,2,16], index: 4, kind: output, shape index: {0}]
  %s5 = inlined_call_operand.vmem [shape: f32[12,2,16], index: 5, kind: output, shape index: {1}]
  %6 = xla_tuple %s4, %s5
  %s7 = sld [smem:[#allocation0]]
  $region41: #{combined_forward.12} parent=0
    _
  %s9 = ssub.s32 1, %s7
  %s10 = scalar_select 0, %s9, %s7
  // Predicated region
  $region2: #{combined_forward.12} parent=0 // pred_check
    _
  $region3: #{combined_forward.12} parent=0 // pred_check_branch
    %12 = sbr.rel (0) target = $region5
  $region4: #{combined_forward.12} parent=0 // pred_region
    _
  $region5: #{combined_forward.12} parent=0 // pred_fallthru
    _
  // Predicated region
  $region6: #{combined_forward.12} parent=0 // pred_check
    _
  $region7: #{combined_forward.12} parent=0 // pred_check_branch
    %14 = sbr.rel (0) target = $region9
  $region8: #{combined_forward.12} parent=0 // pred_region
    _
  $region9: #{combined_forward.12} parent=0 // pred_fallthru
    _
  // Predicated region
  $region10: #{combined_forward.12} parent=0 // pred_check
    _
  $region11: #{combined_forward.12} parent=0 // pred_check_branch
    %16 = sbr.rel (0) target = $region13
  $region12: #{combined_forward.12} parent=0 // pred_region
    _
  $region13: #{combined_forward.12} parent=0 // pred_fallthru
    _
  // Predicated region
  $region14: #{combined_forward.12} parent=0 // pred_check
    _
  $region15: #{combined_forward.12} parent=0 // pred_check_branch
    %18 = sbr.rel (0) target = $region17
  $region16: #{combined_forward.12} parent=0 // pred_region
    _
  $region17: #{combined_forward.12} parent=0 // pred_fallthru
    _
  %v19 = vld [vmem:[%s1] sm:$0xff]
  %v20 = vld [vmem:[%s2] sm:$0xff]
  %v21 = vld [vmem:[%s2 + $0x8] sm:$0xff]
  %v22 = vld [vmem:[%s3] sm:$0x1]
  %vm23 = vcmask 125952
  %24 = vst.msk [vmem:[#allocation2] sm:$0xf] %vm23, 0.0
  %25 = vst.msk [vmem:[#allocation3] sm:$0xf] %vm23, 0.0
  loop: start=0, step=1, limit=12
  $region18: #{combined_forward.12} parent=0 // loop_pre_header
    _
  $region19: #{combined_forward.12} parent=0 // loop_header
    %s27 = sphi 0, %s31
    %p28 = scmp.ge.s32.totalorder %s27, 12
  $region20: #{combined_forward.12} parent=0 // loop_header_branch
    %30 = sbr.rel (%p28) target = $region24
  $region21: #{combined_forward.12} parent=0 // loop_body
    %s32 = ssub.s32 11, %s27
    %s33 = smul.u32 %s27, 2
    %s34 = scalar_lea.vmem %s0, %s33
    %v35 = vld [vmem:[%s34] sm:$0x3]
    %s36 = smul.u32 %s32, 2
    %s37 = scalar_lea.vmem %s0, %s36
    %v38 = vld [vmem:[%s37] sm:$0x3]
    %v40 = vrot.slane %v38, 6
    %vm42 = vcmask 1041408
    %v43 = vsel %vm42, %v35, %v40
    %v44 = vld [vmem:[#allocation2] sm:$0xf]
    %vm45 = vcmask 130048
    %v47 = vsel %vm45, %v44, 0
    %49 = vmatprep.subr.mxu0 0.0
    %50 = vmatpush1.msra.mxu0 %v20
    %51 = vmatprep.subr.mxu0 0.0
    %52 = vmatpush1.msra.mxu0 %v21
    %53 = vmatprep.subr.mxu0 0.0
    %54 = vmatpush1.msra.mxu0 0.0
    %55 = vmatprep.subr.mxu0 0.0
    %56 = vmatpush1.msra.mxu0 0.0
    %57 = vmatprep.subr.mxu0 0.0
    %58 = vmatpush1.msra.mxu0 0.0
    %59 = vmatprep.subr.mxu0 0.0
    %60 = vmatpush1.msra.mxu0 0.0
    %61 = vmatprep.subr.mxu0 0.0
    %62 = vmatpush1.msra.mxu0 0.0
    %63 = vmatprep.subr.mxu0 0.0
    %64 = vmatpush1.msra.mxu0 0.0
    %65 = vmatprep.subr.mxu0 0.0
    %66 = vmatpush1.msra.mxu0 0.0
    %67 = vmatprep.subr.mxu0 0.0
    %68 = vmatpush1.msra.mxu0 0.0
    %69 = vmatprep.subr.mxu0 0.0
    %70 = vmatpush1.msra.mxu0 0.0
    %71 = vmatprep.subr.mxu0 0.0
    %72 = vmatpush1.msra.mxu0 0.0
    %73 = vmatprep.subr.mxu0 0.0
    %74 = vmatpush1.msra.mxu0 0.0
    %75 = vmatprep.subr.mxu0 0.0
    %76 = vmatpush1.msra.mxu0 0.0
    %77 = vmatprep.subr.mxu0 0.0
    %78 = vmatpush1.msra.mxu0 0.0
    %79 = vmatprep.subr.mxu0 0.0
    %80 = vmatpush1.msra.mxu0 0.0
    %81 = vmatprep.subr.mxu0 0.0
    %82 = vmatpush1.msra.mxu0 0.0
    %83 = vmatprep.subr.mxu0 0.0
    %84 = vmatpush1.msra.mxu0 0.0
    %85 = vmatprep.subr.mxu0 0.0
    %86 = vmatpush1.msra.mxu0 0.0
    %87 = vmatprep.subr.mxu0 0.0
    %88 = vmatpush1.msra.mxu0 0.0
    %89 = vmatprep.subr.mxu0 0.0
    %90 = vmatpush1.msra.mxu0 0.0
    %91 = vmatprep.subr.mxu0 0.0
    %92 = vmatpush1.msra.mxu0 0.0
    %93 = vmatprep.subr.mxu0 0.0
    %94 = vmatpush1.msra.mxu0 0.0
    %95 = vmatprep.subr.mxu0 0.0
    %96 = vmatpush1.msra.mxu0 0.0
    %97 = vmatprep.subr.mxu0 0.0
    %98 = vmatpush1.msra.mxu0 0.0
    %99 = vmatprep.subr.mxu0 0.0
    %100 = vmatpush1.msra.mxu0 0.0
    %101 = vmatprep.subr.mxu0 0.0
    %102 = vmatpush1.msra.mxu0 0.0
    %103 = vmatprep.subr.mxu0 0.0
    %104 = vmatpush1.msra.mxu0 0.0
    %105 = vmatprep.subr.mxu0 0.0
    %106 = vmatpush1.msra.mxu0 0.0
    %107 = vmatprep.subr.mxu0 0.0
    %108 = vmatpush1.msra.mxu0 0.0
    %109 = vmatprep.subr.mxu0 0.0
    %110 = vmatpush1.msra.mxu0 0.0
    %111 = vmatprep.subr.mxu0 0.0
    %112 = vmatpush1.msra.mxu0 0.0
    %113 = vmatprep.mubr.f32.mxu0 0.0
    %114 = vmatmul.mubr.f32.gmra.mrb[0].mxu0 %v47
    %v115 = vpop.f32.mrb[0].mxu0
    %v116 = vadd.f32 0.0, %v115
    %v117 = vpop.f32.mrb[0].mxu0
    %118 = vdwg.mxu0
    %vm119 = vcmask 64512
    %v121 = vsel %vm119, %v43, 0
    %123 = vmatprep.subr.mxu0 0.0
    %124 = vmatpush1.msra.mxu0 %v19
    %125 = vmatprep.subr.mxu0 0.0
    %126 = vmatpush1.msra.mxu0 0.0
    %127 = vmatprep.subr.mxu0 0.0
    %128 = vmatpush1.msra.mxu0 0.0
    %129 = vmatprep.subr.mxu0 0.0
    %130 = vmatpush1.msra.mxu0 0.0
    %131 = vmatprep.subr.mxu0 0.0
    %132 = vmatpush1.msra.mxu0 0.0
    %133 = vmatprep.subr.mxu0 0.0
    %134 = vmatpush1.msra.mxu0 0.0
    %135 = vmatprep.subr.mxu0 0.0
    %136 = vmatpush1.msra.mxu0 0.0
    %137 = vmatprep.subr.mxu0 0.0
    %138 = vmatpush1.msra.mxu0 0.0
    %139 = vmatprep.subr.mxu0 0.0
    %140 = vmatpush1.msra.mxu0 0.0
    %141 = vmatprep.subr.mxu0 0.0
    %142 = vmatpush1.msra.mxu0 0.0
    %143 = vmatprep.subr.mxu0 0.0
    %144 = vmatpush1.msra.mxu0 0.0
    %145 = vmatprep.subr.mxu0 0.0
    %146 = vmatpush1.msra.mxu0 0.0
    %147 = vmatprep.subr.mxu0 0.0
    %148 = vmatpush1.msra.mxu0 0.0
    %149 = vmatprep.subr.mxu0 0.0
    %150 = vmatpush1.msra.mxu0 0.0
    %151 = vmatprep.subr.mxu0 0.0
    %152 = vmatpush1.msra.mxu0 0.0
    %153 = vmatprep.subr.mxu0 0.0
    %154 = vmatpush1.msra.mxu0 0.0
    %155 = vmatprep.subr.mxu0 0.0
    %156 = vmatpush1.msra.mxu0 0.0
    %157 = vmatprep.subr.mxu0 0.0
    %158 = vmatpush1.msra.mxu0 0.0
    %159 = vmatprep.subr.mxu0 0.0
    %160 = vmatpush1.msra.mxu0 0.0
    %161 = vmatprep.subr.mxu0 0.0
    %162 = vmatpush1.msra.mxu0 0.0
    %163 = vmatprep.subr.mxu0 0.0
    %164 = vmatpush1.msra.mxu0 0.0
    %165 = vmatprep.subr.mxu0 0.0
    %166 = vmatpush1.msra.mxu0 0.0
    %167 = vmatprep.subr.mxu0 0.0
    %168 = vmatpush1.msra.mxu0 0.0
    %169 = vmatprep.subr.mxu0 0.0
    %170 = vmatpush1.msra.mxu0 0.0
    %171 = vmatprep.subr.mxu0 0.0
    %172 = vmatpush1.msra.mxu0 0.0
    %173 = vmatprep.subr.mxu0 0.0
    %174 = vmatpush1.msra.mxu0 0.0
    %175 = vmatprep.subr.mxu0 0.0
    %176 = vmatpush1.msra.mxu0 0.0
    %177 = vmatprep.subr.mxu0 0.0
    %178 = vmatpush1.msra.mxu0 0.0
    %179 = vmatprep.subr.mxu0 0.0
    %180 = vmatpush1.msra.mxu0 0.0
    %181 = vmatprep.subr.mxu0 0.0
    %182 = vmatpush1.msra.mxu0 0.0
    %183 = vmatprep.subr.mxu0 0.0
    %184 = vmatpush1.msra.mxu0 0.0
    %185 = vmatprep.subr.mxu0 0.0
    %186 = vmatpush1.msra.mxu0 0.0
    %187 = vmatprep.mubr.f32.mxu0 0.0
    %188 = vmatmul.mubr.f32.gmra.mrb[0].mxu0 %v121
    %v189 = vpop.f32.mrb[0].mxu0
    %v190 = vadd.f32 %v116, %v189
    %v191 = vpop.f32.mrb[0].mxu0
    %192 = vdwg.mxu0
    %v194 = vlaneseq
    %v195 = vshrl.u32 %v194, 7
    %v196 = vsub.s32 0, %v195
    %v197 = vrot.slane %v22, %v196
    %v199 = vadd.f32 %v190, %v197
    %201 = vrot.lane.b32.xlu0 %v199, 64
    %v202 = vpop.permute.xlu0 %201
    %v204 = vsel %vm42, %v199, %v202
    %v205 = vxor.u32 %v204, 2147483648
    %v206 = vmul.f32 %v205, 1.442695
    %v207 = vpow.pop %v206
    %v208 = vadd.f32 %v207, 1.0
    %v209 = vrcp.pop %v208
    %v210 = vmul.f32 1.0, %v209
    %v211 = vtanh.pop %v204
    %v212 = vld [vmem:[#allocation3] sm:$0xf]
    %214 = vrot.lane.b32.xlu0 %v212, 16
    %v215 = vpop.permute.xlu0 %214
    %v217 = vmul.f32 %v210, %v215
    %219 = vrot.lane.b32.xlu0 %v211, 96
    %v220 = vpop.permute.xlu0 %219
    %v222 = vmul.f32 %v210, %v220
    %224 = vrot.lane.b32.xlu0 %v222, 16
    %v225 = vpop.permute.xlu0 %224
    %v227 = vadd.f32 %v217, %v225
    %v228 = vtanh.pop %v227
    %230 = vrot.lane.b32.xlu0 %v228, 32
    %v231 = vpop.permute.xlu0 %230
    %v233 = vmul.f32 %v210, %v231
    %235 = vrot.lane.b32.xlu0 %v233, 80
    %v236 = vpop.permute.xlu0 %235
    %238 = vst.msk [vmem:[#allocation2] sm:$0xf] %vm23, %v236
    %240 = vrot.lane.b32.xlu0 %v227, 112
    %v241 = vpop.permute.xlu0 %240
    %243 = vst.msk [vmem:[#allocation3] sm:$0xf] %vm23, %v241
    %s244 = scalar_lea.vmem %s4, %s33
    %vm245 = vcmask 123904
    %246 = vst.msk [vmem:[%s244] sm:$0x3] %vm245, %v236
    %s247 = scalar_lea.vmem %s5, %s36
    %vm248 = vcmask 125954
    %249 = vst.msk [vmem:[%s247 - $0x2] sm:$0xc] %vm248, %v236
  $region22: #{combined_forward.12} parent=0 // loop_footer
    %s31 = sadd.s32 1, %s27
  $region23: #{combined_forward.12} parent=0 // loop_footer_branch
    %26 = sbr.rel target = $region19
  $region24: #{combined_forward.12} parent=0 // loop_exit
    _
  // Predicated region
  $region25: #{combined_forward.12} parent=0 // pred_check
    _
  $region26: #{combined_forward.12} parent=0 // pred_check_branch
    %251 = sbr.rel (0) target = $region28
  $region27: #{combined_forward.12} parent=0 // pred_region
    _
  $region28: #{combined_forward.12} parent=0 // pred_fallthru
    _
  // Predicated region
  $region29: #{combined_forward.12} parent=0 // pred_check
    _
  $region30: #{combined_forward.12} parent=0 // pred_check_branch
    %253 = sbr.rel (0) target = $region32
  $region31: #{combined_forward.12} parent=0 // pred_region
    _
  $region32: #{combined_forward.12} parent=0 // pred_fallthru
    _
  // Predicated region
  $region33: #{combined_forward.12} parent=0 // pred_check
    _
  $region34: #{combined_forward.12} parent=0 // pred_check_branch
    %255 = sbr.rel (0) target = $region36
  $region35: #{combined_forward.12} parent=0 // pred_region
    _
  $region36: #{combined_forward.12} parent=0 // pred_fallthru
    _
  // Predicated region
  $region37: #{combined_forward.12} parent=0 // pred_check
    _
  $region38: #{combined_forward.12} parent=0 // pred_check_branch
    %257 = sbr.rel (0) target = $region40
  $region39: #{combined_forward.12} parent=0 // pred_region
    _
  $region40: #{combined_forward.12} parent=0 // pred_fallthru
    _

// kernel: combined_forward.14
$region0: #{combined_forward.14}
  #allocation0 [shape = 'u32[]', space=smem, size = 0x4, offset = 0x4, fixed_abs, tag = 'smem constant byte address 0x4 - core index']
  #allocation1 [shape = 'u32[144,128]{1,0:T(1,128)}', space=vmem, size = 0x12000, scoped, tag = 'internal scratch']
  %s0 = inlined_call_operand.vmem [shape: f32[2,12,32], index: 0, kind: input, shape index: {}]
  %s1 = inlined_call_operand.vmem [shape: f32[32,32], index: 1, kind: input, shape index: {}]
  %s2 = inlined_call_operand.vmem [shape: f32[32,8], index: 2, kind: input, shape index: {}]
  %s3 = inlined_call_operand.vmem [shape: f32[2,8,32], index: 3, kind: output, shape index: {}]
  %s4 = sld [smem:[#allocation0]]
  $region22: #{combined_forward.14} parent=0
    _
  %s6 = ssub.s32 1, %s4
  %s7 = scalar_select 0, %s6, %s4
  // Predicated region
  $region2: #{combined_forward.14} parent=0 // pred_check
    _
  $region3: #{combined_forward.14} parent=0 // pred_check_branch
    %9 = sbr.rel (0) target = $region5
  $region4: #{combined_forward.14} parent=0 // pred_region
    _
  $region5: #{combined_forward.14} parent=0 // pred_fallthru
    _
  // Predicated region
  $region6: #{combined_forward.14} parent=0 // pred_check
    _
  $region7: #{combined_forward.14} parent=0 // pred_check_branch
    %11 = sbr.rel (0) target = $region9
  $region8: #{combined_forward.14} parent=0 // pred_region
    _
  $region9: #{combined_forward.14} parent=0 // pred_fallthru
    _
  // Predicated region
  $region10: #{combined_forward.14} parent=0 // pred_check
    _
  $region11: #{combined_forward.14} parent=0 // pred_check_branch
    %13 = sbr.rel (0) target = $region13
  $region12: #{combined_forward.14} parent=0 // pred_region
    _
  $region13: #{combined_forward.14} parent=0 // pred_fallthru
    _
  %v14 = vld [vmem:[%s1] sm:$0xff]
  %v15 = vld [vmem:[%s1 + $0x8] sm:$0xff]
  %v16 = vld [vmem:[%s1 + $0x10] sm:$0xff]
  %v17 = vld [vmem:[%s1 + $0x18] sm:$0xff]
  %v18 = vld [vmem:[%s2] sm:$0xff]
  %v19 = vld [vmem:[%s2 + $0x8] sm:$0xff]
  %v20 = vld [vmem:[%s2 + $0x10] sm:$0xff]
  %v21 = vld [vmem:[%s2 + $0x18] sm:$0xff]
  %v22 = vld [vmem:[%s0] sm:$0xff]
  %v23 = vld [vmem:[%s0 + $0x8] sm:$0xf]
  %vm24 = vcmask 261120
  %v26 = vsel %vm24, %v22, 0
  %v29 = vsel %vm24, %v23, 0
  %31 = vmatprep.subr.mxu0 0.0
  %32 = vmatpush1.msra.mxu0 %v14
  %33 = vmatprep.subr.mxu0 0.0
  %34 = vmatpush1.msra.mxu0 %v15
  %35 = vmatprep.subr.mxu0 0.0
  %36 = vmatpush1.msra.mxu0 %v16
  %37 = vmatprep.subr.mxu0 0.0
  %38 = vmatpush1.msra.mxu0 %v17
  %39 = vmatprep.subr.mxu0 0.0
  %40 = vmatpush1.msra.mxu0 0.0
  %41 = vmatprep.subr.mxu0 0.0
  %42 = vmatpush1.msra.mxu0 0.0
  %43 = vmatprep.subr.mxu0 0.0
  %44 = vmatpush1.msra.mxu0 0.0
  %45 = vmatprep.subr.mxu0 0.0
  %46 = vmatpush1.msra.mxu0 0.0
  %47 = vmatprep.subr.mxu0 0.0
  %48 = vmatpush1.msra.mxu0 0.0
  %49 = vmatprep.subr.mxu0 0.0
  %50 = vmatpush1.msra.mxu0 0.0
  %51 = vmatprep.subr.mxu0 0.0
  %52 = vmatpush1.msra.mxu0 0.0
  %53 = vmatprep.subr.mxu0 0.0
  %54 = vmatpush1.msra.mxu0 0.0
  %55 = vmatprep.subr.mxu0 0.0
  %56 = vmatpush1.msra.mxu0 0.0
  %57 = vmatprep.subr.mxu0 0.0
  %58 = vmatpush1.msra.mxu0 0.0
  %59 = vmatprep.subr.mxu0 0.0
  %60 = vmatpush1.msra.mxu0 0.0
  %61 = vmatprep.subr.mxu0 0.0
  %62 = vmatpush1.msra.mxu0 0.0
  %63 = vmatprep.subr.mxu0 0.0
  %64 = vmatpush1.msra.mxu0 0.0
  %65 = vmatprep.subr.mxu0 0.0
  %66 = vmatpush1.msra.mxu0 0.0
  %67 = vmatprep.subr.mxu0 0.0
  %68 = vmatpush1.msra.mxu0 0.0
  %69 = vmatprep.subr.mxu0 0.0
  %70 = vmatpush1.msra.mxu0 0.0
  %71 = vmatprep.subr.mxu0 0.0
  %72 = vmatpush1.msra.mxu0 0.0
  %73 = vmatprep.subr.mxu0 0.0
  %74 = vmatpush1.msra.mxu0 0.0
  %75 = vmatprep.subr.mxu0 0.0
  %76 = vmatpush1.msra.mxu0 0.0
  %77 = vmatprep.subr.mxu0 0.0
  %78 = vmatpush1.msra.mxu0 0.0
  %79 = vmatprep.subr.mxu0 0.0
  %80 = vmatpush1.msra.mxu0 0.0
  %81 = vmatprep.subr.mxu0 0.0
  %82 = vmatpush1.msra.mxu0 0.0
  %83 = vmatprep.subr.mxu0 0.0
  %84 = vmatpush1.msra.mxu0 0.0
  %85 = vmatprep.subr.mxu0 0.0
  %86 = vmatpush1.msra.mxu0 0.0
  %87 = vmatprep.subr.mxu0 0.0
  %88 = vmatpush1.msra.mxu0 0.0
  %89 = vmatprep.subr.mxu0 0.0
  %90 = vmatpush1.msra.mxu0 0.0
  %91 = vmatprep.subr.mxu0 0.0
  %92 = vmatpush1.msra.mxu0 0.0
  %93 = vmatprep.subr.mxu0 0.0
  %94 = vmatpush1.msra.mxu0 0.0
  %95 = vmatprep.mubr.f32.mxu0 0.0
  %96 = vmatmul.mubr.f32.gmra.mrb[0].mxu0 %v26
  %v97 = vpop.f32.mrb[0].mxu0
  %v98 = vadd.f32 0.0, %v97
  %v99 = vpop.f32.mrb[0].mxu0
  %100 = vmatprep.mubr.f32.mxu0 0.0
  %101 = vmatmul.mubr.f32.gmra.mrb[0].mxu0 %v29
  %v102 = vpop.f32.mrb[0].mxu0
  %v103 = vadd.f32 0.0, %v102
  %v104 = vpop.f32.mrb[0].mxu0
  %105 = vdwg.mxu0
  %v106 = vtanh.pop %v98
  %v107 = vtanh.pop %v103
  %v109 = vsel %vm24, %v106, 0
  %v112 = vsel %vm24, %v107, 0
  %114 = vmatprep.subr.mxu0 0.0
  %115 = vmatpush1.msra.mxu0 %v18
  %116 = vmatprep.subr.mxu0 0.0
  %117 = vmatpush1.msra.mxu0 %v19
  %118 = vmatprep.subr.mxu0 0.0
  %119 = vmatpush1.msra.mxu0 %v20
  %120 = vmatprep.subr.mxu0 0.0
  %121 = vmatpush1.msra.mxu0 %v21
  %122 = vmatprep.subr.mxu0 0.0
  %123 = vmatpush1.msra.mxu0 0.0
  %124 = vmatprep.subr.mxu0 0.0
  %125 = vmatpush1.msra.mxu0 0.0
  %126 = vmatprep.subr.mxu0 0.0
  %127 = vmatpush1.msra.mxu0 0.0
  %128 = vmatprep.subr.mxu0 0.0
  %129 = vmatpush1.msra.mxu0 0.0
  %130 = vmatprep.subr.mxu0 0.0
  %131 = vmatpush1.msra.mxu0 0.0
  %132 = vmatprep.subr.mxu0 0.0
  %133 = vmatpush1.msra.mxu0 0.0
  %134 = vmatprep.subr.mxu0 0.0
  %135 = vmatpush1.msra.mxu0 0.0
  %136 = vmatprep.subr.mxu0 0.0
  %137 = vmatpush1.msra.mxu0 0.0
  %138 = vmatprep.subr.mxu0 0.0
  %139 = vmatpush1.msra.mxu0 0.0
  %140 = vmatprep.subr.mxu0 0.0
  %141 = vmatpush1.msra.mxu0 0.0
  %142 = vmatprep.subr.mxu0 0.0
  %143 = vmatpush1.msra.mxu0 0.0
  %144 = vmatprep.subr.mxu0 0.0
  %145 = vmatpush1.msra.mxu0 0.0
  %146 = vmatprep.subr.mxu0 0.0
  %147 = vmatpush1.msra.mxu0 0.0
  %148 = vmatprep.subr.mxu0 0.0
  %149 = vmatpush1.msra.mxu0 0.0
  %150 = vmatprep.subr.mxu0 0.0
  %151 = vmatpush1.msra.mxu0 0.0
  %152 = vmatprep.subr.mxu0 0.0
  %153 = vmatpush1.msra.mxu0 0.0
  %154 = vmatprep.subr.mxu0 0.0
  %155 = vmatpush1.msra.mxu0 0.0
  %156 = vmatprep.subr.mxu0 0.0
  %157 = vmatpush1.msra.mxu0 0.0
  %158 = vmatprep.subr.mxu0 0.0
  %159 = vmatpush1.msra.mxu0 0.0
  %160 = vmatprep.subr.mxu0 0.0
  %161 = vmatpush1.msra.mxu0 0.0
  %162 = vmatprep.subr.mxu0 0.0
  %163 = vmatpush1.msra.mxu0 0.0
  %164 = vmatprep.subr.mxu0 0.0
  %165 = vmatpush1.msra.mxu0 0.0
  %166 = vmatprep.subr.mxu0 0.0
  %167 = vmatpush1.msra.mxu0 0.0
  %168 = vmatprep.subr.mxu0 0.0
  %169 = vmatpush1.msra.mxu0 0.0
  %170 = vmatprep.subr.mxu0 0.0
  %171 = vmatpush1.msra.mxu0 0.0
  %172 = vmatprep.subr.mxu0 0.0
  %173 = vmatpush1.msra.mxu0 0.0
  %174 = vmatprep.subr.mxu0 0.0
  %175 = vmatpush1.msra.mxu0 0.0
  %176 = vmatprep.subr.mxu0 0.0
  %177 = vmatpush1.msra.mxu0 0.0
  %178 = vmatprep.mubr.f32.mxu0 0.0
  %179 = vmatmul.mubr.f32.gmra.mrb[0].mxu0 %v109
  %v180 = vpop.f32.mrb[0].mxu0
  %v181 = vadd.f32 0.0, %v180
  %v182 = vpop.f32.mrb[0].mxu0
  %183 = vmatprep.mubr.f32.mxu0 0.0
  %184 = vmatmul.mubr.f32.gmra.mrb[0].mxu0 %v112
  %v185 = vpop.f32.mrb[0].mxu0
  %v186 = vadd.f32 0.0, %v185
  %v187 = vpop.f32.mrb[0].mxu0
  %188 = vdwg.mxu0
  %vm189 = vcmask 64512
  %v190 = vsel %vm189, %v181, -inf
  %vm191 = vcmask 60416
  %v192 = vsel %vm191, %v186, -inf
  %v193 = vmax.f32 %v190, %v192
  %v194 = vrot.slane %v193, 4
  %v195 = vmax.f32 %v193, %v194
  %v196 = vrot.slane %v195, 2
  %v197 = vmax.f32 %v195, %v196
  %v198 = vrot.slane %v197, 1
  %v199 = vmax.f32 %v197, %v198
  %v200 = vsub.f32 %v181, %v199
  %v201 = vsub.f32 %v186, %v199
  %v202 = vmul.f32 %v200, 1.442695
  %v203 = vpow.pop %v202
  %v204 = vmul.f32 %v201, 1.442695
  %v205 = vpow.pop %v204
  %v206 = vsel %vm189, %v203, 0.0
  %v207 = vsel %vm191, %v205, 0.0
  %v208 = vadd.f32 %v206, %v207
  %v209 = vrot.slane %v208, 4
  %v210 = vadd.f32 %v208, %v209
  %v211 = vrot.slane %v210, 2
  %v212 = vadd.f32 %v210, %v211
  %v213 = vrot.slane %v212, 1
  %v214 = vadd.f32 %v212, %v213
  %v215 = vrcp.pop %v214
  %v216 = vmul.f32 %v203, %v215
  %v217 = vmul.f32 %v205, %v215
  %218 = vxpose.xlu0.b32.start [1/16] %v216, 128
  %219 = vxpose.xlu0.b32.cont [2/16] %v217, 128
  %220 = vxpose.xlu0.b32.cont [3/16] 0.0, 128
  %221 = vxpose.xlu0.b32.cont [4/16] 0.0, 128
  %222 = vxpose.xlu0.b32.cont [5/16] 0.0, 128
  %223 = vxpose.xlu0.b32.cont [6/16] 0.0, 128
  %224 = vxpose.xlu0.b32.cont [7/16] 0.0, 128
  %225 = vxpose.xlu0.b32.cont [8/16] 0.0, 128
  %226 = vxpose.xlu0.b32.cont [9/16] 0.0, 128
  %227 = vxpose.xlu0.b32.cont [10/16] 0.0, 128
  %228 = vxpose.xlu0.b32.cont [11/16] 0.0, 128
  %229 = vxpose.xlu0.b32.cont [12/16] 0.0, 128
  %230 = vxpose.xlu0.b32.cont [13/16] 0.0, 128
  %231 = vxpose.xlu0.b32.cont [14/16] 0.0, 128
  %232 = vxpose.xlu0.b32.cont [15/16] 0.0, 128
  %233 = vxpose.xlu0.b32.end [16/16] 0.0, 128
  %v234 = vpop.trf.xlu0
  %v235 = vpop.trf.xlu0
  %v236 = vpop.trf.xlu0
  %v237 = vpop.trf.xlu0
  %v238 = vpop.trf.xlu0
  %v239 = vpop.trf.xlu0
  %v240 = vpop.trf.xlu0
  %v241 = vpop.trf.xlu0
  %v242 = vpop.trf.xlu0
  %v243 = vpop.trf.xlu0
  %v244 = vpop.trf.xlu0
  %v245 = vpop.trf.xlu0
  %v246 = vpop.trf.xlu0
  %v247 = vpop.trf.xlu0
  %v248 = vpop.trf.xlu0
  %v249 = vpop.trf.xlu0
  %vm250 = vcmask 97280
  %v252 = vsel %vm250, %v234, 0
  %vm254 = vcmask 1043456
  %v255 = vsel %vm254, %v23, 0
  %257 = vmatprep.subr.mxu0 0.0
  %258 = vmatpush1.msra.mxu0 %v22
  %259 = vmatprep.subr.mxu0 0.0
  %260 = vmatpush1.msra.mxu0 %v255
  %261 = vmatprep.subr.mxu0 0.0
  %262 = vmatpush1.msra.mxu0 0.0
  %263 = vmatprep.subr.mxu0 0.0
  %264 = vmatpush1.msra.mxu0 0.0
  %265 = vmatprep.subr.mxu0 0.0
  %266 = vmatpush1.msra.mxu0 0.0
  %267 = vmatprep.subr.mxu0 0.0
  %268 = vmatpush1.msra.mxu0 0.0
  %269 = vmatprep.subr.mxu0 0.0
  %270 = vmatpush1.msra.mxu0 0.0
  %271 = vmatprep.subr.mxu0 0.0
  %272 = vmatpush1.msra.mxu0 0.0
  %273 = vmatprep.subr.mxu0 0.0
  %274 = vmatpush1.msra.mxu0 0.0
  %275 = vmatprep.subr.mxu0 0.0
  %276 = vmatpush1.msra.mxu0 0.0
  %277 = vmatprep.subr.mxu0 0.0
  %278 = vmatpush1.msra.mxu0 0.0
  %279 = vmatprep.subr.mxu0 0.0
  %280 = vmatpush1.msra.mxu0 0.0
  %281 = vmatprep.subr.mxu0 0.0
  %282 = vmatpush1.msra.mxu0 0.0
  %283 = vmatprep.subr.mxu0 0.0
  %284 = vmatpush1.msra.mxu0 0.0
  %285 = vmatprep.subr.mxu0 0.0
  %286 = vmatpush1.msra.mxu0 0.0
  %287 = vmatprep.subr.mxu0 0.0
  %288 = vmatpush1.msra.mxu0 0.0
  %289 = vmatprep.subr.mxu0 0.0
  %290 = vmatpush1.msra.mxu0 0.0
  %291 = vmatprep.subr.mxu0 0.0
  %292 = vmatpush1.msra.mxu0 0.0
  %293 = vmatprep.subr.mxu0 0.0
  %294 = vmatpush1.msra.mxu0 0.0
  %295 = vmatprep.subr.mxu0 0.0
  %296 = vmatpush1.msra.mxu0 0.0
  %297 = vmatprep.subr.mxu0 0.0
  %298 = vmatpush1.msra.mxu0 0.0
  %299 = vmatprep.subr.mxu0 0.0
  %300 = vmatpush1.msra.mxu0 0.0
  %301 = vmatprep.subr.mxu0 0.0
  %302 = vmatpush1.msra.mxu0 0.0
  %303 = vmatprep.subr.mxu0 0.0
  %304 = vmatpush1.msra.mxu0 0.0
  %305 = vmatprep.subr.mxu0 0.0
  %306 = vmatpush1.msra.mxu0 0.0
  %307 = vmatprep.subr.mxu0 0.0
  %308 = vmatpush1.msra.mxu0 0.0
  %309 = vmatprep.subr.mxu0 0.0
  %310 = vmatpush1.msra.mxu0 0.0
  %311 = vmatprep.subr.mxu0 0.0
  %312 = vmatpush1.msra.mxu0 0.0
  %313 = vmatprep.subr.mxu0 0.0
  %314 = vmatpush1.msra.mxu0 0.0
  %315 = vmatprep.subr.mxu0 0.0
  %316 = vmatpush1.msra.mxu0 0.0
  %317 = vmatprep.subr.mxu0 0.0
  %318 = vmatpush1.msra.mxu0 0.0
  %319 = vmatprep.subr.mxu0 0.0
  %320 = vmatpush1.msra.mxu0 0.0
  %321 = vmatprep.mubr.f32.mxu0 0.0
  %322 = vmatmul.mubr.f32.gmra.mrb[0].mxu0 %v252
  %v323 = vpop.f32.mrb[0].mxu0
  %v324 = vadd.f32 0.0, %v323
  %v325 = vpop.f32.mrb[0].mxu0
  %326 = vdwg.mxu0
  %327 = vst.msk [vmem:[%s3] sm:$0xff] %vm24, %v324
  %s328 = scalar_lea.vmem %s0, 16
  %v329 = vld [vmem:[%s328] sm:$0xff]
  %v330 = vld [vmem:[%s328 + $0x8] sm:$0xf]
  %v332 = vsel %vm24, %v329, 0
  %v335 = vsel %vm24, %v330, 0
  %337 = vmatprep.subr.mxu0 0.0
  %338 = vmatpush1.msra.mxu0 %v14
  %339 = vmatprep.subr.mxu0 0.0
  %340 = vmatpush1.msra.mxu0 %v15
  %341 = vmatprep.subr.mxu0 0.0
  %342 = vmatpush1.msra.mxu0 %v16
  %343 = vmatprep.subr.mxu0 0.0
  %344 = vmatpush1.msra.mxu0 %v17
  %345 = vmatprep.subr.mxu0 0.0
  %346 = vmatpush1.msra.mxu0 0.0
  %347 = vmatprep.subr.mxu0 0.0
  %348 = vmatpush1.msra.mxu0 0.0
  %349 = vmatprep.subr.mxu0 0.0
  %350 = vmatpush1.msra.mxu0 0.0
  %351 = vmatprep.subr.mxu0 0.0
  %352 = vmatpush1.msra.mxu0 0.0
  %353 = vmatprep.subr.mxu0 0.0
  %354 = vmatpush1.msra.mxu0 0.0
  %355 = vmatprep.subr.mxu0 0.0
  %356 = vmatpush1.msra.mxu0 0.0
  %357 = vmatprep.subr.mxu0 0.0
  %358 = vmatpush1.msra.mxu0 0.0
  %359 = vmatprep.subr.mxu0 0.0
  %360 = vmatpush1.msra.mxu0 0.0
  %361 = vmatprep.subr.mxu0 0.0
  %362 = vmatpush1.msra.mxu0 0.0
  %363 = vmatprep.subr.mxu0 0.0
  %364 = vmatpush1.msra.mxu0 0.0
  %365 = vmatprep.subr.mxu0 0.0
  %366 = vmatpush1.msra.mxu0 0.0
  %367 = vmatprep.subr.mxu0 0.0
  %368 = vmatpush1.msra.mxu0 0.0
  %369 = vmatprep.subr.mxu0 0.0
  %370 = vmatpush1.msra.mxu0 0.0
  %371 = vmatprep.subr.mxu0 0.0
  %372 = vmatpush1.msra.mxu0 0.0
  %373 = vmatprep.subr.mxu0 0.0
  %374 = vmatpush1.msra.mxu0 0.0
  %375 = vmatprep.subr.mxu0 0.0
  %376 = vmatpush1.msra.mxu0 0.0
  %377 = vmatprep.subr.mxu0 0.0
  %378 = vmatpush1.msra.mxu0 0.0
  %379 = vmatprep.subr.mxu0 0.0
  %380 = vmatpush1.msra.mxu0 0.0
  %381 = vmatprep.subr.mxu0 0.0
  %382 = vmatpush1.msra.mxu0 0.0
  %383 = vmatprep.subr.mxu0 0.0
  %384 = vmatpush1.msra.mxu0 0.0
  %385 = vmatprep.subr.mxu0 0.0
  %386 = vmatpush1.msra.mxu0 0.0
  %387 = vmatprep.subr.mxu0 0.0
  %388 = vmatpush1.msra.mxu0 0.0
  %389 = vmatprep.subr.mxu0 0.0
  %390 = vmatpush1.msra.mxu0 0.0
  %391 = vmatprep.subr.mxu0 0.0
  %392 = vmatpush1.msra.mxu0 0.0
  %393 = vmatprep.subr.mxu0 0.0
  %394 = vmatpush1.msra.mxu0 0.0
  %395 = vmatprep.subr.mxu0 0.0
  %396 = vmatpush1.msra.mxu0 0.0
  %397 = vmatprep.subr.mxu0 0.0
  %398 = vmatpush1.msra.mxu0 0.0
  %399 = vmatprep.subr.mxu0 0.0
  %400 = vmatpush1.msra.mxu0 0.0
  %401 = vmatprep.mubr.f32.mxu0 0.0
  %402 = vmatmul.mubr.f32.gmra.mrb[0].mxu0 %v332
  %v403 = vpop.f32.mrb[0].mxu0
  %v404 = vadd.f32 0.0, %v403
  %v405 = vpop.f32.mrb[0].mxu0
  %406 = vmatprep.mubr.f32.mxu0 0.0
  %407 = vmatmul.mubr.f32.gmra.mrb[0].mxu0 %v335
  %v408 = vpop.f32.mrb[0].mxu0
  %v409 = vadd.f32 0.0, %v408
  %v410 = vpop.f32.mrb[0].mxu0
  %411 = vdwg.mxu0
  %v412 = vtanh.pop %v404
  %v413 = vtanh.pop %v409
  %v415 = vsel %vm24, %v412, 0
  %v418 = vsel %vm24, %v413, 0
  %420 = vmatprep.subr.mxu0 0.0
  %421 = vmatpush1.msra.mxu0 %v18
  %422 = vmatprep.subr.mxu0 0.0
  %423 = vmatpush1.msra.mxu0 %v19
  %424 = vmatprep.subr.mxu0 0.0
  %425 = vmatpush1.msra.mxu0 %v20
  %426 = vmatprep.subr.mxu0 0.0
  %427 = vmatpush1.msra.mxu0 %v21
  %428 = vmatprep.subr.mxu0 0.0
  %429 = vmatpush1.msra.mxu0 0.0
  %430 = vmatprep.subr.mxu0 0.0
  %431 = vmatpush1.msra.mxu0 0.0
  %432 = vmatprep.subr.mxu0 0.0
  %433 = vmatpush1.msra.mxu0 0.0
  %434 = vmatprep.subr.mxu0 0.0
  %435 = vmatpush1.msra.mxu0 0.0
  %436 = vmatprep.subr.mxu0 0.0
  %437 = vmatpush1.msra.mxu0 0.0
  %438 = vmatprep.subr.mxu0 0.0
  %439 = vmatpush1.msra.mxu0 0.0
  %440 = vmatprep.subr.mxu0 0.0
  %441 = vmatpush1.msra.mxu0 0.0
  %442 = vmatprep.subr.mxu0 0.0
  %443 = vmatpush1.msra.mxu0 0.0
  %444 = vmatprep.subr.mxu0 0.0
  %445 = vmatpush1.msra.mxu0 0.0
  %446 = vmatprep.subr.mxu0 0.0
  %447 = vmatpush1.msra.mxu0 0.0
  %448 = vmatprep.subr.mxu0 0.0
  %449 = vmatpush1.msra.mxu0 0.0
  %450 = vmatprep.subr.mxu0 0.0
  %451 = vmatpush1.msra.mxu0 0.0
  %452 = vmatprep.subr.mxu0 0.0
  %453 = vmatpush1.msra.mxu0 0.0
  %454 = vmatprep.subr.mxu0 0.0
  %455 = vmatpush1.msra.mxu0 0.0
  %456 = vmatprep.subr.mxu0 0.0
  %457 = vmatpush1.msra.mxu0 0.0
  %458 = vmatprep.subr.mxu0 0.0
  %459 = vmatpush1.msra.mxu0 0.0
  %460 = vmatprep.subr.mxu0 0.0
  %461 = vmatpush1.msra.mxu0 0.0
  %462 = vmatprep.subr.mxu0 0.0
  %463 = vmatpush1.msra.mxu0 0.0
  %464 = vmatprep.subr.mxu0 0.0
  %465 = vmatpush1.msra.mxu0 0.0
  %466 = vmatprep.subr.mxu0 0.0
  %467 = vmatpush1.msra.mxu0 0.0
  %468 = vmatprep.subr.mxu0 0.0
  %469 = vmatpush1.msra.mxu0 0.0
  %470 = vmatprep.subr.mxu0 0.0
  %471 = vmatpush1.msra.mxu0 0.0
  %472 = vmatprep.subr.mxu0 0.0
  %473 = vmatpush1.msra.mxu0 0.0
  %474 = vmatprep.subr.mxu0 0.0
  %475 = vmatpush1.msra.mxu0 0.0
  %476 = vmatprep.subr.mxu0 0.0
  %477 = vmatpush1.msra.mxu0 0.0
  %478 = vmatprep.subr.mxu0 0.0
  %479 = vmatpush1.msra.mxu0 0.0
  %480 = vmatprep.subr.mxu0 0.0
  %481 = vmatpush1.msra.mxu0 0.0
  %482 = vmatprep.subr.mxu0 0.0
  %483 = vmatpush1.msra.mxu0 0.0
  %484 = vmatprep.mubr.f32.mxu0 0.0
  %485 = vmatmul.mubr.f32.gmra.mrb[0].mxu0 %v415
  %v486 = vpop.f32.mrb[0].mxu0
  %v487 = vadd.f32 0.0, %v486
  %v488 = vpop.f32.mrb[0].mxu0
  %489 = vmatprep.mubr.f32.mxu0 0.0
  %490 = vmatmul.mubr.f32.gmra.mrb[0].mxu0 %v418
  %v491 = vpop.f32.mrb[0].mxu0
  %v492 = vadd.f32 0.0, %v491
  %v493 = vpop.f32.mrb[0].mxu0
  %494 = vdwg.mxu0
  %v495 = vsel %vm189, %v487, -inf
  %v496 = vsel %vm191, %v492, -inf
  %v497 = vmax.f32 %v495, %v496
  %v498 = vrot.slane %v497, 4
  %v499 = vmax.f32 %v497, %v498
  %v500 = vrot.slane %v499, 2
  %v501 = vmax.f32 %v499, %v500
  %v502 = vrot.slane %v501, 1
  %v503 = vmax.f32 %v501, %v502
  %v504 = vsub.f32 %v487, %v503
  %v505 = vsub.f32 %v492, %v503
  %v506 = vmul.f32 %v504, 1.442695
  %v507 = vpow.pop %v506
  %v508 = vmul.f32 %v505, 1.442695
  %v509 = vpow.pop %v508
  %v510 = vsel %vm189, %v507, 0.0
  %v511 = vsel %vm191, %v509, 0.0
  %v512 = vadd.f32 %v510, %v511
  %v513 = vrot.slane %v512, 4
  %v514 = vadd.f32 %v512, %v513
  %v515 = vrot.slane %v514, 2
  %v516 = vadd.f32 %v514, %v515
  %v517 = vrot.slane %v516, 1
  %v518 = vadd.f32 %v516, %v517
  %v519 = vrcp.pop %v518
  %v520 = vmul.f32 %v507, %v519
  %v521 = vmul.f32 %v509, %v519
  %522 = vxpose.xlu0.b32.start [1/16] %v520, 128
  %523 = vxpose.xlu0.b32.cont [2/16] %v521, 128
  %524 = vxpose.xlu0.b32.cont [3/16] 0.0, 128
  %525 = vxpose.xlu0.b32.cont [4/16] 0.0, 128
  %526 = vxpose.xlu0.b32.cont [5/16] 0.0, 128
  %527 = vxpose.xlu0.b32.cont [6/16] 0.0, 128
  %528 = vxpose.xlu0.b32.cont [7/16] 0.0, 128
  %529 = vxpose.xlu0.b32.cont [8/16] 0.0, 128
  %530 = vxpose.xlu0.b32.cont [9/16] 0.0, 128
  %531 = vxpose.xlu0.b32.cont [10/16] 0.0, 128
  %532 = vxpose.xlu0.b32.cont [11/16] 0.0, 128
  %533 = vxpose.xlu0.b32.cont [12/16] 0.0, 128
  %534 = vxpose.xlu0.b32.cont [13/16] 0.0, 128
  %535 = vxpose.xlu0.b32.cont [14/16] 0.0, 128
  %536 = vxpose.xlu0.b32.cont [15/16] 0.0, 128
  %537 = vxpose.xlu0.b32.end [16/16] 0.0, 128
  %v538 = vpop.trf.xlu0
  %v539 = vpop.trf.xlu0
  %v540 = vpop.trf.xlu0
  %v541 = vpop.trf.xlu0
  %v542 = vpop.trf.xlu0
  %v543 = vpop.trf.xlu0
  %v544 = vpop.trf.xlu0
  %v545 = vpop.trf.xlu0
  %v546 = vpop.trf.xlu0
  %v547 = vpop.trf.xlu0
  %v548 = vpop.trf.xlu0
  %v549 = vpop.trf.xlu0
  %v550 = vpop.trf.xlu0
  %v551 = vpop.trf.xlu0
  %v552 = vpop.trf.xlu0
  %v553 = vpop.trf.xlu0
  %v555 = vsel %vm250, %v538, 0
  %v557 = vsel %vm254, %v330, 0
  %559 = vmatprep.subr.mxu0 0.0
  %560 = vmatpush1.msra.mxu0 %v329
  %561 = vmatprep.subr.mxu0 0.0
  %562 = vmatpush1.msra.mxu0 %v557
  %563 = vmatprep.subr.mxu0 0.0
  %564 = vmatpush1.msra.mxu0 0.0
  %565 = vmatprep.subr.mxu0 0.0
  %566 = vmatpush1.msra.mxu0 0.0
  %567 = vmatprep.subr.mxu0 0.0
  %568 = vmatpush1.msra.mxu0 0.0
  %569 = vmatprep.subr.mxu0 0.0
  %570 = vmatpush1.msra.mxu0 0.0
  %571 = vmatprep.subr.mxu0 0.0
  %572 = vmatpush1.msra.mxu0 0.0
  %573 = vmatprep.subr.mxu0 0.0
  %574 = vmatpush1.msra.mxu0 0.0
  %575 = vmatprep.subr.mxu0 0.0
  %576 = vmatpush1.msra.mxu0 0.0
  %577 = vmatprep.subr.mxu0 0.0
  %578 = vmatpush1.msra.mxu0 0.0
  %579 = vmatprep.subr.mxu0 0.0
  %580 = vmatpush1.msra.mxu0 0.0
  %581 = vmatprep.subr.mxu0 0.0
  %582 = vmatpush1.msra.mxu0 0.0
  %583 = vmatprep.subr.mxu0 0.0
  %584 = vmatpush1.msra.mxu0 0.0
  %585 = vmatprep.subr.mxu0 0.0
  %586 = vmatpush1.msra.mxu0 0.0
  %587 = vmatprep.subr.mxu0 0.0
  %588 = vmatpush1.msra.mxu0 0.0
  %589 = vmatprep.subr.mxu0 0.0
  %590 = vmatpush1.msra.mxu0 0.0
  %591 = vmatprep.subr.mxu0 0.0
  %592 = vmatpush1.msra.mxu0 0.0
  %593 = vmatprep.subr.mxu0 0.0
  %594 = vmatpush1.msra.mxu0 0.0
  %595 = vmatprep.subr.mxu0 0.0
  %596 = vmatpush1.msra.mxu0 0.0
  %597 = vmatprep.subr.mxu0 0.0
  %598 = vmatpush1.msra.mxu0 0.0
  %599 = vmatprep.subr.mxu0 0.0
  %600 = vmatpush1.msra.mxu0 0.0
  %601 = vmatprep.subr.mxu0 0.0
  %602 = vmatpush1.msra.mxu0 0.0
  %603 = vmatprep.subr.mxu0 0.0
  %604 = vmatpush1.msra.mxu0 0.0
  %605 = vmatprep.subr.mxu0 0.0
  %606 = vmatpush1.msra.mxu0 0.0
  %607 = vmatprep.subr.mxu0 0.0
  %608 = vmatpush1.msra.mxu0 0.0
  %609 = vmatprep.subr.mxu0 0.0
  %610 = vmatpush1.msra.mxu0 0.0
  %611 = vmatprep.subr.mxu0 0.0
  %612 = vmatpush1.msra.mxu0 0.0
  %613 = vmatprep.subr.mxu0 0.0
  %614 = vmatpush1.msra.mxu0 0.0
  %615 = vmatprep.subr.mxu0 0.0
  %616 = vmatpush1.msra.mxu0 0.0
  %617 = vmatprep.subr.mxu0 0.0
  %618 = vmatpush1.msra.mxu0 0.0
  %619 = vmatprep.subr.mxu0 0.0
  %620 = vmatpush1.msra.mxu0 0.0
  %621 = vmatprep.subr.mxu0 0.0
  %622 = vmatpush1.msra.mxu0 0.0
  %623 = vmatprep.mubr.f32.mxu0 0.0
  %624 = vmatmul.mubr.f32.gmra.mrb[0].mxu0 %v555
  %v625 = vpop.f32.mrb[0].mxu0
  %v626 = vadd.f32 0.0, %v625
  %v627 = vpop.f32.mrb[0].mxu0
  %628 = vdwg.mxu0
  %s629 = scalar_lea.vmem %s3, 8
  %630 = vst.msk [vmem:[%s629] sm:$0xff] %vm24, %v626
  // Predicated region
  $region14: #{combined_forward.14} parent=0 // pred_check
    _
  $region15: #{combined_forward.14} parent=0 // pred_check_branch
    %632 = sbr.rel (0) target = $region17
  $region16: #{combined_forward.14} parent=0 // pred_region
    _
  $region17: #{combined_forward.14} parent=0 // pred_fallthru
    _
  // Predicated region
  $region18: #{combined_forward.14} parent=0 // pred_check
    _
  $region19: #{combined_forward.14} parent=0 // pred_check_branch
    %634 = sbr.rel (0) target = $region21
  $region20: #{combined_forward.14} parent=0 // pred_region
    _
  $region21: #{combined_forward.14} parent=0 // pred_fallthru
    _

// kernel: combined_forward.8
$region0: #{combined_forward.8}
  #allocation0 [shape = 'u32[]', space=smem, size = 0x4, offset = 0x4, fixed_abs, tag = 'smem constant byte address 0x4 - core index']
  #allocation1 [shape = 'u32[144,128]{1,0:T(1,128)}', space=vmem, size = 0x12000, scoped, tag = 'internal scratch']
  #allocation2 [shape = 'f32[4,16]{1,0:T(4,128)}', space=vmem, size = 0x800, scoped, tag = 'scratch operand']
  #allocation3 [shape = 'f32[4,16]{1,0:T(4,128)}', space=vmem, size = 0x800, scoped, tag = 'scratch operand']
  %s0 = inlined_call_operand.vmem [shape: f32[8,2,300], index: 0, kind: input, shape index: {}]
  %s1 = inlined_call_operand.vmem [shape: f32[300,128], index: 1, kind: input, shape index: {}]
  %s2 = inlined_call_operand.vmem [shape: f32[16,128], index: 2, kind: input, shape index: {}]
  %s3 = inlined_call_operand.vmem [shape: f32[1,128], index: 3, kind: input, shape index: {}]
  %s4 = inlined_call_operand.vmem [shape: f32[8,2,16], index: 4, kind: output, shape index: {0}]
  %s5 = inlined_call_operand.vmem [shape: f32[8,2,16], index: 5, kind: output, shape index: {1}]
  %6 = xla_tuple %s4, %s5
  %s7 = sld [smem:[#allocation0]]
  $region41: #{combined_forward.8} parent=0
    _
  %s9 = ssub.s32 1, %s7
  %s10 = scalar_select 0, %s9, %s7
  // Predicated region
  $region2: #{combined_forward.8} parent=0 // pred_check
    _
  $region3: #{combined_forward.8} parent=0 // pred_check_branch
    %12 = sbr.rel (0) target = $region5
  $region4: #{combined_forward.8} parent=0 // pred_region
    _
  $region5: #{combined_forward.8} parent=0 // pred_fallthru
    _
  // Predicated region
  $region6: #{combined_forward.8} parent=0 // pred_check
    _
  $region7: #{combined_forward.8} parent=0 // pred_check_branch
    %14 = sbr.rel (0) target = $region9
  $region8: #{combined_forward.8} parent=0 // pred_region
    _
  $region9: #{combined_forward.8} parent=0 // pred_fallthru
    _
  // Predicated region
  $region10: #{combined_forward.8} parent=0 // pred_check
    _
  $region11: #{combined_forward.8} parent=0 // pred_check_branch
    %16 = sbr.rel (0) target = $region13
  $region12: #{combined_forward.8} parent=0 // pred_region
    _
  $region13: #{combined_forward.8} parent=0 // pred_fallthru
    _
  // Predicated region
  $region14: #{combined_forward.8} parent=0 // pred_check
    _
  $region15: #{combined_forward.8} parent=0 // pred_check_branch
    %18 = sbr.rel (0) target = $region17
  $region16: #{combined_forward.8} parent=0 // pred_region
    _
  $region17: #{combined_forward.8} parent=0 // pred_fallthru
    _
  %v19 = vld [vmem:[%s1] sm:$0xff]
  %v20 = vld [vmem:[%s1 + $0x8] sm:$0xff]
  %v21 = vld [vmem:[%s1 + $0x10] sm:$0xff]
  %v22 = vld [vmem:[%s1 + $0x18] sm:$0xff]
  %v23 = vld [vmem:[%s1 + $0x20] sm:$0xff]
  %v24 = vld [vmem:[%s1 + $0x28] sm:$0xff]
  %v25 = vld [vmem:[%s1 + $0x30] sm:$0xff]
  %v26 = vld [vmem:[%s1 + $0x38] sm:$0xff]
  %v27 = vld [vmem:[%s1 + $0x40] sm:$0xff]
  %v28 = vld [vmem:[%s1 + $0x48] sm:$0xff]
  %v29 = vld [vmem:[%s1 + $0x50] sm:$0xff]
  %v30 = vld [vmem:[%s1 + $0x58] sm:$0xff]
  %v31 = vld [vmem:[%s1 + $0x60] sm:$0xff]
  %v32 = vld [vmem:[%s1 + $0x68] sm:$0xff]
  %v33 = vld [vmem:[%s1 + $0x70] sm:$0xff]
  %v34 = vld [vmem:[%s1 + $0x78] sm:$0xff]
  %v35 = vld [vmem:[%s1 + $0x80] sm:$0xff]
  %v36 = vld [vmem:[%s1 + $0x88] sm:$0xff]
  %v37 = vld [vmem:[%s1 + $0x90] sm:$0xff]
  %v38 = vld [vmem:[%s1 + $0x98] sm:$0xff]
  %v39 = vld [vmem:[%s1 + $0xa0] sm:$0xff]
  %v40 = vld [vmem:[%s1 + $0xa8] sm:$0xff]
  %v41 = vld [vmem:[%s1 + $0xb0] sm:$0xff]
  %v42 = vld [vmem:[%s1 + $0xb8] sm:$0xff]
  %v43 = vld [vmem:[%s1 + $0xc0] sm:$0xff]
  %v44 = vld [vmem:[%s1 + $0xc8] sm:$0xff]
  %v45 = vld [vmem:[%s1 + $0xd0] sm:$0xff]
  %v46 = vld [vmem:[%s1 + $0xd8] sm:$0xff]
  %v47 = vld [vmem:[%s1 + $0xe0] sm:$0xff]
  %v48 = vld [vmem:[%s1 + $0xe8] sm:$0xff]
  %v49 = vld [vmem:[%s1 + $0xf0] sm:$0xff]
  %v50 = vld [vmem:[%s1 + $0xf8] sm:$0xff]
  %v51 = vld [vmem:[%s1 + $0x100] sm:$0xff]
  %v52 = vld [vmem:[%s1 + $0x108] sm:$0xff]
  %v53 = vld [vmem:[%s1 + $0x110] sm:$0xff]
  %v54 = vld [vmem:[%s1 + $0x118] sm:$0xff]
  %v55 = vld [vmem:[%s1 + $0x120] sm:$0xff]
  %v56 = vld [vmem:[%s1 + $0x128] sm:$0xf]
  %v57 = vld [vmem:[%s2] sm:$0xff]
  %v58 = vld [vmem:[%s2 + $0x8] sm:$0xff]
  %v59 = vld [vmem:[%s3] sm:$0x1]
  %vm60 = vcmask 125952
  %61 = vst.msk [vmem:[#allocation2] sm:$0xf] %vm60, 0.0
  %62 = vst.msk [vmem:[#allocation3] sm:$0xf] %vm60, 0.0
  loop: start=0, step=1, limit=8
  $region18: #{combined_forward.8} parent=0 // loop_pre_header
    _
  $region19: #{combined_forward.8} parent=0 // loop_header
    %s64 = sphi 0, %s68
    %p65 = scmp.ge.s32.totalorder %s64, 8
  $region20: #{combined_forward.8} parent=0 // loop_header_branch
    %67 = sbr.rel (%p65) target = $region24
  $region21: #{combined_forward.8} parent=0 // loop_body
    %s69 = ssub.s32 7, %s64
    %s70 = smul.u32 %s64, 3
    %s71 = smul.addr %s70, 2
    %s72 = scalar_lea.vmem %s0, %s71
    %v73 = vld [vmem:[%s72] sm:$0x3f]
    %s74 = smul.u32 %s69, 3
    %s75 = smul.addr %s74, 2
    %s76 = scalar_lea.vmem %s0, %s75
    %v77 = vld [vmem:[%s76] sm:$0x3f]
    %v79 = vcombine.high %v73, %v73
    %v81 = vunpack.c.l.s4 1983009808
    %v82 = vunpack.c.0.s8 %v81
    %v83 = vlaneseq
    %v84 = vshrl.u32 %v83, 7
    %v85 = vsub.s32 %v82, %v84
    %v86 = vrot.slane %v73, %v85
    %v88 = vunpack.c.l.s4 1983009808
    %v89 = vunpack.c.0.s8 %v88
    %v90 = vlaneseq
    %v91 = vshrl.u32 %v90, 7
    %v92 = vsub.s32 %v89, %v91
    %v93 = vrot.slane %v79, %v92
    %v94 = vcombine.high %v86, %v86
    %v99 = vcombine.low %v77, %v77
    %v101 = vunpack.c.l.s4 1983009808
    %v102 = vunpack.c.0.s8 %v101
    %v103 = vlaneseq
    %v104 = vshrl.u32 %v103, 7
    %v105 = vsub.s32 %v102, %v104
    %v106 = vrot.slane %v99, %v105
    %v108 = vunpack.c.l.s4 1983009808
    %v109 = vunpack.c.0.s8 %v108
    %v110 = vlaneseq
    %v111 = vshrl.u32 %v110, 7
    %v112 = vsub.s32 %v109, %v111
    %v113 = vrot.slane %v77, %v112
    %v114 = vcombine.high %v106, %v106
    %vm118 = vcmask 1041408
    %v119 = vsel %vm118, %v86, %v106
    %v120 = vsel %vm118, %v94, %v114
    %v121 = vsel %vm118, %v93, %v113
    %v122 = vld [vmem:[#allocation2] sm:$0xf]
    %vm123 = vcmask 130048
    %v125 = vsel %vm123, %v122, 0
    %127 = vmatprep.subr.mxu0 0.0
    %128 = vmatpush1.msra.mxu0 %v57
    %129 = vmatprep.subr.mxu0 0.0
    %130 = vmatpush1.msra.mxu0 %v58
    %131 = vmatprep.subr.mxu0 0.0
    %132 = vmatpush1.msra.mxu0 0.0
    %133 = vmatprep.subr.mxu0 0.0
    %134 = vmatpush1.msra.mxu0 0.0
    %135 = vmatprep.subr.mxu0 0.0
    %136 = vmatpush1.msra.mxu0 0.0
    %137 = vmatprep.subr.mxu0 0.0
    %138 = vmatpush1.msra.mxu0 0.0
    %139 = vmatprep.subr.mxu0 0.0
    %140 = vmatpush1.msra.mxu0 0.0
    %141 = vmatprep.subr.mxu0 0.0
    %142 = vmatpush1.msra.mxu0 0.0
    %143 = vmatprep.subr.mxu0 0.0
    %144 = vmatpush1.msra.mxu0 0.0
    %145 = vmatprep.subr.mxu0 0.0
    %146 = vmatpush1.msra.mxu0 0.0
    %147 = vmatprep.subr.mxu0 0.0
    %148 = vmatpush1.msra.mxu0 0.0
    %149 = vmatprep.subr.mxu0 0.0
    %150 = vmatpush1.msra.mxu0 0.0
    %151 = vmatprep.subr.mxu0 0.0
    %152 = vmatpush1.msra.mxu0 0.0
    %153 = vmatprep.subr.mxu0 0.0
    %154 = vmatpush1.msra.mxu0 0.0
    %155 = vmatprep.subr.mxu0 0.0
    %156 = vmatpush1.msra.mxu0 0.0
    %157 = vmatprep.subr.mxu0 0.0
    %158 = vmatpush1.msra.mxu0 0.0
    %159 = vmatprep.subr.mxu0 0.0
    %160 = vmatpush1.msra.mxu0 0.0
    %161 = vmatprep.subr.mxu0 0.0
    %162 = vmatpush1.msra.mxu0 0.0
    %163 = vmatprep.subr.mxu0 0.0
    %164 = vmatpush1.msra.mxu0 0.0
    %165 = vmatprep.subr.mxu0 0.0
    %166 = vmatpush1.msra.mxu0 0.0
    %167 = vmatprep.subr.mxu0 0.0
    %168 = vmatpush1.msra.mxu0 0.0
    %169 = vmatprep.subr.mxu0 0.0
    %170 = vmatpush1.msra.mxu0 0.0
    %171 = vmatprep.subr.mxu0 0.0
    %172 = vmatpush1.msra.mxu0 0.0
    %173 = vmatprep.subr.mxu0 0.0
    %174 = vmatpush1.msra.mxu0 0.0
    %175 = vmatprep.subr.mxu0 0.0
    %176 = vmatpush1.msra.mxu0 0.0
    %177 = vmatprep.subr.mxu0 0.0
    %178 = vmatpush1.msra.mxu0 0.0
    %179 = vmatprep.subr.mxu0 0.0
    %180 = vmatpush1.msra.mxu0 0.0
    %181 = vmatprep.subr.mxu0 0.0
    %182 = vmatpush1.msra.mxu0 0.0
    %183 = vmatprep.subr.mxu0 0.0
    %184 = vmatpush1.msra.mxu0 0.0
    %185 = vmatprep.subr.mxu0 0.0
    %186 = vmatpush1.msra.mxu0 0.0
    %187 = vmatprep.subr.mxu0 0.0
    %188 = vmatpush1.msra.mxu0 0.0
    %189 = vmatprep.subr.mxu0 0.0
    %190 = vmatpush1.msra.mxu0 0.0
    %191 = vmatprep.mubr.f32.mxu0 0.0
    %192 = vmatmul.mubr.f32.gmra.mrb[0].mxu0 %v125
    %v193 = vpop.f32.mrb[0].mxu0
    %v194 = vadd.f32 0.0, %v193
    %v195 = vpop.f32.mrb[0].mxu0
    %196 = vdwg.mxu0
    %vm197 = vcmask 359424
    %v199 = vsel %vm197, %v121, 0
    %vm201 = vcmask 1043456
    %v203 = vsel %vm201, %v56, 0
    %205 = vmatprep.subr.mxu0 0.0
    %206 = vmatpush1.msra.mxu0 %v19
    %207 = vmatprep.subr.mxu0 0.0
    %208 = vmatpush1.msra.mxu0 %v20
    %209 = vmatprep.subr.mxu0 0.0
    %210 = vmatpush1.msra.mxu0 %v21
    %211 = vmatprep.subr.mxu0 0.0
    %212 = vmatpush1.msra.mxu0 %v22
    %213 = vmatprep.subr.mxu0 0.0
    %214 = vmatpush1.msra.mxu0 %v23
    %215 = vmatprep.subr.mxu0 0.0
    %216 = vmatpush1.msra.mxu0 %v24
    %217 = vmatprep.subr.mxu0 0.0
    %218 = vmatpush1.msra.mxu0 %v25
    %219 = vmatprep.subr.mxu0 0.0
    %220 = vmatpush1.msra.mxu0 %v26
    %221 = vmatprep.subr.mxu0 0.0
    %222 = vmatpush1.msra.mxu0 %v27
    %223 = vmatprep.subr.mxu0 0.0
    %224 = vmatpush1.msra.mxu0 %v28
    %225 = vmatprep.subr.mxu0 0.0
    %226 = vmatpush1.msra.mxu0 %v29
    %227 = vmatprep.subr.mxu0 0.0
    %228 = vmatpush1.msra.mxu0 %v30
    %229 = vmatprep.subr.mxu0 0.0
    %230 = vmatpush1.msra.mxu0 %v31
    %231 = vmatprep.subr.mxu0 0.0
    %232 = vmatpush1.msra.mxu0 %v32
    %233 = vmatprep.subr.mxu0 0.0
    %234 = vmatpush1.msra.mxu0 %v33
    %235 = vmatprep.subr.mxu0 0.0
    %236 = vmatpush1.msra.mxu0 %v34
    %237 = vmatprep.subr.mxu0 0.0
    %238 = vmatpush1.msra.mxu0 %v35
    %239 = vmatprep.subr.mxu0 0.0
    %240 = vmatpush1.msra.mxu0 %v36
    %241 = vmatprep.subr.mxu0 0.0
    %242 = vmatpush1.msra.mxu0 %v37
    %243 = vmatprep.subr.mxu0 0.0
    %244 = vmatpush1.msra.mxu0 %v38
    %245 = vmatprep.subr.mxu0 0.0
    %246 = vmatpush1.msra.mxu0 %v39
    %247 = vmatprep.subr.mxu0 0.0
    %248 = vmatpush1.msra.mxu0 %v40
    %249 = vmatprep.subr.mxu0 0.0
    %250 = vmatpush1.msra.mxu0 %v41
    %251 = vmatprep.subr.mxu0 0.0
    %252 = vmatpush1.msra.mxu0 %v42
    %253 = vmatprep.subr.mxu0 0.0
    %254 = vmatpush1.msra.mxu0 %v43
    %255 = vmatprep.subr.mxu0 0.0
    %256 = vmatpush1.msra.mxu0 %v44
    %257 = vmatprep.subr.mxu0 0.0
    %258 = vmatpush1.msra.mxu0 %v45
    %259 = vmatprep.subr.mxu0 0.0
    %260 = vmatpush1.msra.mxu0 %v46
    %261 = vmatprep.subr.mxu0 0.0
    %262 = vmatpush1.msra.mxu0 %v47
    %263 = vmatprep.subr.mxu0 0.0
    %264 = vmatpush1.msra.mxu0 %v48
    %265 = vmatprep.subr.mxu0 0.0
    %266 = vmatpush1.msra.mxu0 %v49
    %267 = vmatprep.subr.mxu0 0.0
    %268 = vmatpush1.msra.mxu0 %v50
    %269 = vmatprep.mubr.f32.mxu0 %v120
    %270 = vmatmul.mubr.f32.gmra.mrb[0].mxu0 %v119
    %v271 = vpop.f32.mrb[0].mxu0
    %v272 = vadd.f32 %v194, %v271
    %v273 = vpop.f32.mrb[0].mxu0
    %274 = vdwg.mxu0
    %275 = vmatprep.subr.mxu0 0.0
    %276 = vmatpush1.msra.mxu0 %v51
    %277 = vmatprep.subr.mxu0 0.0
    %278 = vmatpush1.msra.mxu0 %v52
    %279 = vmatprep.subr.mxu0 0.0
    %280 = vmatpush1.msra.mxu0 %v53
    %281 = vmatprep.subr.mxu0 0.0
    %282 = vmatpush1.msra.mxu0 %v54
    %283 = vmatprep.subr.mxu0 0.0
    %284 = vmatpush1.msra.mxu0 %v55
    %285 = vmatprep.subr.mxu0 0.0
    %286 = vmatpush1.msra.mxu0 %v203
    %287 = vmatprep.subr.mxu0 0.0
    %288 = vmatpush1.msra.mxu0 0.0
    %289 = vmatprep.subr.mxu0 0.0
    %290 = vmatpush1.msra.mxu0 0.0
    %291 = vmatprep.subr.mxu0 0.0
    %292 = vmatpush1.msra.mxu0 0.0
    %293 = vmatprep.subr.mxu0 0.0
    %294 = vmatpush1.msra.mxu0 0.0
    %295 = vmatprep.subr.mxu0 0.0
    %296 = vmatpush1.msra.mxu0 0.0
    %297 = vmatprep.subr.mxu0 0.0
    %298 = vmatpush1.msra.mxu0 0.0
    %299 = vmatprep.subr.mxu0 0.0
    %300 = vmatpush1.msra.mxu0 0.0
    %301 = vmatprep.subr.mxu0 0.0
    %302 = vmatpush1.msra.mxu0 0.0
    %303 = vmatprep.subr.mxu0 0.0
    %304 = vmatpush1.msra.mxu0 0.0
    %305 = vmatprep.subr.mxu0 0.0
    %306 = vmatpush1.msra.mxu0 0.0
    %307 = vmatprep.subr.mxu0 0.0
    %308 = vmatpush1.msra.mxu0 0.0
    %309 = vmatprep.subr.mxu0 0.0
    %310 = vmatpush1.msra.mxu0 0.0
    %311 = vmatprep.subr.mxu0 0.0
    %312 = vmatpush1.msra.mxu0 0.0
    %313 = vmatprep.subr.mxu0 0.0
    %314 = vmatpush1.msra.mxu0 0.0
    %315 = vmatprep.subr.mxu0 0.0
    %316 = vmatpush1.msra.mxu0 0.0
    %317 = vmatprep.subr.mxu0 0.0
    %318 = vmatpush1.msra.mxu0 0.0
    %319 = vmatprep.subr.mxu0 0.0
    %320 = vmatpush1.msra.mxu0 0.0
    %321 = vmatprep.subr.mxu0 0.0
    %322 = vmatpush1.msra.mxu0 0.0
    %323 = vmatprep.subr.mxu0 0.0
    %324 = vmatpush1.msra.mxu0 0.0
    %325 = vmatprep.subr.mxu0 0.0
    %326 = vmatpush1.msra.mxu0 0.0
    %327 = vmatprep.subr.mxu0 0.0
    %328 = vmatpush1.msra.mxu0 0.0
    %329 = vmatprep.subr.mxu0 0.0
    %330 = vmatpush1.msra.mxu0 0.0
    %331 = vmatprep.subr.mxu0 0.0
    %332 = vmatpush1.msra.mxu0 0.0
    %333 = vmatprep.subr.mxu0 0.0
    %334 = vmatpush1.msra.mxu0 0.0
    %335 = vmatprep.subr.mxu0 0.0
    %336 = vmatpush1.msra.mxu0 0.0
    %337 = vmatprep.subr.mxu0 0.0
    %338 = vmatpush1.msra.mxu0 0.0
    %339 = vmatprep.mubr.f32.mxu0 0.0
    %340 = vmatmul.mubr.f32.gmra.mrb[0].mxu0 %v199
    %v341 = vpop.f32.mrb[0].mxu0
    %v342 = vadd.f32 %v272, %v341
    %v343 = vpop.f32.mrb[0].mxu0
    %344 = vdwg.mxu0
    %v346 = vlaneseq
    %v347 = vshrl.u32 %v346, 7
    %v348 = vsub.s32 0, %v347
    %v349 = vrot.slane %v59, %v348
    %v351 = vadd.f32 %v342, %v349
    %353 = vrot.lane.b32.xlu0 %v351, 64
    %v354 = vpop.permute.xlu0 %353
    %v356 = vsel %vm118, %v351, %v354
    %v357 = vxor.u32 %v356, 2147483648
    %v358 = vmul.f32 %v357, 1.442695
    %v359 = vpow.pop %v358
    %v360 = vadd.f32 %v359, 1.0
    %v361 = vrcp.pop %v360
    %v362 = vmul.f32 1.0, %v361
    %v363 = vtanh.pop %v356
    %v364 = vld [vmem:[#allocation3] sm:$0xf]
    %366 = vrot.lane.b32.xlu0 %v364, 16
    %v367 = vpop.permute.xlu0 %366
    %v369 = vmul.f32 %v362, %v367
    %371 = vrot.lane.b32.xlu0 %v363, 96
    %v372 = vpop.permute.xlu0 %371
    %v374 = vmul.f32 %v362, %v372
    %376 = vrot.lane.b32.xlu0 %v374, 16
    %v377 = vpop.permute.xlu0 %376
    %v379 = vadd.f32 %v369, %v377
    %v380 = vtanh.pop %v379
    %382 = vrot.lane.b32.xlu0 %v380, 32
    %v383 = vpop.permute.xlu0 %382
    %v385 = vmul.f32 %v362, %v383
    %387 = vrot.lane.b32.xlu0 %v385, 80
    %v388 = vpop.permute.xlu0 %387
    %390 = vst.msk [vmem:[#allocation2] sm:$0xf] %vm60, %v388
    %392 = vrot.lane.b32.xlu0 %v379, 112
    %v393 = vpop.permute.xlu0 %392
    %395 = vst.msk [vmem:[#allocation3] sm:$0xf] %vm60, %v393
    %s396 = smul.u32 %s64, 2
    %s397 = scalar_lea.vmem %s4, %s396
    %vm398 = vcmask 123904
    %399 = vst.msk [vmem:[%s397] sm:$0x3] %vm398, %v388
    %s400 = smul.u32 %s69, 2
    %s401 = scalar_lea.vmem %s5, %s400
    %vm402 = vcmask 125954
    %403 = vst.msk [vmem:[%s401 - $0x2] sm:$0xc] %vm402, %v388
  $region22: #{combined_forward.8} parent=0 // loop_footer
    %s68 = sadd.s32 1, %s64
  $region23: #{combined_forward.8} parent=0 // loop_footer_branch
    %63 = sbr.rel target = $region19
  $region24: #{combined_forward.8} parent=0 // loop_exit
    _
  // Predicated region
  $region25: #{combined_forward.8} parent=0 // pred_check
    _
  $region26: #{combined_forward.8} parent=0 // pred_check_branch
    %405 = sbr.rel (0) target = $region28
  $region27: #{combined_forward.8} parent=0 // pred_region
    _
  $region28: #{combined_forward.8} parent=0 // pred_fallthru
    _
  // Predicated region
  $region29: #{combined_forward.8} parent=0 // pred_check
    _
  $region30: #{combined_forward.8} parent=0 // pred_check_branch
    %407 = sbr.rel (0) target = $region32
  $region31: #{combined_forward.8} parent=0 // pred_region
    _
  $region32: #{combined_forward.8} parent=0 // pred_fallthru
    _
  // Predicated region
  $region33: #{combined_forward.8} parent=0 // pred_check
    _
  $region34: #{combined_forward.8} parent=0 // pred_check_branch
    %409 = sbr.rel (0) target = $region36
  $region35: #{combined_forward.8} parent=0 // pred_region
    _
  $region36: #{combined_forward.8} parent=0 // pred_fallthru
    _
  // Predicated region
  $region37: #{combined_forward.8} parent=0 // pred_check
    _
  $region38: #{combined_forward.8} parent=0 // pred_check_branch
    %411 = sbr.rel (0) target = $region40
  $region39: #{combined_forward.8} parent=0 // pred_region
    _
  $region40: #{combined_forward.8} parent=0 // pred_fallthru
    _

// kernel: combined_forward.10
$region0: #{combined_forward.10}
  #allocation0 [shape = 'u32[]', space=smem, size = 0x4, offset = 0x4, fixed_abs, tag = 'smem constant byte address 0x4 - core index']
  #allocation1 [shape = 'u32[144,128]{1,0:T(1,128)}', space=vmem, size = 0x12000, scoped, tag = 'internal scratch']
  %s0 = inlined_call_operand.vmem [shape: f32[2,8,32], index: 0, kind: input, shape index: {}]
  %s1 = inlined_call_operand.vmem [shape: f32[32,32], index: 1, kind: input, shape index: {}]
  %s2 = inlined_call_operand.vmem [shape: f32[32,8], index: 2, kind: input, shape index: {}]
  %s3 = inlined_call_operand.vmem [shape: f32[2,8,32], index: 3, kind: output, shape index: {}]
  %s4 = sld [smem:[#allocation0]]
  $region22: #{combined_forward.10} parent=0
    _
  %s6 = ssub.s32 1, %s4
  %s7 = scalar_select 0, %s6, %s4
  // Predicated region
  $region2: #{combined_forward.10} parent=0 // pred_check
    _
  $region3: #{combined_forward.10} parent=0 // pred_check_branch
    %9 = sbr.rel (0) target = $region5
  $region4: #{combined_forward.10} parent=0 // pred_region
    _
  $region5: #{combined_forward.10} parent=0 // pred_fallthru
    _
  // Predicated region
  $region6: #{combined_forward.10} parent=0 // pred_check
    _
  $region7: #{combined_forward.10} parent=0 // pred_check_branch
    %11 = sbr.rel (0) target = $region9
  $region8: #{combined_forward.10} parent=0 // pred_region
    _
  $region9: #{combined_forward.10} parent=0 // pred_fallthru
    _
  // Predicated region
  $region10: #{combined_forward.10} parent=0 // pred_check
    _
  $region11: #{combined_forward.10} parent=0 // pred_check_branch
    %13 = sbr.rel (0) target = $region13
  $region12: #{combined_forward.10} parent=0 // pred_region
    _
  $region13: #{combined_forward.10} parent=0 // pred_fallthru
    _
  %v14 = vld [vmem:[%s1] sm:$0xff]
  %v15 = vld [vmem:[%s1 + $0x8] sm:$0xff]
  %v16 = vld [vmem:[%s1 + $0x10] sm:$0xff]
  %v17 = vld [vmem:[%s1 + $0x18] sm:$0xff]
  %v18 = vld [vmem:[%s2] sm:$0xff]
  %v19 = vld [vmem:[%s2 + $0x8] sm:$0xff]
  %v20 = vld [vmem:[%s2 + $0x10] sm:$0xff]
  %v21 = vld [vmem:[%s2 + $0x18] sm:$0xff]
  %v22 = vld [vmem:[%s0] sm:$0xff]
  %vm23 = vcmask 261120
  %v25 = vsel %vm23, %v22, 0
  %27 = vmatprep.subr.mxu0 0.0
  %28 = vmatpush1.msra.mxu0 %v14
  %29 = vmatprep.subr.mxu0 0.0
  %30 = vmatpush1.msra.mxu0 %v15
  %31 = vmatprep.subr.mxu0 0.0
  %32 = vmatpush1.msra.mxu0 %v16
  %33 = vmatprep.subr.mxu0 0.0
  %34 = vmatpush1.msra.mxu0 %v17
  %35 = vmatprep.subr.mxu0 0.0
  %36 = vmatpush1.msra.mxu0 0.0
  %37 = vmatprep.subr.mxu0 0.0
  %38 = vmatpush1.msra.mxu0 0.0
  %39 = vmatprep.subr.mxu0 0.0
  %40 = vmatpush1.msra.mxu0 0.0
  %41 = vmatprep.subr.mxu0 0.0
  %42 = vmatpush1.msra.mxu0 0.0
  %43 = vmatprep.subr.mxu0 0.0
  %44 = vmatpush1.msra.mxu0 0.0
  %45 = vmatprep.subr.mxu0 0.0
  %46 = vmatpush1.msra.mxu0 0.0
  %47 = vmatprep.subr.mxu0 0.0
  %48 = vmatpush1.msra.mxu0 0.0
  %49 = vmatprep.subr.mxu0 0.0
  %50 = vmatpush1.msra.mxu0 0.0
  %51 = vmatprep.subr.mxu0 0.0
  %52 = vmatpush1.msra.mxu0 0.0
  %53 = vmatprep.subr.mxu0 0.0
  %54 = vmatpush1.msra.mxu0 0.0
  %55 = vmatprep.subr.mxu0 0.0
  %56 = vmatpush1.msra.mxu0 0.0
  %57 = vmatprep.subr.mxu0 0.0
  %58 = vmatpush1.msra.mxu0 0.0
  %59 = vmatprep.subr.mxu0 0.0
  %60 = vmatpush1.msra.mxu0 0.0
  %61 = vmatprep.subr.mxu0 0.0
  %62 = vmatpush1.msra.mxu0 0.0
  %63 = vmatprep.subr.mxu0 0.0
  %64 = vmatpush1.msra.mxu0 0.0
  %65 = vmatprep.subr.mxu0 0.0
  %66 = vmatpush1.msra.mxu0 0.0
  %67 = vmatprep.subr.mxu0 0.0
  %68 = vmatpush1.msra.mxu0 0.0
  %69 = vmatprep.subr.mxu0 0.0
  %70 = vmatpush1.msra.mxu0 0.0
  %71 = vmatprep.subr.mxu0 0.0
  %72 = vmatpush1.msra.mxu0 0.0
  %73 = vmatprep.subr.mxu0 0.0
  %74 = vmatpush1.msra.mxu0 0.0
  %75 = vmatprep.subr.mxu0 0.0
  %76 = vmatpush1.msra.mxu0 0.0
  %77 = vmatprep.subr.mxu0 0.0
  %78 = vmatpush1.msra.mxu0 0.0
  %79 = vmatprep.subr.mxu0 0.0
  %80 = vmatpush1.msra.mxu0 0.0
  %81 = vmatprep.subr.mxu0 0.0
  %82 = vmatpush1.msra.mxu0 0.0
  %83 = vmatprep.subr.mxu0 0.0
  %84 = vmatpush1.msra.mxu0 0.0
  %85 = vmatprep.subr.mxu0 0.0
  %86 = vmatpush1.msra.mxu0 0.0
  %87 = vmatprep.subr.mxu0 0.0
  %88 = vmatpush1.msra.mxu0 0.0
  %89 = vmatprep.subr.mxu0 0.0
  %90 = vmatpush1.msra.mxu0 0.0
  %91 = vmatprep.mubr.f32.mxu0 0.0
  %92 = vmatmul.mubr.f32.gmra.mrb[0].mxu0 %v25
  %v93 = vpop.f32.mrb[0].mxu0
  %v94 = vadd.f32 0.0, %v93
  %v95 = vpop.f32.mrb[0].mxu0
  %96 = vdwg.mxu0
  %v97 = vtanh.pop %v94
  %v99 = vsel %vm23, %v97, 0
  %101 = vmatprep.subr.mxu0 0.0
  %102 = vmatpush1.msra.mxu0 %v18
  %103 = vmatprep.subr.mxu0 0.0
  %104 = vmatpush1.msra.mxu0 %v19
  %105 = vmatprep.subr.mxu0 0.0
  %106 = vmatpush1.msra.mxu0 %v20
  %107 = vmatprep.subr.mxu0 0.0
  %108 = vmatpush1.msra.mxu0 %v21
  %109 = vmatprep.subr.mxu0 0.0
  %110 = vmatpush1.msra.mxu0 0.0
  %111 = vmatprep.subr.mxu0 0.0
  %112 = vmatpush1.msra.mxu0 0.0
  %113 = vmatprep.subr.mxu0 0.0
  %114 = vmatpush1.msra.mxu0 0.0
  %115 = vmatprep.subr.mxu0 0.0
  %116 = vmatpush1.msra.mxu0 0.0
  %117 = vmatprep.subr.mxu0 0.0
  %118 = vmatpush1.msra.mxu0 0.0
  %119 = vmatprep.subr.mxu0 0.0
  %120 = vmatpush1.msra.mxu0 0.0
  %121 = vmatprep.subr.mxu0 0.0
  %122 = vmatpush1.msra.mxu0 0.0
  %123 = vmatprep.subr.mxu0 0.0
  %124 = vmatpush1.msra.mxu0 0.0
  %125 = vmatprep.subr.mxu0 0.0
  %126 = vmatpush1.msra.mxu0 0.0
  %127 = vmatprep.subr.mxu0 0.0
  %128 = vmatpush1.msra.mxu0 0.0
  %129 = vmatprep.subr.mxu0 0.0
  %130 = vmatpush1.msra.mxu0 0.0
  %131 = vmatprep.subr.mxu0 0.0
  %132 = vmatpush1.msra.mxu0 0.0
  %133 = vmatprep.subr.mxu0 0.0
  %134 = vmatpush1.msra.mxu0 0.0
  %135 = vmatprep.subr.mxu0 0.0
  %136 = vmatpush1.msra.mxu0 0.0
  %137 = vmatprep.subr.mxu0 0.0
  %138 = vmatpush1.msra.mxu0 0.0
  %139 = vmatprep.subr.mxu0 0.0
  %140 = vmatpush1.msra.mxu0 0.0
  %141 = vmatprep.subr.mxu0 0.0
  %142 = vmatpush1.msra.mxu0 0.0
  %143 = vmatprep.subr.mxu0 0.0
  %144 = vmatpush1.msra.mxu0 0.0
  %145 = vmatprep.subr.mxu0 0.0
  %146 = vmatpush1.msra.mxu0 0.0
  %147 = vmatprep.subr.mxu0 0.0
  %148 = vmatpush1.msra.mxu0 0.0
  %149 = vmatprep.subr.mxu0 0.0
  %150 = vmatpush1.msra.mxu0 0.0
  %151 = vmatprep.subr.mxu0 0.0
  %152 = vmatpush1.msra.mxu0 0.0
  %153 = vmatprep.subr.mxu0 0.0
  %154 = vmatpush1.msra.mxu0 0.0
  %155 = vmatprep.subr.mxu0 0.0
  %156 = vmatpush1.msra.mxu0 0.0
  %157 = vmatprep.subr.mxu0 0.0
  %158 = vmatpush1.msra.mxu0 0.0
  %159 = vmatprep.subr.mxu0 0.0
  %160 = vmatpush1.msra.mxu0 0.0
  %161 = vmatprep.subr.mxu0 0.0
  %162 = vmatpush1.msra.mxu0 0.0
  %163 = vmatprep.subr.mxu0 0.0
  %164 = vmatpush1.msra.mxu0 0.0
  %165 = vmatprep.mubr.f32.mxu0 0.0
  %166 = vmatmul.mubr.f32.gmra.mrb[0].mxu0 %v99
  %v167 = vpop.f32.mrb[0].mxu0
  %v168 = vadd.f32 0.0, %v167
  %v169 = vpop.f32.mrb[0].mxu0
  %170 = vdwg.mxu0
  %vm171 = vcmask 64512
  %v172 = vsel %vm171, %v168, -inf
  %v173 = vrot.slane %v172, 4
  %v174 = vmax.f32 %v172, %v173
  %v175 = vrot.slane %v174, 2
  %v176 = vmax.f32 %v174, %v175
  %v177 = vrot.slane %v176, 1
  %v178 = vmax.f32 %v176, %v177
  %v179 = vsub.f32 %v168, %v178
  %v180 = vmul.f32 %v179, 1.442695
  %v181 = vpow.pop %v180
  %v182 = vsel %vm171, %v181, 0.0
  %v183 = vrot.slane %v182, 4
  %v184 = vadd.f32 %v182, %v183
  %v185 = vrot.slane %v184, 2
  %v186 = vadd.f32 %v184, %v185
  %v187 = vrot.slane %v186, 1
  %v188 = vadd.f32 %v186, %v187
  %v189 = vrcp.pop %v188
  %v190 = vmul.f32 %v181, %v189
  %191 = vxpose.xlu0.b32.start [1/16] %v190, 128
  %192 = vxpose.xlu0.b32.cont [2/16] 0.0, 128
  %193 = vxpose.xlu0.b32.cont [3/16] 0.0, 128
  %194 = vxpose.xlu0.b32.cont [4/16] 0.0, 128
  %195 = vxpose.xlu0.b32.cont [5/16] 0.0, 128
  %196 = vxpose.xlu0.b32.cont [6/16] 0.0, 128
  %197 = vxpose.xlu0.b32.cont [7/16] 0.0, 128
  %198 = vxpose.xlu0.b32.cont [8/16] 0.0, 128
  %199 = vxpose.xlu0.b32.cont [9/16] 0.0, 128
  %200 = vxpose.xlu0.b32.cont [10/16] 0.0, 128
  %201 = vxpose.xlu0.b32.cont [11/16] 0.0, 128
  %202 = vxpose.xlu0.b32.cont [12/16] 0.0, 128
  %203 = vxpose.xlu0.b32.cont [13/16] 0.0, 128
  %204 = vxpose.xlu0.b32.cont [14/16] 0.0, 128
  %205 = vxpose.xlu0.b32.cont [15/16] 0.0, 128
  %206 = vxpose.xlu0.b32.end [16/16] 0.0, 128
  %v207 = vpop.trf.xlu0
  %v208 = vpop.trf.xlu0
  %v209 = vpop.trf.xlu0
  %v210 = vpop.trf.xlu0
  %v211 = vpop.trf.xlu0
  %v212 = vpop.trf.xlu0
  %v213 = vpop.trf.xlu0
  %v214 = vpop.trf.xlu0
  %v215 = vpop.trf.xlu0
  %v216 = vpop.trf.xlu0
  %v217 = vpop.trf.xlu0
  %v218 = vpop.trf.xlu0
  %v219 = vpop.trf.xlu0
  %v220 = vpop.trf.xlu0
  %v221 = vpop.trf.xlu0
  %v222 = vpop.trf.xlu0
  %v224 = vsel %vm171, %v207, 0
  %226 = vmatprep.subr.mxu0 0.0
  %227 = vmatpush1.msra.mxu0 %v22
  %228 = vmatprep.subr.mxu0 0.0
  %229 = vmatpush1.msra.mxu0 0.0
  %230 = vmatprep.subr.mxu0 0.0
  %231 = vmatpush1.msra.mxu0 0.0
  %232 = vmatprep.subr.mxu0 0.0
  %233 = vmatpush1.msra.mxu0 0.0
  %234 = vmatprep.subr.mxu0 0.0
  %235 = vmatpush1.msra.mxu0 0.0
  %236 = vmatprep.subr.mxu0 0.0
  %237 = vmatpush1.msra.mxu0 0.0
  %238 = vmatprep.subr.mxu0 0.0
  %239 = vmatpush1.msra.mxu0 0.0
  %240 = vmatprep.subr.mxu0 0.0
  %241 = vmatpush1.msra.mxu0 0.0
  %242 = vmatprep.subr.mxu0 0.0
  %243 = vmatpush1.msra.mxu0 0.0
  %244 = vmatprep.subr.mxu0 0.0
  %245 = vmatpush1.msra.mxu0 0.0
  %246 = vmatprep.subr.mxu0 0.0
  %247 = vmatpush1.msra.mxu0 0.0
  %248 = vmatprep.subr.mxu0 0.0
  %249 = vmatpush1.msra.mxu0 0.0
  %250 = vmatprep.subr.mxu0 0.0
  %251 = vmatpush1.msra.mxu0 0.0
  %252 = vmatprep.subr.mxu0 0.0
  %253 = vmatpush1.msra.mxu0 0.0
  %254 = vmatprep.subr.mxu0 0.0
  %255 = vmatpush1.msra.mxu0 0.0
  %256 = vmatprep.subr.mxu0 0.0
  %257 = vmatpush1.msra.mxu0 0.0
  %258 = vmatprep.subr.mxu0 0.0
  %259 = vmatpush1.msra.mxu0 0.0
  %260 = vmatprep.subr.mxu0 0.0
  %261 = vmatpush1.msra.mxu0 0.0
  %262 = vmatprep.subr.mxu0 0.0
  %263 = vmatpush1.msra.mxu0 0.0
  %264 = vmatprep.subr.mxu0 0.0
  %265 = vmatpush1.msra.mxu0 0.0
  %266 = vmatprep.subr.mxu0 0.0
  %267 = vmatpush1.msra.mxu0 0.0
  %268 = vmatprep.subr.mxu0 0.0
  %269 = vmatpush1.msra.mxu0 0.0
  %270 = vmatprep.subr.mxu0 0.0
  %271 = vmatpush1.msra.mxu0 0.0
  %272 = vmatprep.subr.mxu0 0.0
  %273 = vmatpush1.msra.mxu0 0.0
  %274 = vmatprep.subr.mxu0 0.0
  %275 = vmatpush1.msra.mxu0 0.0
  %276 = vmatprep.subr.mxu0 0.0
  %277 = vmatpush1.msra.mxu0 0.0
  %278 = vmatprep.subr.mxu0 0.0
  %279 = vmatpush1.msra.mxu0 0.0
  %280 = vmatprep.subr.mxu0 0.0
  %281 = vmatpush1.msra.mxu0 0.0
  %282 = vmatprep.subr.mxu0 0.0
  %283 = vmatpush1.msra.mxu0 0.0
  %284 = vmatprep.subr.mxu0 0.0
  %285 = vmatpush1.msra.mxu0 0.0
  %286 = vmatprep.subr.mxu0 0.0
  %287 = vmatpush1.msra.mxu0 0.0
  %288 = vmatprep.subr.mxu0 0.0
  %289 = vmatpush1.msra.mxu0 0.0
  %290 = vmatprep.mubr.f32.mxu0 0.0
  %291 = vmatmul.mubr.f32.gmra.mrb[0].mxu0 %v224
  %v292 = vpop.f32.mrb[0].mxu0
  %v293 = vadd.f32 0.0, %v292
  %v294 = vpop.f32.mrb[0].mxu0
  %295 = vdwg.mxu0
  %296 = vst.msk [vmem:[%s3] sm:$0xff] %vm23, %v293
  %s297 = scalar_lea.vmem %s0, 8
  %v298 = vld [vmem:[%s297] sm:$0xff]
  %v300 = vsel %vm23, %v298, 0
  %302 = vmatprep.subr.mxu0 0.0
  %303 = vmatpush1.msra.mxu0 %v14
  %304 = vmatprep.subr.mxu0 0.0
  %305 = vmatpush1.msra.mxu0 %v15
  %306 = vmatprep.subr.mxu0 0.0
  %307 = vmatpush1.msra.mxu0 %v16
  %308 = vmatprep.subr.mxu0 0.0
  %309 = vmatpush1.msra.mxu0 %v17
  %310 = vmatprep.subr.mxu0 0.0
  %311 = vmatpush1.msra.mxu0 0.0
  %312 = vmatprep.subr.mxu0 0.0
  %313 = vmatpush1.msra.mxu0 0.0
  %314 = vmatprep.subr.mxu0 0.0
  %315 = vmatpush1.msra.mxu0 0.0
  %316 = vmatprep.subr.mxu0 0.0
  %317 = vmatpush1.msra.mxu0 0.0
  %318 = vmatprep.subr.mxu0 0.0
  %319 = vmatpush1.msra.mxu0 0.0
  %320 = vmatprep.subr.mxu0 0.0
  %321 = vmatpush1.msra.mxu0 0.0
  %322 = vmatprep.subr.mxu0 0.0
  %323 = vmatpush1.msra.mxu0 0.0
  %324 = vmatprep.subr.mxu0 0.0
  %325 = vmatpush1.msra.mxu0 0.0
  %326 = vmatprep.subr.mxu0 0.0
  %327 = vmatpush1.msra.mxu0 0.0
  %328 = vmatprep.subr.mxu0 0.0
  %329 = vmatpush1.msra.mxu0 0.0
  %330 = vmatprep.subr.mxu0 0.0
  %331 = vmatpush1.msra.mxu0 0.0
  %332 = vmatprep.subr.mxu0 0.0
  %333 = vmatpush1.msra.mxu0 0.0
  %334 = vmatprep.subr.mxu0 0.0
  %335 = vmatpush1.msra.mxu0 0.0
  %336 = vmatprep.subr.mxu0 0.0
  %337 = vmatpush1.msra.mxu0 0.0
  %338 = vmatprep.subr.mxu0 0.0
  %339 = vmatpush1.msra.mxu0 0.0
  %340 = vmatprep.subr.mxu0 0.0
  %341 = vmatpush1.msra.mxu0 0.0
  %342 = vmatprep.subr.mxu0 0.0
  %343 = vmatpush1.msra.mxu0 0.0
  %344 = vmatprep.subr.mxu0 0.0
  %345 = vmatpush1.msra.mxu0 0.0
  %346 = vmatprep.subr.mxu0 0.0
  %347 = vmatpush1.msra.mxu0 0.0
  %348 = vmatprep.subr.mxu0 0.0
  %349 = vmatpush1.msra.mxu0 0.0
  %350 = vmatprep.subr.mxu0 0.0
  %351 = vmatpush1.msra.mxu0 0.0
  %352 = vmatprep.subr.mxu0 0.0
  %353 = vmatpush1.msra.mxu0 0.0
  %354 = vmatprep.subr.mxu0 0.0
  %355 = vmatpush1.msra.mxu0 0.0
  %356 = vmatprep.subr.mxu0 0.0
  %357 = vmatpush1.msra.mxu0 0.0
  %358 = vmatprep.subr.mxu0 0.0
  %359 = vmatpush1.msra.mxu0 0.0
  %360 = vmatprep.subr.mxu0 0.0
  %361 = vmatpush1.msra.mxu0 0.0
  %362 = vmatprep.subr.mxu0 0.0
  %363 = vmatpush1.msra.mxu0 0.0
  %364 = vmatprep.subr.mxu0 0.0
  %365 = vmatpush1.msra.mxu0 0.0
  %366 = vmatprep.mubr.f32.mxu0 0.0
  %367 = vmatmul.mubr.f32.gmra.mrb[0].mxu0 %v300
  %v368 = vpop.f32.mrb[0].mxu0
  %v369 = vadd.f32 0.0, %v368
  %v370 = vpop.f32.mrb[0].mxu0
  %371 = vdwg.mxu0
  %v372 = vtanh.pop %v369
  %v374 = vsel %vm23, %v372, 0
  %376 = vmatprep.subr.mxu0 0.0
  %377 = vmatpush1.msra.mxu0 %v18
  %378 = vmatprep.subr.mxu0 0.0
  %379 = vmatpush1.msra.mxu0 %v19
  %380 = vmatprep.subr.mxu0 0.0
  %381 = vmatpush1.msra.mxu0 %v20
  %382 = vmatprep.subr.mxu0 0.0
  %383 = vmatpush1.msra.mxu0 %v21
  %384 = vmatprep.subr.mxu0 0.0
  %385 = vmatpush1.msra.mxu0 0.0
  %386 = vmatprep.subr.mxu0 0.0
  %387 = vmatpush1.msra.mxu0 0.0
  %388 = vmatprep.subr.mxu0 0.0
  %389 = vmatpush1.msra.mxu0 0.0
  %390 = vmatprep.subr.mxu0 0.0
  %391 = vmatpush1.msra.mxu0 0.0
  %392 = vmatprep.subr.mxu0 0.0
  %393 = vmatpush1.msra.mxu0 0.0
  %394 = vmatprep.subr.mxu0 0.0
  %395 = vmatpush1.msra.mxu0 0.0
  %396 = vmatprep.subr.mxu0 0.0
  %397 = vmatpush1.msra.mxu0 0.0
  %398 = vmatprep.subr.mxu0 0.0
  %399 = vmatpush1.msra.mxu0 0.0
  %400 = vmatprep.subr.mxu0 0.0
  %401 = vmatpush1.msra.mxu0 0.0
  %402 = vmatprep.subr.mxu0 0.0
  %403 = vmatpush1.msra.mxu0 0.0
  %404 = vmatprep.subr.mxu0 0.0
  %405 = vmatpush1.msra.mxu0 0.0
  %406 = vmatprep.subr.mxu0 0.0
  %407 = vmatpush1.msra.mxu0 0.0
  %408 = vmatprep.subr.mxu0 0.0
  %409 = vmatpush1.msra.mxu0 0.0
  %410 = vmatprep.subr.mxu0 0.0
  %411 = vmatpush1.msra.mxu0 0.0
  %412 = vmatprep.subr.mxu0 0.0
  %413 = vmatpush1.msra.mxu0 0.0
  %414 = vmatprep.subr.mxu0 0.0
  %415 = vmatpush1.msra.mxu0 0.0
  %416 = vmatprep.subr.mxu0 0.0
  %417 = vmatpush1.msra.mxu0 0.0
  %418 = vmatprep.subr.mxu0 0.0
  %419 = vmatpush1.msra.mxu0 0.0
  %420 = vmatprep.subr.mxu0 0.0
  %421 = vmatpush1.msra.mxu0 0.0
  %422 = vmatprep.subr.mxu0 0.0
  %423 = vmatpush1.msra.mxu0 0.0
  %424 = vmatprep.subr.mxu0 0.0
  %425 = vmatpush1.msra.mxu0 0.0
  %426 = vmatprep.subr.mxu0 0.0
  %427 = vmatpush1.msra.mxu0 0.0
  %428 = vmatprep.subr.mxu0 0.0
  %429 = vmatpush1.msra.mxu0 0.0
  %430 = vmatprep.subr.mxu0 0.0
  %431 = vmatpush1.msra.mxu0 0.0
  %432 = vmatprep.subr.mxu0 0.0
  %433 = vmatpush1.msra.mxu0 0.0
  %434 = vmatprep.subr.mxu0 0.0
  %435 = vmatpush1.msra.mxu0 0.0
  %436 = vmatprep.subr.mxu0 0.0
  %437 = vmatpush1.msra.mxu0 0.0
  %438 = vmatprep.subr.mxu0 0.0
  %439 = vmatpush1.msra.mxu0 0.0
  %440 = vmatprep.mubr.f32.mxu0 0.0
  %441 = vmatmul.mubr.f32.gmra.mrb[0].mxu0 %v374
  %v442 = vpop.f32.mrb[0].mxu0
  %v443 = vadd.f32 0.0, %v442
  %v444 = vpop.f32.mrb[0].mxu0
  %445 = vdwg.mxu0
  %v446 = vsel %vm171, %v443, -inf
  %v447 = vrot.slane %v446, 4
  %v448 = vmax.f32 %v446, %v447
  %v449 = vrot.slane %v448, 2
  %v450 = vmax.f32 %v448, %v449
  %v451 = vrot.slane %v450, 1
  %v452 = vmax.f32 %v450, %v451
  %v453 = vsub.f32 %v443, %v452
  %v454 = vmul.f32 %v453, 1.442695
  %v455 = vpow.pop %v454
  %v456 = vsel %vm171, %v455, 0.0
  %v457 = vrot.slane %v456, 4
  %v458 = vadd.f32 %v456, %v457
  %v459 = vrot.slane %v458, 2
  %v460 = vadd.f32 %v458, %v459
  %v461 = vrot.slane %v460, 1
  %v462 = vadd.f32 %v460, %v461
  %v463 = vrcp.pop %v462
  %v464 = vmul.f32 %v455, %v463
  %465 = vxpose.xlu0.b32.start [1/16] %v464, 128
  %466 = vxpose.xlu0.b32.cont [2/16] 0.0, 128
  %467 = vxpose.xlu0.b32.cont [3/16] 0.0, 128
  %468 = vxpose.xlu0.b32.cont [4/16] 0.0, 128
  %469 = vxpose.xlu0.b32.cont [5/16] 0.0, 128
  %470 = vxpose.xlu0.b32.cont [6/16] 0.0, 128
  %471 = vxpose.xlu0.b32.cont [7/16] 0.0, 128
  %472 = vxpose.xlu0.b32.cont [8/16] 0.0, 128
  %473 = vxpose.xlu0.b32.cont [9/16] 0.0, 128
  %474 = vxpose.xlu0.b32.cont [10/16] 0.0, 128
  %475 = vxpose.xlu0.b32.cont [11/16] 0.0, 128
  %476 = vxpose.xlu0.b32.cont [12/16] 0.0, 128
  %477 = vxpose.xlu0.b32.cont [13/16] 0.0, 128
  %478 = vxpose.xlu0.b32.cont [14/16] 0.0, 128
  %479 = vxpose.xlu0.b32.cont [15/16] 0.0, 128
  %480 = vxpose.xlu0.b32.end [16/16] 0.0, 128
  %v481 = vpop.trf.xlu0
  %v482 = vpop.trf.xlu0
  %v483 = vpop.trf.xlu0
  %v484 = vpop.trf.xlu0
  %v485 = vpop.trf.xlu0
  %v486 = vpop.trf.xlu0
  %v487 = vpop.trf.xlu0
  %v488 = vpop.trf.xlu0
  %v489 = vpop.trf.xlu0
  %v490 = vpop.trf.xlu0
  %v491 = vpop.trf.xlu0
  %v492 = vpop.trf.xlu0
  %v493 = vpop.trf.xlu0
  %v494 = vpop.trf.xlu0
  %v495 = vpop.trf.xlu0
  %v496 = vpop.trf.xlu0
  %v498 = vsel %vm171, %v481, 0
  %500 = vmatprep.subr.mxu0 0.0
  %501 = vmatpush1.msra.mxu0 %v298
  %502 = vmatprep.subr.mxu0 0.0
  %503 = vmatpush1.msra.mxu0 0.0
  %504 = vmatprep.subr.mxu0 0.0
  %505 = vmatpush1.msra.mxu0 0.0
  %506 = vmatprep.subr.mxu0 0.0
  %507 = vmatpush1.msra.mxu0 0.0
  %508 = vmatprep.subr.mxu0 0.0
  %509 = vmatpush1.msra.mxu0 0.0
  %510 = vmatprep.subr.mxu0 0.0
  %511 = vmatpush1.msra.mxu0 0.0
  %512 = vmatprep.subr.mxu0 0.0
  %513 = vmatpush1.msra.mxu0 0.0
  %514 = vmatprep.subr.mxu0 0.0
  %515 = vmatpush1.msra.mxu0 0.0
  %516 = vmatprep.subr.mxu0 0.0
  %517 = vmatpush1.msra.mxu0 0.0
  %518 = vmatprep.subr.mxu0 0.0
  %519 = vmatpush1.msra.mxu0 0.0
  %520 = vmatprep.subr.mxu0 0.0
  %521 = vmatpush1.msra.mxu0 0.0
  %522 = vmatprep.subr.mxu0 0.0
  %523 = vmatpush1.msra.mxu0 0.0
  %524 = vmatprep.subr.mxu0 0.0
  %525 = vmatpush1.msra.mxu0 0.0
  %526 = vmatprep.subr.mxu0 0.0
  %527 = vmatpush1.msra.mxu0 0.0
  %528 = vmatprep.subr.mxu0 0.0
  %529 = vmatpush1.msra.mxu0 0.0
  %530 = vmatprep.subr.mxu0 0.0
  %531 = vmatpush1.msra.mxu0 0.0
  %532 = vmatprep.subr.mxu0 0.0
  %533 = vmatpush1.msra.mxu0 0.0
  %534 = vmatprep.subr.mxu0 0.0
  %535 = vmatpush1.msra.mxu0 0.0
  %536 = vmatprep.subr.mxu0 0.0
  %537 = vmatpush1.msra.mxu0 0.0
  %538 = vmatprep.subr.mxu0 0.0
  %539 = vmatpush1.msra.mxu0 0.0
  %540 = vmatprep.subr.mxu0 0.0
  %541 = vmatpush1.msra.mxu0 0.0
  %542 = vmatprep.subr.mxu0 0.0
  %543 = vmatpush1.msra.mxu0 0.0
  %544 = vmatprep.subr.mxu0 0.0
  %545 = vmatpush1.msra.mxu0 0.0
  %546 = vmatprep.subr.mxu0 0.0
  %547 = vmatpush1.msra.mxu0 0.0
  %548 = vmatprep.subr.mxu0 0.0
  %549 = vmatpush1.msra.mxu0 0.0
  %550 = vmatprep.subr.mxu0 0.0
  %551 = vmatpush1.msra.mxu0 0.0
  %552 = vmatprep.subr.mxu0 0.0
  %553 = vmatpush1.msra.mxu0 0.0
  %554 = vmatprep.subr.mxu0 0.0
  %555 = vmatpush1.msra.mxu0 0.0
  %556 = vmatprep.subr.mxu0 0.0
  %557 = vmatpush1.msra.mxu0 0.0
  %558 = vmatprep.subr.mxu0 0.0
  %559 = vmatpush1.msra.mxu0 0.0
  %560 = vmatprep.subr.mxu0 0.0
  %561 = vmatpush1.msra.mxu0 0.0
  %562 = vmatprep.subr.mxu0 0.0
  %563 = vmatpush1.msra.mxu0 0.0
  %564 = vmatprep.mubr.f32.mxu0 0.0
  %565 = vmatmul.mubr.f32.gmra.mrb[0].mxu0 %v498
  %v566 = vpop.f32.mrb[0].mxu0
  %v567 = vadd.f32 0.0, %v566
  %v568 = vpop.f32.mrb[0].mxu0
  %569 = vdwg.mxu0
  %s570 = scalar_lea.vmem %s3, 8
  %571 = vst.msk [vmem:[%s570] sm:$0xff] %vm23, %v567
  // Predicated region
  $region14: #{combined_forward.10} parent=0 // pred_check
    _
  $region15: #{combined_forward.10} parent=0 // pred_check_branch
    %573 = sbr.rel (0) target = $region17
  $region16: #{combined_forward.10} parent=0 // pred_region
    _
  $region17: #{combined_forward.10} parent=0 // pred_fallthru
    _
  // Predicated region
  $region18: #{combined_forward.10} parent=0 // pred_check
    _
  $region19: #{combined_forward.10} parent=0 // pred_check_branch
    %575 = sbr.rel (0) target = $region21
  $region20: #{combined_forward.10} parent=0 // pred_region
    _
  $region21: #{combined_forward.10} parent=0 // pred_fallthru
    _

// kernel: combined_forward.9
$region0: #{combined_forward.9}
  #allocation0 [shape = 'u32[]', space=smem, size = 0x4, offset = 0x4, fixed_abs, tag = 'smem constant byte address 0x4 - core index']
  #allocation1 [shape = 'u32[144,128]{1,0:T(1,128)}', space=vmem, size = 0x12000, scoped, tag = 'internal scratch']
  #allocation2 [shape = 'f32[4,16]{1,0:T(4,128)}', space=vmem, size = 0x800, scoped, tag = 'scratch operand']
  #allocation3 [shape = 'f32[4,16]{1,0:T(4,128)}', space=vmem, size = 0x800, scoped, tag = 'scratch operand']
  %s0 = inlined_call_operand.vmem [shape: f32[8,2,32], index: 0, kind: input, shape index: {}]
  %s1 = inlined_call_operand.vmem [shape: f32[32,128], index: 1, kind: input, shape index: {}]
  %s2 = inlined_call_operand.vmem [shape: f32[16,128], index: 2, kind: input, shape index: {}]
  %s3 = inlined_call_operand.vmem [shape: f32[1,128], index: 3, kind: input, shape index: {}]
  %s4 = inlined_call_operand.vmem [shape: f32[8,2,16], index: 4, kind: output, shape index: {0}]
  %s5 = inlined_call_operand.vmem [shape: f32[8,2,16], index: 5, kind: output, shape index: {1}]
  %6 = xla_tuple %s4, %s5
  %s7 = sld [smem:[#allocation0]]
  $region41: #{combined_forward.9} parent=0
    _
  %s9 = ssub.s32 1, %s7
  %s10 = scalar_select 0, %s9, %s7
  // Predicated region
  $region2: #{combined_forward.9} parent=0 // pred_check
    _
  $region3: #{combined_forward.9} parent=0 // pred_check_branch
    %12 = sbr.rel (0) target = $region5
  $region4: #{combined_forward.9} parent=0 // pred_region
    _
  $region5: #{combined_forward.9} parent=0 // pred_fallthru
    _
  // Predicated region
  $region6: #{combined_forward.9} parent=0 // pred_check
    _
  $region7: #{combined_forward.9} parent=0 // pred_check_branch
    %14 = sbr.rel (0) target = $region9
  $region8: #{combined_forward.9} parent=0 // pred_region
    _
  $region9: #{combined_forward.9} parent=0 // pred_fallthru
    _
  // Predicated region
  $region10: #{combined_forward.9} parent=0 // pred_check
    _
  $region11: #{combined_forward.9} parent=0 // pred_check_branch
    %16 = sbr.rel (0) target = $region13
  $region12: #{combined_forward.9} parent=0 // pred_region
    _
  $region13: #{combined_forward.9} parent=0 // pred_fallthru
    _
  // Predicated region
  $region14: #{combined_forward.9} parent=0 // pred_check
    _
  $region15: #{combined_forward.9} parent=0 // pred_check_branch
    %18 = sbr.rel (0) target = $region17
  $region16: #{combined_forward.9} parent=0 // pred_region
    _
  $region17: #{combined_forward.9} parent=0 // pred_fallthru
    _
  %v19 = vld [vmem:[%s1] sm:$0xff]
  %v20 = vld [vmem:[%s1 + $0x8] sm:$0xff]
  %v21 = vld [vmem:[%s1 + $0x10] sm:$0xff]
  %v22 = vld [vmem:[%s1 + $0x18] sm:$0xff]
  %v23 = vld [vmem:[%s2] sm:$0xff]
  %v24 = vld [vmem:[%s2 + $0x8] sm:$0xff]
  %v25 = vld [vmem:[%s3] sm:$0x1]
  %vm26 = vcmask 125952
  %27 = vst.msk [vmem:[#allocation2] sm:$0xf] %vm26, 0.0
  %28 = vst.msk [vmem:[#allocation3] sm:$0xf] %vm26, 0.0
  loop: start=0, step=1, limit=8
  $region18: #{combined_forward.9} parent=0 // loop_pre_header
    _
  $region19: #{combined_forward.9} parent=0 // loop_header
    %s30 = sphi 0, %s34
    %p31 = scmp.ge.s32.totalorder %s30, 8
  $region20: #{combined_forward.9} parent=0 // loop_header_branch
    %33 = sbr.rel (%p31) target = $region24
  $region21: #{combined_forward.9} parent=0 // loop_body
    %s35 = ssub.s32 7, %s30
    %s36 = smul.u32 %s30, 2
    %s37 = scalar_lea.vmem %s0, %s36
    %v38 = vld [vmem:[%s37] sm:$0x3]
    %s39 = smul.u32 %s35, 2
    %s40 = scalar_lea.vmem %s0, %s39
    %v41 = vld [vmem:[%s40] sm:$0x3]
    %v43 = vrot.slane %v41, 6
    %vm45 = vcmask 1041408
    %v46 = vsel %vm45, %v38, %v43
    %v47 = vld [vmem:[#allocation2] sm:$0xf]
    %vm48 = vcmask 130048
    %v50 = vsel %vm48, %v47, 0
    %52 = vmatprep.subr.mxu0 0.0
    %53 = vmatpush1.msra.mxu0 %v23
    %54 = vmatprep.subr.mxu0 0.0
    %55 = vmatpush1.msra.mxu0 %v24
    %56 = vmatprep.subr.mxu0 0.0
    %57 = vmatpush1.msra.mxu0 0.0
    %58 = vmatprep.subr.mxu0 0.0
    %59 = vmatpush1.msra.mxu0 0.0
    %60 = vmatprep.subr.mxu0 0.0
    %61 = vmatpush1.msra.mxu0 0.0
    %62 = vmatprep.subr.mxu0 0.0
    %63 = vmatpush1.msra.mxu0 0.0
    %64 = vmatprep.subr.mxu0 0.0
    %65 = vmatpush1.msra.mxu0 0.0
    %66 = vmatprep.subr.mxu0 0.0
    %67 = vmatpush1.msra.mxu0 0.0
    %68 = vmatprep.subr.mxu0 0.0
    %69 = vmatpush1.msra.mxu0 0.0
    %70 = vmatprep.subr.mxu0 0.0
    %71 = vmatpush1.msra.mxu0 0.0
    %72 = vmatprep.subr.mxu0 0.0
    %73 = vmatpush1.msra.mxu0 0.0
    %74 = vmatprep.subr.mxu0 0.0
    %75 = vmatpush1.msra.mxu0 0.0
    %76 = vmatprep.subr.mxu0 0.0
    %77 = vmatpush1.msra.mxu0 0.0
    %78 = vmatprep.subr.mxu0 0.0
    %79 = vmatpush1.msra.mxu0 0.0
    %80 = vmatprep.subr.mxu0 0.0
    %81 = vmatpush1.msra.mxu0 0.0
    %82 = vmatprep.subr.mxu0 0.0
    %83 = vmatpush1.msra.mxu0 0.0
    %84 = vmatprep.subr.mxu0 0.0
    %85 = vmatpush1.msra.mxu0 0.0
    %86 = vmatprep.subr.mxu0 0.0
    %87 = vmatpush1.msra.mxu0 0.0
    %88 = vmatprep.subr.mxu0 0.0
    %89 = vmatpush1.msra.mxu0 0.0
    %90 = vmatprep.subr.mxu0 0.0
    %91 = vmatpush1.msra.mxu0 0.0
    %92 = vmatprep.subr.mxu0 0.0
    %93 = vmatpush1.msra.mxu0 0.0
    %94 = vmatprep.subr.mxu0 0.0
    %95 = vmatpush1.msra.mxu0 0.0
    %96 = vmatprep.subr.mxu0 0.0
    %97 = vmatpush1.msra.mxu0 0.0
    %98 = vmatprep.subr.mxu0 0.0
    %99 = vmatpush1.msra.mxu0 0.0
    %100 = vmatprep.subr.mxu0 0.0
    %101 = vmatpush1.msra.mxu0 0.0
    %102 = vmatprep.subr.mxu0 0.0
    %103 = vmatpush1.msra.mxu0 0.0
    %104 = vmatprep.subr.mxu0 0.0
    %105 = vmatpush1.msra.mxu0 0.0
    %106 = vmatprep.subr.mxu0 0.0
    %107 = vmatpush1.msra.mxu0 0.0
    %108 = vmatprep.subr.mxu0 0.0
    %109 = vmatpush1.msra.mxu0 0.0
    %110 = vmatprep.subr.mxu0 0.0
    %111 = vmatpush1.msra.mxu0 0.0
    %112 = vmatprep.subr.mxu0 0.0
    %113 = vmatpush1.msra.mxu0 0.0
    %114 = vmatprep.subr.mxu0 0.0
    %115 = vmatpush1.msra.mxu0 0.0
    %116 = vmatprep.mubr.f32.mxu0 0.0
    %117 = vmatmul.mubr.f32.gmra.mrb[0].mxu0 %v50
    %v118 = vpop.f32.mrb[0].mxu0
    %v119 = vadd.f32 0.0, %v118
    %v120 = vpop.f32.mrb[0].mxu0
    %121 = vdwg.mxu0
    %vm122 = vcmask 261120
    %v124 = vsel %vm122, %v46, 0
    %126 = vmatprep.subr.mxu0 0.0
    %127 = vmatpush1.msra.mxu0 %v19
    %128 = vmatprep.subr.mxu0 0.0
    %129 = vmatpush1.msra.mxu0 %v20
    %130 = vmatprep.subr.mxu0 0.0
    %131 = vmatpush1.msra.mxu0 %v21
    %132 = vmatprep.subr.mxu0 0.0
    %133 = vmatpush1.msra.mxu0 %v22
    %134 = vmatprep.subr.mxu0 0.0
    %135 = vmatpush1.msra.mxu0 0.0
    %136 = vmatprep.subr.mxu0 0.0
    %137 = vmatpush1.msra.mxu0 0.0
    %138 = vmatprep.subr.mxu0 0.0
    %139 = vmatpush1.msra.mxu0 0.0
    %140 = vmatprep.subr.mxu0 0.0
    %141 = vmatpush1.msra.mxu0 0.0
    %142 = vmatprep.subr.mxu0 0.0
    %143 = vmatpush1.msra.mxu0 0.0
    %144 = vmatprep.subr.mxu0 0.0
    %145 = vmatpush1.msra.mxu0 0.0
    %146 = vmatprep.subr.mxu0 0.0
    %147 = vmatpush1.msra.mxu0 0.0
    %148 = vmatprep.subr.mxu0 0.0
    %149 = vmatpush1.msra.mxu0 0.0
    %150 = vmatprep.subr.mxu0 0.0
    %151 = vmatpush1.msra.mxu0 0.0
    %152 = vmatprep.subr.mxu0 0.0
    %153 = vmatpush1.msra.mxu0 0.0
    %154 = vmatprep.subr.mxu0 0.0
    %155 = vmatpush1.msra.mxu0 0.0
    %156 = vmatprep.subr.mxu0 0.0
    %157 = vmatpush1.msra.mxu0 0.0
    %158 = vmatprep.subr.mxu0 0.0
    %159 = vmatpush1.msra.mxu0 0.0
    %160 = vmatprep.subr.mxu0 0.0
    %161 = vmatpush1.msra.mxu0 0.0
    %162 = vmatprep.subr.mxu0 0.0
    %163 = vmatpush1.msra.mxu0 0.0
    %164 = vmatprep.subr.mxu0 0.0
    %165 = vmatpush1.msra.mxu0 0.0
    %166 = vmatprep.subr.mxu0 0.0
    %167 = vmatpush1.msra.mxu0 0.0
    %168 = vmatprep.subr.mxu0 0.0
    %169 = vmatpush1.msra.mxu0 0.0
    %170 = vmatprep.subr.mxu0 0.0
    %171 = vmatpush1.msra.mxu0 0.0
    %172 = vmatprep.subr.mxu0 0.0
    %173 = vmatpush1.msra.mxu0 0.0
    %174 = vmatprep.subr.mxu0 0.0
    %175 = vmatpush1.msra.mxu0 0.0
    %176 = vmatprep.subr.mxu0 0.0
    %177 = vmatpush1.msra.mxu0 0.0
    %178 = vmatprep.subr.mxu0 0.0
    %179 = vmatpush1.msra.mxu0 0.0
    %180 = vmatprep.subr.mxu0 0.0
    %181 = vmatpush1.msra.mxu0 0.0
    %182 = vmatprep.subr.mxu0 0.0
    %183 = vmatpush1.msra.mxu0 0.0
    %184 = vmatprep.subr.mxu0 0.0
    %185 = vmatpush1.msra.mxu0 0.0
    %186 = vmatprep.subr.mxu0 0.0
    %187 = vmatpush1.msra.mxu0 0.0
    %188 = vmatprep.subr.mxu0 0.0
    %189 = vmatpush1.msra.mxu0 0.0
    %190 = vmatprep.mubr.f32.mxu0 0.0
    %191 = vmatmul.mubr.f32.gmra.mrb[0].mxu0 %v124
    %v192 = vpop.f32.mrb[0].mxu0
    %v193 = vadd.f32 %v119, %v192
    %v194 = vpop.f32.mrb[0].mxu0
    %195 = vdwg.mxu0
    %v197 = vlaneseq
    %v198 = vshrl.u32 %v197, 7
    %v199 = vsub.s32 0, %v198
    %v200 = vrot.slane %v25, %v199
    %v202 = vadd.f32 %v193, %v200
    %204 = vrot.lane.b32.xlu0 %v202, 64
    %v205 = vpop.permute.xlu0 %204
    %v207 = vsel %vm45, %v202, %v205
    %v208 = vxor.u32 %v207, 2147483648
    %v209 = vmul.f32 %v208, 1.442695
    %v210 = vpow.pop %v209
    %v211 = vadd.f32 %v210, 1.0
    %v212 = vrcp.pop %v211
    %v213 = vmul.f32 1.0, %v212
    %v214 = vtanh.pop %v207
    %v215 = vld [vmem:[#allocation3] sm:$0xf]
    %217 = vrot.lane.b32.xlu0 %v215, 16
    %v218 = vpop.permute.xlu0 %217
    %v220 = vmul.f32 %v213, %v218
    %222 = vrot.lane.b32.xlu0 %v214, 96
    %v223 = vpop.permute.xlu0 %222
    %v225 = vmul.f32 %v213, %v223
    %227 = vrot.lane.b32.xlu0 %v225, 16
    %v228 = vpop.permute.xlu0 %227
    %v230 = vadd.f32 %v220, %v228
    %v231 = vtanh.pop %v230
    %233 = vrot.lane.b32.xlu0 %v231, 32
    %v234 = vpop.permute.xlu0 %233
    %v236 = vmul.f32 %v213, %v234
    %238 = vrot.lane.b32.xlu0 %v236, 80
    %v239 = vpop.permute.xlu0 %238
    %241 = vst.msk [vmem:[#allocation2] sm:$0xf] %vm26, %v239
    %243 = vrot.lane.b32.xlu0 %v230, 112
    %v244 = vpop.permute.xlu0 %243
    %246 = vst.msk [vmem:[#allocation3] sm:$0xf] %vm26, %v244
    %s247 = scalar_lea.vmem %s4, %s36
    %vm248 = vcmask 123904
    %249 = vst.msk [vmem:[%s247] sm:$0x3] %vm248, %v239
    %s250 = scalar_lea.vmem %s5, %s39
    %vm251 = vcmask 125954
    %252 = vst.msk [vmem:[%s250 - $0x2] sm:$0xc] %vm251, %v239
  $region22: #{combined_forward.9} parent=0 // loop_footer
    %s34 = sadd.s32 1, %s30
  $region23: #{combined_forward.9} parent=0 // loop_footer_branch
    %29 = sbr.rel target = $region19
  $region24: #{combined_forward.9} parent=0 // loop_exit
    _
  // Predicated region
  $region25: #{combined_forward.9} parent=0 // pred_check
    _
  $region26: #{combined_forward.9} parent=0 // pred_check_branch
    %254 = sbr.rel (0) target = $region28
  $region27: #{combined_forward.9} parent=0 // pred_region
    _
  $region28: #{combined_forward.9} parent=0 // pred_fallthru
    _
  // Predicated region
  $region29: #{combined_forward.9} parent=0 // pred_check
    _
  $region30: #{combined_forward.9} parent=0 // pred_check_branch
    %256 = sbr.rel (0) target = $region32
  $region31: #{combined_forward.9} parent=0 // pred_region
    _
  $region32: #{combined_forward.9} parent=0 // pred_fallthru
    _
  // Predicated region
  $region33: #{combined_forward.9} parent=0 // pred_check
    _
  $region34: #{combined_forward.9} parent=0 // pred_check_branch
    %258 = sbr.rel (0) target = $region36
  $region35: #{combined_forward.9} parent=0 // pred_region
    _
  $region36: #{combined_forward.9} parent=0 // pred_fallthru
    _
  // Predicated region
  $region37: #{combined_forward.9} parent=0 // pred_check
    _
  $region38: #{combined_forward.9} parent=0 // pred_check_branch
    %260 = sbr.rel (0) target = $region40
  $region39: #{combined_forward.9} parent=0 // pred_region
    _
  $region40: #{combined_forward.9} parent=0 // pred_fallthru
    _

// kernel: combined_forward.15
$region0: #{combined_forward.15}
  #allocation0 [shape = 'u32[]', space=smem, size = 0x4, offset = 0x4, fixed_abs, tag = 'smem constant byte address 0x4 - core index']
  #allocation1 [shape = 'u32[144,128]{1,0:T(1,128)}', space=vmem, size = 0x12000, scoped, tag = 'internal scratch']
  %s0 = inlined_call_operand.vmem [shape: f32[2,256], index: 0, kind: input, shape index: {}]
  %s1 = inlined_call_operand.vmem [shape: f32[2,256], index: 1, kind: input, shape index: {}]
  %s2 = inlined_call_operand.vmem [shape: f32[512,128], index: 2, kind: input, shape index: {}]
  %s3 = inlined_call_operand.vmem [shape: f32[1,128], index: 3, kind: input, shape index: {}]
  %s4 = inlined_call_operand.vmem [shape: f32[128,4], index: 4, kind: input, shape index: {}]
  %s5 = inlined_call_operand.vmem [shape: f32[1,4], index: 5, kind: input, shape index: {}]
  %s6 = inlined_call_operand.hbm [shape: f32[2,4], index: 6, kind: output, shape index: {}]
  %s7 = sld [smem:[#allocation0]]
  $region34: #{combined_forward.15} parent=0
    _
  %s9 = ssub.s32 1, %s7
  %s10 = scalar_select 0, %s9, %s7
  $region1: #{combined_forward.15} parent=0
    #allocation2 [shape = 'u8[1024]{0}', space=vmem, size = 0x400, scoped, tag = 'output window, operand 0, single buffered']
    #allocation3 [shape = 's32[1]{0}', space=sflag, size = 0x4, scoped, tag = 'scoped memory for combined_forward.15']
    %11 = vsyncpa [#allocation3], 0
    // Predicated region
    $region2: #{combined_forward.15} parent=1 // pred_check
      _
    $region3: #{combined_forward.15} parent=1 // pred_check_branch
      %13 = sbr.rel (0) target = $region5
    $region4: #{combined_forward.15} parent=1 // pred_region
      _
    $region5: #{combined_forward.15} parent=1 // pred_fallthru
      _
    // Predicated region
    $region6: #{combined_forward.15} parent=1 // pred_check
      _
    $region7: #{combined_forward.15} parent=1 // pred_check_branch
      %15 = sbr.rel (0) target = $region9
    $region8: #{combined_forward.15} parent=1 // pred_region
      _
    $region9: #{combined_forward.15} parent=1 // pred_fallthru
      _
    // Predicated region
    $region10: #{combined_forward.15} parent=1 // pred_check
      _
    $region11: #{combined_forward.15} parent=1 // pred_check_branch
      %17 = sbr.rel (0) target = $region13
    $region12: #{combined_forward.15} parent=1 // pred_region
      _
    $region13: #{combined_forward.15} parent=1 // pred_fallthru
      _
    // Predicated region
    $region14: #{combined_forward.15} parent=1 // pred_check
      _
    $region15: #{combined_forward.15} parent=1 // pred_check_branch
      %19 = sbr.rel (0) target = $region17
    $region16: #{combined_forward.15} parent=1 // pred_region
      _
    $region17: #{combined_forward.15} parent=1 // pred_fallthru
      _
    // Predicated region
    $region18: #{combined_forward.15} parent=1 // pred_check
      _
    $region19: #{combined_forward.15} parent=1 // pred_check_branch
      %21 = sbr.rel (0) target = $region21
    $region20: #{combined_forward.15} parent=1 // pred_region
      _
    $region21: #{combined_forward.15} parent=1 // pred_fallthru
      _
    // Predicated region
    $region22: #{combined_forward.15} parent=1 // pred_check
      _
    $region23: #{combined_forward.15} parent=1 // pred_check_branch
      %23 = sbr.rel (0) target = $region25
    $region24: #{combined_forward.15} parent=1 // pred_region
      _
    $region25: #{combined_forward.15} parent=1 // pred_fallthru
      _
    %v24 = vld [vmem:[%s0] sm:$0xf]
    %v25 = vld [vmem:[%s2] sm:$0xff]
    %v26 = vld [vmem:[%s2 + $0x8] sm:$0xff]
    %v27 = vld [vmem:[%s2 + $0x10] sm:$0xff]
    %v28 = vld [vmem:[%s2 + $0x18] sm:$0xff]
    %v29 = vld [vmem:[%s2 + $0x20] sm:$0xff]
    %v30 = vld [vmem:[%s2 + $0x28] sm:$0xff]
    %v31 = vld [vmem:[%s2 + $0x30] sm:$0xff]
    %v32 = vld [vmem:[%s2 + $0x38] sm:$0xff]
    %v33 = vld [vmem:[%s2 + $0x40] sm:$0xff]
    %v34 = vld [vmem:[%s2 + $0x48] sm:$0xff]
    %v35 = vld [vmem:[%s2 + $0x50] sm:$0xff]
    %v36 = vld [vmem:[%s2 + $0x58] sm:$0xff]
    %v37 = vld [vmem:[%s2 + $0x60] sm:$0xff]
    %v38 = vld [vmem:[%s2 + $0x68] sm:$0xff]
    %v39 = vld [vmem:[%s2 + $0x70] sm:$0xff]
    %v40 = vld [vmem:[%s2 + $0x78] sm:$0xff]
    %v41 = vld [vmem:[%s2 + $0x80] sm:$0xff]
    %v42 = vld [vmem:[%s2 + $0x88] sm:$0xff]
    %v43 = vld [vmem:[%s2 + $0x90] sm:$0xff]
    %v44 = vld [vmem:[%s2 + $0x98] sm:$0xff]
    %v45 = vld [vmem:[%s2 + $0xa0] sm:$0xff]
    %v46 = vld [vmem:[%s2 + $0xa8] sm:$0xff]
    %v47 = vld [vmem:[%s2 + $0xb0] sm:$0xff]
    %v48 = vld [vmem:[%s2 + $0xb8] sm:$0xff]
    %v49 = vld [vmem:[%s2 + $0xc0] sm:$0xff]
    %v50 = vld [vmem:[%s2 + $0xc8] sm:$0xff]
    %v51 = vld [vmem:[%s2 + $0xd0] sm:$0xff]
    %v52 = vld [vmem:[%s2 + $0xd8] sm:$0xff]
    %v53 = vld [vmem:[%s2 + $0xe0] sm:$0xff]
    %v54 = vld [vmem:[%s2 + $0xe8] sm:$0xff]
    %v55 = vld [vmem:[%s2 + $0xf0] sm:$0xff]
    %v56 = vld [vmem:[%s2 + $0xf8] sm:$0xff]
    %v57 = vld [vmem:[%s1] sm:$0xf]
    %v58 = vld [vmem:[%s2 + $0x100] sm:$0xff]
    %v59 = vld [vmem:[%s2 + $0x108] sm:$0xff]
    %v60 = vld [vmem:[%s2 + $0x110] sm:$0xff]
    %v61 = vld [vmem:[%s2 + $0x118] sm:$0xff]
    %v62 = vld [vmem:[%s2 + $0x120] sm:$0xff]
    %v63 = vld [vmem:[%s2 + $0x128] sm:$0xff]
    %v64 = vld [vmem:[%s2 + $0x130] sm:$0xff]
    %v65 = vld [vmem:[%s2 + $0x138] sm:$0xff]
    %v66 = vld [vmem:[%s2 + $0x140] sm:$0xff]
    %v67 = vld [vmem:[%s2 + $0x148] sm:$0xff]
    %v68 = vld [vmem:[%s2 + $0x150] sm:$0xff]
    %v69 = vld [vmem:[%s2 + $0x158] sm:$0xff]
    %v70 = vld [vmem:[%s2 + $0x160] sm:$0xff]
    %v71 = vld [vmem:[%s2 + $0x168] sm:$0xff]
    %v72 = vld [vmem:[%s2 + $0x170] sm:$0xff]
    %v73 = vld [vmem:[%s2 + $0x178] sm:$0xff]
    %v74 = vld [vmem:[%s2 + $0x180] sm:$0xff]
    %v75 = vld [vmem:[%s2 + $0x188] sm:$0xff]
    %v76 = vld [vmem:[%s2 + $0x190] sm:$0xff]
    %v77 = vld [vmem:[%s2 + $0x198] sm:$0xff]
    %v78 = vld [vmem:[%s2 + $0x1a0] sm:$0xff]
    %v79 = vld [vmem:[%s2 + $0x1a8] sm:$0xff]
    %v80 = vld [vmem:[%s2 + $0x1b0] sm:$0xff]
    %v81 = vld [vmem:[%s2 + $0x1b8] sm:$0xff]
    %v82 = vld [vmem:[%s2 + $0x1c0] sm:$0xff]
    %v83 = vld [vmem:[%s2 + $0x1c8] sm:$0xff]
    %v84 = vld [vmem:[%s2 + $0x1d0] sm:$0xff]
    %v85 = vld [vmem:[%s2 + $0x1d8] sm:$0xff]
    %v86 = vld [vmem:[%s2 + $0x1e0] sm:$0xff]
    %v87 = vld [vmem:[%s2 + $0x1e8] sm:$0xff]
    %v88 = vld [vmem:[%s2 + $0x1f0] sm:$0xff]
    %v89 = vld [vmem:[%s2 + $0x1f8] sm:$0xff]
    %v92 = vunpack.c.l.s4 1983009808
    %v93 = vunpack.c.0.s8 %v92
    %v94 = vlaneseq
    %v95 = vshrl.u32 %v94, 7
    %v96 = vsub.s32 %v93, %v95
    %v97 = vrot.slane %v57, %v96
    %v98 = vcombine.high %v97, %v97
    %101 = vmatprep.subr.mxu0 0.0
    %102 = vmatpush1.msra.mxu0 %v58
    %103 = vmatprep.subr.mxu0 0.0
    %104 = vmatpush1.msra.mxu0 %v59
    %105 = vmatprep.subr.mxu0 0.0
    %106 = vmatpush1.msra.mxu0 %v60
    %107 = vmatprep.subr.mxu0 0.0
    %108 = vmatpush1.msra.mxu0 %v61
    %109 = vmatprep.subr.mxu0 0.0
    %110 = vmatpush1.msra.mxu0 %v62
    %111 = vmatprep.subr.mxu0 0.0
    %112 = vmatpush1.msra.mxu0 %v63
    %113 = vmatprep.subr.mxu0 0.0
    %114 = vmatpush1.msra.mxu0 %v64
    %115 = vmatprep.subr.mxu0 0.0
    %116 = vmatpush1.msra.mxu0 %v65
    %117 = vmatprep.subr.mxu0 0.0
    %118 = vmatpush1.msra.mxu0 %v66
    %119 = vmatprep.subr.mxu0 0.0
    %120 = vmatpush1.msra.mxu0 %v67
    %121 = vmatprep.subr.mxu0 0.0
    %122 = vmatpush1.msra.mxu0 %v68
    %123 = vmatprep.subr.mxu0 0.0
    %124 = vmatpush1.msra.mxu0 %v69
    %125 = vmatprep.subr.mxu0 0.0
    %126 = vmatpush1.msra.mxu0 %v70
    %127 = vmatprep.subr.mxu0 0.0
    %128 = vmatpush1.msra.mxu0 %v71
    %129 = vmatprep.subr.mxu0 0.0
    %130 = vmatpush1.msra.mxu0 %v72
    %131 = vmatprep.subr.mxu0 0.0
    %132 = vmatpush1.msra.mxu0 %v73
    %133 = vmatprep.subr.mxu0 0.0
    %134 = vmatpush1.msra.mxu0 %v74
    %135 = vmatprep.subr.mxu0 0.0
    %136 = vmatpush1.msra.mxu0 %v75
    %137 = vmatprep.subr.mxu0 0.0
    %138 = vmatpush1.msra.mxu0 %v76
    %139 = vmatprep.subr.mxu0 0.0
    %140 = vmatpush1.msra.mxu0 %v77
    %141 = vmatprep.subr.mxu0 0.0
    %142 = vmatpush1.msra.mxu0 %v78
    %143 = vmatprep.subr.mxu0 0.0
    %144 = vmatpush1.msra.mxu0 %v79
    %145 = vmatprep.subr.mxu0 0.0
    %146 = vmatpush1.msra.mxu0 %v80
    %147 = vmatprep.subr.mxu0 0.0
    %148 = vmatpush1.msra.mxu0 %v81
    %149 = vmatprep.subr.mxu0 0.0
    %150 = vmatpush1.msra.mxu0 %v82
    %151 = vmatprep.subr.mxu0 0.0
    %152 = vmatpush1.msra.mxu0 %v83
    %153 = vmatprep.subr.mxu0 0.0
    %154 = vmatpush1.msra.mxu0 %v84
    %155 = vmatprep.subr.mxu0 0.0
    %156 = vmatpush1.msra.mxu0 %v85
    %157 = vmatprep.subr.mxu0 0.0
    %158 = vmatpush1.msra.mxu0 %v86
    %159 = vmatprep.subr.mxu0 0.0
    %160 = vmatpush1.msra.mxu0 %v87
    %161 = vmatprep.subr.mxu0 0.0
    %162 = vmatpush1.msra.mxu0 %v88
    %163 = vmatprep.subr.mxu0 0.0
    %164 = vmatpush1.msra.mxu0 %v89
    %165 = vmatprep.mubr.f32.mxu0 %v98
    %166 = vmatmul.mubr.f32.gmra.mrb[0].mxu0 %v97
    %v167 = vpop.f32.mrb[0].mxu0
    %v168 = vadd.f32 0.0, %v167
    %v169 = vpop.f32.mrb[0].mxu0
    %170 = vdwg.mxu0
    %v173 = vunpack.c.l.s4 1983009808
    %v174 = vunpack.c.0.s8 %v173
    %v175 = vlaneseq
    %v176 = vshrl.u32 %v175, 7
    %v177 = vsub.s32 %v174, %v176
    %v178 = vrot.slane %v24, %v177
    %v179 = vcombine.high %v178, %v178
    %182 = vmatprep.subr.mxu0 0.0
    %183 = vmatpush1.msra.mxu0 %v25
    %184 = vmatprep.subr.mxu0 0.0
    %185 = vmatpush1.msra.mxu0 %v26
    %186 = vmatprep.subr.mxu0 0.0
    %187 = vmatpush1.msra.mxu0 %v27
    %188 = vmatprep.subr.mxu0 0.0
    %189 = vmatpush1.msra.mxu0 %v28
    %190 = vmatprep.subr.mxu0 0.0
    %191 = vmatpush1.msra.mxu0 %v29
    %192 = vmatprep.subr.mxu0 0.0
    %193 = vmatpush1.msra.mxu0 %v30
    %194 = vmatprep.subr.mxu0 0.0
    %195 = vmatpush1.msra.mxu0 %v31
    %196 = vmatprep.subr.mxu0 0.0
    %197 = vmatpush1.msra.mxu0 %v32
    %198 = vmatprep.subr.mxu0 0.0
    %199 = vmatpush1.msra.mxu0 %v33
    %200 = vmatprep.subr.mxu0 0.0
    %201 = vmatpush1.msra.mxu0 %v34
    %202 = vmatprep.subr.mxu0 0.0
    %203 = vmatpush1.msra.mxu0 %v35
    %204 = vmatprep.subr.mxu0 0.0
    %205 = vmatpush1.msra.mxu0 %v36
    %206 = vmatprep.subr.mxu0 0.0
    %207 = vmatpush1.msra.mxu0 %v37
    %208 = vmatprep.subr.mxu0 0.0
    %209 = vmatpush1.msra.mxu0 %v38
    %210 = vmatprep.subr.mxu0 0.0
    %211 = vmatpush1.msra.mxu0 %v39
    %212 = vmatprep.subr.mxu0 0.0
    %213 = vmatpush1.msra.mxu0 %v40
    %214 = vmatprep.subr.mxu0 0.0
    %215 = vmatpush1.msra.mxu0 %v41
    %216 = vmatprep.subr.mxu0 0.0
    %217 = vmatpush1.msra.mxu0 %v42
    %218 = vmatprep.subr.mxu0 0.0
    %219 = vmatpush1.msra.mxu0 %v43
    %220 = vmatprep.subr.mxu0 0.0
    %221 = vmatpush1.msra.mxu0 %v44
    %222 = vmatprep.subr.mxu0 0.0
    %223 = vmatpush1.msra.mxu0 %v45
    %224 = vmatprep.subr.mxu0 0.0
    %225 = vmatpush1.msra.mxu0 %v46
    %226 = vmatprep.subr.mxu0 0.0
    %227 = vmatpush1.msra.mxu0 %v47
    %228 = vmatprep.subr.mxu0 0.0
    %229 = vmatpush1.msra.mxu0 %v48
    %230 = vmatprep.subr.mxu0 0.0
    %231 = vmatpush1.msra.mxu0 %v49
    %232 = vmatprep.subr.mxu0 0.0
    %233 = vmatpush1.msra.mxu0 %v50
    %234 = vmatprep.subr.mxu0 0.0
    %235 = vmatpush1.msra.mxu0 %v51
    %236 = vmatprep.subr.mxu0 0.0
    %237 = vmatpush1.msra.mxu0 %v52
    %238 = vmatprep.subr.mxu0 0.0
    %239 = vmatpush1.msra.mxu0 %v53
    %240 = vmatprep.subr.mxu0 0.0
    %241 = vmatpush1.msra.mxu0 %v54
    %242 = vmatprep.subr.mxu0 0.0
    %243 = vmatpush1.msra.mxu0 %v55
    %244 = vmatprep.subr.mxu0 0.0
    %245 = vmatpush1.msra.mxu0 %v56
    %246 = vmatprep.mubr.f32.mxu0 %v179
    %247 = vmatmul.mubr.f32.gmra.mrb[0].mxu0 %v178
    %v248 = vpop.f32.mrb[0].mxu0
    %v249 = vadd.f32 %v168, %v248
    %v250 = vpop.f32.mrb[0].mxu0
    %251 = vdwg.mxu0
    %v252 = vld [vmem:[%s3] sm:$0x1]
    %v254 = vlaneseq
    %v255 = vshrl.u32 %v254, 7
    %v256 = vsub.s32 0, %v255
    %v257 = vrot.slane %v252, %v256
    %v259 = vadd.f32 %v249, %v257
    %v260 = vmax.f32 %v259, 0.0
    %v261 = vld [vmem:[%s4] sm:$0xff]
    %v262 = vld [vmem:[%s4 + $0x8] sm:$0xff]
    %v263 = vld [vmem:[%s4 + $0x10] sm:$0xff]
    %v264 = vld [vmem:[%s4 + $0x18] sm:$0xff]
    %v265 = vld [vmem:[%s4 + $0x20] sm:$0xff]
    %v266 = vld [vmem:[%s4 + $0x28] sm:$0xff]
    %v267 = vld [vmem:[%s4 + $0x30] sm:$0xff]
    %v268 = vld [vmem:[%s4 + $0x38] sm:$0xff]
    %v269 = vld [vmem:[%s4 + $0x40] sm:$0xff]
    %v270 = vld [vmem:[%s4 + $0x48] sm:$0xff]
    %v271 = vld [vmem:[%s4 + $0x50] sm:$0xff]
    %v272 = vld [vmem:[%s4 + $0x58] sm:$0xff]
    %v273 = vld [vmem:[%s4 + $0x60] sm:$0xff]
    %v274 = vld [vmem:[%s4 + $0x68] sm:$0xff]
    %v275 = vld [vmem:[%s4 + $0x70] sm:$0xff]
    %v276 = vld [vmem:[%s4 + $0x78] sm:$0xff]
    %v277 = vld [vmem:[%s5] sm:$0x1]
    %v279 = vlaneseq
    %v280 = vshrl.u32 %v279, 7
    %v281 = vsub.s32 0, %v280
    %v282 = vrot.slane %v277, %v281
    %284 = vmatprep.subr.mxu0 0.0
    %285 = vmatpush1.msra.mxu0 %v261
    %286 = vmatprep.subr.mxu0 0.0
    %287 = vmatpush1.msra.mxu0 %v262
    %288 = vmatprep.subr.mxu0 0.0
    %289 = vmatpush1.msra.mxu0 %v263
    %290 = vmatprep.subr.mxu0 0.0
    %291 = vmatpush1.msra.mxu0 %v264
    %292 = vmatprep.subr.mxu0 0.0
    %293 = vmatpush1.msra.mxu0 %v265
    %294 = vmatprep.subr.mxu0 0.0
    %295 = vmatpush1.msra.mxu0 %v266
    %296 = vmatprep.subr.mxu0 0.0
    %297 = vmatpush1.msra.mxu0 %v267
    %298 = vmatprep.subr.mxu0 0.0
    %299 = vmatpush1.msra.mxu0 %v268
    %300 = vmatprep.subr.mxu0 0.0
    %301 = vmatpush1.msra.mxu0 %v269
    %302 = vmatprep.subr.mxu0 0.0
    %303 = vmatpush1.msra.mxu0 %v270
    %304 = vmatprep.subr.mxu0 0.0
    %305 = vmatpush1.msra.mxu0 %v271
    %306 = vmatprep.subr.mxu0 0.0
    %307 = vmatpush1.msra.mxu0 %v272
    %308 = vmatprep.subr.mxu0 0.0
    %309 = vmatpush1.msra.mxu0 %v273
    %310 = vmatprep.subr.mxu0 0.0
    %311 = vmatpush1.msra.mxu0 %v274
    %312 = vmatprep.subr.mxu0 0.0
    %313 = vmatpush1.msra.mxu0 %v275
    %314 = vmatprep.subr.mxu0 0.0
    %315 = vmatpush1.msra.mxu0 %v276
    %316 = vmatprep.subr.mxu0 0.0
    %317 = vmatpush1.msra.mxu0 0.0
    %318 = vmatprep.subr.mxu0 0.0
    %319 = vmatpush1.msra.mxu0 0.0
    %320 = vmatprep.subr.mxu0 0.0
    %321 = vmatpush1.msra.mxu0 0.0
    %322 = vmatprep.subr.mxu0 0.0
    %323 = vmatpush1.msra.mxu0 0.0
    %324 = vmatprep.subr.mxu0 0.0
    %325 = vmatpush1.msra.mxu0 0.0
    %326 = vmatprep.subr.mxu0 0.0
    %327 = vmatpush1.msra.mxu0 0.0
    %328 = vmatprep.subr.mxu0 0.0
    %329 = vmatpush1.msra.mxu0 0.0
    %330 = vmatprep.subr.mxu0 0.0
    %331 = vmatpush1.msra.mxu0 0.0
    %332 = vmatprep.subr.mxu0 0.0
    %333 = vmatpush1.msra.mxu0 0.0
    %334 = vmatprep.subr.mxu0 0.0
    %335 = vmatpush1.msra.mxu0 0.0
    %336 = vmatprep.subr.mxu0 0.0
    %337 = vmatpush1.msra.mxu0 0.0
    %338 = vmatprep.subr.mxu0 0.0
    %339 = vmatpush1.msra.mxu0 0.0
    %340 = vmatprep.subr.mxu0 0.0
    %341 = vmatpush1.msra.mxu0 0.0
    %342 = vmatprep.subr.mxu0 0.0
    %343 = vmatpush1.msra.mxu0 0.0
    %344 = vmatprep.subr.mxu0 0.0
    %345 = vmatpush1.msra.mxu0 0.0
    %346 = vmatprep.subr.mxu0 0.0
    %347 = vmatpush1.msra.mxu0 0.0
    %348 = vmatprep.mubr.f32.mxu0 0.0
    %349 = vmatmul.mubr.f32.gmra.mrb[0].mxu0 %v260
    %v350 = vpop.f32.mrb[0].mxu0
    %v351 = vadd.f32 %v282, %v350
    %v352 = vpop.f32.mrb[0].mxu0
    %353 = vdwg.mxu0
    %vm354 = vcmask 25600
    %355 = vst.msk [vmem:[#allocation2] sm:$0x3] %vm354, %v351
    // Predicated region
    $region26: #{combined_forward.15} parent=1 // pred_check
      _
    $region27: #{combined_forward.15} parent=1 // pred_check_branch
      %357 = sbr.rel (0) target = $region29
    $region28: #{combined_forward.15} parent=1 // pred_region
      %s359 = ssub.s32 32, 32
      %360 = vsyncadd [#allocation3], %s359
      %s362 = sshll.u32 [#allocation2], 4
      %s363 = int_to_ptr.vmem [resolvable:$true] %s362
      %365 = dma.vmem_to_hbm [thread:$0]  %s363, 32, %s6, [#allocation3]
    $region29: #{combined_forward.15} parent=1 // pred_fallthru
      _
    // Predicated region
    $region30: #{combined_forward.15} parent=1 // pred_check
      _
    $region31: #{combined_forward.15} parent=1 // pred_check_branch
      %367 = sbr.rel (0) target = $region33
    $region32: #{combined_forward.15} parent=1 // pred_region
      %368 = dma.done [#allocation3], 32
    $region33: #{combined_forward.15} parent=1 // pred_fallthru
      _
    %369 = vsyncpa [#allocation3], 1

// kernel: combined_forward.11
$region0: #{combined_forward.11}
  #allocation0 [shape = 'u32[]', space=smem, size = 0x4, offset = 0x4, fixed_abs, tag = 'smem constant byte address 0x4 - core index']
  #allocation1 [shape = 'u32[144,128]{1,0:T(1,128)}', space=vmem, size = 0x12000, scoped, tag = 'internal scratch']
  #allocation2 [shape = 'f32[2,11,26]{2,1,0:T(8,128)}', space=vmem, size = 0x4000, scoped, tag = 'scratch operand']
  #allocation3 [shape = 'f32[4,2,11,26]{3,2,1,0:T(8,128)}', space=vmem, size = 0x10000, scoped, tag = 'scratch operand']
  %s0 = inlined_call_operand.vmem [shape: f32[2,9,24], index: 0, kind: input, shape index: {}]
  %s1 = inlined_call_operand.vmem [shape: f32[36], index: 1, kind: input, shape index: {}]
  %s2 = inlined_call_operand.vmem [shape: f32[4], index: 2, kind: input, shape index: {}]
  %s3 = inlined_call_operand.vmem [shape: f32[144], index: 3, kind: input, shape index: {}]
  %s4 = inlined_call_operand.vmem [shape: f32[4], index: 4, kind: input, shape index: {}]
  %s5 = inlined_call_operand.vmem [shape: f32[4,2,9,24], index: 5, kind: output, shape index: {}]
  %s6 = sld [smem:[#allocation0]]
  $region46: #{combined_forward.11} parent=0
    _
  %s8 = ssub.s32 1, %s6
  %s9 = scalar_select 0, %s8, %s6
  $region1: #{combined_forward.11} parent=0
    #allocation4 [shape = 'u8[512]{0}', space=smem, size = 0x200, scoped, tag = 'input window, operand 1, single buffered']
    #allocation5 [shape = 's32[1]{0}', space=sflag, size = 0x4, scoped, tag = 'scoped memory for combined_forward.11']
    #allocation6 [shape = 'u8[512]{0}', space=smem, size = 0x200, scoped, tag = 'input window, operand 2, single buffered']
    #allocation7 [shape = 's32[1]{0}', space=sflag, size = 0x4, scoped, tag = 'scoped memory for combined_forward.11']
    #allocation8 [shape = 'u8[1024]{0}', space=smem, size = 0x400, scoped, tag = 'input window, operand 3, single buffered']
    #allocation9 [shape = 'u8[512]{0}', space=smem, size = 0x200, scoped, tag = 'input window, operand 4, single buffered']
    #allocation10 [shape = 's32[1]{0}', space=sflag, size = 0x4, scoped, tag = 'scoped memory for combined_forward.11']
    %10 = vsyncpa [#allocation5], 0
    %11 = vsyncpa [#allocation7], 0
    %12 = vsyncpa [#allocation10], 0
    // Predicated region
    $region2: #{combined_forward.11} parent=1 // pred_check
      _
    $region3: #{combined_forward.11} parent=1 // pred_check_branch
      %14 = sbr.rel (0) target = $region5
    $region4: #{combined_forward.11} parent=1 // pred_region
      _
    $region5: #{combined_forward.11} parent=1 // pred_fallthru
      _
    // Predicated region
    $region6: #{combined_forward.11} parent=1 // pred_check
      _
    $region7: #{combined_forward.11} parent=1 // pred_check_branch
      %16 = sbr.rel (0) target = $region9
    $region8: #{combined_forward.11} parent=1 // pred_region
      %s18 = ssub.s32 16, 16
      %19 = vsyncadd [#allocation5], %s18
      %s21 = sshll.u32 %s1, 4
      %s22 = int_to_ptr.vmem [resolvable:$true] %s21
      %24 = dma.vmem_to_smem %s22, 16, [#allocation4], [#allocation5]
    $region9: #{combined_forward.11} parent=1 // pred_fallthru
      _
    // Predicated region
    $region10: #{combined_forward.11} parent=1 // pred_check
      _
    $region11: #{combined_forward.11} parent=1 // pred_check_branch
      %26 = sbr.rel (0) target = $region13
    $region12: #{combined_forward.11} parent=1 // pred_region
      %s28 = ssub.s32 16, 16
      %29 = vsyncadd [#allocation7], %s28
      %s31 = sshll.u32 %s2, 4
      %s32 = int_to_ptr.vmem [resolvable:$true] %s31
      %34 = dma.vmem_to_smem %s32, 16, [#allocation6], [#allocation7]
    $region13: #{combined_forward.11} parent=1 // pred_fallthru
      _
    // Predicated region
    $region14: #{combined_forward.11} parent=1 // pred_check
      _
    $region15: #{combined_forward.11} parent=1 // pred_check_branch
      %36 = sbr.rel (0) target = $region17
    $region16: #{combined_forward.11} parent=1 // pred_region
      %s38 = ssub.s32 32, 32
      %39 = vsyncadd [#allocation7], %s38
      %s41 = sshll.u32 %s3, 4
      %s42 = int_to_ptr.vmem [resolvable:$true] %s41
      %44 = dma.vmem_to_smem %s42, 32, [#allocation8], [#allocation7]
    $region17: #{combined_forward.11} parent=1 // pred_fallthru
      _
    // Predicated region
    $region18: #{combined_forward.11} parent=1 // pred_check
      _
    $region19: #{combined_forward.11} parent=1 // pred_check_branch
      %46 = sbr.rel (0) target = $region21
    $region20: #{combined_forward.11} parent=1 // pred_region
      %s48 = ssub.s32 16, 16
      %49 = vsyncadd [#allocation10], %s48
      %s51 = sshll.u32 %s4, 4
      %s52 = int_to_ptr.vmem [resolvable:$true] %s51
      %54 = dma.vmem_to_smem %s52, 16, [#allocation9], [#allocation10]
    $region21: #{combined_forward.11} parent=1 // pred_fallthru
      _
    // Predicated region
    $region22: #{combined_forward.11} parent=1 // pred_check
      _
    $region23: #{combined_forward.11} parent=1 // pred_check_branch
      %56 = sbr.rel (0) target = $region25
    $region24: #{combined_forward.11} parent=1 // pred_region
      %57 = dma.done [#allocation5], 16
    $region25: #{combined_forward.11} parent=1 // pred_fallthru
      _
    // Predicated region
    $region26: #{combined_forward.11} parent=1 // pred_check
      _
    $region27: #{combined_forward.11} parent=1 // pred_check_branch
      %59 = sbr.rel (0) target = $region29
    $region28: #{combined_forward.11} parent=1 // pred_region
      %60 = dma.done [#allocation7], 16
    $region29: #{combined_forward.11} parent=1 // pred_fallthru
      _
    // Predicated region
    $region30: #{combined_forward.11} parent=1 // pred_check
      _
    $region31: #{combined_forward.11} parent=1 // pred_check_branch
      %62 = sbr.rel (0) target = $region33
    $region32: #{combined_forward.11} parent=1 // pred_region
      %63 = dma.done [#allocation7], 32
    $region33: #{combined_forward.11} parent=1 // pred_fallthru
      _
    // Predicated region
    $region34: #{combined_forward.11} parent=1 // pred_check
      _
    $region35: #{combined_forward.11} parent=1 // pred_check_branch
      %65 = sbr.rel (0) target = $region37
    $region36: #{combined_forward.11} parent=1 // pred_region
      %66 = dma.done [#allocation10], 16
    $region37: #{combined_forward.11} parent=1 // pred_fallthru
      _
    %67 = sfence
    %vm68 = vcmask 211968
    %69 = vst.msk [vmem:[#allocation2] sm:$0xff] %vm68, 0.0
    %vm70 = vcmask 206848
    %71 = vst.msk [vmem:[#allocation2 + $0x8] sm:$0x7] %vm70, 0.0
    %72 = vst.msk [vmem:[#allocation2 + $0x10] sm:$0xff] %vm68, 0.0
    %73 = vst.msk [vmem:[#allocation2 + $0x18] sm:$0x7] %vm70, 0.0
    %74 = vst.msk [vmem:[#allocation3] sm:$0xff] %vm68, 0.0
    %75 = vst.msk [vmem:[#allocation3 + $0x8] sm:$0x7] %vm70, 0.0
    %76 = vst.msk [vmem:[#allocation3 + $0x10] sm:$0xff] %vm68, 0.0
    %77 = vst.msk [vmem:[#allocation3 + $0x18] sm:$0x7] %vm70, 0.0
    %78 = vst.msk [vmem:[#allocation3 + $0x20] sm:$0xff] %vm68, 0.0
    %79 = vst.msk [vmem:[#allocation3 + $0x28] sm:$0x7] %vm70, 0.0
    %80 = vst.msk [vmem:[#allocation3 + $0x30] sm:$0xff] %vm68, 0.0
    %81 = vst.msk [vmem:[#allocation3 + $0x38] sm:$0x7] %vm70, 0.0
    %82 = vst.msk [vmem:[#allocation3 + $0x40] sm:$0xff] %vm68, 0.0
    %83 = vst.msk [vmem:[#allocation3 + $0x48] sm:$0x7] %vm70, 0.0
    %84 = vst.msk [vmem:[#allocation3 + $0x50] sm:$0xff] %vm68, 0.0
    %85 = vst.msk [vmem:[#allocation3 + $0x58] sm:$0x7] %vm70, 0.0
    %86 = vst.msk [vmem:[#allocation3 + $0x60] sm:$0xff] %vm68, 0.0
    %87 = vst.msk [vmem:[#allocation3 + $0x68] sm:$0x7] %vm70, 0.0
    %88 = vst.msk [vmem:[#allocation3 + $0x70] sm:$0xff] %vm68, 0.0
    %89 = vst.msk [vmem:[#allocation3 + $0x78] sm:$0x7] %vm70, 0.0
    %v90 = vld [vmem:[%s0] sm:$0xff]
    %v91 = vld [vmem:[%s0 + $0x8] sm:$0x1]
    %v92 = vld [vmem:[%s0 + $0x10] sm:$0xff]
    %v93 = vld [vmem:[%s0 + $0x18] sm:$0x1]
    %98 = vrot.lane.b32.xlu0 %v90, 1
    %v99 = vpop.permute.xlu0 %98
    %100 = vrot.lane.b32.xlu0 %v91, 1
    %v101 = vpop.permute.xlu0 %100
    %102 = vrot.lane.b32.xlu0 %v92, 1
    %v103 = vpop.permute.xlu0 %102
    %104 = vrot.lane.b32.xlu0 %v93, 1
    %v105 = vpop.permute.xlu0 %104
    %vm110 = vcmask 203784
    %111 = vst.msk [vmem:[#allocation2 + $0x1] sm:$0xff] %vm110, %v99
    %vm112 = vcmask 196616
    %113 = vst.msk [vmem:[#allocation2 + $0x9] sm:$0x1] %vm112, %v101
    %114 = vst.msk [vmem:[#allocation2 + $0x11] sm:$0xff] %vm110, %v103
    %115 = vst.msk [vmem:[#allocation2 + $0x19] sm:$0x1] %vm112, %v105
    %s116 = sld [smem:[#allocation4]]
    %v117 = vld [vmem:[#allocation2] sm:$0xff]
    %v118 = vld [vmem:[#allocation2 + $0x8] sm:$0x1]
    %v119 = vld [vmem:[#allocation2 + $0x10] sm:$0xff]
    %v120 = vld [vmem:[#allocation2 + $0x18] sm:$0x1]
    %v121 = vstv %s116
    %v122 = vmul.f32 %v121, %v117
    %v123 = vmul.f32 %v121, %v118
    %v124 = vmul.f32 %v121, %v119
    %v125 = vmul.f32 %v121, %v120
    %v126 = vadd.f32 %v122, 0.0
    %v127 = vadd.f32 %v123, 0.0
    %v128 = vadd.f32 %v124, 0.0
    %v129 = vadd.f32 %v125, 0.0
    %s130 = sld [smem:[#allocation4 + $0x1]]
    %v131 = vstv %s130
    %v132 = vmul.f32 %v131, %v117
    %v133 = vmul.f32 %v131, %v118
    %v134 = vmul.f32 %v131, %v119
    %v135 = vmul.f32 %v131, %v120
    %140 = vrot.lane.b32.xlu0 %v132, 127
    %v141 = vpop.permute.xlu0 %140
    %142 = vrot.lane.b32.xlu0 %v133, 127
    %v143 = vpop.permute.xlu0 %142
    %144 = vrot.lane.b32.xlu0 %v134, 127
    %v145 = vpop.permute.xlu0 %144
    %146 = vrot.lane.b32.xlu0 %v135, 127
    %v147 = vpop.permute.xlu0 %146
    %v152 = vadd.f32 %v126, %v141
    %v153 = vadd.f32 %v127, %v143
    %v154 = vadd.f32 %v128, %v145
    %v155 = vadd.f32 %v129, %v147
    %s156 = sld [smem:[#allocation4 + $0x2]]
    %v157 = vstv %s156
    %v158 = vmul.f32 %v157, %v117
    %v159 = vmul.f32 %v157, %v118
    %v160 = vmul.f32 %v157, %v119
    %v161 = vmul.f32 %v157, %v120
    %166 = vrot.lane.b32.xlu0 %v158, 126
    %v167 = vpop.permute.xlu0 %166
    %168 = vrot.lane.b32.xlu0 %v159, 126
    %v169 = vpop.permute.xlu0 %168
    %170 = vrot.lane.b32.xlu0 %v160, 126
    %v171 = vpop.permute.xlu0 %170
    %172 = vrot.lane.b32.xlu0 %v161, 126
    %v173 = vpop.permute.xlu0 %172
    %v178 = vadd.f32 %v152, %v167
    %v179 = vadd.f32 %v153, %v169
    %v180 = vadd.f32 %v154, %v171
    %v181 = vadd.f32 %v155, %v173
    %s182 = sld [smem:[#allocation4 + $0x3]]
    %v183 = vld [vmem:[#allocation2 + $0x1] sm:$0xff]
    %v184 = vld [vmem:[#allocation2 + $0x9] sm:$0x1]
    %v185 = vld [vmem:[#allocation2 + $0x11] sm:$0xff]
    %v186 = vld [vmem:[#allocation2 + $0x19] sm:$0x1]
    %v187 = vstv %s182
    %v188 = vmul.f32 %v187, %v183
    %v189 = vmul.f32 %v187, %v184
    %v190 = vmul.f32 %v187, %v185
    %v191 = vmul.f32 %v187, %v186
    %v192 = vadd.f32 %v178, %v188
    %v193 = vadd.f32 %v179, %v189
    %v194 = vadd.f32 %v180, %v190
    %v195 = vadd.f32 %v181, %v191
    %s196 = sld [smem:[#allocation4 + $0x4]]
    %v197 = vstv %s196
    %v198 = vmul.f32 %v197, %v183
    %v199 = vmul.f32 %v197, %v184
    %v200 = vmul.f32 %v197, %v185
    %v201 = vmul.f32 %v197, %v186
    %206 = vrot.lane.b32.xlu0 %v198, 127
    %v207 = vpop.permute.xlu0 %206
    %208 = vrot.lane.b32.xlu0 %v199, 127
    %v209 = vpop.permute.xlu0 %208
    %210 = vrot.lane.b32.xlu0 %v200, 127
    %v211 = vpop.permute.xlu0 %210
    %212 = vrot.lane.b32.xlu0 %v201, 127
    %v213 = vpop.permute.xlu0 %212
    %v218 = vadd.f32 %v192, %v207
    %v219 = vadd.f32 %v193, %v209
    %v220 = vadd.f32 %v194, %v211
    %v221 = vadd.f32 %v195, %v213
    %s222 = sld [smem:[#allocation4 + $0x5]]
    %v223 = vstv %s222
    %v224 = vmul.f32 %v223, %v183
    %v225 = vmul.f32 %v223, %v184
    %v226 = vmul.f32 %v223, %v185
    %v227 = vmul.f32 %v223, %v186
    %232 = vrot.lane.b32.xlu0 %v224, 126
    %v233 = vpop.permute.xlu0 %232
    %234 = vrot.lane.b32.xlu0 %v225, 126
    %v235 = vpop.permute.xlu0 %234
    %236 = vrot.lane.b32.xlu0 %v226, 126
    %v237 = vpop.permute.xlu0 %236
    %238 = vrot.lane.b32.xlu0 %v227, 126
    %v239 = vpop.permute.xlu0 %238
    %v244 = vadd.f32 %v218, %v233
    %v245 = vadd.f32 %v219, %v235
    %v246 = vadd.f32 %v220, %v237
    %v247 = vadd.f32 %v221, %v239
    %s248 = sld [smem:[#allocation4 + $0x6]]
    %v249 = vld [vmem:[#allocation2 + $0x2] sm:$0xff]
    %v250 = vld [vmem:[#allocation2 + $0xa] sm:$0x1]
    %v251 = vld [vmem:[#allocation2 + $0x12] sm:$0xff]
    %v252 = vld [vmem:[#allocation2 + $0x1a] sm:$0x1]
    %v253 = vstv %s248
    %v254 = vmul.f32 %v253, %v249
    %v255 = vmul.f32 %v253, %v250
    %v256 = vmul.f32 %v253, %v251
    %v257 = vmul.f32 %v253, %v252
    %v258 = vadd.f32 %v244, %v254
    %v259 = vadd.f32 %v245, %v255
    %v260 = vadd.f32 %v246, %v256
    %v261 = vadd.f32 %v247, %v257
    %s262 = sld [smem:[#allocation4 + $0x7]]
    %v263 = vstv %s262
    %v264 = vmul.f32 %v263, %v249
    %v265 = vmul.f32 %v263, %v250
    %v266 = vmul.f32 %v263, %v251
    %v267 = vmul.f32 %v263, %v252
    %272 = vrot.lane.b32.xlu0 %v264, 127
    %v273 = vpop.permute.xlu0 %272
    %274 = vrot.lane.b32.xlu0 %v265, 127
    %v275 = vpop.permute.xlu0 %274
    %276 = vrot.lane.b32.xlu0 %v266, 127
    %v277 = vpop.permute.xlu0 %276
    %278 = vrot.lane.b32.xlu0 %v267, 127
    %v279 = vpop.permute.xlu0 %278
    %v284 = vadd.f32 %v258, %v273
    %v285 = vadd.f32 %v259, %v275
    %v286 = vadd.f32 %v260, %v277
    %v287 = vadd.f32 %v261, %v279
    %s288 = sld [smem:[#allocation4 + $0x8]]
    %v289 = vstv %s288
    %v290 = vmul.f32 %v289, %v249
    %v291 = vmul.f32 %v289, %v250
    %v292 = vmul.f32 %v289, %v251
    %v293 = vmul.f32 %v289, %v252
    %298 = vrot.lane.b32.xlu0 %v290, 126
    %v299 = vpop.permute.xlu0 %298
    %300 = vrot.lane.b32.xlu0 %v291, 126
    %v301 = vpop.permute.xlu0 %300
    %302 = vrot.lane.b32.xlu0 %v292, 126
    %v303 = vpop.permute.xlu0 %302
    %304 = vrot.lane.b32.xlu0 %v293, 126
    %v305 = vpop.permute.xlu0 %304
    %v310 = vadd.f32 %v284, %v299
    %v311 = vadd.f32 %v285, %v301
    %v312 = vadd.f32 %v286, %v303
    %v313 = vadd.f32 %v287, %v305
    %s314 = sld [smem:[#allocation6]]
    %v315 = vstv %s314
    %v316 = vadd.f32 %v310, %v315
    %v317 = vadd.f32 %v311, %v315
    %v318 = vadd.f32 %v312, %v315
    %v319 = vadd.f32 %v313, %v315
    %v320 = vmax.f32 %v316, 0.0
    %v321 = vmax.f32 %v317, 0.0
    %v322 = vmax.f32 %v318, 0.0
    %v323 = vmax.f32 %v319, 0.0
    %328 = vrot.lane.b32.xlu0 %v320, 1
    %v329 = vpop.permute.xlu0 %328
    %330 = vrot.lane.b32.xlu0 %v321, 1
    %v331 = vpop.permute.xlu0 %330
    %332 = vrot.lane.b32.xlu0 %v322, 1
    %v333 = vpop.permute.xlu0 %332
    %334 = vrot.lane.b32.xlu0 %v323, 1
    %v335 = vpop.permute.xlu0 %334
    %340 = vst.msk [vmem:[#allocation3 + $0x1] sm:$0xff] %vm110, %v329
    %341 = vst.msk [vmem:[#allocation3 + $0x9] sm:$0x1] %vm112, %v331
    %342 = vst.msk [vmem:[#allocation3 + $0x11] sm:$0xff] %vm110, %v333
    %343 = vst.msk [vmem:[#allocation3 + $0x19] sm:$0x1] %vm112, %v335
    %s344 = sld [smem:[#allocation4 + $0x9]]
    %v345 = vld [vmem:[#allocation2] sm:$0xff]
    %v346 = vld [vmem:[#allocation2 + $0x8] sm:$0x1]
    %v347 = vld [vmem:[#allocation2 + $0x10] sm:$0xff]
    %v348 = vld [vmem:[#allocation2 + $0x18] sm:$0x1]
    %v349 = vstv %s344
    %v350 = vmul.f32 %v349, %v345
    %v351 = vmul.f32 %v349, %v346
    %v352 = vmul.f32 %v349, %v347
    %v353 = vmul.f32 %v349, %v348
    %v354 = vadd.f32 %v350, 0.0
    %v355 = vadd.f32 %v351, 0.0
    %v356 = vadd.f32 %v352, 0.0
    %v357 = vadd.f32 %v353, 0.0
    %s358 = sld [smem:[#allocation4 + $0xa]]
    %v359 = vstv %s358
    %v360 = vmul.f32 %v359, %v345
    %v361 = vmul.f32 %v359, %v346
    %v362 = vmul.f32 %v359, %v347
    %v363 = vmul.f32 %v359, %v348
    %368 = vrot.lane.b32.xlu0 %v360, 127
    %v369 = vpop.permute.xlu0 %368
    %370 = vrot.lane.b32.xlu0 %v361, 127
    %v371 = vpop.permute.xlu0 %370
    %372 = vrot.lane.b32.xlu0 %v362, 127
    %v373 = vpop.permute.xlu0 %372
    %374 = vrot.lane.b32.xlu0 %v363, 127
    %v375 = vpop.permute.xlu0 %374
    %v380 = vadd.f32 %v354, %v369
    %v381 = vadd.f32 %v355, %v371
    %v382 = vadd.f32 %v356, %v373
    %v383 = vadd.f32 %v357, %v375
    %s384 = sld [smem:[#allocation4 + $0xb]]
    %v385 = vstv %s384
    %v386 = vmul.f32 %v385, %v345
    %v387 = vmul.f32 %v385, %v346
    %v388 = vmul.f32 %v385, %v347
    %v389 = vmul.f32 %v385, %v348
    %394 = vrot.lane.b32.xlu0 %v386, 126
    %v395 = vpop.permute.xlu0 %394
    %396 = vrot.lane.b32.xlu0 %v387, 126
    %v397 = vpop.permute.xlu0 %396
    %398 = vrot.lane.b32.xlu0 %v388, 126
    %v399 = vpop.permute.xlu0 %398
    %400 = vrot.lane.b32.xlu0 %v389, 126
    %v401 = vpop.permute.xlu0 %400
    %v406 = vadd.f32 %v380, %v395
    %v407 = vadd.f32 %v381, %v397
    %v408 = vadd.f32 %v382, %v399
    %v409 = vadd.f32 %v383, %v401
    %s410 = sld [smem:[#allocation4 + $0xc]]
    %v411 = vld [vmem:[#allocation2 + $0x1] sm:$0xff]
    %v412 = vld [vmem:[#allocation2 + $0x9] sm:$0x1]
    %v413 = vld [vmem:[#allocation2 + $0x11] sm:$0xff]
    %v414 = vld [vmem:[#allocation2 + $0x19] sm:$0x1]
    %v415 = vstv %s410
    %v416 = vmul.f32 %v415, %v411
    %v417 = vmul.f32 %v415, %v412
    %v418 = vmul.f32 %v415, %v413
    %v419 = vmul.f32 %v415, %v414
    %v420 = vadd.f32 %v406, %v416
    %v421 = vadd.f32 %v407, %v417
    %v422 = vadd.f32 %v408, %v418
    %v423 = vadd.f32 %v409, %v419
    %s424 = sld [smem:[#allocation4 + $0xd]]
    %v425 = vstv %s424
    %v426 = vmul.f32 %v425, %v411
    %v427 = vmul.f32 %v425, %v412
    %v428 = vmul.f32 %v425, %v413
    %v429 = vmul.f32 %v425, %v414
    %434 = vrot.lane.b32.xlu0 %v426, 127
    %v435 = vpop.permute.xlu0 %434
    %436 = vrot.lane.b32.xlu0 %v427, 127
    %v437 = vpop.permute.xlu0 %436
    %438 = vrot.lane.b32.xlu0 %v428, 127
    %v439 = vpop.permute.xlu0 %438
    %440 = vrot.lane.b32.xlu0 %v429, 127
    %v441 = vpop.permute.xlu0 %440
    %v446 = vadd.f32 %v420, %v435
    %v447 = vadd.f32 %v421, %v437
    %v448 = vadd.f32 %v422, %v439
    %v449 = vadd.f32 %v423, %v441
    %s450 = sld [smem:[#allocation4 + $0xe]]
    %v451 = vstv %s450
    %v452 = vmul.f32 %v451, %v411
    %v453 = vmul.f32 %v451, %v412
    %v454 = vmul.f32 %v451, %v413
    %v455 = vmul.f32 %v451, %v414
    %460 = vrot.lane.b32.xlu0 %v452, 126
    %v461 = vpop.permute.xlu0 %460
    %462 = vrot.lane.b32.xlu0 %v453, 126
    %v463 = vpop.permute.xlu0 %462
    %464 = vrot.lane.b32.xlu0 %v454, 126
    %v465 = vpop.permute.xlu0 %464
    %466 = vrot.lane.b32.xlu0 %v455, 126
    %v467 = vpop.permute.xlu0 %466
    %v472 = vadd.f32 %v446, %v461
    %v473 = vadd.f32 %v447, %v463
    %v474 = vadd.f32 %v448, %v465
    %v475 = vadd.f32 %v449, %v467
    %s476 = sld [smem:[#allocation4 + $0xf]]
    %v477 = vld [vmem:[#allocation2 + $0x2] sm:$0xff]
    %v478 = vld [vmem:[#allocation2 + $0xa] sm:$0x1]
    %v479 = vld [vmem:[#allocation2 + $0x12] sm:$0xff]
    %v480 = vld [vmem:[#allocation2 + $0x1a] sm:$0x1]
    %v481 = vstv %s476
    %v482 = vmul.f32 %v481, %v477
    %v483 = vmul.f32 %v481, %v478
    %v484 = vmul.f32 %v481, %v479
    %v485 = vmul.f32 %v481, %v480
    %v486 = vadd.f32 %v472, %v482
    %v487 = vadd.f32 %v473, %v483
    %v488 = vadd.f32 %v474, %v484
    %v489 = vadd.f32 %v475, %v485
    %s490 = sld [smem:[#allocation4 + $0x10]]
    %v491 = vstv %s490
    %v492 = vmul.f32 %v491, %v477
    %v493 = vmul.f32 %v491, %v478
    %v494 = vmul.f32 %v491, %v479
    %v495 = vmul.f32 %v491, %v480
    %500 = vrot.lane.b32.xlu0 %v492, 127
    %v501 = vpop.permute.xlu0 %500
    %502 = vrot.lane.b32.xlu0 %v493, 127
    %v503 = vpop.permute.xlu0 %502
    %504 = vrot.lane.b32.xlu0 %v494, 127
    %v505 = vpop.permute.xlu0 %504
    %506 = vrot.lane.b32.xlu0 %v495, 127
    %v507 = vpop.permute.xlu0 %506
    %v512 = vadd.f32 %v486, %v501
    %v513 = vadd.f32 %v487, %v503
    %v514 = vadd.f32 %v488, %v505
    %v515 = vadd.f32 %v489, %v507
    %s516 = sld [smem:[#allocation4 + $0x11]]
    %v517 = vstv %s516
    %v518 = vmul.f32 %v517, %v477
    %v519 = vmul.f32 %v517, %v478
    %v520 = vmul.f32 %v517, %v479
    %v521 = vmul.f32 %v517, %v480
    %526 = vrot.lane.b32.xlu0 %v518, 126
    %v527 = vpop.permute.xlu0 %526
    %528 = vrot.lane.b32.xlu0 %v519, 126
    %v529 = vpop.permute.xlu0 %528
    %530 = vrot.lane.b32.xlu0 %v520, 126
    %v531 = vpop.permute.xlu0 %530
    %532 = vrot.lane.b32.xlu0 %v521, 126
    %v533 = vpop.permute.xlu0 %532
    %v538 = vadd.f32 %v512, %v527
    %v539 = vadd.f32 %v513, %v529
    %v540 = vadd.f32 %v514, %v531
    %v541 = vadd.f32 %v515, %v533
    %s542 = sld [smem:[#allocation6 + $0x1]]
    %v543 = vstv %s542
    %v544 = vadd.f32 %v538, %v543
    %v545 = vadd.f32 %v539, %v543
    %v546 = vadd.f32 %v540, %v543
    %v547 = vadd.f32 %v541, %v543
    %v548 = vmax.f32 %v544, 0.0
    %v549 = vmax.f32 %v545, 0.0
    %v550 = vmax.f32 %v546, 0.0
    %v551 = vmax.f32 %v547, 0.0
    %556 = vrot.lane.b32.xlu0 %v548, 1
    %v557 = vpop.permute.xlu0 %556
    %558 = vrot.lane.b32.xlu0 %v549, 1
    %v559 = vpop.permute.xlu0 %558
    %560 = vrot.lane.b32.xlu0 %v550, 1
    %v561 = vpop.permute.xlu0 %560
    %562 = vrot.lane.b32.xlu0 %v551, 1
    %v563 = vpop.permute.xlu0 %562
    %s568 = scalar_lea.vmem [#allocation3], 32
    %569 = vst.msk [vmem:[%s568 + $0x1] sm:$0xff] %vm110, %v557
    %570 = vst.msk [vmem:[%s568 + $0x9] sm:$0x1] %vm112, %v559
    %571 = vst.msk [vmem:[%s568 + $0x11] sm:$0xff] %vm110, %v561
    %572 = vst.msk [vmem:[%s568 + $0x19] sm:$0x1] %vm112, %v563
    %s573 = sld [smem:[#allocation4 + $0x12]]
    %v574 = vld [vmem:[#allocation2] sm:$0xff]
    %v575 = vld [vmem:[#allocation2 + $0x8] sm:$0x1]
    %v576 = vld [vmem:[#allocation2 + $0x10] sm:$0xff]
    %v577 = vld [vmem:[#allocation2 + $0x18] sm:$0x1]
    %v578 = vstv %s573
    %v579 = vmul.f32 %v578, %v574
    %v580 = vmul.f32 %v578, %v575
    %v581 = vmul.f32 %v578, %v576
    %v582 = vmul.f32 %v578, %v577
    %v583 = vadd.f32 %v579, 0.0
    %v584 = vadd.f32 %v580, 0.0
    %v585 = vadd.f32 %v581, 0.0
    %v586 = vadd.f32 %v582, 0.0
    %s587 = sld [smem:[#allocation4 + $0x13]]
    %v588 = vstv %s587
    %v589 = vmul.f32 %v588, %v574
    %v590 = vmul.f32 %v588, %v575
    %v591 = vmul.f32 %v588, %v576
    %v592 = vmul.f32 %v588, %v577
    %597 = vrot.lane.b32.xlu0 %v589, 127
    %v598 = vpop.permute.xlu0 %597
    %599 = vrot.lane.b32.xlu0 %v590, 127
    %v600 = vpop.permute.xlu0 %599
    %601 = vrot.lane.b32.xlu0 %v591, 127
    %v602 = vpop.permute.xlu0 %601
    %603 = vrot.lane.b32.xlu0 %v592, 127
    %v604 = vpop.permute.xlu0 %603
    %v609 = vadd.f32 %v583, %v598
    %v610 = vadd.f32 %v584, %v600
    %v611 = vadd.f32 %v585, %v602
    %v612 = vadd.f32 %v586, %v604
    %s613 = sld [smem:[#allocation4 + $0x14]]
    %v614 = vstv %s613
    %v615 = vmul.f32 %v614, %v574
    %v616 = vmul.f32 %v614, %v575
    %v617 = vmul.f32 %v614, %v576
    %v618 = vmul.f32 %v614, %v577
    %623 = vrot.lane.b32.xlu0 %v615, 126
    %v624 = vpop.permute.xlu0 %623
    %625 = vrot.lane.b32.xlu0 %v616, 126
    %v626 = vpop.permute.xlu0 %625
    %627 = vrot.lane.b32.xlu0 %v617, 126
    %v628 = vpop.permute.xlu0 %627
    %629 = vrot.lane.b32.xlu0 %v618, 126
    %v630 = vpop.permute.xlu0 %629
    %v635 = vadd.f32 %v609, %v624
    %v636 = vadd.f32 %v610, %v626
    %v637 = vadd.f32 %v611, %v628
    %v638 = vadd.f32 %v612, %v630
    %s639 = sld [smem:[#allocation4 + $0x15]]
    %v640 = vld [vmem:[#allocation2 + $0x1] sm:$0xff]
    %v641 = vld [vmem:[#allocation2 + $0x9] sm:$0x1]
    %v642 = vld [vmem:[#allocation2 + $0x11] sm:$0xff]
    %v643 = vld [vmem:[#allocation2 + $0x19] sm:$0x1]
    %v644 = vstv %s639
    %v645 = vmul.f32 %v644, %v640
    %v646 = vmul.f32 %v644, %v641
    %v647 = vmul.f32 %v644, %v642
    %v648 = vmul.f32 %v644, %v643
    %v649 = vadd.f32 %v635, %v645
    %v650 = vadd.f32 %v636, %v646
    %v651 = vadd.f32 %v637, %v647
    %v652 = vadd.f32 %v638, %v648
    %s653 = sld [smem:[#allocation4 + $0x16]]
    %v654 = vstv %s653
    %v655 = vmul.f32 %v654, %v640
    %v656 = vmul.f32 %v654, %v641
    %v657 = vmul.f32 %v654, %v642
    %v658 = vmul.f32 %v654, %v643
    %663 = vrot.lane.b32.xlu0 %v655, 127
    %v664 = vpop.permute.xlu0 %663
    %665 = vrot.lane.b32.xlu0 %v656, 127
    %v666 = vpop.permute.xlu0 %665
    %667 = vrot.lane.b32.xlu0 %v657, 127
    %v668 = vpop.permute.xlu0 %667
    %669 = vrot.lane.b32.xlu0 %v658, 127
    %v670 = vpop.permute.xlu0 %669
    %v675 = vadd.f32 %v649, %v664
    %v676 = vadd.f32 %v650, %v666
    %v677 = vadd.f32 %v651, %v668
    %v678 = vadd.f32 %v652, %v670
    %s679 = sld [smem:[#allocation4 + $0x17]]
    %v680 = vstv %s679
    %v681 = vmul.f32 %v680, %v640
    %v682 = vmul.f32 %v680, %v641
    %v683 = vmul.f32 %v680, %v642
    %v684 = vmul.f32 %v680, %v643
    %689 = vrot.lane.b32.xlu0 %v681, 126
    %v690 = vpop.permute.xlu0 %689
    %691 = vrot.lane.b32.xlu0 %v682, 126
    %v692 = vpop.permute.xlu0 %691
    %693 = vrot.lane.b32.xlu0 %v683, 126
    %v694 = vpop.permute.xlu0 %693
    %695 = vrot.lane.b32.xlu0 %v684, 126
    %v696 = vpop.permute.xlu0 %695
    %v701 = vadd.f32 %v675, %v690
    %v702 = vadd.f32 %v676, %v692
    %v703 = vadd.f32 %v677, %v694
    %v704 = vadd.f32 %v678, %v696
    %s705 = sld [smem:[#allocation4 + $0x18]]
    %v706 = vld [vmem:[#allocation2 + $0x2] sm:$0xff]
    %v707 = vld [vmem:[#allocation2 + $0xa] sm:$0x1]
    %v708 = vld [vmem:[#allocation2 + $0x12] sm:$0xff]
    %v709 = vld [vmem:[#allocation2 + $0x1a] sm:$0x1]
    %v710 = vstv %s705
    %v711 = vmul.f32 %v710, %v706
    %v712 = vmul.f32 %v710, %v707
    %v713 = vmul.f32 %v710, %v708
    %v714 = vmul.f32 %v710, %v709
    %v715 = vadd.f32 %v701, %v711
    %v716 = vadd.f32 %v702, %v712
    %v717 = vadd.f32 %v703, %v713
    %v718 = vadd.f32 %v704, %v714
    %s719 = sld [smem:[#allocation4 + $0x19]]
    %v720 = vstv %s719
    %v721 = vmul.f32 %v720, %v706
    %v722 = vmul.f32 %v720, %v707
    %v723 = vmul.f32 %v720, %v708
    %v724 = vmul.f32 %v720, %v709
    %729 = vrot.lane.b32.xlu0 %v721, 127
    %v730 = vpop.permute.xlu0 %729
    %731 = vrot.lane.b32.xlu0 %v722, 127
    %v732 = vpop.permute.xlu0 %731
    %733 = vrot.lane.b32.xlu0 %v723, 127
    %v734 = vpop.permute.xlu0 %733
    %735 = vrot.lane.b32.xlu0 %v724, 127
    %v736 = vpop.permute.xlu0 %735
    %v741 = vadd.f32 %v715, %v730
    %v742 = vadd.f32 %v716, %v732
    %v743 = vadd.f32 %v717, %v734
    %v744 = vadd.f32 %v718, %v736
    %s745 = sld [smem:[#allocation4 + $0x1a]]
    %v746 = vstv %s745
    %v747 = vmul.f32 %v746, %v706
    %v748 = vmul.f32 %v746, %v707
    %v749 = vmul.f32 %v746, %v708
    %v750 = vmul.f32 %v746, %v709
    %755 = vrot.lane.b32.xlu0 %v747, 126
    %v756 = vpop.permute.xlu0 %755
    %757 = vrot.lane.b32.xlu0 %v748, 126
    %v758 = vpop.permute.xlu0 %757
    %759 = vrot.lane.b32.xlu0 %v749, 126
    %v760 = vpop.permute.xlu0 %759
    %761 = vrot.lane.b32.xlu0 %v750, 126
    %v762 = vpop.permute.xlu0 %761
    %v767 = vadd.f32 %v741, %v756
    %v768 = vadd.f32 %v742, %v758
    %v769 = vadd.f32 %v743, %v760
    %v770 = vadd.f32 %v744, %v762
    %s771 = sld [smem:[#allocation6 + $0x2]]
    %v772 = vstv %s771
    %v773 = vadd.f32 %v767, %v772
    %v774 = vadd.f32 %v768, %v772
    %v775 = vadd.f32 %v769, %v772
    %v776 = vadd.f32 %v770, %v772
    %v777 = vmax.f32 %v773, 0.0
    %v778 = vmax.f32 %v774, 0.0
    %v779 = vmax.f32 %v775, 0.0
    %v780 = vmax.f32 %v776, 0.0
    %785 = vrot.lane.b32.xlu0 %v777, 1
    %v786 = vpop.permute.xlu0 %785
    %787 = vrot.lane.b32.xlu0 %v778, 1
    %v788 = vpop.permute.xlu0 %787
    %789 = vrot.lane.b32.xlu0 %v779, 1
    %v790 = vpop.permute.xlu0 %789
    %791 = vrot.lane.b32.xlu0 %v780, 1
    %v792 = vpop.permute.xlu0 %791
    %s797 = scalar_lea.vmem [#allocation3], 64
    %798 = vst.msk [vmem:[%s797 + $0x1] sm:$0xff] %vm110, %v786
    %799 = vst.msk [vmem:[%s797 + $0x9] sm:$0x1] %vm112, %v788
    %800 = vst.msk [vmem:[%s797 + $0x11] sm:$0xff] %vm110, %v790
    %801 = vst.msk [vmem:[%s797 + $0x19] sm:$0x1] %vm112, %v792
    %s802 = sld [smem:[#allocation4 + $0x1b]]
    %v803 = vld [vmem:[#allocation2] sm:$0xff]
    %v804 = vld [vmem:[#allocation2 + $0x8] sm:$0x1]
    %v805 = vld [vmem:[#allocation2 + $0x10] sm:$0xff]
    %v806 = vld [vmem:[#allocation2 + $0x18] sm:$0x1]
    %v807 = vstv %s802
    %v808 = vmul.f32 %v807, %v803
    %v809 = vmul.f32 %v807, %v804
    %v810 = vmul.f32 %v807, %v805
    %v811 = vmul.f32 %v807, %v806
    %v812 = vadd.f32 %v808, 0.0
    %v813 = vadd.f32 %v809, 0.0
    %v814 = vadd.f32 %v810, 0.0
    %v815 = vadd.f32 %v811, 0.0
    %s816 = sld [smem:[#allocation4 + $0x1c]]
    %v817 = vstv %s816
    %v818 = vmul.f32 %v817, %v803
    %v819 = vmul.f32 %v817, %v804
    %v820 = vmul.f32 %v817, %v805
    %v821 = vmul.f32 %v817, %v806
    %826 = vrot.lane.b32.xlu0 %v818, 127
    %v827 = vpop.permute.xlu0 %826
    %828 = vrot.lane.b32.xlu0 %v819, 127
    %v829 = vpop.permute.xlu0 %828
    %830 = vrot.lane.b32.xlu0 %v820, 127
    %v831 = vpop.permute.xlu0 %830
    %832 = vrot.lane.b32.xlu0 %v821, 127
    %v833 = vpop.permute.xlu0 %832
    %v838 = vadd.f32 %v812, %v827
    %v839 = vadd.f32 %v813, %v829
    %v840 = vadd.f32 %v814, %v831
    %v841 = vadd.f32 %v815, %v833
    %s842 = sld [smem:[#allocation4 + $0x1d]]
    %v843 = vstv %s842
    %v844 = vmul.f32 %v843, %v803
    %v845 = vmul.f32 %v843, %v804
    %v846 = vmul.f32 %v843, %v805
    %v847 = vmul.f32 %v843, %v806
    %852 = vrot.lane.b32.xlu0 %v844, 126
    %v853 = vpop.permute.xlu0 %852
    %854 = vrot.lane.b32.xlu0 %v845, 126
    %v855 = vpop.permute.xlu0 %854
    %856 = vrot.lane.b32.xlu0 %v846, 126
    %v857 = vpop.permute.xlu0 %856
    %858 = vrot.lane.b32.xlu0 %v847, 126
    %v859 = vpop.permute.xlu0 %858
    %v864 = vadd.f32 %v838, %v853
    %v865 = vadd.f32 %v839, %v855
    %v866 = vadd.f32 %v840, %v857
    %v867 = vadd.f32 %v841, %v859
    %s868 = sld [smem:[#allocation4 + $0x1e]]
    %v869 = vld [vmem:[#allocation2 + $0x1] sm:$0xff]
    %v870 = vld [vmem:[#allocation2 + $0x9] sm:$0x1]
    %v871 = vld [vmem:[#allocation2 + $0x11] sm:$0xff]
    %v872 = vld [vmem:[#allocation2 + $0x19] sm:$0x1]
    %v873 = vstv %s868
    %v874 = vmul.f32 %v873, %v869
    %v875 = vmul.f32 %v873, %v870
    %v876 = vmul.f32 %v873, %v871
    %v877 = vmul.f32 %v873, %v872
    %v878 = vadd.f32 %v864, %v874
    %v879 = vadd.f32 %v865, %v875
    %v880 = vadd.f32 %v866, %v876
    %v881 = vadd.f32 %v867, %v877
    %s882 = sld [smem:[#allocation4 + $0x1f]]
    %v883 = vstv %s882
    %v884 = vmul.f32 %v883, %v869
    %v885 = vmul.f32 %v883, %v870
    %v886 = vmul.f32 %v883, %v871
    %v887 = vmul.f32 %v883, %v872
    %892 = vrot.lane.b32.xlu0 %v884, 127
    %v893 = vpop.permute.xlu0 %892
    %894 = vrot.lane.b32.xlu0 %v885, 127
    %v895 = vpop.permute.xlu0 %894
    %896 = vrot.lane.b32.xlu0 %v886, 127
    %v897 = vpop.permute.xlu0 %896
    %898 = vrot.lane.b32.xlu0 %v887, 127
    %v899 = vpop.permute.xlu0 %898
    %v904 = vadd.f32 %v878, %v893
    %v905 = vadd.f32 %v879, %v895
    %v906 = vadd.f32 %v880, %v897
    %v907 = vadd.f32 %v881, %v899
    %s908 = sld [smem:[#allocation4 + $0x20]]
    %v909 = vstv %s908
    %v910 = vmul.f32 %v909, %v869
    %v911 = vmul.f32 %v909, %v870
    %v912 = vmul.f32 %v909, %v871
    %v913 = vmul.f32 %v909, %v872
    %918 = vrot.lane.b32.xlu0 %v910, 126
    %v919 = vpop.permute.xlu0 %918
    %920 = vrot.lane.b32.xlu0 %v911, 126
    %v921 = vpop.permute.xlu0 %920
    %922 = vrot.lane.b32.xlu0 %v912, 126
    %v923 = vpop.permute.xlu0 %922
    %924 = vrot.lane.b32.xlu0 %v913, 126
    %v925 = vpop.permute.xlu0 %924
    %v930 = vadd.f32 %v904, %v919
    %v931 = vadd.f32 %v905, %v921
    %v932 = vadd.f32 %v906, %v923
    %v933 = vadd.f32 %v907, %v925
    %s934 = sld [smem:[#allocation4 + $0x21]]
    %v935 = vld [vmem:[#allocation2 + $0x2] sm:$0xff]
    %v936 = vld [vmem:[#allocation2 + $0xa] sm:$0x1]
    %v937 = vld [vmem:[#allocation2 + $0x12] sm:$0xff]
    %v938 = vld [vmem:[#allocation2 + $0x1a] sm:$0x1]
    %v939 = vstv %s934
    %v940 = vmul.f32 %v939, %v935
    %v941 = vmul.f32 %v939, %v936
    %v942 = vmul.f32 %v939, %v937
    %v943 = vmul.f32 %v939, %v938
    %v944 = vadd.f32 %v930, %v940
    %v945 = vadd.f32 %v931, %v941
    %v946 = vadd.f32 %v932, %v942
    %v947 = vadd.f32 %v933, %v943
    %s948 = sld [smem:[#allocation4 + $0x22]]
    %v949 = vstv %s948
    %v950 = vmul.f32 %v949, %v935
    %v951 = vmul.f32 %v949, %v936
    %v952 = vmul.f32 %v949, %v937
    %v953 = vmul.f32 %v949, %v938
    %958 = vrot.lane.b32.xlu0 %v950, 127
    %v959 = vpop.permute.xlu0 %958
    %960 = vrot.lane.b32.xlu0 %v951, 127
    %v961 = vpop.permute.xlu0 %960
    %962 = vrot.lane.b32.xlu0 %v952, 127
    %v963 = vpop.permute.xlu0 %962
    %964 = vrot.lane.b32.xlu0 %v953, 127
    %v965 = vpop.permute.xlu0 %964
    %v970 = vadd.f32 %v944, %v959
    %v971 = vadd.f32 %v945, %v961
    %v972 = vadd.f32 %v946, %v963
    %v973 = vadd.f32 %v947, %v965
    %s974 = sld [smem:[#allocation4 + $0x23]]
    %v975 = vstv %s974
    %v976 = vmul.f32 %v975, %v935
    %v977 = vmul.f32 %v975, %v936
    %v978 = vmul.f32 %v975, %v937
    %v979 = vmul.f32 %v975, %v938
    %984 = vrot.lane.b32.xlu0 %v976, 126
    %v985 = vpop.permute.xlu0 %984
    %986 = vrot.lane.b32.xlu0 %v977, 126
    %v987 = vpop.permute.xlu0 %986
    %988 = vrot.lane.b32.xlu0 %v978, 126
    %v989 = vpop.permute.xlu0 %988
    %990 = vrot.lane.b32.xlu0 %v979, 126
    %v991 = vpop.permute.xlu0 %990
    %v996 = vadd.f32 %v970, %v985
    %v997 = vadd.f32 %v971, %v987
    %v998 = vadd.f32 %v972, %v989
    %v999 = vadd.f32 %v973, %v991
    %s1000 = sld [smem:[#allocation6 + $0x3]]
    %v1001 = vstv %s1000
    %v1002 = vadd.f32 %v996, %v1001
    %v1003 = vadd.f32 %v997, %v1001
    %v1004 = vadd.f32 %v998, %v1001
    %v1005 = vadd.f32 %v999, %v1001
    %v1006 = vmax.f32 %v1002, 0.0
    %v1007 = vmax.f32 %v1003, 0.0
    %v1008 = vmax.f32 %v1004, 0.0
    %v1009 = vmax.f32 %v1005, 0.0
    %1014 = vrot.lane.b32.xlu0 %v1006, 1
    %v1015 = vpop.permute.xlu0 %1014
    %1016 = vrot.lane.b32.xlu0 %v1007, 1
    %v1017 = vpop.permute.xlu0 %1016
    %1018 = vrot.lane.b32.xlu0 %v1008, 1
    %v1019 = vpop.permute.xlu0 %1018
    %1020 = vrot.lane.b32.xlu0 %v1009, 1
    %v1021 = vpop.permute.xlu0 %1020
    %s1026 = scalar_lea.vmem [#allocation3], 96
    %1027 = vst.msk [vmem:[%s1026 + $0x1] sm:$0xff] %vm110, %v1015
    %1028 = vst.msk [vmem:[%s1026 + $0x9] sm:$0x1] %vm112, %v1017
    %1029 = vst.msk [vmem:[%s1026 + $0x11] sm:$0xff] %vm110, %v1019
    %1030 = vst.msk [vmem:[%s1026 + $0x19] sm:$0x1] %vm112, %v1021
    %s1031 = sld [smem:[#allocation8]]
    %v1032 = vld [vmem:[#allocation3] sm:$0xff]
    %v1033 = vld [vmem:[#allocation3 + $0x8] sm:$0x1]
    %v1034 = vld [vmem:[#allocation3 + $0x10] sm:$0xff]
    %v1035 = vld [vmem:[#allocation3 + $0x18] sm:$0x1]
    %v1036 = vstv %s1031
    %v1037 = vmul.f32 %v1036, %v1032
    %v1038 = vmul.f32 %v1036, %v1033
    %v1039 = vmul.f32 %v1036, %v1034
    %v1040 = vmul.f32 %v1036, %v1035
    %v1041 = vadd.f32 %v1037, 0.0
    %v1042 = vadd.f32 %v1038, 0.0
    %v1043 = vadd.f32 %v1039, 0.0
    %v1044 = vadd.f32 %v1040, 0.0
    %s1045 = sld [smem:[#allocation8 + $0x1]]
    %v1046 = vstv %s1045
    %v1047 = vmul.f32 %v1046, %v1032
    %v1048 = vmul.f32 %v1046, %v1033
    %v1049 = vmul.f32 %v1046, %v1034
    %v1050 = vmul.f32 %v1046, %v1035
    %1055 = vrot.lane.b32.xlu0 %v1047, 127
    %v1056 = vpop.permute.xlu0 %1055
    %1057 = vrot.lane.b32.xlu0 %v1048, 127
    %v1058 = vpop.permute.xlu0 %1057
    %1059 = vrot.lane.b32.xlu0 %v1049, 127
    %v1060 = vpop.permute.xlu0 %1059
    %1061 = vrot.lane.b32.xlu0 %v1050, 127
    %v1062 = vpop.permute.xlu0 %1061
    %v1067 = vadd.f32 %v1041, %v1056
    %v1068 = vadd.f32 %v1042, %v1058
    %v1069 = vadd.f32 %v1043, %v1060
    %v1070 = vadd.f32 %v1044, %v1062
    %s1071 = sld [smem:[#allocation8 + $0x2]]
    %v1072 = vstv %s1071
    %v1073 = vmul.f32 %v1072, %v1032
    %v1074 = vmul.f32 %v1072, %v1033
    %v1075 = vmul.f32 %v1072, %v1034
    %v1076 = vmul.f32 %v1072, %v1035
    %1081 = vrot.lane.b32.xlu0 %v1073, 126
    %v1082 = vpop.permute.xlu0 %1081
    %1083 = vrot.lane.b32.xlu0 %v1074, 126
    %v1084 = vpop.permute.xlu0 %1083
    %1085 = vrot.lane.b32.xlu0 %v1075, 126
    %v1086 = vpop.permute.xlu0 %1085
    %1087 = vrot.lane.b32.xlu0 %v1076, 126
    %v1088 = vpop.permute.xlu0 %1087
    %v1093 = vadd.f32 %v1067, %v1082
    %v1094 = vadd.f32 %v1068, %v1084
    %v1095 = vadd.f32 %v1069, %v1086
    %v1096 = vadd.f32 %v1070, %v1088
    %s1097 = sld [smem:[#allocation8 + $0x3]]
    %v1098 = vld [vmem:[#allocation3 + $0x1] sm:$0xff]
    %v1099 = vld [vmem:[#allocation3 + $0x9] sm:$0x1]
    %v1100 = vld [vmem:[#allocation3 + $0x11] sm:$0xff]
    %v1101 = vld [vmem:[#allocation3 + $0x19] sm:$0x1]
    %v1102 = vstv %s1097
    %v1103 = vmul.f32 %v1102, %v1098
    %v1104 = vmul.f32 %v1102, %v1099
    %v1105 = vmul.f32 %v1102, %v1100
    %v1106 = vmul.f32 %v1102, %v1101
    %v1107 = vadd.f32 %v1093, %v1103
    %v1108 = vadd.f32 %v1094, %v1104
    %v1109 = vadd.f32 %v1095, %v1105
    %v1110 = vadd.f32 %v1096, %v1106
    %s1111 = sld [smem:[#allocation8 + $0x4]]
    %v1112 = vstv %s1111
    %v1113 = vmul.f32 %v1112, %v1098
    %v1114 = vmul.f32 %v1112, %v1099
    %v1115 = vmul.f32 %v1112, %v1100
    %v1116 = vmul.f32 %v1112, %v1101
    %1121 = vrot.lane.b32.xlu0 %v1113, 127
    %v1122 = vpop.permute.xlu0 %1121
    %1123 = vrot.lane.b32.xlu0 %v1114, 127
    %v1124 = vpop.permute.xlu0 %1123
    %1125 = vrot.lane.b32.xlu0 %v1115, 127
    %v1126 = vpop.permute.xlu0 %1125
    %1127 = vrot.lane.b32.xlu0 %v1116, 127
    %v1128 = vpop.permute.xlu0 %1127
    %v1133 = vadd.f32 %v1107, %v1122
    %v1134 = vadd.f32 %v1108, %v1124
    %v1135 = vadd.f32 %v1109, %v1126
    %v1136 = vadd.f32 %v1110, %v1128
    %s1137 = sld [smem:[#allocation8 + $0x5]]
    %v1138 = vstv %s1137
    %v1139 = vmul.f32 %v1138, %v1098
    %v1140 = vmul.f32 %v1138, %v1099
    %v1141 = vmul.f32 %v1138, %v1100
    %v1142 = vmul.f32 %v1138, %v1101
    %1147 = vrot.lane.b32.xlu0 %v1139, 126
    %v1148 = vpop.permute.xlu0 %1147
    %1149 = vrot.lane.b32.xlu0 %v1140, 126
    %v1150 = vpop.permute.xlu0 %1149
    %1151 = vrot.lane.b32.xlu0 %v1141, 126
    %v1152 = vpop.permute.xlu0 %1151
    %1153 = vrot.lane.b32.xlu0 %v1142, 126
    %v1154 = vpop.permute.xlu0 %1153
    %v1159 = vadd.f32 %v1133, %v1148
    %v1160 = vadd.f32 %v1134, %v1150
    %v1161 = vadd.f32 %v1135, %v1152
    %v1162 = vadd.f32 %v1136, %v1154
    %s1163 = sld [smem:[#allocation8 + $0x6]]
    %v1164 = vld [vmem:[#allocation3 + $0x2] sm:$0xff]
    %v1165 = vld [vmem:[#allocation3 + $0xa] sm:$0x1]
    %v1166 = vld [vmem:[#allocation3 + $0x12] sm:$0xff]
    %v1167 = vld [vmem:[#allocation3 + $0x1a] sm:$0x1]
    %v1168 = vstv %s1163
    %v1169 = vmul.f32 %v1168, %v1164
    %v1170 = vmul.f32 %v1168, %v1165
    %v1171 = vmul.f32 %v1168, %v1166
    %v1172 = vmul.f32 %v1168, %v1167
    %v1173 = vadd.f32 %v1159, %v1169
    %v1174 = vadd.f32 %v1160, %v1170
    %v1175 = vadd.f32 %v1161, %v1171
    %v1176 = vadd.f32 %v1162, %v1172
    %s1177 = sld [smem:[#allocation8 + $0x7]]
    %v1178 = vstv %s1177
    %v1179 = vmul.f32 %v1178, %v1164
    %v1180 = vmul.f32 %v1178, %v1165
    %v1181 = vmul.f32 %v1178, %v1166
    %v1182 = vmul.f32 %v1178, %v1167
    %1187 = vrot.lane.b32.xlu0 %v1179, 127
    %v1188 = vpop.permute.xlu0 %1187
    %1189 = vrot.lane.b32.xlu0 %v1180, 127
    %v1190 = vpop.permute.xlu0 %1189
    %1191 = vrot.lane.b32.xlu0 %v1181, 127
    %v1192 = vpop.permute.xlu0 %1191
    %1193 = vrot.lane.b32.xlu0 %v1182, 127
    %v1194 = vpop.permute.xlu0 %1193
    %v1199 = vadd.f32 %v1173, %v1188
    %v1200 = vadd.f32 %v1174, %v1190
    %v1201 = vadd.f32 %v1175, %v1192
    %v1202 = vadd.f32 %v1176, %v1194
    %s1203 = sld [smem:[#allocation8 + $0x8]]
    %v1204 = vstv %s1203
    %v1205 = vmul.f32 %v1204, %v1164
    %v1206 = vmul.f32 %v1204, %v1165
    %v1207 = vmul.f32 %v1204, %v1166
    %v1208 = vmul.f32 %v1204, %v1167
    %1213 = vrot.lane.b32.xlu0 %v1205, 126
    %v1214 = vpop.permute.xlu0 %1213
    %1215 = vrot.lane.b32.xlu0 %v1206, 126
    %v1216 = vpop.permute.xlu0 %1215
    %1217 = vrot.lane.b32.xlu0 %v1207, 126
    %v1218 = vpop.permute.xlu0 %1217
    %1219 = vrot.lane.b32.xlu0 %v1208, 126
    %v1220 = vpop.permute.xlu0 %1219
    %v1225 = vadd.f32 %v1199, %v1214
    %v1226 = vadd.f32 %v1200, %v1216
    %v1227 = vadd.f32 %v1201, %v1218
    %v1228 = vadd.f32 %v1202, %v1220
    %s1229 = sld [smem:[#allocation8 + $0x9]]
    %v1230 = vld [vmem:[%s568] sm:$0xff]
    %v1231 = vld [vmem:[%s568 + $0x8] sm:$0x1]
    %v1232 = vld [vmem:[%s568 + $0x10] sm:$0xff]
    %v1233 = vld [vmem:[%s568 + $0x18] sm:$0x1]
    %v1234 = vstv %s1229
    %v1235 = vmul.f32 %v1234, %v1230
    %v1236 = vmul.f32 %v1234, %v1231
    %v1237 = vmul.f32 %v1234, %v1232
    %v1238 = vmul.f32 %v1234, %v1233
    %v1239 = vadd.f32 %v1225, %v1235
    %v1240 = vadd.f32 %v1226, %v1236
    %v1241 = vadd.f32 %v1227, %v1237
    %v1242 = vadd.f32 %v1228, %v1238
    %s1243 = sld [smem:[#allocation8 + $0xa]]
    %v1244 = vstv %s1243
    %v1245 = vmul.f32 %v1244, %v1230
    %v1246 = vmul.f32 %v1244, %v1231
    %v1247 = vmul.f32 %v1244, %v1232
    %v1248 = vmul.f32 %v1244, %v1233
    %1253 = vrot.lane.b32.xlu0 %v1245, 127
    %v1254 = vpop.permute.xlu0 %1253
    %1255 = vrot.lane.b32.xlu0 %v1246, 127
    %v1256 = vpop.permute.xlu0 %1255
    %1257 = vrot.lane.b32.xlu0 %v1247, 127
    %v1258 = vpop.permute.xlu0 %1257
    %1259 = vrot.lane.b32.xlu0 %v1248, 127
    %v1260 = vpop.permute.xlu0 %1259
    %v1265 = vadd.f32 %v1239, %v1254
    %v1266 = vadd.f32 %v1240, %v1256
    %v1267 = vadd.f32 %v1241, %v1258
    %v1268 = vadd.f32 %v1242, %v1260
    %s1269 = sld [smem:[#allocation8 + $0xb]]
    %v1270 = vstv %s1269
    %v1271 = vmul.f32 %v1270, %v1230
    %v1272 = vmul.f32 %v1270, %v1231
    %v1273 = vmul.f32 %v1270, %v1232
    %v1274 = vmul.f32 %v1270, %v1233
    %1279 = vrot.lane.b32.xlu0 %v1271, 126
    %v1280 = vpop.permute.xlu0 %1279
    %1281 = vrot.lane.b32.xlu0 %v1272, 126
    %v1282 = vpop.permute.xlu0 %1281
    %1283 = vrot.lane.b32.xlu0 %v1273, 126
    %v1284 = vpop.permute.xlu0 %1283
    %1285 = vrot.lane.b32.xlu0 %v1274, 126
    %v1286 = vpop.permute.xlu0 %1285
    %v1291 = vadd.f32 %v1265, %v1280
    %v1292 = vadd.f32 %v1266, %v1282
    %v1293 = vadd.f32 %v1267, %v1284
    %v1294 = vadd.f32 %v1268, %v1286
    %s1295 = sld [smem:[#allocation8 + $0xc]]
    %v1296 = vld [vmem:[%s568 + $0x1] sm:$0xff]
    %v1297 = vld [vmem:[%s568 + $0x9] sm:$0x1]
    %v1298 = vld [vmem:[%s568 + $0x11] sm:$0xff]
    %v1299 = vld [vmem:[%s568 + $0x19] sm:$0x1]
    %v1300 = vstv %s1295
    %v1301 = vmul.f32 %v1300, %v1296
    %v1302 = vmul.f32 %v1300, %v1297
    %v1303 = vmul.f32 %v1300, %v1298
    %v1304 = vmul.f32 %v1300, %v1299
    %v1305 = vadd.f32 %v1291, %v1301
    %v1306 = vadd.f32 %v1292, %v1302
    %v1307 = vadd.f32 %v1293, %v1303
    %v1308 = vadd.f32 %v1294, %v1304
    %s1309 = sld [smem:[#allocation8 + $0xd]]
    %v1310 = vstv %s1309
    %v1311 = vmul.f32 %v1310, %v1296
    %v1312 = vmul.f32 %v1310, %v1297
    %v1313 = vmul.f32 %v1310, %v1298
    %v1314 = vmul.f32 %v1310, %v1299
    %1319 = vrot.lane.b32.xlu0 %v1311, 127
    %v1320 = vpop.permute.xlu0 %1319
    %1321 = vrot.lane.b32.xlu0 %v1312, 127
    %v1322 = vpop.permute.xlu0 %1321
    %1323 = vrot.lane.b32.xlu0 %v1313, 127
    %v1324 = vpop.permute.xlu0 %1323
    %1325 = vrot.lane.b32.xlu0 %v1314, 127
    %v1326 = vpop.permute.xlu0 %1325
    %v1331 = vadd.f32 %v1305, %v1320
    %v1332 = vadd.f32 %v1306, %v1322
    %v1333 = vadd.f32 %v1307, %v1324
    %v1334 = vadd.f32 %v1308, %v1326
    %s1335 = sld [smem:[#allocation8 + $0xe]]
    %v1336 = vstv %s1335
    %v1337 = vmul.f32 %v1336, %v1296
    %v1338 = vmul.f32 %v1336, %v1297
    %v1339 = vmul.f32 %v1336, %v1298
    %v1340 = vmul.f32 %v1336, %v1299
    %1345 = vrot.lane.b32.xlu0 %v1337, 126
    %v1346 = vpop.permute.xlu0 %1345
    %1347 = vrot.lane.b32.xlu0 %v1338, 126
    %v1348 = vpop.permute.xlu0 %1347
    %1349 = vrot.lane.b32.xlu0 %v1339, 126
    %v1350 = vpop.permute.xlu0 %1349
    %1351 = vrot.lane.b32.xlu0 %v1340, 126
    %v1352 = vpop.permute.xlu0 %1351
    %v1357 = vadd.f32 %v1331, %v1346
    %v1358 = vadd.f32 %v1332, %v1348
    %v1359 = vadd.f32 %v1333, %v1350
    %v1360 = vadd.f32 %v1334, %v1352
    %s1361 = sld [smem:[#allocation8 + $0xf]]
    %v1362 = vld [vmem:[%s568 + $0x2] sm:$0xff]
    %v1363 = vld [vmem:[%s568 + $0xa] sm:$0x1]
    %v1364 = vld [vmem:[%s568 + $0x12] sm:$0xff]
    %v1365 = vld [vmem:[%s568 + $0x1a] sm:$0x1]
    %v1366 = vstv %s1361
    %v1367 = vmul.f32 %v1366, %v1362
    %v1368 = vmul.f32 %v1366, %v1363
    %v1369 = vmul.f32 %v1366, %v1364
    %v1370 = vmul.f32 %v1366, %v1365
    %v1371 = vadd.f32 %v1357, %v1367
    %v1372 = vadd.f32 %v1358, %v1368
    %v1373 = vadd.f32 %v1359, %v1369
    %v1374 = vadd.f32 %v1360, %v1370
    %s1375 = sld [smem:[#allocation8 + $0x10]]
    %v1376 = vstv %s1375
    %v1377 = vmul.f32 %v1376, %v1362
    %v1378 = vmul.f32 %v1376, %v1363
    %v1379 = vmul.f32 %v1376, %v1364
    %v1380 = vmul.f32 %v1376, %v1365
    %1385 = vrot.lane.b32.xlu0 %v1377, 127
    %v1386 = vpop.permute.xlu0 %1385
    %1387 = vrot.lane.b32.xlu0 %v1378, 127
    %v1388 = vpop.permute.xlu0 %1387
    %1389 = vrot.lane.b32.xlu0 %v1379, 127
    %v1390 = vpop.permute.xlu0 %1389
    %1391 = vrot.lane.b32.xlu0 %v1380, 127
    %v1392 = vpop.permute.xlu0 %1391
    %v1397 = vadd.f32 %v1371, %v1386
    %v1398 = vadd.f32 %v1372, %v1388
    %v1399 = vadd.f32 %v1373, %v1390
    %v1400 = vadd.f32 %v1374, %v1392
    %s1401 = sld [smem:[#allocation8 + $0x11]]
    %v1402 = vstv %s1401
    %v1403 = vmul.f32 %v1402, %v1362
    %v1404 = vmul.f32 %v1402, %v1363
    %v1405 = vmul.f32 %v1402, %v1364
    %v1406 = vmul.f32 %v1402, %v1365
    %1411 = vrot.lane.b32.xlu0 %v1403, 126
    %v1412 = vpop.permute.xlu0 %1411
    %1413 = vrot.lane.b32.xlu0 %v1404, 126
    %v1414 = vpop.permute.xlu0 %1413
    %1415 = vrot.lane.b32.xlu0 %v1405, 126
    %v1416 = vpop.permute.xlu0 %1415
    %1417 = vrot.lane.b32.xlu0 %v1406, 126
    %v1418 = vpop.permute.xlu0 %1417
    %v1423 = vadd.f32 %v1397, %v1412
    %v1424 = vadd.f32 %v1398, %v1414
    %v1425 = vadd.f32 %v1399, %v1416
    %v1426 = vadd.f32 %v1400, %v1418
    %s1427 = sld [smem:[#allocation8 + $0x12]]
    %v1428 = vld [vmem:[%s797] sm:$0xff]
    %v1429 = vld [vmem:[%s797 + $0x8] sm:$0x1]
    %v1430 = vld [vmem:[%s797 + $0x10] sm:$0xff]
    %v1431 = vld [vmem:[%s797 + $0x18] sm:$0x1]
    %v1432 = vstv %s1427
    %v1433 = vmul.f32 %v1432, %v1428
    %v1434 = vmul.f32 %v1432, %v1429
    %v1435 = vmul.f32 %v1432, %v1430
    %v1436 = vmul.f32 %v1432, %v1431
    %v1437 = vadd.f32 %v1423, %v1433
    %v1438 = vadd.f32 %v1424, %v1434
    %v1439 = vadd.f32 %v1425, %v1435
    %v1440 = vadd.f32 %v1426, %v1436
    %s1441 = sld [smem:[#allocation8 + $0x13]]
    %v1442 = vstv %s1441
    %v1443 = vmul.f32 %v1442, %v1428
    %v1444 = vmul.f32 %v1442, %v1429
    %v1445 = vmul.f32 %v1442, %v1430
    %v1446 = vmul.f32 %v1442, %v1431
    %1451 = vrot.lane.b32.xlu0 %v1443, 127
    %v1452 = vpop.permute.xlu0 %1451
    %1453 = vrot.lane.b32.xlu0 %v1444, 127
    %v1454 = vpop.permute.xlu0 %1453
    %1455 = vrot.lane.b32.xlu0 %v1445, 127
    %v1456 = vpop.permute.xlu0 %1455
    %1457 = vrot.lane.b32.xlu0 %v1446, 127
    %v1458 = vpop.permute.xlu0 %1457
    %v1463 = vadd.f32 %v1437, %v1452
    %v1464 = vadd.f32 %v1438, %v1454
    %v1465 = vadd.f32 %v1439, %v1456
    %v1466 = vadd.f32 %v1440, %v1458
    %s1467 = sld [smem:[#allocation8 + $0x14]]
    %v1468 = vstv %s1467
    %v1469 = vmul.f32 %v1468, %v1428
    %v1470 = vmul.f32 %v1468, %v1429
    %v1471 = vmul.f32 %v1468, %v1430
    %v1472 = vmul.f32 %v1468, %v1431
    %1477 = vrot.lane.b32.xlu0 %v1469, 126
    %v1478 = vpop.permute.xlu0 %1477
    %1479 = vrot.lane.b32.xlu0 %v1470, 126
    %v1480 = vpop.permute.xlu0 %1479
    %1481 = vrot.lane.b32.xlu0 %v1471, 126
    %v1482 = vpop.permute.xlu0 %1481
    %1483 = vrot.lane.b32.xlu0 %v1472, 126
    %v1484 = vpop.permute.xlu0 %1483
    %v1489 = vadd.f32 %v1463, %v1478
    %v1490 = vadd.f32 %v1464, %v1480
    %v1491 = vadd.f32 %v1465, %v1482
    %v1492 = vadd.f32 %v1466, %v1484
    %s1493 = sld [smem:[#allocation8 + $0x15]]
    %v1494 = vld [vmem:[%s797 + $0x1] sm:$0xff]
    %v1495 = vld [vmem:[%s797 + $0x9] sm:$0x1]
    %v1496 = vld [vmem:[%s797 + $0x11] sm:$0xff]
    %v1497 = vld [vmem:[%s797 + $0x19] sm:$0x1]
    %v1498 = vstv %s1493
    %v1499 = vmul.f32 %v1498, %v1494
    %v1500 = vmul.f32 %v1498, %v1495
    %v1501 = vmul.f32 %v1498, %v1496
    %v1502 = vmul.f32 %v1498, %v1497
    %v1503 = vadd.f32 %v1489, %v1499
    %v1504 = vadd.f32 %v1490, %v1500
    %v1505 = vadd.f32 %v1491, %v1501
    %v1506 = vadd.f32 %v1492, %v1502
    %s1507 = sld [smem:[#allocation8 + $0x16]]
    %v1508 = vstv %s1507
    %v1509 = vmul.f32 %v1508, %v1494
    %v1510 = vmul.f32 %v1508, %v1495
    %v1511 = vmul.f32 %v1508, %v1496
    %v1512 = vmul.f32 %v1508, %v1497
    %1517 = vrot.lane.b32.xlu0 %v1509, 127
    %v1518 = vpop.permute.xlu0 %1517
    %1519 = vrot.lane.b32.xlu0 %v1510, 127
    %v1520 = vpop.permute.xlu0 %1519
    %1521 = vrot.lane.b32.xlu0 %v1511, 127
    %v1522 = vpop.permute.xlu0 %1521
    %1523 = vrot.lane.b32.xlu0 %v1512, 127
    %v1524 = vpop.permute.xlu0 %1523
    %v1529 = vadd.f32 %v1503, %v1518
    %v1530 = vadd.f32 %v1504, %v1520
    %v1531 = vadd.f32 %v1505, %v1522
    %v1532 = vadd.f32 %v1506, %v1524
    %s1533 = sld [smem:[#allocation8 + $0x17]]
    %v1534 = vstv %s1533
    %v1535 = vmul.f32 %v1534, %v1494
    %v1536 = vmul.f32 %v1534, %v1495
    %v1537 = vmul.f32 %v1534, %v1496
    %v1538 = vmul.f32 %v1534, %v1497
    %1543 = vrot.lane.b32.xlu0 %v1535, 126
    %v1544 = vpop.permute.xlu0 %1543
    %1545 = vrot.lane.b32.xlu0 %v1536, 126
    %v1546 = vpop.permute.xlu0 %1545
    %1547 = vrot.lane.b32.xlu0 %v1537, 126
    %v1548 = vpop.permute.xlu0 %1547
    %1549 = vrot.lane.b32.xlu0 %v1538, 126
    %v1550 = vpop.permute.xlu0 %1549
    %v1555 = vadd.f32 %v1529, %v1544
    %v1556 = vadd.f32 %v1530, %v1546
    %v1557 = vadd.f32 %v1531, %v1548
    %v1558 = vadd.f32 %v1532, %v1550
    %s1559 = sld [smem:[#allocation8 + $0x18]]
    %v1560 = vld [vmem:[%s797 + $0x2] sm:$0xff]
    %v1561 = vld [vmem:[%s797 + $0xa] sm:$0x1]
    %v1562 = vld [vmem:[%s797 + $0x12] sm:$0xff]
    %v1563 = vld [vmem:[%s797 + $0x1a] sm:$0x1]
    %v1564 = vstv %s1559
    %v1565 = vmul.f32 %v1564, %v1560
    %v1566 = vmul.f32 %v1564, %v1561
    %v1567 = vmul.f32 %v1564, %v1562
    %v1568 = vmul.f32 %v1564, %v1563
    %v1569 = vadd.f32 %v1555, %v1565
    %v1570 = vadd.f32 %v1556, %v1566
    %v1571 = vadd.f32 %v1557, %v1567
    %v1572 = vadd.f32 %v1558, %v1568
    %s1573 = sld [smem:[#allocation8 + $0x19]]
    %v1574 = vstv %s1573
    %v1575 = vmul.f32 %v1574, %v1560
    %v1576 = vmul.f32 %v1574, %v1561
    %v1577 = vmul.f32 %v1574, %v1562
    %v1578 = vmul.f32 %v1574, %v1563
    %1583 = vrot.lane.b32.xlu0 %v1575, 127
    %v1584 = vpop.permute.xlu0 %1583
    %1585 = vrot.lane.b32.xlu0 %v1576, 127
    %v1586 = vpop.permute.xlu0 %1585
    %1587 = vrot.lane.b32.xlu0 %v1577, 127
    %v1588 = vpop.permute.xlu0 %1587
    %1589 = vrot.lane.b32.xlu0 %v1578, 127
    %v1590 = vpop.permute.xlu0 %1589
    %v1595 = vadd.f32 %v1569, %v1584
    %v1596 = vadd.f32 %v1570, %v1586
    %v1597 = vadd.f32 %v1571, %v1588
    %v1598 = vadd.f32 %v1572, %v1590
    %s1599 = sld [smem:[#allocation8 + $0x1a]]
    %v1600 = vstv %s1599
    %v1601 = vmul.f32 %v1600, %v1560
    %v1602 = vmul.f32 %v1600, %v1561
    %v1603 = vmul.f32 %v1600, %v1562
    %v1604 = vmul.f32 %v1600, %v1563
    %1609 = vrot.lane.b32.xlu0 %v1601, 126
    %v1610 = vpop.permute.xlu0 %1609
    %1611 = vrot.lane.b32.xlu0 %v1602, 126
    %v1612 = vpop.permute.xlu0 %1611
    %1613 = vrot.lane.b32.xlu0 %v1603, 126
    %v1614 = vpop.permute.xlu0 %1613
    %1615 = vrot.lane.b32.xlu0 %v1604, 126
    %v1616 = vpop.permute.xlu0 %1615
    %v1621 = vadd.f32 %v1595, %v1610
    %v1622 = vadd.f32 %v1596, %v1612
    %v1623 = vadd.f32 %v1597, %v1614
    %v1624 = vadd.f32 %v1598, %v1616
    %s1625 = sld [smem:[#allocation8 + $0x1b]]
    %v1626 = vld [vmem:[%s1026] sm:$0xff]
    %v1627 = vld [vmem:[%s1026 + $0x8] sm:$0x1]
    %v1628 = vld [vmem:[%s1026 + $0x10] sm:$0xff]
    %v1629 = vld [vmem:[%s1026 + $0x18] sm:$0x1]
    %v1630 = vstv %s1625
    %v1631 = vmul.f32 %v1630, %v1626
    %v1632 = vmul.f32 %v1630, %v1627
    %v1633 = vmul.f32 %v1630, %v1628
    %v1634 = vmul.f32 %v1630, %v1629
    %v1635 = vadd.f32 %v1621, %v1631
    %v1636 = vadd.f32 %v1622, %v1632
    %v1637 = vadd.f32 %v1623, %v1633
    %v1638 = vadd.f32 %v1624, %v1634
    %s1639 = sld [smem:[#allocation8 + $0x1c]]
    %v1640 = vstv %s1639
    %v1641 = vmul.f32 %v1640, %v1626
    %v1642 = vmul.f32 %v1640, %v1627
    %v1643 = vmul.f32 %v1640, %v1628
    %v1644 = vmul.f32 %v1640, %v1629
    %1649 = vrot.lane.b32.xlu0 %v1641, 127
    %v1650 = vpop.permute.xlu0 %1649
    %1651 = vrot.lane.b32.xlu0 %v1642, 127
    %v1652 = vpop.permute.xlu0 %1651
    %1653 = vrot.lane.b32.xlu0 %v1643, 127
    %v1654 = vpop.permute.xlu0 %1653
    %1655 = vrot.lane.b32.xlu0 %v1644, 127
    %v1656 = vpop.permute.xlu0 %1655
    %v1661 = vadd.f32 %v1635, %v1650
    %v1662 = vadd.f32 %v1636, %v1652
    %v1663 = vadd.f32 %v1637, %v1654
    %v1664 = vadd.f32 %v1638, %v1656
    %s1665 = sld [smem:[#allocation8 + $0x1d]]
    %v1666 = vstv %s1665
    %v1667 = vmul.f32 %v1666, %v1626
    %v1668 = vmul.f32 %v1666, %v1627
    %v1669 = vmul.f32 %v1666, %v1628
    %v1670 = vmul.f32 %v1666, %v1629
    %1675 = vrot.lane.b32.xlu0 %v1667, 126
    %v1676 = vpop.permute.xlu0 %1675
    %1677 = vrot.lane.b32.xlu0 %v1668, 126
    %v1678 = vpop.permute.xlu0 %1677
    %1679 = vrot.lane.b32.xlu0 %v1669, 126
    %v1680 = vpop.permute.xlu0 %1679
    %1681 = vrot.lane.b32.xlu0 %v1670, 126
    %v1682 = vpop.permute.xlu0 %1681
    %v1687 = vadd.f32 %v1661, %v1676
    %v1688 = vadd.f32 %v1662, %v1678
    %v1689 = vadd.f32 %v1663, %v1680
    %v1690 = vadd.f32 %v1664, %v1682
    %s1691 = sld [smem:[#allocation8 + $0x1e]]
    %v1692 = vld [vmem:[%s1026 + $0x1] sm:$0xff]
    %v1693 = vld [vmem:[%s1026 + $0x9] sm:$0x1]
    %v1694 = vld [vmem:[%s1026 + $0x11] sm:$0xff]
    %v1695 = vld [vmem:[%s1026 + $0x19] sm:$0x1]
    %v1696 = vstv %s1691
    %v1697 = vmul.f32 %v1696, %v1692
    %v1698 = vmul.f32 %v1696, %v1693
    %v1699 = vmul.f32 %v1696, %v1694
    %v1700 = vmul.f32 %v1696, %v1695
    %v1701 = vadd.f32 %v1687, %v1697
    %v1702 = vadd.f32 %v1688, %v1698
    %v1703 = vadd.f32 %v1689, %v1699
    %v1704 = vadd.f32 %v1690, %v1700
    %s1705 = sld [smem:[#allocation8 + $0x1f]]
    %v1706 = vstv %s1705
    %v1707 = vmul.f32 %v1706, %v1692
    %v1708 = vmul.f32 %v1706, %v1693
    %v1709 = vmul.f32 %v1706, %v1694
    %v1710 = vmul.f32 %v1706, %v1695
    %1715 = vrot.lane.b32.xlu0 %v1707, 127
    %v1716 = vpop.permute.xlu0 %1715
    %1717 = vrot.lane.b32.xlu0 %v1708, 127
    %v1718 = vpop.permute.xlu0 %1717
    %1719 = vrot.lane.b32.xlu0 %v1709, 127
    %v1720 = vpop.permute.xlu0 %1719
    %1721 = vrot.lane.b32.xlu0 %v1710, 127
    %v1722 = vpop.permute.xlu0 %1721
    %v1727 = vadd.f32 %v1701, %v1716
    %v1728 = vadd.f32 %v1702, %v1718
    %v1729 = vadd.f32 %v1703, %v1720
    %v1730 = vadd.f32 %v1704, %v1722
    %s1731 = sld [smem:[#allocation8 + $0x20]]
    %v1732 = vstv %s1731
    %v1733 = vmul.f32 %v1732, %v1692
    %v1734 = vmul.f32 %v1732, %v1693
    %v1735 = vmul.f32 %v1732, %v1694
    %v1736 = vmul.f32 %v1732, %v1695
    %1741 = vrot.lane.b32.xlu0 %v1733, 126
    %v1742 = vpop.permute.xlu0 %1741
    %1743 = vrot.lane.b32.xlu0 %v1734, 126
    %v1744 = vpop.permute.xlu0 %1743
    %1745 = vrot.lane.b32.xlu0 %v1735, 126
    %v1746 = vpop.permute.xlu0 %1745
    %1747 = vrot.lane.b32.xlu0 %v1736, 126
    %v1748 = vpop.permute.xlu0 %1747
    %v1753 = vadd.f32 %v1727, %v1742
    %v1754 = vadd.f32 %v1728, %v1744
    %v1755 = vadd.f32 %v1729, %v1746
    %v1756 = vadd.f32 %v1730, %v1748
    %s1757 = sld [smem:[#allocation8 + $0x21]]
    %v1758 = vld [vmem:[%s1026 + $0x2] sm:$0xff]
    %v1759 = vld [vmem:[%s1026 + $0xa] sm:$0x1]
    %v1760 = vld [vmem:[%s1026 + $0x12] sm:$0xff]
    %v1761 = vld [vmem:[%s1026 + $0x1a] sm:$0x1]
    %v1762 = vstv %s1757
    %v1763 = vmul.f32 %v1762, %v1758
    %v1764 = vmul.f32 %v1762, %v1759
    %v1765 = vmul.f32 %v1762, %v1760
    %v1766 = vmul.f32 %v1762, %v1761
    %v1767 = vadd.f32 %v1753, %v1763
    %v1768 = vadd.f32 %v1754, %v1764
    %v1769 = vadd.f32 %v1755, %v1765
    %v1770 = vadd.f32 %v1756, %v1766
    %s1771 = sld [smem:[#allocation8 + $0x22]]
    %v1772 = vstv %s1771
    %v1773 = vmul.f32 %v1772, %v1758
    %v1774 = vmul.f32 %v1772, %v1759
    %v1775 = vmul.f32 %v1772, %v1760
    %v1776 = vmul.f32 %v1772, %v1761
    %1781 = vrot.lane.b32.xlu0 %v1773, 127
    %v1782 = vpop.permute.xlu0 %1781
    %1783 = vrot.lane.b32.xlu0 %v1774, 127
    %v1784 = vpop.permute.xlu0 %1783
    %1785 = vrot.lane.b32.xlu0 %v1775, 127
    %v1786 = vpop.permute.xlu0 %1785
    %1787 = vrot.lane.b32.xlu0 %v1776, 127
    %v1788 = vpop.permute.xlu0 %1787
    %v1793 = vadd.f32 %v1767, %v1782
    %v1794 = vadd.f32 %v1768, %v1784
    %v1795 = vadd.f32 %v1769, %v1786
    %v1796 = vadd.f32 %v1770, %v1788
    %s1797 = sld [smem:[#allocation8 + $0x23]]
    %v1798 = vstv %s1797
    %v1799 = vmul.f32 %v1798, %v1758
    %v1800 = vmul.f32 %v1798, %v1759
    %v1801 = vmul.f32 %v1798, %v1760
    %v1802 = vmul.f32 %v1798, %v1761
    %1807 = vrot.lane.b32.xlu0 %v1799, 126
    %v1808 = vpop.permute.xlu0 %1807
    %1809 = vrot.lane.b32.xlu0 %v1800, 126
    %v1810 = vpop.permute.xlu0 %1809
    %1811 = vrot.lane.b32.xlu0 %v1801, 126
    %v1812 = vpop.permute.xlu0 %1811
    %1813 = vrot.lane.b32.xlu0 %v1802, 126
    %v1814 = vpop.permute.xlu0 %1813
    %v1819 = vadd.f32 %v1793, %v1808
    %v1820 = vadd.f32 %v1794, %v1810
    %v1821 = vadd.f32 %v1795, %v1812
    %v1822 = vadd.f32 %v1796, %v1814
    %s1823 = sld [smem:[#allocation9]]
    %v1824 = vstv %s1823
    %v1825 = vadd.f32 %v1819, %v1824
    %v1826 = vadd.f32 %v1820, %v1824
    %v1827 = vadd.f32 %v1821, %v1824
    %v1828 = vadd.f32 %v1822, %v1824
    %v1829 = vmax.f32 %v1825, 0.0
    %v1830 = vmax.f32 %v1826, 0.0
    %v1831 = vmax.f32 %v1827, 0.0
    %v1832 = vmax.f32 %v1828, 0.0
    %vm1833 = vcmask 195584
    %1834 = vst.msk [vmem:[%s5] sm:$0xff] %vm1833, %v1829
    %vm1835 = vcmask 188416
    %1836 = vst.msk [vmem:[%s5 + $0x8] sm:$0x1] %vm1835, %v1830
    %1837 = vst.msk [vmem:[%s5 + $0x10] sm:$0xff] %vm1833, %v1831
    %1838 = vst.msk [vmem:[%s5 + $0x18] sm:$0x1] %vm1835, %v1832
    %s1839 = sld [smem:[#allocation8 + $0x24]]
    %v1840 = vld [vmem:[#allocation3] sm:$0xff]
    %v1841 = vld [vmem:[#allocation3 + $0x8] sm:$0x1]
    %v1842 = vld [vmem:[#allocation3 + $0x10] sm:$0xff]
    %v1843 = vld [vmem:[#allocation3 + $0x18] sm:$0x1]
    %v1844 = vstv %s1839
    %v1845 = vmul.f32 %v1844, %v1840
    %v1846 = vmul.f32 %v1844, %v1841
    %v1847 = vmul.f32 %v1844, %v1842
    %v1848 = vmul.f32 %v1844, %v1843
    %v1849 = vadd.f32 %v1845, 0.0
    %v1850 = vadd.f32 %v1846, 0.0
    %v1851 = vadd.f32 %v1847, 0.0
    %v1852 = vadd.f32 %v1848, 0.0
    %s1853 = sld [smem:[#allocation8 + $0x25]]
    %v1854 = vstv %s1853
    %v1855 = vmul.f32 %v1854, %v1840
    %v1856 = vmul.f32 %v1854, %v1841
    %v1857 = vmul.f32 %v1854, %v1842
    %v1858 = vmul.f32 %v1854, %v1843
    %1863 = vrot.lane.b32.xlu0 %v1855, 127
    %v1864 = vpop.permute.xlu0 %1863
    %1865 = vrot.lane.b32.xlu0 %v1856, 127
    %v1866 = vpop.permute.xlu0 %1865
    %1867 = vrot.lane.b32.xlu0 %v1857, 127
    %v1868 = vpop.permute.xlu0 %1867
    %1869 = vrot.lane.b32.xlu0 %v1858, 127
    %v1870 = vpop.permute.xlu0 %1869
    %v1875 = vadd.f32 %v1849, %v1864
    %v1876 = vadd.f32 %v1850, %v1866
    %v1877 = vadd.f32 %v1851, %v1868
    %v1878 = vadd.f32 %v1852, %v1870
    %s1879 = sld [smem:[#allocation8 + $0x26]]
    %v1880 = vstv %s1879
    %v1881 = vmul.f32 %v1880, %v1840
    %v1882 = vmul.f32 %v1880, %v1841
    %v1883 = vmul.f32 %v1880, %v1842
    %v1884 = vmul.f32 %v1880, %v1843
    %1889 = vrot.lane.b32.xlu0 %v1881, 126
    %v1890 = vpop.permute.xlu0 %1889
    %1891 = vrot.lane.b32.xlu0 %v1882, 126
    %v1892 = vpop.permute.xlu0 %1891
    %1893 = vrot.lane.b32.xlu0 %v1883, 126
    %v1894 = vpop.permute.xlu0 %1893
    %1895 = vrot.lane.b32.xlu0 %v1884, 126
    %v1896 = vpop.permute.xlu0 %1895
    %v1901 = vadd.f32 %v1875, %v1890
    %v1902 = vadd.f32 %v1876, %v1892
    %v1903 = vadd.f32 %v1877, %v1894
    %v1904 = vadd.f32 %v1878, %v1896
    %s1905 = sld [smem:[#allocation8 + $0x27]]
    %v1906 = vld [vmem:[#allocation3 + $0x1] sm:$0xff]
    %v1907 = vld [vmem:[#allocation3 + $0x9] sm:$0x1]
    %v1908 = vld [vmem:[#allocation3 + $0x11] sm:$0xff]
    %v1909 = vld [vmem:[#allocation3 + $0x19] sm:$0x1]
    %v1910 = vstv %s1905
    %v1911 = vmul.f32 %v1910, %v1906
    %v1912 = vmul.f32 %v1910, %v1907
    %v1913 = vmul.f32 %v1910, %v1908
    %v1914 = vmul.f32 %v1910, %v1909
    %v1915 = vadd.f32 %v1901, %v1911
    %v1916 = vadd.f32 %v1902, %v1912
    %v1917 = vadd.f32 %v1903, %v1913
    %v1918 = vadd.f32 %v1904, %v1914
    %s1919 = sld [smem:[#allocation8 + $0x28]]
    %v1920 = vstv %s1919
    %v1921 = vmul.f32 %v1920, %v1906
    %v1922 = vmul.f32 %v1920, %v1907
    %v1923 = vmul.f32 %v1920, %v1908
    %v1924 = vmul.f32 %v1920, %v1909
    %1929 = vrot.lane.b32.xlu0 %v1921, 127
    %v1930 = vpop.permute.xlu0 %1929
    %1931 = vrot.lane.b32.xlu0 %v1922, 127
    %v1932 = vpop.permute.xlu0 %1931
    %1933 = vrot.lane.b32.xlu0 %v1923, 127
    %v1934 = vpop.permute.xlu0 %1933
    %1935 = vrot.lane.b32.xlu0 %v1924, 127
    %v1936 = vpop.permute.xlu0 %1935
    %v1941 = vadd.f32 %v1915, %v1930
    %v1942 = vadd.f32 %v1916, %v1932
    %v1943 = vadd.f32 %v1917, %v1934
    %v1944 = vadd.f32 %v1918, %v1936
    %s1945 = sld [smem:[#allocation8 + $0x29]]
    %v1946 = vstv %s1945
    %v1947 = vmul.f32 %v1946, %v1906
    %v1948 = vmul.f32 %v1946, %v1907
    %v1949 = vmul.f32 %v1946, %v1908
    %v1950 = vmul.f32 %v1946, %v1909
    %1955 = vrot.lane.b32.xlu0 %v1947, 126
    %v1956 = vpop.permute.xlu0 %1955
    %1957 = vrot.lane.b32.xlu0 %v1948, 126
    %v1958 = vpop.permute.xlu0 %1957
    %1959 = vrot.lane.b32.xlu0 %v1949, 126
    %v1960 = vpop.permute.xlu0 %1959
    %1961 = vrot.lane.b32.xlu0 %v1950, 126
    %v1962 = vpop.permute.xlu0 %1961
    %v1967 = vadd.f32 %v1941, %v1956
    %v1968 = vadd.f32 %v1942, %v1958
    %v1969 = vadd.f32 %v1943, %v1960
    %v1970 = vadd.f32 %v1944, %v1962
    %s1971 = sld [smem:[#allocation8 + $0x2a]]
    %v1972 = vld [vmem:[#allocation3 + $0x2] sm:$0xff]
    %v1973 = vld [vmem:[#allocation3 + $0xa] sm:$0x1]
    %v1974 = vld [vmem:[#allocation3 + $0x12] sm:$0xff]
    %v1975 = vld [vmem:[#allocation3 + $0x1a] sm:$0x1]
    %v1976 = vstv %s1971
    %v1977 = vmul.f32 %v1976, %v1972
    %v1978 = vmul.f32 %v1976, %v1973
    %v1979 = vmul.f32 %v1976, %v1974
    %v1980 = vmul.f32 %v1976, %v1975
    %v1981 = vadd.f32 %v1967, %v1977
    %v1982 = vadd.f32 %v1968, %v1978
    %v1983 = vadd.f32 %v1969, %v1979
    %v1984 = vadd.f32 %v1970, %v1980
    %s1985 = sld [smem:[#allocation8 + $0x2b]]
    %v1986 = vstv %s1985
    %v1987 = vmul.f32 %v1986, %v1972
    %v1988 = vmul.f32 %v1986, %v1973
    %v1989 = vmul.f32 %v1986, %v1974
    %v1990 = vmul.f32 %v1986, %v1975
    %1995 = vrot.lane.b32.xlu0 %v1987, 127
    %v1996 = vpop.permute.xlu0 %1995
    %1997 = vrot.lane.b32.xlu0 %v1988, 127
    %v1998 = vpop.permute.xlu0 %1997
    %1999 = vrot.lane.b32.xlu0 %v1989, 127
    %v2000 = vpop.permute.xlu0 %1999
    %2001 = vrot.lane.b32.xlu0 %v1990, 127
    %v2002 = vpop.permute.xlu0 %2001
    %v2007 = vadd.f32 %v1981, %v1996
    %v2008 = vadd.f32 %v1982, %v1998
    %v2009 = vadd.f32 %v1983, %v2000
    %v2010 = vadd.f32 %v1984, %v2002
    %s2011 = sld [smem:[#allocation8 + $0x2c]]
    %v2012 = vstv %s2011
    %v2013 = vmul.f32 %v2012, %v1972
    %v2014 = vmul.f32 %v2012, %v1973
    %v2015 = vmul.f32 %v2012, %v1974
    %v2016 = vmul.f32 %v2012, %v1975
    %2021 = vrot.lane.b32.xlu0 %v2013, 126
    %v2022 = vpop.permute.xlu0 %2021
    %2023 = vrot.lane.b32.xlu0 %v2014, 126
    %v2024 = vpop.permute.xlu0 %2023
    %2025 = vrot.lane.b32.xlu0 %v2015, 126
    %v2026 = vpop.permute.xlu0 %2025
    %2027 = vrot.lane.b32.xlu0 %v2016, 126
    %v2028 = vpop.permute.xlu0 %2027
    %v2033 = vadd.f32 %v2007, %v2022
    %v2034 = vadd.f32 %v2008, %v2024
    %v2035 = vadd.f32 %v2009, %v2026
    %v2036 = vadd.f32 %v2010, %v2028
    %s2037 = sld [smem:[#allocation8 + $0x2d]]
    %v2038 = vld [vmem:[%s568] sm:$0xff]
    %v2039 = vld [vmem:[%s568 + $0x8] sm:$0x1]
    %v2040 = vld [vmem:[%s568 + $0x10] sm:$0xff]
    %v2041 = vld [vmem:[%s568 + $0x18] sm:$0x1]
    %v2042 = vstv %s2037
    %v2043 = vmul.f32 %v2042, %v2038
    %v2044 = vmul.f32 %v2042, %v2039
    %v2045 = vmul.f32 %v2042, %v2040
    %v2046 = vmul.f32 %v2042, %v2041
    %v2047 = vadd.f32 %v2033, %v2043
    %v2048 = vadd.f32 %v2034, %v2044
    %v2049 = vadd.f32 %v2035, %v2045
    %v2050 = vadd.f32 %v2036, %v2046
    %s2051 = sld [smem:[#allocation8 + $0x2e]]
    %v2052 = vstv %s2051
    %v2053 = vmul.f32 %v2052, %v2038
    %v2054 = vmul.f32 %v2052, %v2039
    %v2055 = vmul.f32 %v2052, %v2040
    %v2056 = vmul.f32 %v2052, %v2041
    %2061 = vrot.lane.b32.xlu0 %v2053, 127
    %v2062 = vpop.permute.xlu0 %2061
    %2063 = vrot.lane.b32.xlu0 %v2054, 127
    %v2064 = vpop.permute.xlu0 %2063
    %2065 = vrot.lane.b32.xlu0 %v2055, 127
    %v2066 = vpop.permute.xlu0 %2065
    %2067 = vrot.lane.b32.xlu0 %v2056, 127
    %v2068 = vpop.permute.xlu0 %2067
    %v2073 = vadd.f32 %v2047, %v2062
    %v2074 = vadd.f32 %v2048, %v2064
    %v2075 = vadd.f32 %v2049, %v2066
    %v2076 = vadd.f32 %v2050, %v2068
    %s2077 = sld [smem:[#allocation8 + $0x2f]]
    %v2078 = vstv %s2077
    %v2079 = vmul.f32 %v2078, %v2038
    %v2080 = vmul.f32 %v2078, %v2039
    %v2081 = vmul.f32 %v2078, %v2040
    %v2082 = vmul.f32 %v2078, %v2041
    %2087 = vrot.lane.b32.xlu0 %v2079, 126
    %v2088 = vpop.permute.xlu0 %2087
    %2089 = vrot.lane.b32.xlu0 %v2080, 126
    %v2090 = vpop.permute.xlu0 %2089
    %2091 = vrot.lane.b32.xlu0 %v2081, 126
    %v2092 = vpop.permute.xlu0 %2091
    %2093 = vrot.lane.b32.xlu0 %v2082, 126
    %v2094 = vpop.permute.xlu0 %2093
    %v2099 = vadd.f32 %v2073, %v2088
    %v2100 = vadd.f32 %v2074, %v2090
    %v2101 = vadd.f32 %v2075, %v2092
    %v2102 = vadd.f32 %v2076, %v2094
    %s2103 = sld [smem:[#allocation8 + $0x30]]
    %v2104 = vld [vmem:[%s568 + $0x1] sm:$0xff]
    %v2105 = vld [vmem:[%s568 + $0x9] sm:$0x1]
    %v2106 = vld [vmem:[%s568 + $0x11] sm:$0xff]
    %v2107 = vld [vmem:[%s568 + $0x19] sm:$0x1]
    %v2108 = vstv %s2103
    %v2109 = vmul.f32 %v2108, %v2104
    %v2110 = vmul.f32 %v2108, %v2105
    %v2111 = vmul.f32 %v2108, %v2106
    %v2112 = vmul.f32 %v2108, %v2107
    %v2113 = vadd.f32 %v2099, %v2109
    %v2114 = vadd.f32 %v2100, %v2110
    %v2115 = vadd.f32 %v2101, %v2111
    %v2116 = vadd.f32 %v2102, %v2112
    %s2117 = sld [smem:[#allocation8 + $0x31]]
    %v2118 = vstv %s2117
    %v2119 = vmul.f32 %v2118, %v2104
    %v2120 = vmul.f32 %v2118, %v2105
    %v2121 = vmul.f32 %v2118, %v2106
    %v2122 = vmul.f32 %v2118, %v2107
    %2127 = vrot.lane.b32.xlu0 %v2119, 127
    %v2128 = vpop.permute.xlu0 %2127
    %2129 = vrot.lane.b32.xlu0 %v2120, 127
    %v2130 = vpop.permute.xlu0 %2129
    %2131 = vrot.lane.b32.xlu0 %v2121, 127
    %v2132 = vpop.permute.xlu0 %2131
    %2133 = vrot.lane.b32.xlu0 %v2122, 127
    %v2134 = vpop.permute.xlu0 %2133
    %v2139 = vadd.f32 %v2113, %v2128
    %v2140 = vadd.f32 %v2114, %v2130
    %v2141 = vadd.f32 %v2115, %v2132
    %v2142 = vadd.f32 %v2116, %v2134
    %s2143 = sld [smem:[#allocation8 + $0x32]]
    %v2144 = vstv %s2143
    %v2145 = vmul.f32 %v2144, %v2104
    %v2146 = vmul.f32 %v2144, %v2105
    %v2147 = vmul.f32 %v2144, %v2106
    %v2148 = vmul.f32 %v2144, %v2107
    %2153 = vrot.lane.b32.xlu0 %v2145, 126
    %v2154 = vpop.permute.xlu0 %2153
    %2155 = vrot.lane.b32.xlu0 %v2146, 126
    %v2156 = vpop.permute.xlu0 %2155
    %2157 = vrot.lane.b32.xlu0 %v2147, 126
    %v2158 = vpop.permute.xlu0 %2157
    %2159 = vrot.lane.b32.xlu0 %v2148, 126
    %v2160 = vpop.permute.xlu0 %2159
    %v2165 = vadd.f32 %v2139, %v2154
    %v2166 = vadd.f32 %v2140, %v2156
    %v2167 = vadd.f32 %v2141, %v2158
    %v2168 = vadd.f32 %v2142, %v2160
    %s2169 = sld [smem:[#allocation8 + $0x33]]
    %v2170 = vld [vmem:[%s568 + $0x2] sm:$0xff]
    %v2171 = vld [vmem:[%s568 + $0xa] sm:$0x1]
    %v2172 = vld [vmem:[%s568 + $0x12] sm:$0xff]
    %v2173 = vld [vmem:[%s568 + $0x1a] sm:$0x1]
    %v2174 = vstv %s2169
    %v2175 = vmul.f32 %v2174, %v2170
    %v2176 = vmul.f32 %v2174, %v2171
    %v2177 = vmul.f32 %v2174, %v2172
    %v2178 = vmul.f32 %v2174, %v2173
    %v2179 = vadd.f32 %v2165, %v2175
    %v2180 = vadd.f32 %v2166, %v2176
    %v2181 = vadd.f32 %v2167, %v2177
    %v2182 = vadd.f32 %v2168, %v2178
    %s2183 = sld [smem:[#allocation8 + $0x34]]
    %v2184 = vstv %s2183
    %v2185 = vmul.f32 %v2184, %v2170
    %v2186 = vmul.f32 %v2184, %v2171
    %v2187 = vmul.f32 %v2184, %v2172
    %v2188 = vmul.f32 %v2184, %v2173
    %2193 = vrot.lane.b32.xlu0 %v2185, 127
    %v2194 = vpop.permute.xlu0 %2193
    %2195 = vrot.lane.b32.xlu0 %v2186, 127
    %v2196 = vpop.permute.xlu0 %2195
    %2197 = vrot.lane.b32.xlu0 %v2187, 127
    %v2198 = vpop.permute.xlu0 %2197
    %2199 = vrot.lane.b32.xlu0 %v2188, 127
    %v2200 = vpop.permute.xlu0 %2199
    %v2205 = vadd.f32 %v2179, %v2194
    %v2206 = vadd.f32 %v2180, %v2196
    %v2207 = vadd.f32 %v2181, %v2198
    %v2208 = vadd.f32 %v2182, %v2200
    %s2209 = sld [smem:[#allocation8 + $0x35]]
    %v2210 = vstv %s2209
    %v2211 = vmul.f32 %v2210, %v2170
    %v2212 = vmul.f32 %v2210, %v2171
    %v2213 = vmul.f32 %v2210, %v2172
    %v2214 = vmul.f32 %v2210, %v2173
    %2219 = vrot.lane.b32.xlu0 %v2211, 126
    %v2220 = vpop.permute.xlu0 %2219
    %2221 = vrot.lane.b32.xlu0 %v2212, 126
    %v2222 = vpop.permute.xlu0 %2221
    %2223 = vrot.lane.b32.xlu0 %v2213, 126
    %v2224 = vpop.permute.xlu0 %2223
    %2225 = vrot.lane.b32.xlu0 %v2214, 126
    %v2226 = vpop.permute.xlu0 %2225
    %v2231 = vadd.f32 %v2205, %v2220
    %v2232 = vadd.f32 %v2206, %v2222
    %v2233 = vadd.f32 %v2207, %v2224
    %v2234 = vadd.f32 %v2208, %v2226
    %s2235 = sld [smem:[#allocation8 + $0x36]]
    %v2236 = vld [vmem:[%s797] sm:$0xff]
    %v2237 = vld [vmem:[%s797 + $0x8] sm:$0x1]
    %v2238 = vld [vmem:[%s797 + $0x10] sm:$0xff]
    %v2239 = vld [vmem:[%s797 + $0x18] sm:$0x1]
    %v2240 = vstv %s2235
    %v2241 = vmul.f32 %v2240, %v2236
    %v2242 = vmul.f32 %v2240, %v2237
    %v2243 = vmul.f32 %v2240, %v2238
    %v2244 = vmul.f32 %v2240, %v2239
    %v2245 = vadd.f32 %v2231, %v2241
    %v2246 = vadd.f32 %v2232, %v2242
    %v2247 = vadd.f32 %v2233, %v2243
    %v2248 = vadd.f32 %v2234, %v2244
    %s2249 = sld [smem:[#allocation8 + $0x37]]
    %v2250 = vstv %s2249
    %v2251 = vmul.f32 %v2250, %v2236
    %v2252 = vmul.f32 %v2250, %v2237
    %v2253 = vmul.f32 %v2250, %v2238
    %v2254 = vmul.f32 %v2250, %v2239
    %2259 = vrot.lane.b32.xlu0 %v2251, 127
    %v2260 = vpop.permute.xlu0 %2259
    %2261 = vrot.lane.b32.xlu0 %v2252, 127
    %v2262 = vpop.permute.xlu0 %2261
    %2263 = vrot.lane.b32.xlu0 %v2253, 127
    %v2264 = vpop.permute.xlu0 %2263
    %2265 = vrot.lane.b32.xlu0 %v2254, 127
    %v2266 = vpop.permute.xlu0 %2265
    %v2271 = vadd.f32 %v2245, %v2260
    %v2272 = vadd.f32 %v2246, %v2262
    %v2273 = vadd.f32 %v2247, %v2264
    %v2274 = vadd.f32 %v2248, %v2266
    %s2275 = sld [smem:[#allocation8 + $0x38]]
    %v2276 = vstv %s2275
    %v2277 = vmul.f32 %v2276, %v2236
    %v2278 = vmul.f32 %v2276, %v2237
    %v2279 = vmul.f32 %v2276, %v2238
    %v2280 = vmul.f32 %v2276, %v2239
    %2285 = vrot.lane.b32.xlu0 %v2277, 126
    %v2286 = vpop.permute.xlu0 %2285
    %2287 = vrot.lane.b32.xlu0 %v2278, 126
    %v2288 = vpop.permute.xlu0 %2287
    %2289 = vrot.lane.b32.xlu0 %v2279, 126
    %v2290 = vpop.permute.xlu0 %2289
    %2291 = vrot.lane.b32.xlu0 %v2280, 126
    %v2292 = vpop.permute.xlu0 %2291
    %v2297 = vadd.f32 %v2271, %v2286
    %v2298 = vadd.f32 %v2272, %v2288
    %v2299 = vadd.f32 %v2273, %v2290
    %v2300 = vadd.f32 %v2274, %v2292
    %s2301 = sld [smem:[#allocation8 + $0x39]]
    %v2302 = vld [vmem:[%s797 + $0x1] sm:$0xff]
    %v2303 = vld [vmem:[%s797 + $0x9] sm:$0x1]
    %v2304 = vld [vmem:[%s797 + $0x11] sm:$0xff]
    %v2305 = vld [vmem:[%s797 + $0x19] sm:$0x1]
    %v2306 = vstv %s2301
    %v2307 = vmul.f32 %v2306, %v2302
    %v2308 = vmul.f32 %v2306, %v2303
    %v2309 = vmul.f32 %v2306, %v2304
    %v2310 = vmul.f32 %v2306, %v2305
    %v2311 = vadd.f32 %v2297, %v2307
    %v2312 = vadd.f32 %v2298, %v2308
    %v2313 = vadd.f32 %v2299, %v2309
    %v2314 = vadd.f32 %v2300, %v2310
    %s2315 = sld [smem:[#allocation8 + $0x3a]]
    %v2316 = vstv %s2315
    %v2317 = vmul.f32 %v2316, %v2302
    %v2318 = vmul.f32 %v2316, %v2303
    %v2319 = vmul.f32 %v2316, %v2304
    %v2320 = vmul.f32 %v2316, %v2305
    %2325 = vrot.lane.b32.xlu0 %v2317, 127
    %v2326 = vpop.permute.xlu0 %2325
    %2327 = vrot.lane.b32.xlu0 %v2318, 127
    %v2328 = vpop.permute.xlu0 %2327
    %2329 = vrot.lane.b32.xlu0 %v2319, 127
    %v2330 = vpop.permute.xlu0 %2329
    %2331 = vrot.lane.b32.xlu0 %v2320, 127
    %v2332 = vpop.permute.xlu0 %2331
    %v2337 = vadd.f32 %v2311, %v2326
    %v2338 = vadd.f32 %v2312, %v2328
    %v2339 = vadd.f32 %v2313, %v2330
    %v2340 = vadd.f32 %v2314, %v2332
    %s2341 = sld [smem:[#allocation8 + $0x3b]]
    %v2342 = vstv %s2341
    %v2343 = vmul.f32 %v2342, %v2302
    %v2344 = vmul.f32 %v2342, %v2303
    %v2345 = vmul.f32 %v2342, %v2304
    %v2346 = vmul.f32 %v2342, %v2305
    %2351 = vrot.lane.b32.xlu0 %v2343, 126
    %v2352 = vpop.permute.xlu0 %2351
    %2353 = vrot.lane.b32.xlu0 %v2344, 126
    %v2354 = vpop.permute.xlu0 %2353
    %2355 = vrot.lane.b32.xlu0 %v2345, 126
    %v2356 = vpop.permute.xlu0 %2355
    %2357 = vrot.lane.b32.xlu0 %v2346, 126
    %v2358 = vpop.permute.xlu0 %2357
    %v2363 = vadd.f32 %v2337, %v2352
    %v2364 = vadd.f32 %v2338, %v2354
    %v2365 = vadd.f32 %v2339, %v2356
    %v2366 = vadd.f32 %v2340, %v2358
    %s2367 = sld [smem:[#allocation8 + $0x3c]]
    %v2368 = vld [vmem:[%s797 + $0x2] sm:$0xff]
    %v2369 = vld [vmem:[%s797 + $0xa] sm:$0x1]
    %v2370 = vld [vmem:[%s797 + $0x12] sm:$0xff]
    %v2371 = vld [vmem:[%s797 + $0x1a] sm:$0x1]
    %v2372 = vstv %s2367
    %v2373 = vmul.f32 %v2372, %v2368
    %v2374 = vmul.f32 %v2372, %v2369
    %v2375 = vmul.f32 %v2372, %v2370
    %v2376 = vmul.f32 %v2372, %v2371
    %v2377 = vadd.f32 %v2363, %v2373
    %v2378 = vadd.f32 %v2364, %v2374
    %v2379 = vadd.f32 %v2365, %v2375
    %v2380 = vadd.f32 %v2366, %v2376
    %s2381 = sld [smem:[#allocation8 + $0x3d]]
    %v2382 = vstv %s2381
    %v2383 = vmul.f32 %v2382, %v2368
    %v2384 = vmul.f32 %v2382, %v2369
    %v2385 = vmul.f32 %v2382, %v2370
    %v2386 = vmul.f32 %v2382, %v2371
    %2391 = vrot.lane.b32.xlu0 %v2383, 127
    %v2392 = vpop.permute.xlu0 %2391
    %2393 = vrot.lane.b32.xlu0 %v2384, 127
    %v2394 = vpop.permute.xlu0 %2393
    %2395 = vrot.lane.b32.xlu0 %v2385, 127
    %v2396 = vpop.permute.xlu0 %2395
    %2397 = vrot.lane.b32.xlu0 %v2386, 127
    %v2398 = vpop.permute.xlu0 %2397
    %v2403 = vadd.f32 %v2377, %v2392
    %v2404 = vadd.f32 %v2378, %v2394
    %v2405 = vadd.f32 %v2379, %v2396
    %v2406 = vadd.f32 %v2380, %v2398
    %s2407 = sld [smem:[#allocation8 + $0x3e]]
    %v2408 = vstv %s2407
    %v2409 = vmul.f32 %v2408, %v2368
    %v2410 = vmul.f32 %v2408, %v2369
    %v2411 = vmul.f32 %v2408, %v2370
    %v2412 = vmul.f32 %v2408, %v2371
    %2417 = vrot.lane.b32.xlu0 %v2409, 126
    %v2418 = vpop.permute.xlu0 %2417
    %2419 = vrot.lane.b32.xlu0 %v2410, 126
    %v2420 = vpop.permute.xlu0 %2419
    %2421 = vrot.lane.b32.xlu0 %v2411, 126
    %v2422 = vpop.permute.xlu0 %2421
    %2423 = vrot.lane.b32.xlu0 %v2412, 126
    %v2424 = vpop.permute.xlu0 %2423
    %v2429 = vadd.f32 %v2403, %v2418
    %v2430 = vadd.f32 %v2404, %v2420
    %v2431 = vadd.f32 %v2405, %v2422
    %v2432 = vadd.f32 %v2406, %v2424
    %s2433 = sld [smem:[#allocation8 + $0x3f]]
    %v2434 = vld [vmem:[%s1026] sm:$0xff]
    %v2435 = vld [vmem:[%s1026 + $0x8] sm:$0x1]
    %v2436 = vld [vmem:[%s1026 + $0x10] sm:$0xff]
    %v2437 = vld [vmem:[%s1026 + $0x18] sm:$0x1]
    %v2438 = vstv %s2433
    %v2439 = vmul.f32 %v2438, %v2434
    %v2440 = vmul.f32 %v2438, %v2435
    %v2441 = vmul.f32 %v2438, %v2436
    %v2442 = vmul.f32 %v2438, %v2437
    %v2443 = vadd.f32 %v2429, %v2439
    %v2444 = vadd.f32 %v2430, %v2440
    %v2445 = vadd.f32 %v2431, %v2441
    %v2446 = vadd.f32 %v2432, %v2442
    %s2447 = sld [smem:[#allocation8 + $0x40]]
    %v2448 = vstv %s2447
    %v2449 = vmul.f32 %v2448, %v2434
    %v2450 = vmul.f32 %v2448, %v2435
    %v2451 = vmul.f32 %v2448, %v2436
    %v2452 = vmul.f32 %v2448, %v2437
    %2457 = vrot.lane.b32.xlu0 %v2449, 127
    %v2458 = vpop.permute.xlu0 %2457
    %2459 = vrot.lane.b32.xlu0 %v2450, 127
    %v2460 = vpop.permute.xlu0 %2459
    %2461 = vrot.lane.b32.xlu0 %v2451, 127
    %v2462 = vpop.permute.xlu0 %2461
    %2463 = vrot.lane.b32.xlu0 %v2452, 127
    %v2464 = vpop.permute.xlu0 %2463
    %v2469 = vadd.f32 %v2443, %v2458
    %v2470 = vadd.f32 %v2444, %v2460
    %v2471 = vadd.f32 %v2445, %v2462
    %v2472 = vadd.f32 %v2446, %v2464
    %s2473 = sld [smem:[#allocation8 + $0x41]]
    %v2474 = vstv %s2473
    %v2475 = vmul.f32 %v2474, %v2434
    %v2476 = vmul.f32 %v2474, %v2435
    %v2477 = vmul.f32 %v2474, %v2436
    %v2478 = vmul.f32 %v2474, %v2437
    %2483 = vrot.lane.b32.xlu0 %v2475, 126
    %v2484 = vpop.permute.xlu0 %2483
    %2485 = vrot.lane.b32.xlu0 %v2476, 126
    %v2486 = vpop.permute.xlu0 %2485
    %2487 = vrot.lane.b32.xlu0 %v2477, 126
    %v2488 = vpop.permute.xlu0 %2487
    %2489 = vrot.lane.b32.xlu0 %v2478, 126
    %v2490 = vpop.permute.xlu0 %2489
    %v2495 = vadd.f32 %v2469, %v2484
    %v2496 = vadd.f32 %v2470, %v2486
    %v2497 = vadd.f32 %v2471, %v2488
    %v2498 = vadd.f32 %v2472, %v2490
    %s2499 = sld [smem:[#allocation8 + $0x42]]
    %v2500 = vld [vmem:[%s1026 + $0x1] sm:$0xff]
    %v2501 = vld [vmem:[%s1026 + $0x9] sm:$0x1]
    %v2502 = vld [vmem:[%s1026 + $0x11] sm:$0xff]
    %v2503 = vld [vmem:[%s1026 + $0x19] sm:$0x1]
    %v2504 = vstv %s2499
    %v2505 = vmul.f32 %v2504, %v2500
    %v2506 = vmul.f32 %v2504, %v2501
    %v2507 = vmul.f32 %v2504, %v2502
    %v2508 = vmul.f32 %v2504, %v2503
    %v2509 = vadd.f32 %v2495, %v2505
    %v2510 = vadd.f32 %v2496, %v2506
    %v2511 = vadd.f32 %v2497, %v2507
    %v2512 = vadd.f32 %v2498, %v2508
    %s2513 = sld [smem:[#allocation8 + $0x43]]
    %v2514 = vstv %s2513
    %v2515 = vmul.f32 %v2514, %v2500
    %v2516 = vmul.f32 %v2514, %v2501
    %v2517 = vmul.f32 %v2514, %v2502
    %v2518 = vmul.f32 %v2514, %v2503
    %2523 = vrot.lane.b32.xlu0 %v2515, 127
    %v2524 = vpop.permute.xlu0 %2523
    %2525 = vrot.lane.b32.xlu0 %v2516, 127
    %v2526 = vpop.permute.xlu0 %2525
    %2527 = vrot.lane.b32.xlu0 %v2517, 127
    %v2528 = vpop.permute.xlu0 %2527
    %2529 = vrot.lane.b32.xlu0 %v2518, 127
    %v2530 = vpop.permute.xlu0 %2529
    %v2535 = vadd.f32 %v2509, %v2524
    %v2536 = vadd.f32 %v2510, %v2526
    %v2537 = vadd.f32 %v2511, %v2528
    %v2538 = vadd.f32 %v2512, %v2530
    %s2539 = sld [smem:[#allocation8 + $0x44]]
    %v2540 = vstv %s2539
    %v2541 = vmul.f32 %v2540, %v2500
    %v2542 = vmul.f32 %v2540, %v2501
    %v2543 = vmul.f32 %v2540, %v2502
    %v2544 = vmul.f32 %v2540, %v2503
    %2549 = vrot.lane.b32.xlu0 %v2541, 126
    %v2550 = vpop.permute.xlu0 %2549
    %2551 = vrot.lane.b32.xlu0 %v2542, 126
    %v2552 = vpop.permute.xlu0 %2551
    %2553 = vrot.lane.b32.xlu0 %v2543, 126
    %v2554 = vpop.permute.xlu0 %2553
    %2555 = vrot.lane.b32.xlu0 %v2544, 126
    %v2556 = vpop.permute.xlu0 %2555
    %v2561 = vadd.f32 %v2535, %v2550
    %v2562 = vadd.f32 %v2536, %v2552
    %v2563 = vadd.f32 %v2537, %v2554
    %v2564 = vadd.f32 %v2538, %v2556
    %s2565 = sld [smem:[#allocation8 + $0x45]]
    %v2566 = vld [vmem:[%s1026 + $0x2] sm:$0xff]
    %v2567 = vld [vmem:[%s1026 + $0xa] sm:$0x1]
    %v2568 = vld [vmem:[%s1026 + $0x12] sm:$0xff]
    %v2569 = vld [vmem:[%s1026 + $0x1a] sm:$0x1]
    %v2570 = vstv %s2565
    %v2571 = vmul.f32 %v2570, %v2566
    %v2572 = vmul.f32 %v2570, %v2567
    %v2573 = vmul.f32 %v2570, %v2568
    %v2574 = vmul.f32 %v2570, %v2569
    %v2575 = vadd.f32 %v2561, %v2571
    %v2576 = vadd.f32 %v2562, %v2572
    %v2577 = vadd.f32 %v2563, %v2573
    %v2578 = vadd.f32 %v2564, %v2574
    %s2579 = sld [smem:[#allocation8 + $0x46]]
    %v2580 = vstv %s2579
    %v2581 = vmul.f32 %v2580, %v2566
    %v2582 = vmul.f32 %v2580, %v2567
    %v2583 = vmul.f32 %v2580, %v2568
    %v2584 = vmul.f32 %v2580, %v2569
    %2589 = vrot.lane.b32.xlu0 %v2581, 127
    %v2590 = vpop.permute.xlu0 %2589
    %2591 = vrot.lane.b32.xlu0 %v2582, 127
    %v2592 = vpop.permute.xlu0 %2591
    %2593 = vrot.lane.b32.xlu0 %v2583, 127
    %v2594 = vpop.permute.xlu0 %2593
    %2595 = vrot.lane.b32.xlu0 %v2584, 127
    %v2596 = vpop.permute.xlu0 %2595
    %v2601 = vadd.f32 %v2575, %v2590
    %v2602 = vadd.f32 %v2576, %v2592
    %v2603 = vadd.f32 %v2577, %v2594
    %v2604 = vadd.f32 %v2578, %v2596
    %s2605 = sld [smem:[#allocation8 + $0x47]]
    %v2606 = vstv %s2605
    %v2607 = vmul.f32 %v2606, %v2566
    %v2608 = vmul.f32 %v2606, %v2567
    %v2609 = vmul.f32 %v2606, %v2568
    %v2610 = vmul.f32 %v2606, %v2569
    %2615 = vrot.lane.b32.xlu0 %v2607, 126
    %v2616 = vpop.permute.xlu0 %2615
    %2617 = vrot.lane.b32.xlu0 %v2608, 126
    %v2618 = vpop.permute.xlu0 %2617
    %2619 = vrot.lane.b32.xlu0 %v2609, 126
    %v2620 = vpop.permute.xlu0 %2619
    %2621 = vrot.lane.b32.xlu0 %v2610, 126
    %v2622 = vpop.permute.xlu0 %2621
    %v2627 = vadd.f32 %v2601, %v2616
    %v2628 = vadd.f32 %v2602, %v2618
    %v2629 = vadd.f32 %v2603, %v2620
    %v2630 = vadd.f32 %v2604, %v2622
    %s2631 = sld [smem:[#allocation9 + $0x1]]
    %v2632 = vstv %s2631
    %v2633 = vadd.f32 %v2627, %v2632
    %v2634 = vadd.f32 %v2628, %v2632
    %v2635 = vadd.f32 %v2629, %v2632
    %v2636 = vadd.f32 %v2630, %v2632
    %v2637 = vmax.f32 %v2633, 0.0
    %v2638 = vmax.f32 %v2634, 0.0
    %v2639 = vmax.f32 %v2635, 0.0
    %v2640 = vmax.f32 %v2636, 0.0
    %s2641 = scalar_lea.vmem %s5, 32
    %2642 = vst.msk [vmem:[%s2641] sm:$0xff] %vm1833, %v2637
    %2643 = vst.msk [vmem:[%s2641 + $0x8] sm:$0x1] %vm1835, %v2638
    %2644 = vst.msk [vmem:[%s2641 + $0x10] sm:$0xff] %vm1833, %v2639
    %2645 = vst.msk [vmem:[%s2641 + $0x18] sm:$0x1] %vm1835, %v2640
    %s2646 = sld [smem:[#allocation8 + $0x48]]
    %v2647 = vld [vmem:[#allocation3] sm:$0xff]
    %v2648 = vld [vmem:[#allocation3 + $0x8] sm:$0x1]
    %v2649 = vld [vmem:[#allocation3 + $0x10] sm:$0xff]
    %v2650 = vld [vmem:[#allocation3 + $0x18] sm:$0x1]
    %v2651 = vstv %s2646
    %v2652 = vmul.f32 %v2651, %v2647
    %v2653 = vmul.f32 %v2651, %v2648
    %v2654 = vmul.f32 %v2651, %v2649
    %v2655 = vmul.f32 %v2651, %v2650
    %v2656 = vadd.f32 %v2652, 0.0
    %v2657 = vadd.f32 %v2653, 0.0
    %v2658 = vadd.f32 %v2654, 0.0
    %v2659 = vadd.f32 %v2655, 0.0
    %s2660 = sld [smem:[#allocation8 + $0x49]]
    %v2661 = vstv %s2660
    %v2662 = vmul.f32 %v2661, %v2647
    %v2663 = vmul.f32 %v2661, %v2648
    %v2664 = vmul.f32 %v2661, %v2649
    %v2665 = vmul.f32 %v2661, %v2650
    %2670 = vrot.lane.b32.xlu0 %v2662, 127
    %v2671 = vpop.permute.xlu0 %2670
    %2672 = vrot.lane.b32.xlu0 %v2663, 127
    %v2673 = vpop.permute.xlu0 %2672
    %2674 = vrot.lane.b32.xlu0 %v2664, 127
    %v2675 = vpop.permute.xlu0 %2674
    %2676 = vrot.lane.b32.xlu0 %v2665, 127
    %v2677 = vpop.permute.xlu0 %2676
    %v2682 = vadd.f32 %v2656, %v2671
    %v2683 = vadd.f32 %v2657, %v2673
    %v2684 = vadd.f32 %v2658, %v2675
    %v2685 = vadd.f32 %v2659, %v2677
    %s2686 = sld [smem:[#allocation8 + $0x4a]]
    %v2687 = vstv %s2686
    %v2688 = vmul.f32 %v2687, %v2647
    %v2689 = vmul.f32 %v2687, %v2648
    %v2690 = vmul.f32 %v2687, %v2649
    %v2691 = vmul.f32 %v2687, %v2650
    %2696 = vrot.lane.b32.xlu0 %v2688, 126
    %v2697 = vpop.permute.xlu0 %2696
    %2698 = vrot.lane.b32.xlu0 %v2689, 126
    %v2699 = vpop.permute.xlu0 %2698
    %2700 = vrot.lane.b32.xlu0 %v2690, 126
    %v2701 = vpop.permute.xlu0 %2700
    %2702 = vrot.lane.b32.xlu0 %v2691, 126
    %v2703 = vpop.permute.xlu0 %2702
    %v2708 = vadd.f32 %v2682, %v2697
    %v2709 = vadd.f32 %v2683, %v2699
    %v2710 = vadd.f32 %v2684, %v2701
    %v2711 = vadd.f32 %v2685, %v2703
    %s2712 = sld [smem:[#allocation8 + $0x4b]]
    %v2713 = vld [vmem:[#allocation3 + $0x1] sm:$0xff]
    %v2714 = vld [vmem:[#allocation3 + $0x9] sm:$0x1]
    %v2715 = vld [vmem:[#allocation3 + $0x11] sm:$0xff]
    %v2716 = vld [vmem:[#allocation3 + $0x19] sm:$0x1]
    %v2717 = vstv %s2712
    %v2718 = vmul.f32 %v2717, %v2713
    %v2719 = vmul.f32 %v2717, %v2714
    %v2720 = vmul.f32 %v2717, %v2715
    %v2721 = vmul.f32 %v2717, %v2716
    %v2722 = vadd.f32 %v2708, %v2718
    %v2723 = vadd.f32 %v2709, %v2719
    %v2724 = vadd.f32 %v2710, %v2720
    %v2725 = vadd.f32 %v2711, %v2721
    %s2726 = sld [smem:[#allocation8 + $0x4c]]
    %v2727 = vstv %s2726
    %v2728 = vmul.f32 %v2727, %v2713
    %v2729 = vmul.f32 %v2727, %v2714
    %v2730 = vmul.f32 %v2727, %v2715
    %v2731 = vmul.f32 %v2727, %v2716
    %2736 = vrot.lane.b32.xlu0 %v2728, 127
    %v2737 = vpop.permute.xlu0 %2736
    %2738 = vrot.lane.b32.xlu0 %v2729, 127
    %v2739 = vpop.permute.xlu0 %2738
    %2740 = vrot.lane.b32.xlu0 %v2730, 127
    %v2741 = vpop.permute.xlu0 %2740
    %2742 = vrot.lane.b32.xlu0 %v2731, 127
    %v2743 = vpop.permute.xlu0 %2742
    %v2748 = vadd.f32 %v2722, %v2737
    %v2749 = vadd.f32 %v2723, %v2739
    %v2750 = vadd.f32 %v2724, %v2741
    %v2751 = vadd.f32 %v2725, %v2743
    %s2752 = sld [smem:[#allocation8 + $0x4d]]
    %v2753 = vstv %s2752
    %v2754 = vmul.f32 %v2753, %v2713
    %v2755 = vmul.f32 %v2753, %v2714
    %v2756 = vmul.f32 %v2753, %v2715
    %v2757 = vmul.f32 %v2753, %v2716
    %2762 = vrot.lane.b32.xlu0 %v2754, 126
    %v2763 = vpop.permute.xlu0 %2762
    %2764 = vrot.lane.b32.xlu0 %v2755, 126
    %v2765 = vpop.permute.xlu0 %2764
    %2766 = vrot.lane.b32.xlu0 %v2756, 126
    %v2767 = vpop.permute.xlu0 %2766
    %2768 = vrot.lane.b32.xlu0 %v2757, 126
    %v2769 = vpop.permute.xlu0 %2768
    %v2774 = vadd.f32 %v2748, %v2763
    %v2775 = vadd.f32 %v2749, %v2765
    %v2776 = vadd.f32 %v2750, %v2767
    %v2777 = vadd.f32 %v2751, %v2769
    %s2778 = sld [smem:[#allocation8 + $0x4e]]
    %v2779 = vld [vmem:[#allocation3 + $0x2] sm:$0xff]
    %v2780 = vld [vmem:[#allocation3 + $0xa] sm:$0x1]
    %v2781 = vld [vmem:[#allocation3 + $0x12] sm:$0xff]
    %v2782 = vld [vmem:[#allocation3 + $0x1a] sm:$0x1]
    %v2783 = vstv %s2778
    %v2784 = vmul.f32 %v2783, %v2779
    %v2785 = vmul.f32 %v2783, %v2780
    %v2786 = vmul.f32 %v2783, %v2781
    %v2787 = vmul.f32 %v2783, %v2782
    %v2788 = vadd.f32 %v2774, %v2784
    %v2789 = vadd.f32 %v2775, %v2785
    %v2790 = vadd.f32 %v2776, %v2786
    %v2791 = vadd.f32 %v2777, %v2787
    %s2792 = sld [smem:[#allocation8 + $0x4f]]
    %v2793 = vstv %s2792
    %v2794 = vmul.f32 %v2793, %v2779
    %v2795 = vmul.f32 %v2793, %v2780
    %v2796 = vmul.f32 %v2793, %v2781
    %v2797 = vmul.f32 %v2793, %v2782
    %2802 = vrot.lane.b32.xlu0 %v2794, 127
    %v2803 = vpop.permute.xlu0 %2802
    %2804 = vrot.lane.b32.xlu0 %v2795, 127
    %v2805 = vpop.permute.xlu0 %2804
    %2806 = vrot.lane.b32.xlu0 %v2796, 127
    %v2807 = vpop.permute.xlu0 %2806
    %2808 = vrot.lane.b32.xlu0 %v2797, 127
    %v2809 = vpop.permute.xlu0 %2808
    %v2814 = vadd.f32 %v2788, %v2803
    %v2815 = vadd.f32 %v2789, %v2805
    %v2816 = vadd.f32 %v2790, %v2807
    %v2817 = vadd.f32 %v2791, %v2809
    %s2818 = sld [smem:[#allocation8 + $0x50]]
    %v2819 = vstv %s2818
    %v2820 = vmul.f32 %v2819, %v2779
    %v2821 = vmul.f32 %v2819, %v2780
    %v2822 = vmul.f32 %v2819, %v2781
    %v2823 = vmul.f32 %v2819, %v2782
    %2828 = vrot.lane.b32.xlu0 %v2820, 126
    %v2829 = vpop.permute.xlu0 %2828
    %2830 = vrot.lane.b32.xlu0 %v2821, 126
    %v2831 = vpop.permute.xlu0 %2830
    %2832 = vrot.lane.b32.xlu0 %v2822, 126
    %v2833 = vpop.permute.xlu0 %2832
    %2834 = vrot.lane.b32.xlu0 %v2823, 126
    %v2835 = vpop.permute.xlu0 %2834
    %v2840 = vadd.f32 %v2814, %v2829
    %v2841 = vadd.f32 %v2815, %v2831
    %v2842 = vadd.f32 %v2816, %v2833
    %v2843 = vadd.f32 %v2817, %v2835
    %s2844 = sld [smem:[#allocation8 + $0x51]]
    %v2845 = vld [vmem:[%s568] sm:$0xff]
    %v2846 = vld [vmem:[%s568 + $0x8] sm:$0x1]
    %v2847 = vld [vmem:[%s568 + $0x10] sm:$0xff]
    %v2848 = vld [vmem:[%s568 + $0x18] sm:$0x1]
    %v2849 = vstv %s2844
    %v2850 = vmul.f32 %v2849, %v2845
    %v2851 = vmul.f32 %v2849, %v2846
    %v2852 = vmul.f32 %v2849, %v2847
    %v2853 = vmul.f32 %v2849, %v2848
    %v2854 = vadd.f32 %v2840, %v2850
    %v2855 = vadd.f32 %v2841, %v2851
    %v2856 = vadd.f32 %v2842, %v2852
    %v2857 = vadd.f32 %v2843, %v2853
    %s2858 = sld [smem:[#allocation8 + $0x52]]
    %v2859 = vstv %s2858
    %v2860 = vmul.f32 %v2859, %v2845
    %v2861 = vmul.f32 %v2859, %v2846
    %v2862 = vmul.f32 %v2859, %v2847
    %v2863 = vmul.f32 %v2859, %v2848
    %2868 = vrot.lane.b32.xlu0 %v2860, 127
    %v2869 = vpop.permute.xlu0 %2868
    %2870 = vrot.lane.b32.xlu0 %v2861, 127
    %v2871 = vpop.permute.xlu0 %2870
    %2872 = vrot.lane.b32.xlu0 %v2862, 127
    %v2873 = vpop.permute.xlu0 %2872
    %2874 = vrot.lane.b32.xlu0 %v2863, 127
    %v2875 = vpop.permute.xlu0 %2874
    %v2880 = vadd.f32 %v2854, %v2869
    %v2881 = vadd.f32 %v2855, %v2871
    %v2882 = vadd.f32 %v2856, %v2873
    %v2883 = vadd.f32 %v2857, %v2875
    %s2884 = sld [smem:[#allocation8 + $0x53]]
    %v2885 = vstv %s2884
    %v2886 = vmul.f32 %v2885, %v2845
    %v2887 = vmul.f32 %v2885, %v2846
    %v2888 = vmul.f32 %v2885, %v2847
    %v2889 = vmul.f32 %v2885, %v2848
    %2894 = vrot.lane.b32.xlu0 %v2886, 126
    %v2895 = vpop.permute.xlu0 %2894
    %2896 = vrot.lane.b32.xlu0 %v2887, 126
    %v2897 = vpop.permute.xlu0 %2896
    %2898 = vrot.lane.b32.xlu0 %v2888, 126
    %v2899 = vpop.permute.xlu0 %2898
    %2900 = vrot.lane.b32.xlu0 %v2889, 126
    %v2901 = vpop.permute.xlu0 %2900
    %v2906 = vadd.f32 %v2880, %v2895
    %v2907 = vadd.f32 %v2881, %v2897
    %v2908 = vadd.f32 %v2882, %v2899
    %v2909 = vadd.f32 %v2883, %v2901
    %s2910 = sld [smem:[#allocation8 + $0x54]]
    %v2911 = vld [vmem:[%s568 + $0x1] sm:$0xff]
    %v2912 = vld [vmem:[%s568 + $0x9] sm:$0x1]
    %v2913 = vld [vmem:[%s568 + $0x11] sm:$0xff]
    %v2914 = vld [vmem:[%s568 + $0x19] sm:$0x1]
    %v2915 = vstv %s2910
    %v2916 = vmul.f32 %v2915, %v2911
    %v2917 = vmul.f32 %v2915, %v2912
    %v2918 = vmul.f32 %v2915, %v2913
    %v2919 = vmul.f32 %v2915, %v2914
    %v2920 = vadd.f32 %v2906, %v2916
    %v2921 = vadd.f32 %v2907, %v2917
    %v2922 = vadd.f32 %v2908, %v2918
    %v2923 = vadd.f32 %v2909, %v2919
    %s2924 = sld [smem:[#allocation8 + $0x55]]
    %v2925 = vstv %s2924
    %v2926 = vmul.f32 %v2925, %v2911
    %v2927 = vmul.f32 %v2925, %v2912
    %v2928 = vmul.f32 %v2925, %v2913
    %v2929 = vmul.f32 %v2925, %v2914
    %2934 = vrot.lane.b32.xlu0 %v2926, 127
    %v2935 = vpop.permute.xlu0 %2934
    %2936 = vrot.lane.b32.xlu0 %v2927, 127
    %v2937 = vpop.permute.xlu0 %2936
    %2938 = vrot.lane.b32.xlu0 %v2928, 127
    %v2939 = vpop.permute.xlu0 %2938
    %2940 = vrot.lane.b32.xlu0 %v2929, 127
    %v2941 = vpop.permute.xlu0 %2940
    %v2946 = vadd.f32 %v2920, %v2935
    %v2947 = vadd.f32 %v2921, %v2937
    %v2948 = vadd.f32 %v2922, %v2939
    %v2949 = vadd.f32 %v2923, %v2941
    %s2950 = sld [smem:[#allocation8 + $0x56]]
    %v2951 = vstv %s2950
    %v2952 = vmul.f32 %v2951, %v2911
    %v2953 = vmul.f32 %v2951, %v2912
    %v2954 = vmul.f32 %v2951, %v2913
    %v2955 = vmul.f32 %v2951, %v2914
    %2960 = vrot.lane.b32.xlu0 %v2952, 126
    %v2961 = vpop.permute.xlu0 %2960
    %2962 = vrot.lane.b32.xlu0 %v2953, 126
    %v2963 = vpop.permute.xlu0 %2962
    %2964 = vrot.lane.b32.xlu0 %v2954, 126
    %v2965 = vpop.permute.xlu0 %2964
    %2966 = vrot.lane.b32.xlu0 %v2955, 126
    %v2967 = vpop.permute.xlu0 %2966
    %v2972 = vadd.f32 %v2946, %v2961
    %v2973 = vadd.f32 %v2947, %v2963
    %v2974 = vadd.f32 %v2948, %v2965
    %v2975 = vadd.f32 %v2949, %v2967
    %s2976 = sld [smem:[#allocation8 + $0x57]]
    %v2977 = vld [vmem:[%s568 + $0x2] sm:$0xff]
    %v2978 = vld [vmem:[%s568 + $0xa] sm:$0x1]
    %v2979 = vld [vmem:[%s568 + $0x12] sm:$0xff]
    %v2980 = vld [vmem:[%s568 + $0x1a] sm:$0x1]
    %v2981 = vstv %s2976
    %v2982 = vmul.f32 %v2981, %v2977
    %v2983 = vmul.f32 %v2981, %v2978
    %v2984 = vmul.f32 %v2981, %v2979
    %v2985 = vmul.f32 %v2981, %v2980
    %v2986 = vadd.f32 %v2972, %v2982
    %v2987 = vadd.f32 %v2973, %v2983
    %v2988 = vadd.f32 %v2974, %v2984
    %v2989 = vadd.f32 %v2975, %v2985
    %s2990 = sld [smem:[#allocation8 + $0x58]]
    %v2991 = vstv %s2990
    %v2992 = vmul.f32 %v2991, %v2977
    %v2993 = vmul.f32 %v2991, %v2978
    %v2994 = vmul.f32 %v2991, %v2979
    %v2995 = vmul.f32 %v2991, %v2980
    %3000 = vrot.lane.b32.xlu0 %v2992, 127
    %v3001 = vpop.permute.xlu0 %3000
    %3002 = vrot.lane.b32.xlu0 %v2993, 127
    %v3003 = vpop.permute.xlu0 %3002
    %3004 = vrot.lane.b32.xlu0 %v2994, 127
    %v3005 = vpop.permute.xlu0 %3004
    %3006 = vrot.lane.b32.xlu0 %v2995, 127
    %v3007 = vpop.permute.xlu0 %3006
    %v3012 = vadd.f32 %v2986, %v3001
    %v3013 = vadd.f32 %v2987, %v3003
    %v3014 = vadd.f32 %v2988, %v3005
    %v3015 = vadd.f32 %v2989, %v3007
    %s3016 = sld [smem:[#allocation8 + $0x59]]
    %v3017 = vstv %s3016
    %v3018 = vmul.f32 %v3017, %v2977
    %v3019 = vmul.f32 %v3017, %v2978
    %v3020 = vmul.f32 %v3017, %v2979
    %v3021 = vmul.f32 %v3017, %v2980
    %3026 = vrot.lane.b32.xlu0 %v3018, 126
    %v3027 = vpop.permute.xlu0 %3026
    %3028 = vrot.lane.b32.xlu0 %v3019, 126
    %v3029 = vpop.permute.xlu0 %3028
    %3030 = vrot.lane.b32.xlu0 %v3020, 126
    %v3031 = vpop.permute.xlu0 %3030
    %3032 = vrot.lane.b32.xlu0 %v3021, 126
    %v3033 = vpop.permute.xlu0 %3032
    %v3038 = vadd.f32 %v3012, %v3027
    %v3039 = vadd.f32 %v3013, %v3029
    %v3040 = vadd.f32 %v3014, %v3031
    %v3041 = vadd.f32 %v3015, %v3033
    %s3042 = sld [smem:[#allocation8 + $0x5a]]
    %v3043 = vld [vmem:[%s797] sm:$0xff]
    %v3044 = vld [vmem:[%s797 + $0x8] sm:$0x1]
    %v3045 = vld [vmem:[%s797 + $0x10] sm:$0xff]
    %v3046 = vld [vmem:[%s797 + $0x18] sm:$0x1]
    %v3047 = vstv %s3042
    %v3048 = vmul.f32 %v3047, %v3043
    %v3049 = vmul.f32 %v3047, %v3044
    %v3050 = vmul.f32 %v3047, %v3045
    %v3051 = vmul.f32 %v3047, %v3046
    %v3052 = vadd.f32 %v3038, %v3048
    %v3053 = vadd.f32 %v3039, %v3049
    %v3054 = vadd.f32 %v3040, %v3050
    %v3055 = vadd.f32 %v3041, %v3051
    %s3056 = sld [smem:[#allocation8 + $0x5b]]
    %v3057 = vstv %s3056
    %v3058 = vmul.f32 %v3057, %v3043
    %v3059 = vmul.f32 %v3057, %v3044
    %v3060 = vmul.f32 %v3057, %v3045
    %v3061 = vmul.f32 %v3057, %v3046
    %3066 = vrot.lane.b32.xlu0 %v3058, 127
    %v3067 = vpop.permute.xlu0 %3066
    %3068 = vrot.lane.b32.xlu0 %v3059, 127
    %v3069 = vpop.permute.xlu0 %3068
    %3070 = vrot.lane.b32.xlu0 %v3060, 127
    %v3071 = vpop.permute.xlu0 %3070
    %3072 = vrot.lane.b32.xlu0 %v3061, 127
    %v3073 = vpop.permute.xlu0 %3072
    %v3078 = vadd.f32 %v3052, %v3067
    %v3079 = vadd.f32 %v3053, %v3069
    %v3080 = vadd.f32 %v3054, %v3071
    %v3081 = vadd.f32 %v3055, %v3073
    %s3082 = sld [smem:[#allocation8 + $0x5c]]
    %v3083 = vstv %s3082
    %v3084 = vmul.f32 %v3083, %v3043
    %v3085 = vmul.f32 %v3083, %v3044
    %v3086 = vmul.f32 %v3083, %v3045
    %v3087 = vmul.f32 %v3083, %v3046
    %3092 = vrot.lane.b32.xlu0 %v3084, 126
    %v3093 = vpop.permute.xlu0 %3092
    %3094 = vrot.lane.b32.xlu0 %v3085, 126
    %v3095 = vpop.permute.xlu0 %3094
    %3096 = vrot.lane.b32.xlu0 %v3086, 126
    %v3097 = vpop.permute.xlu0 %3096
    %3098 = vrot.lane.b32.xlu0 %v3087, 126
    %v3099 = vpop.permute.xlu0 %3098
    %v3104 = vadd.f32 %v3078, %v3093
    %v3105 = vadd.f32 %v3079, %v3095
    %v3106 = vadd.f32 %v3080, %v3097
    %v3107 = vadd.f32 %v3081, %v3099
    %s3108 = sld [smem:[#allocation8 + $0x5d]]
    %v3109 = vld [vmem:[%s797 + $0x1] sm:$0xff]
    %v3110 = vld [vmem:[%s797 + $0x9] sm:$0x1]
    %v3111 = vld [vmem:[%s797 + $0x11] sm:$0xff]
    %v3112 = vld [vmem:[%s797 + $0x19] sm:$0x1]
    %v3113 = vstv %s3108
    %v3114 = vmul.f32 %v3113, %v3109
    %v3115 = vmul.f32 %v3113, %v3110
    %v3116 = vmul.f32 %v3113, %v3111
    %v3117 = vmul.f32 %v3113, %v3112
    %v3118 = vadd.f32 %v3104, %v3114
    %v3119 = vadd.f32 %v3105, %v3115
    %v3120 = vadd.f32 %v3106, %v3116
    %v3121 = vadd.f32 %v3107, %v3117
    %s3122 = sld [smem:[#allocation8 + $0x5e]]
    %v3123 = vstv %s3122
    %v3124 = vmul.f32 %v3123, %v3109
    %v3125 = vmul.f32 %v3123, %v3110
    %v3126 = vmul.f32 %v3123, %v3111
    %v3127 = vmul.f32 %v3123, %v3112
    %3132 = vrot.lane.b32.xlu0 %v3124, 127
    %v3133 = vpop.permute.xlu0 %3132
    %3134 = vrot.lane.b32.xlu0 %v3125, 127
    %v3135 = vpop.permute.xlu0 %3134
    %3136 = vrot.lane.b32.xlu0 %v3126, 127
    %v3137 = vpop.permute.xlu0 %3136
    %3138 = vrot.lane.b32.xlu0 %v3127, 127
    %v3139 = vpop.permute.xlu0 %3138
    %v3144 = vadd.f32 %v3118, %v3133
    %v3145 = vadd.f32 %v3119, %v3135
    %v3146 = vadd.f32 %v3120, %v3137
    %v3147 = vadd.f32 %v3121, %v3139
    %s3148 = sld [smem:[#allocation8 + $0x5f]]
    %v3149 = vstv %s3148
    %v3150 = vmul.f32 %v3149, %v3109
    %v3151 = vmul.f32 %v3149, %v3110
    %v3152 = vmul.f32 %v3149, %v3111
    %v3153 = vmul.f32 %v3149, %v3112
    %3158 = vrot.lane.b32.xlu0 %v3150, 126
    %v3159 = vpop.permute.xlu0 %3158
    %3160 = vrot.lane.b32.xlu0 %v3151, 126
    %v3161 = vpop.permute.xlu0 %3160
    %3162 = vrot.lane.b32.xlu0 %v3152, 126
    %v3163 = vpop.permute.xlu0 %3162
    %3164 = vrot.lane.b32.xlu0 %v3153, 126
    %v3165 = vpop.permute.xlu0 %3164
    %v3170 = vadd.f32 %v3144, %v3159
    %v3171 = vadd.f32 %v3145, %v3161
    %v3172 = vadd.f32 %v3146, %v3163
    %v3173 = vadd.f32 %v3147, %v3165
    %s3174 = sld [smem:[#allocation8 + $0x60]]
    %v3175 = vld [vmem:[%s797 + $0x2] sm:$0xff]
    %v3176 = vld [vmem:[%s797 + $0xa] sm:$0x1]
    %v3177 = vld [vmem:[%s797 + $0x12] sm:$0xff]
    %v3178 = vld [vmem:[%s797 + $0x1a] sm:$0x1]
    %v3179 = vstv %s3174
    %v3180 = vmul.f32 %v3179, %v3175
    %v3181 = vmul.f32 %v3179, %v3176
    %v3182 = vmul.f32 %v3179, %v3177
    %v3183 = vmul.f32 %v3179, %v3178
    %v3184 = vadd.f32 %v3170, %v3180
    %v3185 = vadd.f32 %v3171, %v3181
    %v3186 = vadd.f32 %v3172, %v3182
    %v3187 = vadd.f32 %v3173, %v3183
    %s3188 = sld [smem:[#allocation8 + $0x61]]
    %v3189 = vstv %s3188
    %v3190 = vmul.f32 %v3189, %v3175
    %v3191 = vmul.f32 %v3189, %v3176
    %v3192 = vmul.f32 %v3189, %v3177
    %v3193 = vmul.f32 %v3189, %v3178
    %3198 = vrot.lane.b32.xlu0 %v3190, 127
    %v3199 = vpop.permute.xlu0 %3198
    %3200 = vrot.lane.b32.xlu0 %v3191, 127
    %v3201 = vpop.permute.xlu0 %3200
    %3202 = vrot.lane.b32.xlu0 %v3192, 127
    %v3203 = vpop.permute.xlu0 %3202
    %3204 = vrot.lane.b32.xlu0 %v3193, 127
    %v3205 = vpop.permute.xlu0 %3204
    %v3210 = vadd.f32 %v3184, %v3199
    %v3211 = vadd.f32 %v3185, %v3201
    %v3212 = vadd.f32 %v3186, %v3203
    %v3213 = vadd.f32 %v3187, %v3205
    %s3214 = sld [smem:[#allocation8 + $0x62]]
    %v3215 = vstv %s3214
    %v3216 = vmul.f32 %v3215, %v3175
    %v3217 = vmul.f32 %v3215, %v3176
    %v3218 = vmul.f32 %v3215, %v3177
    %v3219 = vmul.f32 %v3215, %v3178
    %3224 = vrot.lane.b32.xlu0 %v3216, 126
    %v3225 = vpop.permute.xlu0 %3224
    %3226 = vrot.lane.b32.xlu0 %v3217, 126
    %v3227 = vpop.permute.xlu0 %3226
    %3228 = vrot.lane.b32.xlu0 %v3218, 126
    %v3229 = vpop.permute.xlu0 %3228
    %3230 = vrot.lane.b32.xlu0 %v3219, 126
    %v3231 = vpop.permute.xlu0 %3230
    %v3236 = vadd.f32 %v3210, %v3225
    %v3237 = vadd.f32 %v3211, %v3227
    %v3238 = vadd.f32 %v3212, %v3229
    %v3239 = vadd.f32 %v3213, %v3231
    %s3240 = sld [smem:[#allocation8 + $0x63]]
    %v3241 = vld [vmem:[%s1026] sm:$0xff]
    %v3242 = vld [vmem:[%s1026 + $0x8] sm:$0x1]
    %v3243 = vld [vmem:[%s1026 + $0x10] sm:$0xff]
    %v3244 = vld [vmem:[%s1026 + $0x18] sm:$0x1]
    %v3245 = vstv %s3240
    %v3246 = vmul.f32 %v3245, %v3241
    %v3247 = vmul.f32 %v3245, %v3242
    %v3248 = vmul.f32 %v3245, %v3243
    %v3249 = vmul.f32 %v3245, %v3244
    %v3250 = vadd.f32 %v3236, %v3246
    %v3251 = vadd.f32 %v3237, %v3247
    %v3252 = vadd.f32 %v3238, %v3248
    %v3253 = vadd.f32 %v3239, %v3249
    %s3254 = sld [smem:[#allocation8 + $0x64]]
    %v3255 = vstv %s3254
    %v3256 = vmul.f32 %v3255, %v3241
    %v3257 = vmul.f32 %v3255, %v3242
    %v3258 = vmul.f32 %v3255, %v3243
    %v3259 = vmul.f32 %v3255, %v3244
    %3264 = vrot.lane.b32.xlu0 %v3256, 127
    %v3265 = vpop.permute.xlu0 %3264
    %3266 = vrot.lane.b32.xlu0 %v3257, 127
    %v3267 = vpop.permute.xlu0 %3266
    %3268 = vrot.lane.b32.xlu0 %v3258, 127
    %v3269 = vpop.permute.xlu0 %3268
    %3270 = vrot.lane.b32.xlu0 %v3259, 127
    %v3271 = vpop.permute.xlu0 %3270
    %v3276 = vadd.f32 %v3250, %v3265
    %v3277 = vadd.f32 %v3251, %v3267
    %v3278 = vadd.f32 %v3252, %v3269
    %v3279 = vadd.f32 %v3253, %v3271
    %s3280 = sld [smem:[#allocation8 + $0x65]]
    %v3281 = vstv %s3280
    %v3282 = vmul.f32 %v3281, %v3241
    %v3283 = vmul.f32 %v3281, %v3242
    %v3284 = vmul.f32 %v3281, %v3243
    %v3285 = vmul.f32 %v3281, %v3244
    %3290 = vrot.lane.b32.xlu0 %v3282, 126
    %v3291 = vpop.permute.xlu0 %3290
    %3292 = vrot.lane.b32.xlu0 %v3283, 126
    %v3293 = vpop.permute.xlu0 %3292
    %3294 = vrot.lane.b32.xlu0 %v3284, 126
    %v3295 = vpop.permute.xlu0 %3294
    %3296 = vrot.lane.b32.xlu0 %v3285, 126
    %v3297 = vpop.permute.xlu0 %3296
    %v3302 = vadd.f32 %v3276, %v3291
    %v3303 = vadd.f32 %v3277, %v3293
    %v3304 = vadd.f32 %v3278, %v3295
    %v3305 = vadd.f32 %v3279, %v3297
    %s3306 = sld [smem:[#allocation8 + $0x66]]
    %v3307 = vld [vmem:[%s1026 + $0x1] sm:$0xff]
    %v3308 = vld [vmem:[%s1026 + $0x9] sm:$0x1]
    %v3309 = vld [vmem:[%s1026 + $0x11] sm:$0xff]
    %v3310 = vld [vmem:[%s1026 + $0x19] sm:$0x1]
    %v3311 = vstv %s3306
    %v3312 = vmul.f32 %v3311, %v3307
    %v3313 = vmul.f32 %v3311, %v3308
    %v3314 = vmul.f32 %v3311, %v3309
    %v3315 = vmul.f32 %v3311, %v3310
    %v3316 = vadd.f32 %v3302, %v3312
    %v3317 = vadd.f32 %v3303, %v3313
    %v3318 = vadd.f32 %v3304, %v3314
    %v3319 = vadd.f32 %v3305, %v3315
    %s3320 = sld [smem:[#allocation8 + $0x67]]
    %v3321 = vstv %s3320
    %v3322 = vmul.f32 %v3321, %v3307
    %v3323 = vmul.f32 %v3321, %v3308
    %v3324 = vmul.f32 %v3321, %v3309
    %v3325 = vmul.f32 %v3321, %v3310
    %3330 = vrot.lane.b32.xlu0 %v3322, 127
    %v3331 = vpop.permute.xlu0 %3330
    %3332 = vrot.lane.b32.xlu0 %v3323, 127
    %v3333 = vpop.permute.xlu0 %3332
    %3334 = vrot.lane.b32.xlu0 %v3324, 127
    %v3335 = vpop.permute.xlu0 %3334
    %3336 = vrot.lane.b32.xlu0 %v3325, 127
    %v3337 = vpop.permute.xlu0 %3336
    %v3342 = vadd.f32 %v3316, %v3331
    %v3343 = vadd.f32 %v3317, %v3333
    %v3344 = vadd.f32 %v3318, %v3335
    %v3345 = vadd.f32 %v3319, %v3337
    %s3346 = sld [smem:[#allocation8 + $0x68]]
    %v3347 = vstv %s3346
    %v3348 = vmul.f32 %v3347, %v3307
    %v3349 = vmul.f32 %v3347, %v3308
    %v3350 = vmul.f32 %v3347, %v3309
    %v3351 = vmul.f32 %v3347, %v3310
    %3356 = vrot.lane.b32.xlu0 %v3348, 126
    %v3357 = vpop.permute.xlu0 %3356
    %3358 = vrot.lane.b32.xlu0 %v3349, 126
    %v3359 = vpop.permute.xlu0 %3358
    %3360 = vrot.lane.b32.xlu0 %v3350, 126
    %v3361 = vpop.permute.xlu0 %3360
    %3362 = vrot.lane.b32.xlu0 %v3351, 126
    %v3363 = vpop.permute.xlu0 %3362
    %v3368 = vadd.f32 %v3342, %v3357
    %v3369 = vadd.f32 %v3343, %v3359
    %v3370 = vadd.f32 %v3344, %v3361
    %v3371 = vadd.f32 %v3345, %v3363
    %s3372 = sld [smem:[#allocation8 + $0x69]]
    %v3373 = vld [vmem:[%s1026 + $0x2] sm:$0xff]
    %v3374 = vld [vmem:[%s1026 + $0xa] sm:$0x1]
    %v3375 = vld [vmem:[%s1026 + $0x12] sm:$0xff]
    %v3376 = vld [vmem:[%s1026 + $0x1a] sm:$0x1]
    %v3377 = vstv %s3372
    %v3378 = vmul.f32 %v3377, %v3373
    %v3379 = vmul.f32 %v3377, %v3374
    %v3380 = vmul.f32 %v3377, %v3375
    %v3381 = vmul.f32 %v3377, %v3376
    %v3382 = vadd.f32 %v3368, %v3378
    %v3383 = vadd.f32 %v3369, %v3379
    %v3384 = vadd.f32 %v3370, %v3380
    %v3385 = vadd.f32 %v3371, %v3381
    %s3386 = sld [smem:[#allocation8 + $0x6a]]
    %v3387 = vstv %s3386
    %v3388 = vmul.f32 %v3387, %v3373
    %v3389 = vmul.f32 %v3387, %v3374
    %v3390 = vmul.f32 %v3387, %v3375
    %v3391 = vmul.f32 %v3387, %v3376
    %3396 = vrot.lane.b32.xlu0 %v3388, 127
    %v3397 = vpop.permute.xlu0 %3396
    %3398 = vrot.lane.b32.xlu0 %v3389, 127
    %v3399 = vpop.permute.xlu0 %3398
    %3400 = vrot.lane.b32.xlu0 %v3390, 127
    %v3401 = vpop.permute.xlu0 %3400
    %3402 = vrot.lane.b32.xlu0 %v3391, 127
    %v3403 = vpop.permute.xlu0 %3402
    %v3408 = vadd.f32 %v3382, %v3397
    %v3409 = vadd.f32 %v3383, %v3399
    %v3410 = vadd.f32 %v3384, %v3401
    %v3411 = vadd.f32 %v3385, %v3403
    %s3412 = sld [smem:[#allocation8 + $0x6b]]
    %v3413 = vstv %s3412
    %v3414 = vmul.f32 %v3413, %v3373
    %v3415 = vmul.f32 %v3413, %v3374
    %v3416 = vmul.f32 %v3413, %v3375
    %v3417 = vmul.f32 %v3413, %v3376
    %3422 = vrot.lane.b32.xlu0 %v3414, 126
    %v3423 = vpop.permute.xlu0 %3422
    %3424 = vrot.lane.b32.xlu0 %v3415, 126
    %v3425 = vpop.permute.xlu0 %3424
    %3426 = vrot.lane.b32.xlu0 %v3416, 126
    %v3427 = vpop.permute.xlu0 %3426
    %3428 = vrot.lane.b32.xlu0 %v3417, 126
    %v3429 = vpop.permute.xlu0 %3428
    %v3434 = vadd.f32 %v3408, %v3423
    %v3435 = vadd.f32 %v3409, %v3425
    %v3436 = vadd.f32 %v3410, %v3427
    %v3437 = vadd.f32 %v3411, %v3429
    %s3438 = sld [smem:[#allocation9 + $0x2]]
    %v3439 = vstv %s3438
    %v3440 = vadd.f32 %v3434, %v3439
    %v3441 = vadd.f32 %v3435, %v3439
    %v3442 = vadd.f32 %v3436, %v3439
    %v3443 = vadd.f32 %v3437, %v3439
    %v3444 = vmax.f32 %v3440, 0.0
    %v3445 = vmax.f32 %v3441, 0.0
    %v3446 = vmax.f32 %v3442, 0.0
    %v3447 = vmax.f32 %v3443, 0.0
    %s3448 = scalar_lea.vmem %s5, 64
    %3449 = vst.msk [vmem:[%s3448] sm:$0xff] %vm1833, %v3444
    %3450 = vst.msk [vmem:[%s3448 + $0x8] sm:$0x1] %vm1835, %v3445
    %3451 = vst.msk [vmem:[%s3448 + $0x10] sm:$0xff] %vm1833, %v3446
    %3452 = vst.msk [vmem:[%s3448 + $0x18] sm:$0x1] %vm1835, %v3447
    %s3453 = sld [smem:[#allocation8 + $0x6c]]
    %v3454 = vld [vmem:[#allocation3] sm:$0xff]
    %v3455 = vld [vmem:[#allocation3 + $0x8] sm:$0x1]
    %v3456 = vld [vmem:[#allocation3 + $0x10] sm:$0xff]
    %v3457 = vld [vmem:[#allocation3 + $0x18] sm:$0x1]
    %v3458 = vstv %s3453
    %v3459 = vmul.f32 %v3458, %v3454
    %v3460 = vmul.f32 %v3458, %v3455
    %v3461 = vmul.f32 %v3458, %v3456
    %v3462 = vmul.f32 %v3458, %v3457
    %v3463 = vadd.f32 %v3459, 0.0
    %v3464 = vadd.f32 %v3460, 0.0
    %v3465 = vadd.f32 %v3461, 0.0
    %v3466 = vadd.f32 %v3462, 0.0
    %s3467 = sld [smem:[#allocation8 + $0x6d]]
    %v3468 = vstv %s3467
    %v3469 = vmul.f32 %v3468, %v3454
    %v3470 = vmul.f32 %v3468, %v3455
    %v3471 = vmul.f32 %v3468, %v3456
    %v3472 = vmul.f32 %v3468, %v3457
    %3477 = vrot.lane.b32.xlu0 %v3469, 127
    %v3478 = vpop.permute.xlu0 %3477
    %3479 = vrot.lane.b32.xlu0 %v3470, 127
    %v3480 = vpop.permute.xlu0 %3479
    %3481 = vrot.lane.b32.xlu0 %v3471, 127
    %v3482 = vpop.permute.xlu0 %3481
    %3483 = vrot.lane.b32.xlu0 %v3472, 127
    %v3484 = vpop.permute.xlu0 %3483
    %v3489 = vadd.f32 %v3463, %v3478
    %v3490 = vadd.f32 %v3464, %v3480
    %v3491 = vadd.f32 %v3465, %v3482
    %v3492 = vadd.f32 %v3466, %v3484
    %s3493 = sld [smem:[#allocation8 + $0x6e]]
    %v3494 = vstv %s3493
    %v3495 = vmul.f32 %v3494, %v3454
    %v3496 = vmul.f32 %v3494, %v3455
    %v3497 = vmul.f32 %v3494, %v3456
    %v3498 = vmul.f32 %v3494, %v3457
    %3503 = vrot.lane.b32.xlu0 %v3495, 126
    %v3504 = vpop.permute.xlu0 %3503
    %3505 = vrot.lane.b32.xlu0 %v3496, 126
    %v3506 = vpop.permute.xlu0 %3505
    %3507 = vrot.lane.b32.xlu0 %v3497, 126
    %v3508 = vpop.permute.xlu0 %3507
    %3509 = vrot.lane.b32.xlu0 %v3498, 126
    %v3510 = vpop.permute.xlu0 %3509
    %v3515 = vadd.f32 %v3489, %v3504
    %v3516 = vadd.f32 %v3490, %v3506
    %v3517 = vadd.f32 %v3491, %v3508
    %v3518 = vadd.f32 %v3492, %v3510
    %s3519 = sld [smem:[#allocation8 + $0x6f]]
    %v3520 = vld [vmem:[#allocation3 + $0x1] sm:$0xff]
    %v3521 = vld [vmem:[#allocation3 + $0x9] sm:$0x1]
    %v3522 = vld [vmem:[#allocation3 + $0x11] sm:$0xff]
    %v3523 = vld [vmem:[#allocation3 + $0x19] sm:$0x1]
    %v3524 = vstv %s3519
    %v3525 = vmul.f32 %v3524, %v3520
    %v3526 = vmul.f32 %v3524, %v3521
    %v3527 = vmul.f32 %v3524, %v3522
    %v3528 = vmul.f32 %v3524, %v3523
    %v3529 = vadd.f32 %v3515, %v3525
    %v3530 = vadd.f32 %v3516, %v3526
    %v3531 = vadd.f32 %v3517, %v3527
    %v3532 = vadd.f32 %v3518, %v3528
    %s3533 = sld [smem:[#allocation8 + $0x70]]
    %v3534 = vstv %s3533
    %v3535 = vmul.f32 %v3534, %v3520
    %v3536 = vmul.f32 %v3534, %v3521
    %v3537 = vmul.f32 %v3534, %v3522
    %v3538 = vmul.f32 %v3534, %v3523
    %3543 = vrot.lane.b32.xlu0 %v3535, 127
    %v3544 = vpop.permute.xlu0 %3543
    %3545 = vrot.lane.b32.xlu0 %v3536, 127
    %v3546 = vpop.permute.xlu0 %3545
    %3547 = vrot.lane.b32.xlu0 %v3537, 127
    %v3548 = vpop.permute.xlu0 %3547
    %3549 = vrot.lane.b32.xlu0 %v3538, 127
    %v3550 = vpop.permute.xlu0 %3549
    %v3555 = vadd.f32 %v3529, %v3544
    %v3556 = vadd.f32 %v3530, %v3546
    %v3557 = vadd.f32 %v3531, %v3548
    %v3558 = vadd.f32 %v3532, %v3550
    %s3559 = sld [smem:[#allocation8 + $0x71]]
    %v3560 = vstv %s3559
    %v3561 = vmul.f32 %v3560, %v3520
    %v3562 = vmul.f32 %v3560, %v3521
    %v3563 = vmul.f32 %v3560, %v3522
    %v3564 = vmul.f32 %v3560, %v3523
    %3569 = vrot.lane.b32.xlu0 %v3561, 126
    %v3570 = vpop.permute.xlu0 %3569
    %3571 = vrot.lane.b32.xlu0 %v3562, 126
    %v3572 = vpop.permute.xlu0 %3571
    %3573 = vrot.lane.b32.xlu0 %v3563, 126
    %v3574 = vpop.permute.xlu0 %3573
    %3575 = vrot.lane.b32.xlu0 %v3564, 126
    %v3576 = vpop.permute.xlu0 %3575
    %v3581 = vadd.f32 %v3555, %v3570
    %v3582 = vadd.f32 %v3556, %v3572
    %v3583 = vadd.f32 %v3557, %v3574
    %v3584 = vadd.f32 %v3558, %v3576
    %s3585 = sld [smem:[#allocation8 + $0x72]]
    %v3586 = vld [vmem:[#allocation3 + $0x2] sm:$0xff]
    %v3587 = vld [vmem:[#allocation3 + $0xa] sm:$0x1]
    %v3588 = vld [vmem:[#allocation3 + $0x12] sm:$0xff]
    %v3589 = vld [vmem:[#allocation3 + $0x1a] sm:$0x1]
    %v3590 = vstv %s3585
    %v3591 = vmul.f32 %v3590, %v3586
    %v3592 = vmul.f32 %v3590, %v3587
    %v3593 = vmul.f32 %v3590, %v3588
    %v3594 = vmul.f32 %v3590, %v3589
    %v3595 = vadd.f32 %v3581, %v3591
    %v3596 = vadd.f32 %v3582, %v3592
    %v3597 = vadd.f32 %v3583, %v3593
    %v3598 = vadd.f32 %v3584, %v3594
    %s3599 = sld [smem:[#allocation8 + $0x73]]
    %v3600 = vstv %s3599
    %v3601 = vmul.f32 %v3600, %v3586
    %v3602 = vmul.f32 %v3600, %v3587
    %v3603 = vmul.f32 %v3600, %v3588
    %v3604 = vmul.f32 %v3600, %v3589
    %3609 = vrot.lane.b32.xlu0 %v3601, 127
    %v3610 = vpop.permute.xlu0 %3609
    %3611 = vrot.lane.b32.xlu0 %v3602, 127
    %v3612 = vpop.permute.xlu0 %3611
    %3613 = vrot.lane.b32.xlu0 %v3603, 127
    %v3614 = vpop.permute.xlu0 %3613
    %3615 = vrot.lane.b32.xlu0 %v3604, 127
    %v3616 = vpop.permute.xlu0 %3615
    %v3621 = vadd.f32 %v3595, %v3610
    %v3622 = vadd.f32 %v3596, %v3612
    %v3623 = vadd.f32 %v3597, %v3614
    %v3624 = vadd.f32 %v3598, %v3616
    %s3625 = sld [smem:[#allocation8 + $0x74]]
    %v3626 = vstv %s3625
    %v3627 = vmul.f32 %v3626, %v3586
    %v3628 = vmul.f32 %v3626, %v3587
    %v3629 = vmul.f32 %v3626, %v3588
    %v3630 = vmul.f32 %v3626, %v3589
    %3635 = vrot.lane.b32.xlu0 %v3627, 126
    %v3636 = vpop.permute.xlu0 %3635
    %3637 = vrot.lane.b32.xlu0 %v3628, 126
    %v3638 = vpop.permute.xlu0 %3637
    %3639 = vrot.lane.b32.xlu0 %v3629, 126
    %v3640 = vpop.permute.xlu0 %3639
    %3641 = vrot.lane.b32.xlu0 %v3630, 126
    %v3642 = vpop.permute.xlu0 %3641
    %v3647 = vadd.f32 %v3621, %v3636
    %v3648 = vadd.f32 %v3622, %v3638
    %v3649 = vadd.f32 %v3623, %v3640
    %v3650 = vadd.f32 %v3624, %v3642
    %s3651 = sld [smem:[#allocation8 + $0x75]]
    %v3652 = vld [vmem:[%s568] sm:$0xff]
    %v3653 = vld [vmem:[%s568 + $0x8] sm:$0x1]
    %v3654 = vld [vmem:[%s568 + $0x10] sm:$0xff]
    %v3655 = vld [vmem:[%s568 + $0x18] sm:$0x1]
    %v3656 = vstv %s3651
    %v3657 = vmul.f32 %v3656, %v3652
    %v3658 = vmul.f32 %v3656, %v3653
    %v3659 = vmul.f32 %v3656, %v3654
    %v3660 = vmul.f32 %v3656, %v3655
    %v3661 = vadd.f32 %v3647, %v3657
    %v3662 = vadd.f32 %v3648, %v3658
    %v3663 = vadd.f32 %v3649, %v3659
    %v3664 = vadd.f32 %v3650, %v3660
    %s3665 = sld [smem:[#allocation8 + $0x76]]
    %v3666 = vstv %s3665
    %v3667 = vmul.f32 %v3666, %v3652
    %v3668 = vmul.f32 %v3666, %v3653
    %v3669 = vmul.f32 %v3666, %v3654
    %v3670 = vmul.f32 %v3666, %v3655
    %3675 = vrot.lane.b32.xlu0 %v3667, 127
    %v3676 = vpop.permute.xlu0 %3675
    %3677 = vrot.lane.b32.xlu0 %v3668, 127
    %v3678 = vpop.permute.xlu0 %3677
    %3679 = vrot.lane.b32.xlu0 %v3669, 127
    %v3680 = vpop.permute.xlu0 %3679
    %3681 = vrot.lane.b32.xlu0 %v3670, 127
    %v3682 = vpop.permute.xlu0 %3681
    %v3687 = vadd.f32 %v3661, %v3676
    %v3688 = vadd.f32 %v3662, %v3678
    %v3689 = vadd.f32 %v3663, %v3680
    %v3690 = vadd.f32 %v3664, %v3682
    %s3691 = sld [smem:[#allocation8 + $0x77]]
    %v3692 = vstv %s3691
    %v3693 = vmul.f32 %v3692, %v3652
    %v3694 = vmul.f32 %v3692, %v3653
    %v3695 = vmul.f32 %v3692, %v3654
    %v3696 = vmul.f32 %v3692, %v3655
    %3701 = vrot.lane.b32.xlu0 %v3693, 126
    %v3702 = vpop.permute.xlu0 %3701
    %3703 = vrot.lane.b32.xlu0 %v3694, 126
    %v3704 = vpop.permute.xlu0 %3703
    %3705 = vrot.lane.b32.xlu0 %v3695, 126
    %v3706 = vpop.permute.xlu0 %3705
    %3707 = vrot.lane.b32.xlu0 %v3696, 126
    %v3708 = vpop.permute.xlu0 %3707
    %v3713 = vadd.f32 %v3687, %v3702
    %v3714 = vadd.f32 %v3688, %v3704
    %v3715 = vadd.f32 %v3689, %v3706
    %v3716 = vadd.f32 %v3690, %v3708
    %s3717 = sld [smem:[#allocation8 + $0x78]]
    %v3718 = vld [vmem:[%s568 + $0x1] sm:$0xff]
    %v3719 = vld [vmem:[%s568 + $0x9] sm:$0x1]
    %v3720 = vld [vmem:[%s568 + $0x11] sm:$0xff]
    %v3721 = vld [vmem:[%s568 + $0x19] sm:$0x1]
    %v3722 = vstv %s3717
    %v3723 = vmul.f32 %v3722, %v3718
    %v3724 = vmul.f32 %v3722, %v3719
    %v3725 = vmul.f32 %v3722, %v3720
    %v3726 = vmul.f32 %v3722, %v3721
    %v3727 = vadd.f32 %v3713, %v3723
    %v3728 = vadd.f32 %v3714, %v3724
    %v3729 = vadd.f32 %v3715, %v3725
    %v3730 = vadd.f32 %v3716, %v3726
    %s3731 = sld [smem:[#allocation8 + $0x79]]
    %v3732 = vstv %s3731
    %v3733 = vmul.f32 %v3732, %v3718
    %v3734 = vmul.f32 %v3732, %v3719
    %v3735 = vmul.f32 %v3732, %v3720
    %v3736 = vmul.f32 %v3732, %v3721
    %3741 = vrot.lane.b32.xlu0 %v3733, 127
    %v3742 = vpop.permute.xlu0 %3741
    %3743 = vrot.lane.b32.xlu0 %v3734, 127
    %v3744 = vpop.permute.xlu0 %3743
    %3745 = vrot.lane.b32.xlu0 %v3735, 127
    %v3746 = vpop.permute.xlu0 %3745
    %3747 = vrot.lane.b32.xlu0 %v3736, 127
    %v3748 = vpop.permute.xlu0 %3747
    %v3753 = vadd.f32 %v3727, %v3742
    %v3754 = vadd.f32 %v3728, %v3744
    %v3755 = vadd.f32 %v3729, %v3746
    %v3756 = vadd.f32 %v3730, %v3748
    %s3757 = sld [smem:[#allocation8 + $0x7a]]
    %v3758 = vstv %s3757
    %v3759 = vmul.f32 %v3758, %v3718
    %v3760 = vmul.f32 %v3758, %v3719
    %v3761 = vmul.f32 %v3758, %v3720
    %v3762 = vmul.f32 %v3758, %v3721
    %3767 = vrot.lane.b32.xlu0 %v3759, 126
    %v3768 = vpop.permute.xlu0 %3767
    %3769 = vrot.lane.b32.xlu0 %v3760, 126
    %v3770 = vpop.permute.xlu0 %3769
    %3771 = vrot.lane.b32.xlu0 %v3761, 126
    %v3772 = vpop.permute.xlu0 %3771
    %3773 = vrot.lane.b32.xlu0 %v3762, 126
    %v3774 = vpop.permute.xlu0 %3773
    %v3779 = vadd.f32 %v3753, %v3768
    %v3780 = vadd.f32 %v3754, %v3770
    %v3781 = vadd.f32 %v3755, %v3772
    %v3782 = vadd.f32 %v3756, %v3774
    %s3783 = sld [smem:[#allocation8 + $0x7b]]
    %v3784 = vld [vmem:[%s568 + $0x2] sm:$0xff]
    %v3785 = vld [vmem:[%s568 + $0xa] sm:$0x1]
    %v3786 = vld [vmem:[%s568 + $0x12] sm:$0xff]
    %v3787 = vld [vmem:[%s568 + $0x1a] sm:$0x1]
    %v3788 = vstv %s3783
    %v3789 = vmul.f32 %v3788, %v3784
    %v3790 = vmul.f32 %v3788, %v3785
    %v3791 = vmul.f32 %v3788, %v3786
    %v3792 = vmul.f32 %v3788, %v3787
    %v3793 = vadd.f32 %v3779, %v3789
    %v3794 = vadd.f32 %v3780, %v3790
    %v3795 = vadd.f32 %v3781, %v3791
    %v3796 = vadd.f32 %v3782, %v3792
    %s3797 = sld [smem:[#allocation8 + $0x7c]]
    %v3798 = vstv %s3797
    %v3799 = vmul.f32 %v3798, %v3784
    %v3800 = vmul.f32 %v3798, %v3785
    %v3801 = vmul.f32 %v3798, %v3786
    %v3802 = vmul.f32 %v3798, %v3787
    %3807 = vrot.lane.b32.xlu0 %v3799, 127
    %v3808 = vpop.permute.xlu0 %3807
    %3809 = vrot.lane.b32.xlu0 %v3800, 127
    %v3810 = vpop.permute.xlu0 %3809
    %3811 = vrot.lane.b32.xlu0 %v3801, 127
    %v3812 = vpop.permute.xlu0 %3811
    %3813 = vrot.lane.b32.xlu0 %v3802, 127
    %v3814 = vpop.permute.xlu0 %3813
    %v3819 = vadd.f32 %v3793, %v3808
    %v3820 = vadd.f32 %v3794, %v3810
    %v3821 = vadd.f32 %v3795, %v3812
    %v3822 = vadd.f32 %v3796, %v3814
    %s3823 = sld [smem:[#allocation8 + $0x7d]]
    %v3824 = vstv %s3823
    %v3825 = vmul.f32 %v3824, %v3784
    %v3826 = vmul.f32 %v3824, %v3785
    %v3827 = vmul.f32 %v3824, %v3786
    %v3828 = vmul.f32 %v3824, %v3787
    %3833 = vrot.lane.b32.xlu0 %v3825, 126
    %v3834 = vpop.permute.xlu0 %3833
    %3835 = vrot.lane.b32.xlu0 %v3826, 126
    %v3836 = vpop.permute.xlu0 %3835
    %3837 = vrot.lane.b32.xlu0 %v3827, 126
    %v3838 = vpop.permute.xlu0 %3837
    %3839 = vrot.lane.b32.xlu0 %v3828, 126
    %v3840 = vpop.permute.xlu0 %3839
    %v3845 = vadd.f32 %v3819, %v3834
    %v3846 = vadd.f32 %v3820, %v3836
    %v3847 = vadd.f32 %v3821, %v3838
    %v3848 = vadd.f32 %v3822, %v3840
    %s3849 = sld [smem:[#allocation8 + $0x7e]]
    %v3850 = vld [vmem:[%s797] sm:$0xff]
    %v3851 = vld [vmem:[%s797 + $0x8] sm:$0x1]
    %v3852 = vld [vmem:[%s797 + $0x10] sm:$0xff]
    %v3853 = vld [vmem:[%s797 + $0x18] sm:$0x1]
    %v3854 = vstv %s3849
    %v3855 = vmul.f32 %v3854, %v3850
    %v3856 = vmul.f32 %v3854, %v3851
    %v3857 = vmul.f32 %v3854, %v3852
    %v3858 = vmul.f32 %v3854, %v3853
    %v3859 = vadd.f32 %v3845, %v3855
    %v3860 = vadd.f32 %v3846, %v3856
    %v3861 = vadd.f32 %v3847, %v3857
    %v3862 = vadd.f32 %v3848, %v3858
    %s3863 = sld [smem:[#allocation8 + $0x7f]]
    %v3864 = vstv %s3863
    %v3865 = vmul.f32 %v3864, %v3850
    %v3866 = vmul.f32 %v3864, %v3851
    %v3867 = vmul.f32 %v3864, %v3852
    %v3868 = vmul.f32 %v3864, %v3853
    %3873 = vrot.lane.b32.xlu0 %v3865, 127
    %v3874 = vpop.permute.xlu0 %3873
    %3875 = vrot.lane.b32.xlu0 %v3866, 127
    %v3876 = vpop.permute.xlu0 %3875
    %3877 = vrot.lane.b32.xlu0 %v3867, 127
    %v3878 = vpop.permute.xlu0 %3877
    %3879 = vrot.lane.b32.xlu0 %v3868, 127
    %v3880 = vpop.permute.xlu0 %3879
    %v3885 = vadd.f32 %v3859, %v3874
    %v3886 = vadd.f32 %v3860, %v3876
    %v3887 = vadd.f32 %v3861, %v3878
    %v3888 = vadd.f32 %v3862, %v3880
    %s3889 = sld [smem:[#allocation8 + $0x80]]
    %v3890 = vstv %s3889
    %v3891 = vmul.f32 %v3890, %v3850
    %v3892 = vmul.f32 %v3890, %v3851
    %v3893 = vmul.f32 %v3890, %v3852
    %v3894 = vmul.f32 %v3890, %v3853
    %3899 = vrot.lane.b32.xlu0 %v3891, 126
    %v3900 = vpop.permute.xlu0 %3899
    %3901 = vrot.lane.b32.xlu0 %v3892, 126
    %v3902 = vpop.permute.xlu0 %3901
    %3903 = vrot.lane.b32.xlu0 %v3893, 126
    %v3904 = vpop.permute.xlu0 %3903
    %3905 = vrot.lane.b32.xlu0 %v3894, 126
    %v3906 = vpop.permute.xlu0 %3905
    %v3911 = vadd.f32 %v3885, %v3900
    %v3912 = vadd.f32 %v3886, %v3902
    %v3913 = vadd.f32 %v3887, %v3904
    %v3914 = vadd.f32 %v3888, %v3906
    %s3915 = sld [smem:[#allocation8 + $0x81]]
    %v3916 = vld [vmem:[%s797 + $0x1] sm:$0xff]
    %v3917 = vld [vmem:[%s797 + $0x9] sm:$0x1]
    %v3918 = vld [vmem:[%s797 + $0x11] sm:$0xff]
    %v3919 = vld [vmem:[%s797 + $0x19] sm:$0x1]
    %v3920 = vstv %s3915
    %v3921 = vmul.f32 %v3920, %v3916
    %v3922 = vmul.f32 %v3920, %v3917
    %v3923 = vmul.f32 %v3920, %v3918
    %v3924 = vmul.f32 %v3920, %v3919
    %v3925 = vadd.f32 %v3911, %v3921
    %v3926 = vadd.f32 %v3912, %v3922
    %v3927 = vadd.f32 %v3913, %v3923
    %v3928 = vadd.f32 %v3914, %v3924
    %s3929 = sld [smem:[#allocation8 + $0x82]]
    %v3930 = vstv %s3929
    %v3931 = vmul.f32 %v3930, %v3916
    %v3932 = vmul.f32 %v3930, %v3917
    %v3933 = vmul.f32 %v3930, %v3918
    %v3934 = vmul.f32 %v3930, %v3919
    %3939 = vrot.lane.b32.xlu0 %v3931, 127
    %v3940 = vpop.permute.xlu0 %3939
    %3941 = vrot.lane.b32.xlu0 %v3932, 127
    %v3942 = vpop.permute.xlu0 %3941
    %3943 = vrot.lane.b32.xlu0 %v3933, 127
    %v3944 = vpop.permute.xlu0 %3943
    %3945 = vrot.lane.b32.xlu0 %v3934, 127
    %v3946 = vpop.permute.xlu0 %3945
    %v3951 = vadd.f32 %v3925, %v3940
    %v3952 = vadd.f32 %v3926, %v3942
    %v3953 = vadd.f32 %v3927, %v3944
    %v3954 = vadd.f32 %v3928, %v3946
    %s3955 = sld [smem:[#allocation8 + $0x83]]
    %v3956 = vstv %s3955
    %v3957 = vmul.f32 %v3956, %v3916
    %v3958 = vmul.f32 %v3956, %v3917
    %v3959 = vmul.f32 %v3956, %v3918
    %v3960 = vmul.f32 %v3956, %v3919
    %3965 = vrot.lane.b32.xlu0 %v3957, 126
    %v3966 = vpop.permute.xlu0 %3965
    %3967 = vrot.lane.b32.xlu0 %v3958, 126
    %v3968 = vpop.permute.xlu0 %3967
    %3969 = vrot.lane.b32.xlu0 %v3959, 126
    %v3970 = vpop.permute.xlu0 %3969
    %3971 = vrot.lane.b32.xlu0 %v3960, 126
    %v3972 = vpop.permute.xlu0 %3971
    %v3977 = vadd.f32 %v3951, %v3966
    %v3978 = vadd.f32 %v3952, %v3968
    %v3979 = vadd.f32 %v3953, %v3970
    %v3980 = vadd.f32 %v3954, %v3972
    %s3981 = sld [smem:[#allocation8 + $0x84]]
    %v3982 = vld [vmem:[%s797 + $0x2] sm:$0xff]
    %v3983 = vld [vmem:[%s797 + $0xa] sm:$0x1]
    %v3984 = vld [vmem:[%s797 + $0x12] sm:$0xff]
    %v3985 = vld [vmem:[%s797 + $0x1a] sm:$0x1]
    %v3986 = vstv %s3981
    %v3987 = vmul.f32 %v3986, %v3982
    %v3988 = vmul.f32 %v3986, %v3983
    %v3989 = vmul.f32 %v3986, %v3984
    %v3990 = vmul.f32 %v3986, %v3985
    %v3991 = vadd.f32 %v3977, %v3987
    %v3992 = vadd.f32 %v3978, %v3988
    %v3993 = vadd.f32 %v3979, %v3989
    %v3994 = vadd.f32 %v3980, %v3990
    %s3995 = sld [smem:[#allocation8 + $0x85]]
    %v3996 = vstv %s3995
    %v3997 = vmul.f32 %v3996, %v3982
    %v3998 = vmul.f32 %v3996, %v3983
    %v3999 = vmul.f32 %v3996, %v3984
    %v4000 = vmul.f32 %v3996, %v3985
    %4005 = vrot.lane.b32.xlu0 %v3997, 127
    %v4006 = vpop.permute.xlu0 %4005
    %4007 = vrot.lane.b32.xlu0 %v3998, 127
    %v4008 = vpop.permute.xlu0 %4007
    %4009 = vrot.lane.b32.xlu0 %v3999, 127
    %v4010 = vpop.permute.xlu0 %4009
    %4011 = vrot.lane.b32.xlu0 %v4000, 127
    %v4012 = vpop.permute.xlu0 %4011
    %v4017 = vadd.f32 %v3991, %v4006
    %v4018 = vadd.f32 %v3992, %v4008
    %v4019 = vadd.f32 %v3993, %v4010
    %v4020 = vadd.f32 %v3994, %v4012
    %s4021 = sld [smem:[#allocation8 + $0x86]]
    %v4022 = vstv %s4021
    %v4023 = vmul.f32 %v4022, %v3982
    %v4024 = vmul.f32 %v4022, %v3983
    %v4025 = vmul.f32 %v4022, %v3984
    %v4026 = vmul.f32 %v4022, %v3985
    %4031 = vrot.lane.b32.xlu0 %v4023, 126
    %v4032 = vpop.permute.xlu0 %4031
    %4033 = vrot.lane.b32.xlu0 %v4024, 126
    %v4034 = vpop.permute.xlu0 %4033
    %4035 = vrot.lane.b32.xlu0 %v4025, 126
    %v4036 = vpop.permute.xlu0 %4035
    %4037 = vrot.lane.b32.xlu0 %v4026, 126
    %v4038 = vpop.permute.xlu0 %4037
    %v4043 = vadd.f32 %v4017, %v4032
    %v4044 = vadd.f32 %v4018, %v4034
    %v4045 = vadd.f32 %v4019, %v4036
    %v4046 = vadd.f32 %v4020, %v4038
    %s4047 = sld [smem:[#allocation8 + $0x87]]
    %v4048 = vld [vmem:[%s1026] sm:$0xff]
    %v4049 = vld [vmem:[%s1026 + $0x8] sm:$0x1]
    %v4050 = vld [vmem:[%s1026 + $0x10] sm:$0xff]
    %v4051 = vld [vmem:[%s1026 + $0x18] sm:$0x1]
    %v4052 = vstv %s4047
    %v4053 = vmul.f32 %v4052, %v4048
    %v4054 = vmul.f32 %v4052, %v4049
    %v4055 = vmul.f32 %v4052, %v4050
    %v4056 = vmul.f32 %v4052, %v4051
    %v4057 = vadd.f32 %v4043, %v4053
    %v4058 = vadd.f32 %v4044, %v4054
    %v4059 = vadd.f32 %v4045, %v4055
    %v4060 = vadd.f32 %v4046, %v4056
    %s4061 = sld [smem:[#allocation8 + $0x88]]
    %v4062 = vstv %s4061
    %v4063 = vmul.f32 %v4062, %v4048
    %v4064 = vmul.f32 %v4062, %v4049
    %v4065 = vmul.f32 %v4062, %v4050
    %v4066 = vmul.f32 %v4062, %v4051
    %4071 = vrot.lane.b32.xlu0 %v4063, 127
    %v4072 = vpop.permute.xlu0 %4071
    %4073 = vrot.lane.b32.xlu0 %v4064, 127
    %v4074 = vpop.permute.xlu0 %4073
    %4075 = vrot.lane.b32.xlu0 %v4065, 127
    %v4076 = vpop.permute.xlu0 %4075
    %4077 = vrot.lane.b32.xlu0 %v4066, 127
    %v4078 = vpop.permute.xlu0 %4077
    %v4083 = vadd.f32 %v4057, %v4072
    %v4084 = vadd.f32 %v4058, %v4074
    %v4085 = vadd.f32 %v4059, %v4076
    %v4086 = vadd.f32 %v4060, %v4078
    %s4087 = sld [smem:[#allocation8 + $0x89]]
    %v4088 = vstv %s4087
    %v4089 = vmul.f32 %v4088, %v4048
    %v4090 = vmul.f32 %v4088, %v4049
    %v4091 = vmul.f32 %v4088, %v4050
    %v4092 = vmul.f32 %v4088, %v4051
    %4097 = vrot.lane.b32.xlu0 %v4089, 126
    %v4098 = vpop.permute.xlu0 %4097
    %4099 = vrot.lane.b32.xlu0 %v4090, 126
    %v4100 = vpop.permute.xlu0 %4099
    %4101 = vrot.lane.b32.xlu0 %v4091, 126
    %v4102 = vpop.permute.xlu0 %4101
    %4103 = vrot.lane.b32.xlu0 %v4092, 126
    %v4104 = vpop.permute.xlu0 %4103
    %v4109 = vadd.f32 %v4083, %v4098
    %v4110 = vadd.f32 %v4084, %v4100
    %v4111 = vadd.f32 %v4085, %v4102
    %v4112 = vadd.f32 %v4086, %v4104
    %s4113 = sld [smem:[#allocation8 + $0x8a]]
    %v4114 = vld [vmem:[%s1026 + $0x1] sm:$0xff]
    %v4115 = vld [vmem:[%s1026 + $0x9] sm:$0x1]
    %v4116 = vld [vmem:[%s1026 + $0x11] sm:$0xff]
    %v4117 = vld [vmem:[%s1026 + $0x19] sm:$0x1]
    %v4118 = vstv %s4113
    %v4119 = vmul.f32 %v4118, %v4114
    %v4120 = vmul.f32 %v4118, %v4115
    %v4121 = vmul.f32 %v4118, %v4116
    %v4122 = vmul.f32 %v4118, %v4117
    %v4123 = vadd.f32 %v4109, %v4119
    %v4124 = vadd.f32 %v4110, %v4120
    %v4125 = vadd.f32 %v4111, %v4121
    %v4126 = vadd.f32 %v4112, %v4122
    %s4127 = sld [smem:[#allocation8 + $0x8b]]
    %v4128 = vstv %s4127
    %v4129 = vmul.f32 %v4128, %v4114
    %v4130 = vmul.f32 %v4128, %v4115
    %v4131 = vmul.f32 %v4128, %v4116
    %v4132 = vmul.f32 %v4128, %v4117
    %4137 = vrot.lane.b32.xlu0 %v4129, 127
    %v4138 = vpop.permute.xlu0 %4137
    %4139 = vrot.lane.b32.xlu0 %v4130, 127
    %v4140 = vpop.permute.xlu0 %4139
    %4141 = vrot.lane.b32.xlu0 %v4131, 127
    %v4142 = vpop.permute.xlu0 %4141
    %4143 = vrot.lane.b32.xlu0 %v4132, 127
    %v4144 = vpop.permute.xlu0 %4143
    %v4149 = vadd.f32 %v4123, %v4138
    %v4150 = vadd.f32 %v4124, %v4140
    %v4151 = vadd.f32 %v4125, %v4142
    %v4152 = vadd.f32 %v4126, %v4144
    %s4153 = sld [smem:[#allocation8 + $0x8c]]
    %v4154 = vstv %s4153
    %v4155 = vmul.f32 %v4154, %v4114
    %v4156 = vmul.f32 %v4154, %v4115
    %v4157 = vmul.f32 %v4154, %v4116
    %v4158 = vmul.f32 %v4154, %v4117
    %4163 = vrot.lane.b32.xlu0 %v4155, 126
    %v4164 = vpop.permute.xlu0 %4163
    %4165 = vrot.lane.b32.xlu0 %v4156, 126
    %v4166 = vpop.permute.xlu0 %4165
    %4167 = vrot.lane.b32.xlu0 %v4157, 126
    %v4168 = vpop.permute.xlu0 %4167
    %4169 = vrot.lane.b32.xlu0 %v4158, 126
    %v4170 = vpop.permute.xlu0 %4169
    %v4175 = vadd.f32 %v4149, %v4164
    %v4176 = vadd.f32 %v4150, %v4166
    %v4177 = vadd.f32 %v4151, %v4168
    %v4178 = vadd.f32 %v4152, %v4170
    %s4179 = sld [smem:[#allocation8 + $0x8d]]
    %v4180 = vld [vmem:[%s1026 + $0x2] sm:$0xff]
    %v4181 = vld [vmem:[%s1026 + $0xa] sm:$0x1]
    %v4182 = vld [vmem:[%s1026 + $0x12] sm:$0xff]
    %v4183 = vld [vmem:[%s1026 + $0x1a] sm:$0x1]
    %v4184 = vstv %s4179
    %v4185 = vmul.f32 %v4184, %v4180
    %v4186 = vmul.f32 %v4184, %v4181
    %v4187 = vmul.f32 %v4184, %v4182
    %v4188 = vmul.f32 %v4184, %v4183
    %v4189 = vadd.f32 %v4175, %v4185
    %v4190 = vadd.f32 %v4176, %v4186
    %v4191 = vadd.f32 %v4177, %v4187
    %v4192 = vadd.f32 %v4178, %v4188
    %s4193 = sld [smem:[#allocation8 + $0x8e]]
    %v4194 = vstv %s4193
    %v4195 = vmul.f32 %v4194, %v4180
    %v4196 = vmul.f32 %v4194, %v4181
    %v4197 = vmul.f32 %v4194, %v4182
    %v4198 = vmul.f32 %v4194, %v4183
    %4203 = vrot.lane.b32.xlu0 %v4195, 127
    %v4204 = vpop.permute.xlu0 %4203
    %4205 = vrot.lane.b32.xlu0 %v4196, 127
    %v4206 = vpop.permute.xlu0 %4205
    %4207 = vrot.lane.b32.xlu0 %v4197, 127
    %v4208 = vpop.permute.xlu0 %4207
    %4209 = vrot.lane.b32.xlu0 %v4198, 127
    %v4210 = vpop.permute.xlu0 %4209
    %v4215 = vadd.f32 %v4189, %v4204
    %v4216 = vadd.f32 %v4190, %v4206
    %v4217 = vadd.f32 %v4191, %v4208
    %v4218 = vadd.f32 %v4192, %v4210
    %s4219 = sld [smem:[#allocation8 + $0x8f]]
    %v4220 = vstv %s4219
    %v4221 = vmul.f32 %v4220, %v4180
    %v4222 = vmul.f32 %v4220, %v4181
    %v4223 = vmul.f32 %v4220, %v4182
    %v4224 = vmul.f32 %v4220, %v4183
    %4229 = vrot.lane.b32.xlu0 %v4221, 126
    %v4230 = vpop.permute.xlu0 %4229
    %4231 = vrot.lane.b32.xlu0 %v4222, 126
    %v4232 = vpop.permute.xlu0 %4231
    %4233 = vrot.lane.b32.xlu0 %v4223, 126
    %v4234 = vpop.permute.xlu0 %4233
    %4235 = vrot.lane.b32.xlu0 %v4224, 126
    %v4236 = vpop.permute.xlu0 %4235
    %v4241 = vadd.f32 %v4215, %v4230
    %v4242 = vadd.f32 %v4216, %v4232
    %v4243 = vadd.f32 %v4217, %v4234
    %v4244 = vadd.f32 %v4218, %v4236
    %s4245 = sld [smem:[#allocation9 + $0x3]]
    %v4246 = vstv %s4245
    %v4247 = vadd.f32 %v4241, %v4246
    %v4248 = vadd.f32 %v4242, %v4246
    %v4249 = vadd.f32 %v4243, %v4246
    %v4250 = vadd.f32 %v4244, %v4246
    %v4251 = vmax.f32 %v4247, 0.0
    %v4252 = vmax.f32 %v4248, 0.0
    %v4253 = vmax.f32 %v4249, 0.0
    %v4254 = vmax.f32 %v4250, 0.0
    %s4255 = scalar_lea.vmem %s5, 96
    %4256 = vst.msk [vmem:[%s4255] sm:$0xff] %vm1833, %v4251
    %4257 = vst.msk [vmem:[%s4255 + $0x8] sm:$0x1] %vm1835, %v4252
    %4258 = vst.msk [vmem:[%s4255 + $0x10] sm:$0xff] %vm1833, %v4253
    %4259 = vst.msk [vmem:[%s4255 + $0x18] sm:$0x1] %vm1835, %v4254
    // Predicated region
    $region38: #{combined_forward.11} parent=1 // pred_check
      _
    $region39: #{combined_forward.11} parent=1 // pred_check_branch
      %4261 = sbr.rel (0) target = $region41
    $region40: #{combined_forward.11} parent=1 // pred_region
      _
    $region41: #{combined_forward.11} parent=1 // pred_fallthru
      _
    // Predicated region
    $region42: #{combined_forward.11} parent=1 // pred_check
      _
    $region43: #{combined_forward.11} parent=1 // pred_check_branch
      %4263 = sbr.rel (0) target = $region45
    $region44: #{combined_forward.11} parent=1 // pred_region
      _
    $region45: #{combined_forward.11} parent=1 // pred_fallthru
      _
    %4264 = vsyncpa [#allocation5], 1
    %4265 = vsyncpa [#allocation7], 1
    %4266 = vsyncpa [#allocation10], 1

</llo_original>
